<compile_context>
chip_gen: v7x
topology: tpu7x:2x2x1
jax: 0.10.0
libtpu: 0.0.40
codegen_flags: <defaults>
</compile_context>

<pallas_src>
import functools

import jax
import jax.numpy as jnp
import numpy as np
from jax import lax
from jax.experimental import pallas as pl
from jax.experimental.pallas import tpu as pltpu

EPS = 1e-5
COMPUTE_DTYPE = jnp.bfloat16     # MXU operand dtype (accumulation is f32)


# ------------------------- fused BN+ReLU+conv kernel ------------------------- #

def _fused_bn_relu_conv_kernel(*refs, H, W, Ho, Wo, Cin, Cout, stride,
                               with_bias, want_stats):
    """BN affine + ReLU + 3x3 conv (pad=1, stride) for one image, single MXU dot.

    refs layout: inputs (x, scale, shift, w[, bias]) | outputs (out[, sum, sumsq])
                 | scratch (pad, cols)
      x     : (1, H, W, Cin)        raw (unpadded) input image block
      scale : (1, Cin) f32          folded BN affine (batch stats)
      shift : (1, Cin) f32
      w     : (9*Cin, Cout) bf16    conv weight, (kh, kw, cin)-major rows
      bias  : (1, Cout) f32         only if with_bias
      out   : (1, Ho*Wo, Cout)
      sum   : (1, 1, Cout) f32      per-image channel sums of out      (want_stats)
      sumsq : (1, 1, Cout) f32      per-image channel sums of squares  (want_stats)
      pad   : (H+2, W+2, Cin) bf16  VMEM scratch: zero halo + activated interior
      cols  : (Ho, Wo, 9*Cin) bf16  VMEM scratch: im2col buffer
    """
    it = iter(refs)
    x_ref = next(it)
    s_ref = next(it)
    t_ref = next(it)
    w_ref = next(it)
    b_ref = next(it) if with_bias else None
    o_ref = next(it)
    sum_ref = next(it) if want_stats else None
    sumsq_ref = next(it) if want_stats else None
    pad_ref = next(it)
    cols_ref = next(it)

    # --- BN affine + ReLU in f32 on the VPU (v5e has no bf16 VPU); cast to bf16 only
    #     at the scratch store so the MXU sees native bf16 operands. ---
    x = x_ref[0].astype(jnp.float32)                        # (H, W, Cin)
    scale = s_ref[...].reshape(1, 1, Cin)
    shift = t_ref[...].reshape(1, 1, Cin)
    act = jnp.maximum(x * scale + shift, 0.0)

    # --- Structural zero halo: 4 tiny strip stores per step (replaces the per-step
    #     broadcasted_iota interior mask). Re-done every step so correctness does not
    #     depend on program_id==0 when the batch axis is split across TensorCores. ---
    zrow = jnp.zeros((1, W + 2, Cin), pad_ref.dtype)
    zcol = jnp.zeros((H + 2, 1, Cin), pad_ref.dtype)
    pad_ref[0:1, :, :] = zrow
    pad_ref[H + 1:H + 2, :, :] = zrow
    pad_ref[:, 0:1, :] = zcol
    pad_ref[:, W + 1:W + 2, :] = zcol
    pad_ref[1:H + 1, 1:W + 1, :] = act.astype(pad_ref.dtype)

    # --- im2col into a single VMEM buffer (9 window copies), then ONE deep-K dot. ---
    # NOTE: for Cin < 128 (toy demo) the t*Cin lane offsets are not lane-aligned and the
    # Cout-wide output store is masked; production channel counts (>=128) are lane-dense.
    for kh in range(3):
        for kw in range(3):
            t = kh * 3 + kw
            if stride == 1:
                tap = pad_ref[kh:kh + H, kw:kw + W, :]
            else:
                # Strided tap gather: only the Ho*Wo needed outputs are computed.
                tap = pad_ref[pl.ds(kh, Ho, stride=stride),
                              pl.ds(kw, Wo, stride=stride), :]
            cols_ref[:, :, t * Cin:(t + 1) * Cin] = tap

    cols = cols_ref[...].reshape(Ho * Wo, 9 * Cin)           # bf16
    acc = jnp.dot(cols, w_ref[...],                          # single matmul, K = 9*Cin
                  preferred_element_type=jnp.float32)        # (Ho*Wo, Cout) f32

    if with_bias:
        acc = acc + b_ref[...].astype(jnp.float32)

    o_ref[0] = acc.astype(o_ref.dtype)

    if want_stats:
        # Per-image partial batch stats of this stage's output so the next BN needs no
        # extra HBM pass over the intermediate. Computed from the same f32 accumulator
        # that is stored (output dtype is f32 here, so no train-mode mismatch).
        sum_ref[0] = jnp.sum(acc, axis=0, keepdims=True)            # (1, Cout)
        sumsq_ref[0] = jnp.sum(acc * acc, axis=0, keepdims=True)    # (1, Cout)


def fused_bn_relu_conv3x3(x_nhwc, scale, shift, w_oihw, bias=None, *,
                          stride=1, want_stats=False):
    """relu(x*scale + shift) -> conv3x3(pad=1, stride) [+ bias], one image per grid step.

    Returns (out_nhwc, stats); stats = (channel_sum, channel_sumsq) of the output when
    want_stats, else None.
    """
    N, H, W, Cin = x_nhwc.shape
    Cout = w_oihw.shape[0]
    Ho = (H - 1) // stride + 1
    Wo = (W - 1) // stride + 1
    with_bias = bias is not None

    # PyTorch OIHW -> (kh, kw, Cin, Cout) -> (9*Cin, Cout); bf16 MXU operand.
    w = jnp.transpose(w_oihw, (2, 3, 1, 0)).reshape(9 * Cin, Cout).astype(COMPUTE_DTYPE)

    inputs = [
        x_nhwc,                                             # unpadded: no HBM pad pass
        scale.astype(jnp.float32).reshape(1, Cin),
        shift.astype(jnp.float32).reshape(1, Cin),
        w,
    ]
    in_specs = [
        pl.BlockSpec((1, H, W, Cin), lambda n: (n, 0, 0, 0)),
        pl.BlockSpec((1, Cin), lambda n: (0, 0)),
        pl.BlockSpec((1, Cin), lambda n: (0, 0)),
        pl.BlockSpec((9 * Cin, Cout), lambda n: (0, 0)),
    ]
    if with_bias:
        inputs.append(bias.astype(jnp.float32).reshape(1, Cout))
        in_specs.append(pl.BlockSpec((1, Cout), lambda n: (0, 0)))

    out_shapes = [jax.ShapeDtypeStruct((N, Ho * Wo, Cout), x_nhwc.dtype)]
    out_specs = [pl.BlockSpec((1, Ho * Wo, Cout), lambda n: (n, 0, 0))]
    if want_stats:
        out_shapes += [jax.ShapeDtypeStruct((N, 1, Cout), jnp.float32),
                       jax.ShapeDtypeStruct((N, 1, Cout), jnp.float32)]
        out_specs += [pl.BlockSpec((1, 1, Cout), lambda n: (n, 0, 0)),
                      pl.BlockSpec((1, 1, Cout), lambda n: (n, 0, 0))]

    kernel = functools.partial(
        _fused_bn_relu_conv_kernel,
        H=H, W=W, Ho=Ho, Wo=Wo, Cin=Cin, Cout=Cout, stride=stride,
        with_bias=with_bias, want_stats=want_stats)

    # Per-step VMEM footprint estimate; only raise the scoped limit if the 32 MiB
    # default would be exceeded (cap at v7x's 64 MiB physical per-core VMEM).
    bpe_x = np.dtype(x_nhwc.dtype).itemsize
    bpe_c = np.dtype(COMPUTE_DTYPE).itemsize
    vmem_est = (2 * H * W * Cin * bpe_x                  # double-buffered input block
                + 2 * Ho * Wo * Cout * bpe_x             # double-buffered output block
                + 2 * 9 * Cin * Cout * bpe_c             # double-buffered weight
                + (H + 2) * (W + 2) * Cin * bpe_c        # padded-activation scratch
                + 2 * Ho * Wo * 9 * Cin * bpe_c          # im2col scratch (+ value copy)
                + H * W * Cin * 4 + Ho * Wo * Cout * 4)  # f32 act / acc temporaries
    cp_kwargs = dict(dimension_semantics=("parallel",))  # dual-TC / megacore over batch
    if vmem_est > 32 * 1024 * 1024:
        cp_kwargs["vmem_limit_bytes"] = int(min(2 * vmem_est, 64 * 1024 * 1024))

    results = pl.pallas_call(
        kernel,
        out_shape=out_shapes,
        grid_spec=pltpu.PrefetchScalarGridSpec(
            num_scalar_prefetch=0,
            grid=(N,),                                   # one image per grid step
            in_specs=in_specs,
            out_specs=out_specs,
            scratch_shapes=[
                pltpu.VMEM((H + 2, W + 2, Cin), COMPUTE_DTYPE),   # zero-halo padded act
                pltpu.VMEM((Ho, Wo, 9 * Cin), COMPUTE_DTYPE),     # im2col buffer
            ]),
        compiler_params=pltpu.CompilerParams(**cp_kwargs),
    )(*inputs)

    out = results[0].reshape(N, Ho, Wo, Cout)
    stats = None
    if want_stats:
        stats = (jnp.sum(results[1][:, 0, :], axis=0),
                 jnp.sum(results[2][:, 0, :], axis=0))
    return out, stats


# ------------------------------ module forward ------------------------------ #

def _scale_shift_from_sums(s, ss, count, gamma, beta):
    # Training-mode BN folded into per-channel affine: y = x * scale + shift.
    mean = s / count
    var = ss / count - mean * mean           # biased variance (PyTorch train mode)
    scale = gamma / jnp.sqrt(var + EPS)
    shift = beta - mean * scale
    return scale, shift


@functools.partial(jax.jit, static_argnames=("in_planes", "out_planes"))
def preact_block_mr_forward(x_nchw, params, *, in_planes, out_planes):
    stride1 = 1 if in_planes == out_planes else 2

    x = jnp.transpose(x_nchw, (0, 2, 3, 1))              # NCHW -> NHWC
    N, H, W, _ = x.shape

    # bn1 batch stats: one fused sum / sum-of-squares pass over the raw input (XLA).
    cnt1 = N * H * W
    s1 = jnp.sum(x, axis=(0, 1, 2))
    ss1 = jnp.sum(x * x, axis=(0, 1, 2))
    scale1, shift1 = _scale_shift_from_sums(s1, ss1, cnt1,
                                            params["bn1_gamma"], params["bn1_beta"])

    # Stage 1: bn1 + relu + conv1 (no bias). The kernel also emits per-image
    # (sum, sumsq) of its output so bn2 needs no extra HBM pass over y.
    y, (s2, ss2) = fused_bn_relu_conv3x3(
        x, scale1, shift1, params["conv1_w"], bias=None,
        stride=stride1, want_stats=True)

    N2, H2, W2, _ = y.shape
    cnt2 = N2 * H2 * W2
    scale2, shift2 = _scale_shift_from_sums(s2, ss2, cnt2,
                                            params["bn2_gamma"], params["bn2_beta"])

    # Stage 2: bn2 + relu + conv2 (with bias), stride 1.
    out, _ = fused_bn_relu_conv3x3(
        y, scale2, shift2, params["conv2_w"], bias=params["conv2_b"],
        stride=1, want_stats=False)

    return jnp.transpose(out, (0, 3, 1, 2))              # NHWC -> NCHW


# ---------------------------- pure-JAX reference ----------------------------- #

def reference_forward(x, params, in_planes, out_planes):
    def bn_relu_ref(t, g, b):
        m = t.mean(axis=(0, 2, 3), keepdims=True)
        v = ((t - m) ** 2).mean(axis=(0, 2, 3), keepdims=True)
        y = (t - m) / jnp.sqrt(v + EPS) * g.reshape(1, -1, 1, 1) + b.reshape(1, -1, 1, 1)
        return jnp.maximum(y, 0.0)

    stride1 = 1 if in_planes == out_planes else 2
    out = bn_relu_ref(x, params["bn1_gamma"], params["bn1_beta"])
    out = lax.conv_general_dilated(
        out, params["conv1_w"], (stride1, stride1), ((1, 1), (1, 1)),
        dimension_numbers=("NCHW", "OIHW", "NCHW"))
    out = bn_relu_ref(out, params["bn2_gamma"], params["bn2_beta"])
    out = lax.conv_general_dilated(
        out, params["conv2_w"], (1, 1), ((1, 1), (1, 1)),
        dimension_numbers=("NCHW", "OIHW", "NCHW"))
    out = out + params["conv2_b"].reshape(1, -1, 1, 1)
    return out


# ----------------------------------- main ------------------------------------ #

if __name__ == "__main__":
    in_planes, out_planes = 4, 4   # equal planes -> conv1 stride=1 branch
    N, H, W = 2, 16, 16

    key = jax.random.PRNGKey(0)
    keys = jax.random.split(key, 8)

    params = {
        "bn1_gamma": 1.0 + 0.1 * jax.random.normal(keys[0], (in_planes,), jnp.float32),
        "bn1_beta": 0.1 * jax.random.normal(keys[1], (in_planes,), jnp.float32),
        "conv1_w": 0.1 * jax.random.normal(keys[2], (out_planes, in_planes, 3, 3), jnp.float32),
        "bn2_gamma": 1.0 + 0.1 * jax.random.normal(keys[3], (out_planes,), jnp.float32),
        "bn2_beta": 0.1 * jax.random.normal(keys[4], (out_planes,), jnp.float32),
        "conv2_w": 0.1 * jax.random.normal(keys[5], (out_planes, out_planes, 3, 3), jnp.float32),
        "conv2_b": 0.1 * jax.random.normal(keys[6], (out_planes,), jnp.float32),
    }

    x = jax.random.normal(keys[7], (N, in_planes, H, W), jnp.float32)

    out = preact_block_mr_forward(x, params, in_planes=in_planes, out_planes=out_planes)
    out = jax.block_until_ready(out)

    ref = jax.block_until_ready(reference_forward(x, params, in_planes, out_planes))
    assert out.shape == ref.shape, (out.shape, ref.shape)
    # Tolerance reflects the bf16 MXU-operand path (f32 accumulation): ~0.2% per-operand
    # rounding through two conv stages + batch-stat coupling.
    np.testing.assert_allclose(np.asarray(out), np.asarray(ref), rtol=5e-2, atol=5e-2)

    print("KERNEL_OK")
</pallas_src>

<mosaic_0001>
module attributes {stable_mosaic.version = 11 : i64} {
  func.func @_fused_bn_relu_conv_kernel(%arg0: i32, %arg1: memref<1x16x16x4xf32, #tpu.memory_space<vmem>>, %arg2: memref<1x4xf32, #tpu.memory_space<vmem>>, %arg3: memref<1x4xf32, #tpu.memory_space<vmem>>, %arg4: memref<36x4xbf16, #tpu.memory_space<vmem>>, %arg5: memref<1x4xf32, #tpu.memory_space<vmem>>, %arg6: memref<1x256x4xf32, #tpu.memory_space<vmem>>, %arg7: memref<18x18x4xbf16, #tpu.memory_space<vmem>>, %arg8: memref<16x16x36xbf16, #tpu.memory_space<vmem>>) attributes {dimension_semantics = [#tpu.dimension_semantics<parallel>], iteration_bounds = array<i64: 2>, scalar_prefetch = 0 : i64, scratch_operands = 2 : i64, tpu.core_type = #tpu.core_type<tc>, window_params = [{transform_indices = @transform_0, window_bounds = array<i64: 1, 16, 16, 4>}, {pipeline_mode = #tpu.pipeline_mode<synchronous>, transform_indices = @transform_1, window_bounds = array<i64: 1, 4>}, {pipeline_mode = #tpu.pipeline_mode<synchronous>, transform_indices = @transform_2, window_bounds = array<i64: 1, 4>}, {pipeline_mode = #tpu.pipeline_mode<synchronous>, transform_indices = @transform_3, window_bounds = array<i64: 36, 4>}, {pipeline_mode = #tpu.pipeline_mode<synchronous>, transform_indices = @transform_4, window_bounds = array<i64: 1, 4>}, {transform_indices = @transform_5, window_bounds = array<i64: 1, 256, 4>}]} {
    %c0 = arith.constant 0 : index
    %c0_0 = arith.constant 0 : index
    %c0_1 = arith.constant 0 : index
    %c0_2 = arith.constant 0 : index
    %0 = vector.load %arg1[%c0, %c0_0, %c0_1, %c0_2] : memref<1x16x16x4xf32, #tpu.memory_space<vmem>>, vector<1x16x16x4xf32>
    %1 = vector.shape_cast %0 : vector<1x16x16x4xf32> to vector<16x16x4xf32>
    %c0_3 = arith.constant 0 : index
    %c0_4 = arith.constant 0 : index
    %2 = vector.load %arg2[%c0_3, %c0_4] : memref<1x4xf32, #tpu.memory_space<vmem>>, vector<1x4xf32>
    %3 = vector.shape_cast %2 : vector<1x4xf32> to vector<1x1x4xf32>
    %c0_5 = arith.constant 0 : index
    %c0_6 = arith.constant 0 : index
    %4 = vector.load %arg3[%c0_5, %c0_6] : memref<1x4xf32, #tpu.memory_space<vmem>>, vector<1x4xf32>
    %5 = vector.shape_cast %4 : vector<1x4xf32> to vector<1x1x4xf32>
    %6 = vector.broadcast %3 : vector<1x1x4xf32> to vector<16x16x4xf32>
    %7 = arith.mulf %1, %6 : vector<16x16x4xf32>
    %8 = vector.broadcast %5 : vector<1x1x4xf32> to vector<16x16x4xf32>
    %9 = arith.addf %7, %8 : vector<16x16x4xf32>
    %cst = arith.constant 0.000000e+00 : f32
    %10 = vector.broadcast %cst : f32 to vector<16x16x4xf32>
    %11 = arith.maximumf %9, %10 : vector<16x16x4xf32>
    %cst_7 = arith.constant 0.000000e+00 : bf16
    %12 = vector.broadcast %cst_7 : bf16 to vector<1x18x4xbf16>
    %cst_8 = arith.constant 0.000000e+00 : bf16
    %13 = vector.broadcast %cst_8 : bf16 to vector<18x1x4xbf16>
    %c0_9 = arith.constant 0 : index
    %c0_10 = arith.constant 0 : index
    %c0_11 = arith.constant 0 : index
    %14 = vector.load %arg7[%c0_9, %c0_10, %c0_11] : memref<18x18x4xbf16, #tpu.memory_space<vmem>>, vector<1x18x4xbf16>
    tpu.vector_store %arg7[%c0_9, %c0_10, %c0_11], %12 {strides = array<i32>} : memref<18x18x4xbf16, #tpu.memory_space<vmem>>, vector<1x18x4xbf16>,
    %c17 = arith.constant 17 : index
    %c0_12 = arith.constant 0 : index
    %c0_13 = arith.constant 0 : index
    %15 = vector.load %arg7[%c17, %c0_12, %c0_13] : memref<18x18x4xbf16, #tpu.memory_space<vmem>>, vector<1x18x4xbf16>
    tpu.vector_store %arg7[%c17, %c0_12, %c0_13], %12 {strides = array<i32>} : memref<18x18x4xbf16, #tpu.memory_space<vmem>>, vector<1x18x4xbf16>,
    %c0_14 = arith.constant 0 : index
    %c0_15 = arith.constant 0 : index
    %c0_16 = arith.constant 0 : index
    %16 = vector.load %arg7[%c0_14, %c0_15, %c0_16] : memref<18x18x4xbf16, #tpu.memory_space<vmem>>, vector<18x1x4xbf16>
    tpu.vector_store %arg7[%c0_14, %c0_15, %c0_16], %13 {strides = array<i32>} : memref<18x18x4xbf16, #tpu.memory_space<vmem>>, vector<18x1x4xbf16>,
    %c0_17 = arith.constant 0 : index
    %c17_18 = arith.constant 17 : index
    %c0_19 = arith.constant 0 : index
    %17 = vector.load %arg7[%c0_17, %c17_18, %c0_19] : memref<18x18x4xbf16, #tpu.memory_space<vmem>>, vector<18x1x4xbf16>
    tpu.vector_store %arg7[%c0_17, %c17_18, %c0_19], %13 {strides = array<i32>} : memref<18x18x4xbf16, #tpu.memory_space<vmem>>, vector<18x1x4xbf16>,
    %18 = arith.truncf %11 : vector<16x16x4xf32> to vector<16x16x4xbf16>
    %c1 = arith.constant 1 : index
    %c1_20 = arith.constant 1 : index
    %c0_21 = arith.constant 0 : index
    %19 = vector.load %arg7[%c1, %c1_20, %c0_21] : memref<18x18x4xbf16, #tpu.memory_space<vmem>>, vector<16x16x4xbf16>
    tpu.vector_store %arg7[%c1, %c1_20, %c0_21], %18 {strides = array<i32>} : memref<18x18x4xbf16, #tpu.memory_space<vmem>>, vector<16x16x4xbf16>,
    %c0_22 = arith.constant 0 : index
    %c0_23 = arith.constant 0 : index
    %c0_24 = arith.constant 0 : index
    %20 = vector.load %arg7[%c0_22, %c0_23, %c0_24] : memref<18x18x4xbf16, #tpu.memory_space<vmem>>, vector<16x16x4xbf16>
    %c0_25 = arith.constant 0 : index
    %c0_26 = arith.constant 0 : index
    %c0_27 = arith.constant 0 : index
    %21 = vector.load %arg8[%c0_25, %c0_26, %c0_27] : memref<16x16x36xbf16, #tpu.memory_space<vmem>>, vector<16x16x4xbf16>
    tpu.vector_store %arg8[%c0_25, %c0_26, %c0_27], %20 {strides = array<i32>} : memref<16x16x36xbf16, #tpu.memory_space<vmem>>, vector<16x16x4xbf16>,
    %c0_28 = arith.constant 0 : index
    %c1_29 = arith.constant 1 : index
    %c0_30 = arith.constant 0 : index
    %22 = vector.load %arg7[%c0_28, %c1_29, %c0_30] : memref<18x18x4xbf16, #tpu.memory_space<vmem>>, vector<16x16x4xbf16>
    %c0_31 = arith.constant 0 : index
    %c0_32 = arith.constant 0 : index
    %c4 = arith.constant 4 : index
    %23 = vector.load %arg8[%c0_31, %c0_32, %c4] : memref<16x16x36xbf16, #tpu.memory_space<vmem>>, vector<16x16x4xbf16>
    tpu.vector_store %arg8[%c0_31, %c0_32, %c4], %22 {strides = array<i32>} : memref<16x16x36xbf16, #tpu.memory_space<vmem>>, vector<16x16x4xbf16>,
    %c0_33 = arith.constant 0 : index
    %c2 = arith.constant 2 : index
    %c0_34 = arith.constant 0 : index
    %24 = vector.load %arg7[%c0_33, %c2, %c0_34] : memref<18x18x4xbf16, #tpu.memory_space<vmem>>, vector<16x16x4xbf16>
    %c0_35 = arith.constant 0 : index
    %c0_36 = arith.constant 0 : index
    %c8 = arith.constant 8 : index
    %25 = vector.load %arg8[%c0_35, %c0_36, %c8] : memref<16x16x36xbf16, #tpu.memory_space<vmem>>, vector<16x16x4xbf16>
    tpu.vector_store %arg8[%c0_35, %c0_36, %c8], %24 {strides = array<i32>} : memref<16x16x36xbf16, #tpu.memory_space<vmem>>, vector<16x16x4xbf16>,
    %c1_37 = arith.constant 1 : index
    %c0_38 = arith.constant 0 : index
    %c0_39 = arith.constant 0 : index
    %26 = vector.load %arg7[%c1_37, %c0_38, %c0_39] : memref<18x18x4xbf16, #tpu.memory_space<vmem>>, vector<16x16x4xbf16>
    %c0_40 = arith.constant 0 : index
    %c0_41 = arith.constant 0 : index
    %c12 = arith.constant 12 : index
    %27 = vector.load %arg8[%c0_40, %c0_41, %c12] : memref<16x16x36xbf16, #tpu.memory_space<vmem>>, vector<16x16x4xbf16>
    tpu.vector_store %arg8[%c0_40, %c0_41, %c12], %26 {strides = array<i32>} : memref<16x16x36xbf16, #tpu.memory_space<vmem>>, vector<16x16x4xbf16>,
    %c1_42 = arith.constant 1 : index
    %c1_43 = arith.constant 1 : index
    %c0_44 = arith.constant 0 : index
    %28 = vector.load %arg7[%c1_42, %c1_43, %c0_44] : memref<18x18x4xbf16, #tpu.memory_space<vmem>>, vector<16x16x4xbf16>
    %c0_45 = arith.constant 0 : index
    %c0_46 = arith.constant 0 : index
    %c16 = arith.constant 16 : index
    %29 = vector.load %arg8[%c0_45, %c0_46, %c16] : memref<16x16x36xbf16, #tpu.memory_space<vmem>>, vector<16x16x4xbf16>
    tpu.vector_store %arg8[%c0_45, %c0_46, %c16], %28 {strides = array<i32>} : memref<16x16x36xbf16, #tpu.memory_space<vmem>>, vector<16x16x4xbf16>,
    %c1_47 = arith.constant 1 : index
    %c2_48 = arith.constant 2 : index
    %c0_49 = arith.constant 0 : index
    %30 = vector.load %arg7[%c1_47, %c2_48, %c0_49] : memref<18x18x4xbf16, #tpu.memory_space<vmem>>, vector<16x16x4xbf16>
    %c0_50 = arith.constant 0 : index
    %c0_51 = arith.constant 0 : index
    %c20 = arith.constant 20 : index
    %31 = vector.load %arg8[%c0_50, %c0_51, %c20] : memref<16x16x36xbf16, #tpu.memory_space<vmem>>, vector<16x16x4xbf16>
    tpu.vector_store %arg8[%c0_50, %c0_51, %c20], %30 {strides = array<i32>} : memref<16x16x36xbf16, #tpu.memory_space<vmem>>, vector<16x16x4xbf16>,
    %c2_52 = arith.constant 2 : index
    %c0_53 = arith.constant 0 : index
    %c0_54 = arith.constant 0 : index
    %32 = vector.load %arg7[%c2_52, %c0_53, %c0_54] : memref<18x18x4xbf16, #tpu.memory_space<vmem>>, vector<16x16x4xbf16>
    %c0_55 = arith.constant 0 : index
    %c0_56 = arith.constant 0 : index
    %c24 = arith.constant 24 : index
    %33 = vector.load %arg8[%c0_55, %c0_56, %c24] : memref<16x16x36xbf16, #tpu.memory_space<vmem>>, vector<16x16x4xbf16>
    tpu.vector_store %arg8[%c0_55, %c0_56, %c24], %32 {strides = array<i32>} : memref<16x16x36xbf16, #tpu.memory_space<vmem>>, vector<16x16x4xbf16>,
    %c2_57 = arith.constant 2 : index
    %c1_58 = arith.constant 1 : index
    %c0_59 = arith.constant 0 : index
    %34 = vector.load %arg7[%c2_57, %c1_58, %c0_59] : memref<18x18x4xbf16, #tpu.memory_space<vmem>>, vector<16x16x4xbf16>
    %c0_60 = arith.constant 0 : index
    %c0_61 = arith.constant 0 : index
    %c28 = arith.constant 28 : index
    %35 = vector.load %arg8[%c0_60, %c0_61, %c28] : memref<16x16x36xbf16, #tpu.memory_space<vmem>>, vector<16x16x4xbf16>
    tpu.vector_store %arg8[%c0_60, %c0_61, %c28], %34 {strides = array<i32>} : memref<16x16x36xbf16, #tpu.memory_space<vmem>>, vector<16x16x4xbf16>,
    %c2_62 = arith.constant 2 : index
    %c2_63 = arith.constant 2 : index
    %c0_64 = arith.constant 0 : index
    %36 = vector.load %arg7[%c2_62, %c2_63, %c0_64] : memref<18x18x4xbf16, #tpu.memory_space<vmem>>, vector<16x16x4xbf16>
    %c0_65 = arith.constant 0 : index
    %c0_66 = arith.constant 0 : index
    %c32 = arith.constant 32 : index
    %37 = vector.load %arg8[%c0_65, %c0_66, %c32] : memref<16x16x36xbf16, #tpu.memory_space<vmem>>, vector<16x16x4xbf16>
    tpu.vector_store %arg8[%c0_65, %c0_66, %c32], %36 {strides = array<i32>} : memref<16x16x36xbf16, #tpu.memory_space<vmem>>, vector<16x16x4xbf16>,
    %c0_67 = arith.constant 0 : index
    %c0_68 = arith.constant 0 : index
    %c0_69 = arith.constant 0 : index
    %38 = vector.load %arg8[%c0_67, %c0_68, %c0_69] : memref<16x16x36xbf16, #tpu.memory_space<vmem>>, vector<16x16x36xbf16>
    %39 = vector.shape_cast %38 : vector<16x16x36xbf16> to vector<256x36xbf16>
    %c0_70 = arith.constant 0 : index
    %c0_71 = arith.constant 0 : index
    %40 = vector.load %arg4[%c0_70, %c0_71] : memref<36x4xbf16, #tpu.memory_space<vmem>>, vector<36x4xbf16>
    %cst_72 = arith.constant dense<0.000000e+00> : vector<256x4xf32>
    %41 = tpu.matmul %39, %40, %cst_72 {dimension_numbers = #tpu.dot_dimension_numbers<[1], [0], [0], [1], [0, 0, 1, 1], [], []>} : vector<256x36xbf16>, vector<36x4xbf16>, vector<256x4xf32> -> vector<256x4xf32>
    %c0_73 = arith.constant 0 : index
    %c0_74 = arith.constant 0 : index
    %42 = vector.load %arg5[%c0_73, %c0_74] : memref<1x4xf32, #tpu.memory_space<vmem>>, vector<1x4xf32>
    %43 = vector.broadcast %42 : vector<1x4xf32> to vector<256x4xf32>
    %44 = arith.addf %41, %43 : vector<256x4xf32>
    %c0_75 = arith.constant 0 : index
    %c0_76 = arith.constant 0 : index
    %c0_77 = arith.constant 0 : index
    %45 = vector.load %arg6[%c0_75, %c0_76, %c0_77] : memref<1x256x4xf32, #tpu.memory_space<vmem>>, vector<1x256x4xf32>
    %46 = vector.shape_cast %45 : vector<1x256x4xf32> to vector<256x4xf32>
    %47 = vector.shape_cast %44 : vector<256x4xf32> to vector<1x256x4xf32>
    tpu.vector_store %arg6[%c0_75, %c0_76, %c0_77], %47 {strides = array<i32>} : memref<1x256x4xf32, #tpu.memory_space<vmem>>, vector<1x256x4xf32>,
    return
  }
  func.func @transform_0(%arg0: i32) -> (i32, i32, i32, i32) {
    %c0_i32 = arith.constant 0 : i32
    %c0_i32_0 = arith.constant 0 : i32
    %c0_i32_1 = arith.constant 0 : i32
    %c0_i32_2 = arith.constant 0 : i32
    return %arg0, %c0_i32, %c0_i32_0, %c0_i32_1 : i32, i32, i32, i32
  }
  func.func @transform_1(%arg0: i32) -> (i32, i32) {
    %c0_i32 = arith.constant 0 : i32
    %c0_i32_0 = arith.constant 0 : i32
    %c0_i32_1 = arith.constant 0 : i32
    return %c0_i32, %c0_i32_0 : i32, i32
  }
  func.func @transform_2(%arg0: i32) -> (i32, i32) {
    %c0_i32 = arith.constant 0 : i32
    %c0_i32_0 = arith.constant 0 : i32
    %c0_i32_1 = arith.constant 0 : i32
    return %c0_i32, %c0_i32_0 : i32, i32
  }
  func.func @transform_3(%arg0: i32) -> (i32, i32) {
    %c0_i32 = arith.constant 0 : i32
    %c0_i32_0 = arith.constant 0 : i32
    %c0_i32_1 = arith.constant 0 : i32
    return %c0_i32, %c0_i32_0 : i32, i32
  }
  func.func @transform_4(%arg0: i32) -> (i32, i32) {
    %c0_i32 = arith.constant 0 : i32
    %c0_i32_0 = arith.constant 0 : i32
    %c0_i32_1 = arith.constant 0 : i32
    return %c0_i32, %c0_i32_0 : i32, i32
  }
  func.func @transform_5(%arg0: i32) -> (i32, i32, i32) {
    %c0_i32 = arith.constant 0 : i32
    %c0_i32_0 = arith.constant 0 : i32
    %c0_i32_1 = arith.constant 0 : i32
    return %arg0, %c0_i32, %c0_i32_0 : i32, i32, i32
  }
}

module attributes {stable_mosaic.version = 11 : i64} {
  func.func @_fused_bn_relu_conv_kernel(%arg0: i32, %arg1: memref<1x16x16x4xf32, #tpu.memory_space<vmem>>, %arg2: memref<1x4xf32, #tpu.memory_space<vmem>>, %arg3: memref<1x4xf32, #tpu.memory_space<vmem>>, %arg4: memref<36x4xbf16, #tpu.memory_space<vmem>>, %arg5: memref<1x256x4xf32, #tpu.memory_space<vmem>>, %arg6: memref<1x1x4xf32, #tpu.memory_space<vmem>>, %arg7: memref<1x1x4xf32, #tpu.memory_space<vmem>>, %arg8: memref<18x18x4xbf16, #tpu.memory_space<vmem>>, %arg9: memref<16x16x36xbf16, #tpu.memory_space<vmem>>) attributes {dimension_semantics = [#tpu.dimension_semantics<parallel>], iteration_bounds = array<i64: 2>, scalar_prefetch = 0 : i64, scratch_operands = 2 : i64, tpu.core_type = #tpu.core_type<tc>, window_params = [{transform_indices = @transform_0, window_bounds = array<i64: 1, 16, 16, 4>}, {pipeline_mode = #tpu.pipeline_mode<synchronous>, transform_indices = @transform_1, window_bounds = array<i64: 1, 4>}, {pipeline_mode = #tpu.pipeline_mode<synchronous>, transform_indices = @transform_2, window_bounds = array<i64: 1, 4>}, {pipeline_mode = #tpu.pipeline_mode<synchronous>, transform_indices = @transform_3, window_bounds = array<i64: 36, 4>}, {transform_indices = @transform_4, window_bounds = array<i64: 1, 256, 4>}, {transform_indices = @transform_5, window_bounds = array<i64: 1, 1, 4>}, {transform_indices = @transform_6, window_bounds = array<i64: 1, 1, 4>}]} {
    %c0 = arith.constant 0 : index
    %c0_0 = arith.constant 0 : index
    %c0_1 = arith.constant 0 : index
    %c0_2 = arith.constant 0 : index
    %0 = vector.load %arg1[%c0, %c0_0, %c0_1, %c0_2] : memref<1x16x16x4xf32, #tpu.memory_space<vmem>>, vector<1x16x16x4xf32>
    %1 = vector.shape_cast %0 : vector<1x16x16x4xf32> to vector<16x16x4xf32>
    %c0_3 = arith.constant 0 : index
    %c0_4 = arith.constant 0 : index
    %2 = vector.load %arg2[%c0_3, %c0_4] : memref<1x4xf32, #tpu.memory_space<vmem>>, vector<1x4xf32>
    %3 = vector.shape_cast %2 : vector<1x4xf32> to vector<1x1x4xf32>
    %c0_5 = arith.constant 0 : index
    %c0_6 = arith.constant 0 : index
    %4 = vector.load %arg3[%c0_5, %c0_6] : memref<1x4xf32, #tpu.memory_space<vmem>>, vector<1x4xf32>
    %5 = vector.shape_cast %4 : vector<1x4xf32> to vector<1x1x4xf32>
    %6 = vector.broadcast %3 : vector<1x1x4xf32> to vector<16x16x4xf32>
    %7 = arith.mulf %1, %6 : vector<16x16x4xf32>
    %8 = vector.broadcast %5 : vector<1x1x4xf32> to vector<16x16x4xf32>
    %9 = arith.addf %7, %8 : vector<16x16x4xf32>
    %cst = arith.constant 0.000000e+00 : f32
    %10 = vector.broadcast %cst : f32 to vector<16x16x4xf32>
    %11 = arith.maximumf %9, %10 : vector<16x16x4xf32>
    %cst_7 = arith.constant 0.000000e+00 : bf16
    %12 = vector.broadcast %cst_7 : bf16 to vector<1x18x4xbf16>
    %cst_8 = arith.constant 0.000000e+00 : bf16
    %13 = vector.broadcast %cst_8 : bf16 to vector<18x1x4xbf16>
    %c0_9 = arith.constant 0 : index
    %c0_10 = arith.constant 0 : index
    %c0_11 = arith.constant 0 : index
    %14 = vector.load %arg8[%c0_9, %c0_10, %c0_11] : memref<18x18x4xbf16, #tpu.memory_space<vmem>>, vector<1x18x4xbf16>
    tpu.vector_store %arg8[%c0_9, %c0_10, %c0_11], %12 {strides = array<i32>} : memref<18x18x4xbf16, #tpu.memory_space<vmem>>, vector<1x18x4xbf16>,
    %c17 = arith.constant 17 : index
    %c0_12 = arith.constant 0 : index
    %c0_13 = arith.constant 0 : index
    %15 = vector.load %arg8[%c17, %c0_12, %c0_13] : memref<18x18x4xbf16, #tpu.memory_space<vmem>>, vector<1x18x4xbf16>
    tpu.vector_store %arg8[%c17, %c0_12, %c0_13], %12 {strides = array<i32>} : memref<18x18x4xbf16, #tpu.memory_space<vmem>>, vector<1x18x4xbf16>,
    %c0_14 = arith.constant 0 : index
    %c0_15 = arith.constant 0 : index
    %c0_16 = arith.constant 0 : index
    %16 = vector.load %arg8[%c0_14, %c0_15, %c0_16] : memref<18x18x4xbf16, #tpu.memory_space<vmem>>, vector<18x1x4xbf16>
    tpu.vector_store %arg8[%c0_14, %c0_15, %c0_16], %13 {strides = array<i32>} : memref<18x18x4xbf16, #tpu.memory_space<vmem>>, vector<18x1x4xbf16>,
    %c0_17 = arith.constant 0 : index
    %c17_18 = arith.constant 17 : index
    %c0_19 = arith.constant 0 : index
    %17 = vector.load %arg8[%c0_17, %c17_18, %c0_19] : memref<18x18x4xbf16, #tpu.memory_space<vmem>>, vector<18x1x4xbf16>
    tpu.vector_store %arg8[%c0_17, %c17_18, %c0_19], %13 {strides = array<i32>} : memref<18x18x4xbf16, #tpu.memory_space<vmem>>, vector<18x1x4xbf16>,
    %18 = arith.truncf %11 : vector<16x16x4xf32> to vector<16x16x4xbf16>
    %c1 = arith.constant 1 : index
    %c1_20 = arith.constant 1 : index
    %c0_21 = arith.constant 0 : index
    %19 = vector.load %arg8[%c1, %c1_20, %c0_21] : memref<18x18x4xbf16, #tpu.memory_space<vmem>>, vector<16x16x4xbf16>
    tpu.vector_store %arg8[%c1, %c1_20, %c0_21], %18 {strides = array<i32>} : memref<18x18x4xbf16, #tpu.memory_space<vmem>>, vector<16x16x4xbf16>,
    %c0_22 = arith.constant 0 : index
    %c0_23 = arith.constant 0 : index
    %c0_24 = arith.constant 0 : index
    %20 = vector.load %arg8[%c0_22, %c0_23, %c0_24] : memref<18x18x4xbf16, #tpu.memory_space<vmem>>, vector<16x16x4xbf16>
    %c0_25 = arith.constant 0 : index
    %c0_26 = arith.constant 0 : index
    %c0_27 = arith.constant 0 : index
    %21 = vector.load %arg9[%c0_25, %c0_26, %c0_27] : memref<16x16x36xbf16, #tpu.memory_space<vmem>>, vector<16x16x4xbf16>
    tpu.vector_store %arg9[%c0_25, %c0_26, %c0_27], %20 {strides = array<i32>} : memref<16x16x36xbf16, #tpu.memory_space<vmem>>, vector<16x16x4xbf16>,
    %c0_28 = arith.constant 0 : index
    %c1_29 = arith.constant 1 : index
    %c0_30 = arith.constant 0 : index
    %22 = vector.load %arg8[%c0_28, %c1_29, %c0_30] : memref<18x18x4xbf16, #tpu.memory_space<vmem>>, vector<16x16x4xbf16>
    %c0_31 = arith.constant 0 : index
    %c0_32 = arith.constant 0 : index
    %c4 = arith.constant 4 : index
    %23 = vector.load %arg9[%c0_31, %c0_32, %c4] : memref<16x16x36xbf16, #tpu.memory_space<vmem>>, vector<16x16x4xbf16>
    tpu.vector_store %arg9[%c0_31, %c0_32, %c4], %22 {strides = array<i32>} : memref<16x16x36xbf16, #tpu.memory_space<vmem>>, vector<16x16x4xbf16>,
    %c0_33 = arith.constant 0 : index
    %c2 = arith.constant 2 : index
    %c0_34 = arith.constant 0 : index
    %24 = vector.load %arg8[%c0_33, %c2, %c0_34] : memref<18x18x4xbf16, #tpu.memory_space<vmem>>, vector<16x16x4xbf16>
    %c0_35 = arith.constant 0 : index
    %c0_36 = arith.constant 0 : index
    %c8 = arith.constant 8 : index
    %25 = vector.load %arg9[%c0_35, %c0_36, %c8] : memref<16x16x36xbf16, #tpu.memory_space<vmem>>, vector<16x16x4xbf16>
    tpu.vector_store %arg9[%c0_35, %c0_36, %c8], %24 {strides = array<i32>} : memref<16x16x36xbf16, #tpu.memory_space<vmem>>, vector<16x16x4xbf16>,
    %c1_37 = arith.constant 1 : index
    %c0_38 = arith.constant 0 : index
    %c0_39 = arith.constant 0 : index
    %26 = vector.load %arg8[%c1_37, %c0_38, %c0_39] : memref<18x18x4xbf16, #tpu.memory_space<vmem>>, vector<16x16x4xbf16>
    %c0_40 = arith.constant 0 : index
    %c0_41 = arith.constant 0 : index
    %c12 = arith.constant 12 : index
    %27 = vector.load %arg9[%c0_40, %c0_41, %c12] : memref<16x16x36xbf16, #tpu.memory_space<vmem>>, vector<16x16x4xbf16>
    tpu.vector_store %arg9[%c0_40, %c0_41, %c12], %26 {strides = array<i32>} : memref<16x16x36xbf16, #tpu.memory_space<vmem>>, vector<16x16x4xbf16>,
    %c1_42 = arith.constant 1 : index
    %c1_43 = arith.constant 1 : index
    %c0_44 = arith.constant 0 : index
    %28 = vector.load %arg8[%c1_42, %c1_43, %c0_44] : memref<18x18x4xbf16, #tpu.memory_space<vmem>>, vector<16x16x4xbf16>
    %c0_45 = arith.constant 0 : index
    %c0_46 = arith.constant 0 : index
    %c16 = arith.constant 16 : index
    %29 = vector.load %arg9[%c0_45, %c0_46, %c16] : memref<16x16x36xbf16, #tpu.memory_space<vmem>>, vector<16x16x4xbf16>
    tpu.vector_store %arg9[%c0_45, %c0_46, %c16], %28 {strides = array<i32>} : memref<16x16x36xbf16, #tpu.memory_space<vmem>>, vector<16x16x4xbf16>,
    %c1_47 = arith.constant 1 : index
    %c2_48 = arith.constant 2 : index
    %c0_49 = arith.constant 0 : index
    %30 = vector.load %arg8[%c1_47, %c2_48, %c0_49] : memref<18x18x4xbf16, #tpu.memory_space<vmem>>, vector<16x16x4xbf16>
    %c0_50 = arith.constant 0 : index
    %c0_51 = arith.constant 0 : index
    %c20 = arith.constant 20 : index
    %31 = vector.load %arg9[%c0_50, %c0_51, %c20] : memref<16x16x36xbf16, #tpu.memory_space<vmem>>, vector<16x16x4xbf16>
    tpu.vector_store %arg9[%c0_50, %c0_51, %c20], %30 {strides = array<i32>} : memref<16x16x36xbf16, #tpu.memory_space<vmem>>, vector<16x16x4xbf16>,
    %c2_52 = arith.constant 2 : index
    %c0_53 = arith.constant 0 : index
    %c0_54 = arith.constant 0 : index
    %32 = vector.load %arg8[%c2_52, %c0_53, %c0_54] : memref<18x18x4xbf16, #tpu.memory_space<vmem>>, vector<16x16x4xbf16>
    %c0_55 = arith.constant 0 : index
    %c0_56 = arith.constant 0 : index
    %c24 = arith.constant 24 : index
    %33 = vector.load %arg9[%c0_55, %c0_56, %c24] : memref<16x16x36xbf16, #tpu.memory_space<vmem>>, vector<16x16x4xbf16>
    tpu.vector_store %arg9[%c0_55, %c0_56, %c24], %32 {strides = array<i32>} : memref<16x16x36xbf16, #tpu.memory_space<vmem>>, vector<16x16x4xbf16>,
    %c2_57 = arith.constant 2 : index
    %c1_58 = arith.constant 1 : index
    %c0_59 = arith.constant 0 : index
    %34 = vector.load %arg8[%c2_57, %c1_58, %c0_59] : memref<18x18x4xbf16, #tpu.memory_space<vmem>>, vector<16x16x4xbf16>
    %c0_60 = arith.constant 0 : index
    %c0_61 = arith.constant 0 : index
    %c28 = arith.constant 28 : index
    %35 = vector.load %arg9[%c0_60, %c0_61, %c28] : memref<16x16x36xbf16, #tpu.memory_space<vmem>>, vector<16x16x4xbf16>
    tpu.vector_store %arg9[%c0_60, %c0_61, %c28], %34 {strides = array<i32>} : memref<16x16x36xbf16, #tpu.memory_space<vmem>>, vector<16x16x4xbf16>,
    %c2_62 = arith.constant 2 : index
    %c2_63 = arith.constant 2 : index
    %c0_64 = arith.constant 0 : index
    %36 = vector.load %arg8[%c2_62, %c2_63, %c0_64] : memref<18x18x4xbf16, #tpu.memory_space<vmem>>, vector<16x16x4xbf16>
    %c0_65 = arith.constant 0 : index
    %c0_66 = arith.constant 0 : index
    %c32 = arith.constant 32 : index
    %37 = vector.load %arg9[%c0_65, %c0_66, %c32] : memref<16x16x36xbf16, #tpu.memory_space<vmem>>, vector<16x16x4xbf16>
    tpu.vector_store %arg9[%c0_65, %c0_66, %c32], %36 {strides = array<i32>} : memref<16x16x36xbf16, #tpu.memory_space<vmem>>, vector<16x16x4xbf16>,
    %c0_67 = arith.constant 0 : index
    %c0_68 = arith.constant 0 : index
    %c0_69 = arith.constant 0 : index
    %38 = vector.load %arg9[%c0_67, %c0_68, %c0_69] : memref<16x16x36xbf16, #tpu.memory_space<vmem>>, vector<16x16x36xbf16>
    %39 = vector.shape_cast %38 : vector<16x16x36xbf16> to vector<256x36xbf16>
    %c0_70 = arith.constant 0 : index
    %c0_71 = arith.constant 0 : index
    %40 = vector.load %arg4[%c0_70, %c0_71] : memref<36x4xbf16, #tpu.memory_space<vmem>>, vector<36x4xbf16>
    %cst_72 = arith.constant dense<0.000000e+00> : vector<256x4xf32>
    %41 = tpu.matmul %39, %40, %cst_72 {dimension_numbers = #tpu.dot_dimension_numbers<[1], [0], [0], [1], [0, 0, 1, 1], [], []>} : vector<256x36xbf16>, vector<36x4xbf16>, vector<256x4xf32> -> vector<256x4xf32>
    %c0_73 = arith.constant 0 : index
    %c0_74 = arith.constant 0 : index
    %c0_75 = arith.constant 0 : index
    %42 = vector.load %arg5[%c0_73, %c0_74, %c0_75] : memref<1x256x4xf32, #tpu.memory_space<vmem>>, vector<1x256x4xf32>
    %43 = vector.shape_cast %42 : vector<1x256x4xf32> to vector<256x4xf32>
    %44 = vector.shape_cast %41 : vector<256x4xf32> to vector<1x256x4xf32>
    tpu.vector_store %arg5[%c0_73, %c0_74, %c0_75], %44 {strides = array<i32>} : memref<1x256x4xf32, #tpu.memory_space<vmem>>, vector<1x256x4xf32>,
    %cst_76 = arith.constant dense<0.000000e+00> : vector<4xf32>
    %45 = vector.multi_reduction <add>, %41, %cst_76 [0] : vector<256x4xf32> to vector<4xf32>
    %46 = vector.shape_cast %45 : vector<4xf32> to vector<1x4xf32>
    %c0_77 = arith.constant 0 : index
    %c0_78 = arith.constant 0 : index
    %c0_79 = arith.constant 0 : index
    %47 = vector.load %arg6[%c0_77, %c0_78, %c0_79] : memref<1x1x4xf32, #tpu.memory_space<vmem>>, vector<1x1x4xf32>
    %48 = vector.shape_cast %47 : vector<1x1x4xf32> to vector<1x4xf32>
    %49 = vector.shape_cast %46 : vector<1x4xf32> to vector<1x1x4xf32>
    tpu.vector_store %arg6[%c0_77, %c0_78, %c0_79], %49 {strides = array<i32>} : memref<1x1x4xf32, #tpu.memory_space<vmem>>, vector<1x1x4xf32>,
    %50 = arith.mulf %41, %41 : vector<256x4xf32>
    %cst_80 = arith.constant dense<0.000000e+00> : vector<4xf32>
    %51 = vector.multi_reduction <add>, %50, %cst_80 [0] : vector<256x4xf32> to vector<4xf32>
    %52 = vector.shape_cast %51 : vector<4xf32> to vector<1x4xf32>
    %c0_81 = arith.constant 0 : index
    %c0_82 = arith.constant 0 : index
    %c0_83 = arith.constant 0 : index
    %53 = vector.load %arg7[%c0_81, %c0_82, %c0_83] : memref<1x1x4xf32, #tpu.memory_space<vmem>>, vector<1x1x4xf32>
    %54 = vector.shape_cast %53 : vector<1x1x4xf32> to vector<1x4xf32>
    %55 = vector.shape_cast %52 : vector<1x4xf32> to vector<1x1x4xf32>
    tpu.vector_store %arg7[%c0_81, %c0_82, %c0_83], %55 {strides = array<i32>} : memref<1x1x4xf32, #tpu.memory_space<vmem>>, vector<1x1x4xf32>,
    return
  }
  func.func @transform_0(%arg0: i32) -> (i32, i32, i32, i32) {
    %c0_i32 = arith.constant 0 : i32
    %c0_i32_0 = arith.constant 0 : i32
    %c0_i32_1 = arith.constant 0 : i32
    %c0_i32_2 = arith.constant 0 : i32
    return %arg0, %c0_i32, %c0_i32_0, %c0_i32_1 : i32, i32, i32, i32
  }
  func.func @transform_1(%arg0: i32) -> (i32, i32) {
    %c0_i32 = arith.constant 0 : i32
    %c0_i32_0 = arith.constant 0 : i32
    %c0_i32_1 = arith.constant 0 : i32
    return %c0_i32, %c0_i32_0 : i32, i32
  }
  func.func @transform_2(%arg0: i32) -> (i32, i32) {
    %c0_i32 = arith.constant 0 : i32
    %c0_i32_0 = arith.constant 0 : i32
    %c0_i32_1 = arith.constant 0 : i32
    return %c0_i32, %c0_i32_0 : i32, i32
  }
  func.func @transform_3(%arg0: i32) -> (i32, i32) {
    %c0_i32 = arith.constant 0 : i32
    %c0_i32_0 = arith.constant 0 : i32
    %c0_i32_1 = arith.constant 0 : i32
    return %c0_i32, %c0_i32_0 : i32, i32
  }
  func.func @transform_4(%arg0: i32) -> (i32, i32, i32) {
    %c0_i32 = arith.constant 0 : i32
    %c0_i32_0 = arith.constant 0 : i32
    %c0_i32_1 = arith.constant 0 : i32
    return %arg0, %c0_i32, %c0_i32_0 : i32, i32, i32
  }
  func.func @transform_5(%arg0: i32) -> (i32, i32, i32) {
    %c0_i32 = arith.constant 0 : i32
    %c0_i32_0 = arith.constant 0 : i32
    %c0_i32_1 = arith.constant 0 : i32
    return %arg0, %c0_i32, %c0_i32_0 : i32, i32, i32
  }
  func.func @transform_6(%arg0: i32) -> (i32, i32, i32) {
    %c0_i32 = arith.constant 0 : i32
    %c0_i32_0 = arith.constant 0 : i32
    %c0_i32_1 = arith.constant 0 : i32
    return %arg0, %c0_i32, %c0_i32_0 : i32, i32, i32
  }
}

</mosaic_0001>

<llo_original>
// kernel: preact_block_mr_forward.3
$region0: #{preact_block_mr_forward.3}
  #allocation0 [shape = 'u32[]', space=smem, size = 0x4, offset = 0x4, fixed_abs, tag = 'smem constant byte address 0x4 - core index']
  #allocation1 [shape = 'u32[144,128]{1,0:T(1,128)}', space=vmem, size = 0x12000, scoped, tag = 'internal scratch']
  #allocation2 [shape = 'bf16[18,18,4]{2,1,0:T(8,128)(2,1)}', space=vmem, size = 0x1b000, scoped, tag = 'scratch operand']
  #allocation3 [shape = 'bf16[16,16,36]{2,1,0:T(16,128)(2,1)}', space=vmem, size = 0x10000, scoped, tag = 'scratch operand']
  %s0 = inlined_call_operand.vmem [shape: f32[2,16,16,4], index: 0, kind: input, shape index: {}]
  %s1 = inlined_call_operand.vmem [shape: f32[1,4], index: 1, kind: input, shape index: {}]
  %s2 = inlined_call_operand.vmem [shape: f32[1,4], index: 2, kind: input, shape index: {}]
  %s3 = inlined_call_operand.vmem [shape: bf16[36,4], index: 3, kind: input, shape index: {}]
  %s4 = inlined_call_operand.vmem [shape: f32[1,4], index: 4, kind: input, shape index: {}]
  %s5 = inlined_call_operand.vmem [shape: f32[2,256,4], index: 5, kind: output, shape index: {}]
  %s6 = sld [smem:[#allocation0]]
  $region53: #{preact_block_mr_forward.3} parent=0
    _
  %s8 = ssub.s32 1, %s6
  %s9 = scalar_select 0, %s8, %s6
  loop: start=0, step=1, limit=4
  $region2: #{preact_block_mr_forward.3} parent=0 // loop_pre_header
    _
  $region3: #{preact_block_mr_forward.3} parent=0 // loop_header
    %s11 = sphi 0, %s15
    %p12 = scmp.ge.s32.totalorder %s11, 4
    %s21 = sphi 0, %s23
    %s24 = sphi 0, %s21
    %s25 = sphi 0, %s24
    %s41 = sphi 0, %s25
    %s45 = sphi 0, %s45
    %s47 = sphi 0, %s45
    %s48 = sphi 0, %s47
    %s62 = sphi 0, %s48
    %s66 = sphi 0, %s66
    %s68 = sphi 0, %s66
    %s69 = sphi 0, %s68
    %s83 = sphi 0, %s69
    %s87 = sphi 0, %s87
    %s89 = sphi 0, %s87
    %s90 = sphi 0, %s89
    %s104 = sphi 0, %s90
    %s108 = sphi 0, %s108
    %s110 = sphi 0, %s108
    %s111 = sphi 0, %s110
    %s125 = sphi 0, %s111
    %s131 = sphi 0, %s133
    %s134 = sphi 0, %s131
    %s135 = sphi 0, %s134
    %s151 = sphi 0, %s135
  $region4: #{preact_block_mr_forward.3} parent=0 // loop_header_branch
    %14 = sbr.rel (%p12) target = $region8
  $region5: #{preact_block_mr_forward.3} parent=0 // loop_body
    %s16 = ssub.s32 %s11, 1
    %s17 = ssub.s32 %s11, 2
    %s18 = sadd.s32 %s11, 1
    %s19 = ssub.s32 %s11, %s18
    %p20 = scmp.eq.s32.totalorder %s19, 0
    %s22 = sadd.s32 %s21, 1
    %s23 = scalar_select %p20, %s21, %s22
    %p26 = pneg %p20
    %p27 = scmp.eq.s32.totalorder %s11, 1
    %p28 = por %p26, %p27
    %p29 = scmp.ne.s32.totalorder %s21, %s24
    %p30 = scmp.eq.s32.totalorder %s11, 0
    %p31 = por %p29, %p30
    %p32 = scmp.ne.s32.totalorder %s21, %s24
    %p33 = scmp.eq.s32.totalorder %s16, 1
    %p34 = por %p32, %p33
    %p35 = scmp.ne.s32.totalorder %s24, %s25
    %p36 = scmp.eq.s32.totalorder %s16, 0
    %p37 = por %p35, %p36
    %p38 = scmp.ne.s32.totalorder %s24, %s25
    %p39 = scmp.eq.s32.totalorder %s17, 1
    %p40 = por %p38, %p39
    %p42 = scmp.ne.s32.totalorder %s25, %s41
    %p43 = scmp.eq.s32.totalorder %s17, 0
    %p44 = por %p42, %p43
    %s46 = sadd.s32 %s45, 1
    %p49 = scmp.eq.s32.totalorder %s11, 1
    %p50 = scmp.ne.s32.totalorder %s45, %s47
    %p51 = scmp.eq.s32.totalorder %s11, 0
    %p52 = por %p50, %p51
    %p53 = scmp.ne.s32.totalorder %s45, %s47
    %p54 = scmp.eq.s32.totalorder %s16, 1
    %p55 = por %p53, %p54
    %p56 = scmp.ne.s32.totalorder %s47, %s48
    %p57 = scmp.eq.s32.totalorder %s16, 0
    %p58 = por %p56, %p57
    %p59 = scmp.ne.s32.totalorder %s47, %s48
    %p60 = scmp.eq.s32.totalorder %s17, 1
    %p61 = por %p59, %p60
    %p63 = scmp.ne.s32.totalorder %s48, %s62
    %p64 = scmp.eq.s32.totalorder %s17, 0
    %p65 = por %p63, %p64
    %s67 = sadd.s32 %s66, 1
    %p70 = scmp.eq.s32.totalorder %s11, 1
    %p71 = scmp.ne.s32.totalorder %s66, %s68
    %p72 = scmp.eq.s32.totalorder %s11, 0
    %p73 = por %p71, %p72
    %p74 = scmp.ne.s32.totalorder %s66, %s68
    %p75 = scmp.eq.s32.totalorder %s16, 1
    %p76 = por %p74, %p75
    %p77 = scmp.ne.s32.totalorder %s68, %s69
    %p78 = scmp.eq.s32.totalorder %s16, 0
    %p79 = por %p77, %p78
    %p80 = scmp.ne.s32.totalorder %s68, %s69
    %p81 = scmp.eq.s32.totalorder %s17, 1
    %p82 = por %p80, %p81
    %p84 = scmp.ne.s32.totalorder %s69, %s83
    %p85 = scmp.eq.s32.totalorder %s17, 0
    %p86 = por %p84, %p85
    %s88 = sadd.s32 %s87, 1
    %p91 = scmp.eq.s32.totalorder %s11, 1
    %p92 = scmp.ne.s32.totalorder %s87, %s89
    %p93 = scmp.eq.s32.totalorder %s11, 0
    %p94 = por %p92, %p93
    %p95 = scmp.ne.s32.totalorder %s87, %s89
    %p96 = scmp.eq.s32.totalorder %s16, 1
    %p97 = por %p95, %p96
    %p98 = scmp.ne.s32.totalorder %s89, %s90
    %p99 = scmp.eq.s32.totalorder %s16, 0
    %p100 = por %p98, %p99
    %p101 = scmp.ne.s32.totalorder %s89, %s90
    %p102 = scmp.eq.s32.totalorder %s17, 1
    %p103 = por %p101, %p102
    %p105 = scmp.ne.s32.totalorder %s90, %s104
    %p106 = scmp.eq.s32.totalorder %s17, 0
    %p107 = por %p105, %p106
    %s109 = sadd.s32 %s108, 1
    %p112 = scmp.eq.s32.totalorder %s11, 1
    %p113 = scmp.ne.s32.totalorder %s108, %s110
    %p114 = scmp.eq.s32.totalorder %s11, 0
    %p115 = por %p113, %p114
    %p116 = scmp.ne.s32.totalorder %s108, %s110
    %p117 = scmp.eq.s32.totalorder %s16, 1
    %p118 = por %p116, %p117
    %p119 = scmp.ne.s32.totalorder %s110, %s111
    %p120 = scmp.eq.s32.totalorder %s16, 0
    %p121 = por %p119, %p120
    %p122 = scmp.ne.s32.totalorder %s110, %s111
    %p123 = scmp.eq.s32.totalorder %s17, 1
    %p124 = por %p122, %p123
    %p126 = scmp.ne.s32.totalorder %s111, %s125
    %p127 = scmp.eq.s32.totalorder %s17, 0
    %p128 = por %p126, %p127
    %s129 = ssub.s32 %s11, %s18
    %p130 = scmp.eq.s32.totalorder %s129, 0
    %s132 = sadd.s32 %s131, 1
    %s133 = scalar_select %p130, %s131, %s132
    %p136 = pneg %p130
    %p137 = scmp.eq.s32.totalorder %s11, 1
    %p138 = por %p136, %p137
    %p139 = scmp.ne.s32.totalorder %s131, %s134
    %p140 = scmp.eq.s32.totalorder %s11, 0
    %p141 = por %p139, %p140
    %p142 = scmp.ne.s32.totalorder %s131, %s134
    %p143 = scmp.eq.s32.totalorder %s16, 1
    %p144 = por %p142, %p143
    %p145 = scmp.ne.s32.totalorder %s134, %s135
    %p146 = scmp.eq.s32.totalorder %s16, 0
    %p147 = por %p145, %p146
    %p148 = scmp.ne.s32.totalorder %s134, %s135
    %p149 = scmp.eq.s32.totalorder %s17, 1
    %p150 = por %p148, %p149
    %p152 = scmp.ne.s32.totalorder %s135, %s151
    %p153 = scmp.eq.s32.totalorder %s17, 0
    %p154 = por %p152, %p153
    %p155 = scmp.le.s32.totalorder 1, %s11
    %p156 = scmp.lt.s32.totalorder %s11, 3
    %p157 = pnand %p155, %p156
    %p158 = pneg %p157
    // Predicated region
    $region9: #{preact_block_mr_forward.3} parent=5 // pred_check
      _
    $region10: #{preact_block_mr_forward.3} parent=5 // pred_check_branch
      %160 = sbr.rel (%p157) target = $region12
    $region11: #{preact_block_mr_forward.3} parent=5 // pred_region
      %s161 = ssub.s32 %s11, 1
      // Predicated region
      $region13: #{preact_block_mr_forward.3} parent=11 // pred_check
        %p162 = pneg %p58
      $region14: #{preact_block_mr_forward.3} parent=11 // pred_check_branch
        %164 = sbr.rel (%p162) target = $region16
      $region15: #{preact_block_mr_forward.3} parent=11 // pred_region
        _
      $region16: #{preact_block_mr_forward.3} parent=11 // pred_fallthru
        _
      // Predicated region
      $region17: #{preact_block_mr_forward.3} parent=11 // pred_check
        %p165 = pneg %p79
      $region18: #{preact_block_mr_forward.3} parent=11 // pred_check_branch
        %167 = sbr.rel (%p165) target = $region20
      $region19: #{preact_block_mr_forward.3} parent=11 // pred_region
        _
      $region20: #{preact_block_mr_forward.3} parent=11 // pred_fallthru
        _
      // Predicated region
      $region21: #{preact_block_mr_forward.3} parent=11 // pred_check
        %p168 = pneg %p100
      $region22: #{preact_block_mr_forward.3} parent=11 // pred_check_branch
        %170 = sbr.rel (%p168) target = $region24
      $region23: #{preact_block_mr_forward.3} parent=11 // pred_region
        _
      $region24: #{preact_block_mr_forward.3} parent=11 // pred_fallthru
        _
      // Predicated region
      $region25: #{preact_block_mr_forward.3} parent=11 // pred_check
        %p171 = pneg %p121
      $region26: #{preact_block_mr_forward.3} parent=11 // pred_check_branch
        %173 = sbr.rel (%p171) target = $region28
      $region27: #{preact_block_mr_forward.3} parent=11 // pred_region
        _
      $region28: #{preact_block_mr_forward.3} parent=11 // pred_fallthru
        _
    $region12: #{preact_block_mr_forward.3} parent=5 // pred_fallthru
      _
    %p174 = scmp.lt.s32.totalorder %s11, 2
    // Predicated region
    $region29: #{preact_block_mr_forward.3} parent=5 // pred_check
      %p175 = pneg %p174
    $region30: #{preact_block_mr_forward.3} parent=5 // pred_check_branch
      %177 = sbr.rel (%p175) target = $region32
    $region31: #{preact_block_mr_forward.3} parent=5 // pred_region
      // Predicated region
      $region33: #{preact_block_mr_forward.3} parent=31 // pred_check
        %p178 = pneg %p31
      $region34: #{preact_block_mr_forward.3} parent=31 // pred_check_branch
        %180 = sbr.rel (%p178) target = $region36
      $region35: #{preact_block_mr_forward.3} parent=31 // pred_region
        %p181 = scmp.lt.s32.totalorder %s11, 1
        %s182 = scalar_select %p181, %s11, 1
        %s183 = smul.addr %s182, 32
        %s184 = smul.addr %s183, 8
        %s185 = scalar_lea.vmem %s0, %s184
      $region36: #{preact_block_mr_forward.3} parent=31 // pred_fallthru
        _
    $region32: #{preact_block_mr_forward.3} parent=5 // pred_fallthru
      _
    %p186 = scmp.le.s32.totalorder 1, %s11
    %p187 = scmp.lt.s32.totalorder %s11, 3
    %p188 = pnand %p186, %p187
    %p189 = pneg %p188
    // Predicated region
    $region37: #{preact_block_mr_forward.3} parent=5 // pred_check
      _
    $region38: #{preact_block_mr_forward.3} parent=5 // pred_check_branch
      %191 = sbr.rel (%p188) target = $region40
    $region39: #{preact_block_mr_forward.3} parent=5 // pred_region
      %s192 = ssub.s32 %s11, 1
      %p193 = scmp.lt.s32.totalorder %s16, 1
      %s194 = scalar_select %p193, %s16, 1
      %s195 = smul.addr %s194, 32
      %s196 = smul.addr %s195, 8
      %s197 = scalar_lea.vmem %s0, %s196
      %p198 = pneg %p37
      %p199 = pneg %p34
      %p200 = pneg %p58
      %p201 = pneg %p55
      %p202 = pneg %p79
      %p203 = pneg %p76
      %p204 = pneg %p100
      %p205 = pneg %p97
      %p206 = pneg %p121
      %p207 = pneg %p118
      %p208 = pneg %p147
      %p209 = pneg %p144
      %p210 = scmp.lt.s32.totalorder %s16, 1
      %s211 = scalar_select %p210, %s16, 1
      %s212 = smul.addr %s211, 32
      %s213 = smul.addr %s212, 8
      %s214 = scalar_lea.vmem %s5, %s213
      %p215 = scmp.lt.s32.totalorder %s16, 1
      %s216 = scalar_select %p215, %s16, 1
      %s217 = smul.addr %s216, 32
      %s218 = smul.addr %s217, 8
      %s219 = scalar_lea.vmem %s0, %s218
      %p220 = scmp.lt.s32.totalorder %s16, 1
      %s221 = scalar_select %p220, %s16, 1
      %s222 = smul.addr %s221, 32
      %s223 = smul.addr %s222, 8
      %s224 = scalar_lea.vmem %s5, %s223
      %v226 = vld [vmem:[%s219] sm:$0xff]
      %v227 = vld [vmem:[%s219 + $0x8] sm:$0xff]
      %v228 = vld [vmem:[%s219 + $0x10] sm:$0xff]
      %v229 = vld [vmem:[%s219 + $0x18] sm:$0xff]
      %v230 = vld [vmem:[%s219 + $0x20] sm:$0xff]
      %v231 = vld [vmem:[%s219 + $0x28] sm:$0xff]
      %v232 = vld [vmem:[%s219 + $0x30] sm:$0xff]
      %v233 = vld [vmem:[%s219 + $0x38] sm:$0xff]
      %v234 = vld [vmem:[%s219 + $0x40] sm:$0xff]
      %v235 = vld [vmem:[%s219 + $0x48] sm:$0xff]
      %v236 = vld [vmem:[%s219 + $0x50] sm:$0xff]
      %v237 = vld [vmem:[%s219 + $0x58] sm:$0xff]
      %v238 = vld [vmem:[%s219 + $0x60] sm:$0xff]
      %v239 = vld [vmem:[%s219 + $0x68] sm:$0xff]
      %v240 = vld [vmem:[%s219 + $0x70] sm:$0xff]
      %v241 = vld [vmem:[%s219 + $0x78] sm:$0xff]
      %v242 = vld [vmem:[%s219 + $0x80] sm:$0xff]
      %v243 = vld [vmem:[%s219 + $0x88] sm:$0xff]
      %v244 = vld [vmem:[%s219 + $0x90] sm:$0xff]
      %v245 = vld [vmem:[%s219 + $0x98] sm:$0xff]
      %v246 = vld [vmem:[%s219 + $0xa0] sm:$0xff]
      %v247 = vld [vmem:[%s219 + $0xa8] sm:$0xff]
      %v248 = vld [vmem:[%s219 + $0xb0] sm:$0xff]
      %v249 = vld [vmem:[%s219 + $0xb8] sm:$0xff]
      %v250 = vld [vmem:[%s219 + $0xc0] sm:$0xff]
      %v251 = vld [vmem:[%s219 + $0xc8] sm:$0xff]
      %v252 = vld [vmem:[%s219 + $0xd0] sm:$0xff]
      %v253 = vld [vmem:[%s219 + $0xd8] sm:$0xff]
      %v254 = vld [vmem:[%s219 + $0xe0] sm:$0xff]
      %v255 = vld [vmem:[%s219 + $0xe8] sm:$0xff]
      %v256 = vld [vmem:[%s219 + $0xf0] sm:$0xff]
      %v257 = vld [vmem:[%s219 + $0xf8] sm:$0xff]
      %v258 = vld [vmem:[%s1] sm:$0x1]
      %v259 = vld [vmem:[%s2] sm:$0x1]
      %v261 = vlaneseq
      %v262 = vshrl.u32 %v261, 7
      %v263 = vsub.s32 0, %v262
      %v264 = vrot.slane %v258, %v263
      %v266 = vmul.f32 %v226, %v264
      %v267 = vmul.f32 %v227, %v264
      %v268 = vmul.f32 %v228, %v264
      %v269 = vmul.f32 %v229, %v264
      %v270 = vmul.f32 %v230, %v264
      %v271 = vmul.f32 %v231, %v264
      %v272 = vmul.f32 %v232, %v264
      %v273 = vmul.f32 %v233, %v264
      %v274 = vmul.f32 %v234, %v264
      %v275 = vmul.f32 %v235, %v264
      %v276 = vmul.f32 %v236, %v264
      %v277 = vmul.f32 %v237, %v264
      %v278 = vmul.f32 %v238, %v264
      %v279 = vmul.f32 %v239, %v264
      %v280 = vmul.f32 %v240, %v264
      %v281 = vmul.f32 %v241, %v264
      %v282 = vmul.f32 %v242, %v264
      %v283 = vmul.f32 %v243, %v264
      %v284 = vmul.f32 %v244, %v264
      %v285 = vmul.f32 %v245, %v264
      %v286 = vmul.f32 %v246, %v264
      %v287 = vmul.f32 %v247, %v264
      %v288 = vmul.f32 %v248, %v264
      %v289 = vmul.f32 %v249, %v264
      %v290 = vmul.f32 %v250, %v264
      %v291 = vmul.f32 %v251, %v264
      %v292 = vmul.f32 %v252, %v264
      %v293 = vmul.f32 %v253, %v264
      %v294 = vmul.f32 %v254, %v264
      %v295 = vmul.f32 %v255, %v264
      %v296 = vmul.f32 %v256, %v264
      %v297 = vmul.f32 %v257, %v264
      %v299 = vlaneseq
      %v300 = vshrl.u32 %v299, 7
      %v301 = vsub.s32 0, %v300
      %v302 = vrot.slane %v259, %v301
      %v304 = vadd.f32 %v266, %v302
      %v305 = vadd.f32 %v267, %v302
      %v306 = vadd.f32 %v268, %v302
      %v307 = vadd.f32 %v269, %v302
      %v308 = vadd.f32 %v270, %v302
      %v309 = vadd.f32 %v271, %v302
      %v310 = vadd.f32 %v272, %v302
      %v311 = vadd.f32 %v273, %v302
      %v312 = vadd.f32 %v274, %v302
      %v313 = vadd.f32 %v275, %v302
      %v314 = vadd.f32 %v276, %v302
      %v315 = vadd.f32 %v277, %v302
      %v316 = vadd.f32 %v278, %v302
      %v317 = vadd.f32 %v279, %v302
      %v318 = vadd.f32 %v280, %v302
      %v319 = vadd.f32 %v281, %v302
      %v320 = vadd.f32 %v282, %v302
      %v321 = vadd.f32 %v283, %v302
      %v322 = vadd.f32 %v284, %v302
      %v323 = vadd.f32 %v285, %v302
      %v324 = vadd.f32 %v286, %v302
      %v325 = vadd.f32 %v287, %v302
      %v326 = vadd.f32 %v288, %v302
      %v327 = vadd.f32 %v289, %v302
      %v328 = vadd.f32 %v290, %v302
      %v329 = vadd.f32 %v291, %v302
      %v330 = vadd.f32 %v292, %v302
      %v331 = vadd.f32 %v293, %v302
      %v332 = vadd.f32 %v294, %v302
      %v333 = vadd.f32 %v295, %v302
      %v334 = vadd.f32 %v296, %v302
      %v335 = vadd.f32 %v297, %v302
      %v336 = vmax.f32 %v304, 0.0
      %v337 = vmax.f32 %v305, 0.0
      %v338 = vmax.f32 %v306, 0.0
      %v339 = vmax.f32 %v307, 0.0
      %v340 = vmax.f32 %v308, 0.0
      %v341 = vmax.f32 %v309, 0.0
      %v342 = vmax.f32 %v310, 0.0
      %v343 = vmax.f32 %v311, 0.0
      %v344 = vmax.f32 %v312, 0.0
      %v345 = vmax.f32 %v313, 0.0
      %v346 = vmax.f32 %v314, 0.0
      %v347 = vmax.f32 %v315, 0.0
      %v348 = vmax.f32 %v316, 0.0
      %v349 = vmax.f32 %v317, 0.0
      %v350 = vmax.f32 %v318, 0.0
      %v351 = vmax.f32 %v319, 0.0
      %v352 = vmax.f32 %v320, 0.0
      %v353 = vmax.f32 %v321, 0.0
      %v354 = vmax.f32 %v322, 0.0
      %v355 = vmax.f32 %v323, 0.0
      %v356 = vmax.f32 %v324, 0.0
      %v357 = vmax.f32 %v325, 0.0
      %v358 = vmax.f32 %v326, 0.0
      %v359 = vmax.f32 %v327, 0.0
      %v360 = vmax.f32 %v328, 0.0
      %v361 = vmax.f32 %v329, 0.0
      %v362 = vmax.f32 %v330, 0.0
      %v363 = vmax.f32 %v331, 0.0
      %v364 = vmax.f32 %v332, 0.0
      %v365 = vmax.f32 %v333, 0.0
      %v366 = vmax.f32 %v334, 0.0
      %v367 = vmax.f32 %v335, 0.0
      %vm368 = vcmask 27648
      %369 = vst.msk [vmem:[#allocation2] sm:$0xf] %vm368, 0
      %370 = vst.msk [vmem:[#allocation2 + $0x4] sm:$0xf] %vm368, 0
      %vm371 = vcmask 24576
      %372 = vst.msk [vmem:[#allocation2 + $0x8] sm:$0x1] %vm371, 0
      %s373 = scalar_lea.vmem [#allocation2], 204
      %374 = vst.msk [vmem:[%s373] sm:$0xf] %vm368, 0
      %375 = vst.msk [vmem:[%s373 + $0x4] sm:$0xf] %vm368, 0
      %376 = vst.msk [vmem:[%s373 + $0x8] sm:$0x1] %vm371, 0
      %vm377 = vcmask 24576
      %vm378 = vsmask.f32 256
      %vm379 = vmand %vm377, %vm378
      %v380 = vld [vmem:[#allocation2] sm:$0x1]
      %v381 = vsel %vm379, 0, %v380
      %382 = vst [vmem:[#allocation2] sm:$0x1] %v381
      %v383 = vld [vmem:[#allocation2 + $0xc] sm:$0x1]
      %v384 = vsel %vm379, 0, %v383
      %385 = vst [vmem:[#allocation2 + $0xc] sm:$0x1] %v384
      %v386 = vld [vmem:[#allocation2 + $0x18] sm:$0x1]
      %v387 = vsel %vm379, 0, %v386
      %388 = vst [vmem:[#allocation2 + $0x18] sm:$0x1] %v387
      %v389 = vld [vmem:[#allocation2 + $0x24] sm:$0x1]
      %v390 = vsel %vm379, 0, %v389
      %391 = vst [vmem:[#allocation2 + $0x24] sm:$0x1] %v390
      %v392 = vld [vmem:[#allocation2 + $0x30] sm:$0x1]
      %v393 = vsel %vm379, 0, %v392
      %394 = vst [vmem:[#allocation2 + $0x30] sm:$0x1] %v393
      %v395 = vld [vmem:[#allocation2 + $0x3c] sm:$0x1]
      %v396 = vsel %vm379, 0, %v395
      %397 = vst [vmem:[#allocation2 + $0x3c] sm:$0x1] %v396
      %v398 = vld [vmem:[#allocation2 + $0x48] sm:$0x1]
      %v399 = vsel %vm379, 0, %v398
      %400 = vst [vmem:[#allocation2 + $0x48] sm:$0x1] %v399
      %v401 = vld [vmem:[#allocation2 + $0x54] sm:$0x1]
      %v402 = vsel %vm379, 0, %v401
      %403 = vst [vmem:[#allocation2 + $0x54] sm:$0x1] %v402
      %v404 = vld [vmem:[#allocation2 + $0x60] sm:$0x1]
      %v405 = vsel %vm379, 0, %v404
      %406 = vst [vmem:[#allocation2 + $0x60] sm:$0x1] %v405
      %v407 = vld [vmem:[#allocation2 + $0x6c] sm:$0x1]
      %v408 = vsel %vm379, 0, %v407
      %409 = vst [vmem:[#allocation2 + $0x6c] sm:$0x1] %v408
      %v410 = vld [vmem:[#allocation2 + $0x78] sm:$0x1]
      %v411 = vsel %vm379, 0, %v410
      %412 = vst [vmem:[#allocation2 + $0x78] sm:$0x1] %v411
      %v413 = vld [vmem:[#allocation2 + $0x84] sm:$0x1]
      %v414 = vsel %vm379, 0, %v413
      %415 = vst [vmem:[#allocation2 + $0x84] sm:$0x1] %v414
      %v416 = vld [vmem:[#allocation2 + $0x90] sm:$0x1]
      %v417 = vsel %vm379, 0, %v416
      %418 = vst [vmem:[#allocation2 + $0x90] sm:$0x1] %v417
      %v419 = vld [vmem:[#allocation2 + $0x9c] sm:$0x1]
      %v420 = vsel %vm379, 0, %v419
      %421 = vst [vmem:[#allocation2 + $0x9c] sm:$0x1] %v420
      %v422 = vld [vmem:[#allocation2 + $0xa8] sm:$0x1]
      %v423 = vsel %vm379, 0, %v422
      %424 = vst [vmem:[#allocation2 + $0xa8] sm:$0x1] %v423
      %v425 = vld [vmem:[#allocation2 + $0xb4] sm:$0x1]
      %v426 = vsel %vm379, 0, %v425
      %427 = vst [vmem:[#allocation2 + $0xb4] sm:$0x1] %v426
      %v428 = vld [vmem:[#allocation2 + $0xc0] sm:$0x1]
      %v429 = vsel %vm379, 0, %v428
      %430 = vst [vmem:[#allocation2 + $0xc0] sm:$0x1] %v429
      %v431 = vld [vmem:[#allocation2 + $0xcc] sm:$0x1]
      %v432 = vsel %vm379, 0, %v431
      %433 = vst [vmem:[#allocation2 + $0xcc] sm:$0x1] %v432
      %vm434 = vsmask.f32 7938
      %vm435 = vmand %vm377, %vm434
      %v436 = vld [vmem:[#allocation2 + $0x8] sm:$0x1]
      %v437 = vsel %vm435, 0, %v436
      %438 = vst [vmem:[#allocation2 + $0x8] sm:$0x1] %v437
      %v439 = vld [vmem:[#allocation2 + $0x14] sm:$0x1]
      %v440 = vsel %vm435, 0, %v439
      %441 = vst [vmem:[#allocation2 + $0x14] sm:$0x1] %v440
      %v442 = vld [vmem:[#allocation2 + $0x20] sm:$0x1]
      %v443 = vsel %vm435, 0, %v442
      %444 = vst [vmem:[#allocation2 + $0x20] sm:$0x1] %v443
      %v445 = vld [vmem:[#allocation2 + $0x2c] sm:$0x1]
      %v446 = vsel %vm435, 0, %v445
      %447 = vst [vmem:[#allocation2 + $0x2c] sm:$0x1] %v446
      %v448 = vld [vmem:[#allocation2 + $0x38] sm:$0x1]
      %v449 = vsel %vm435, 0, %v448
      %450 = vst [vmem:[#allocation2 + $0x38] sm:$0x1] %v449
      %v451 = vld [vmem:[#allocation2 + $0x44] sm:$0x1]
      %v452 = vsel %vm435, 0, %v451
      %453 = vst [vmem:[#allocation2 + $0x44] sm:$0x1] %v452
      %v454 = vld [vmem:[#allocation2 + $0x50] sm:$0x1]
      %v455 = vsel %vm435, 0, %v454
      %456 = vst [vmem:[#allocation2 + $0x50] sm:$0x1] %v455
      %v457 = vld [vmem:[#allocation2 + $0x5c] sm:$0x1]
      %v458 = vsel %vm435, 0, %v457
      %459 = vst [vmem:[#allocation2 + $0x5c] sm:$0x1] %v458
      %v460 = vld [vmem:[#allocation2 + $0x68] sm:$0x1]
      %v461 = vsel %vm435, 0, %v460
      %462 = vst [vmem:[#allocation2 + $0x68] sm:$0x1] %v461
      %v463 = vld [vmem:[#allocation2 + $0x74] sm:$0x1]
      %v464 = vsel %vm435, 0, %v463
      %465 = vst [vmem:[#allocation2 + $0x74] sm:$0x1] %v464
      %v466 = vld [vmem:[#allocation2 + $0x80] sm:$0x1]
      %v467 = vsel %vm435, 0, %v466
      %468 = vst [vmem:[#allocation2 + $0x80] sm:$0x1] %v467
      %v469 = vld [vmem:[#allocation2 + $0x8c] sm:$0x1]
      %v470 = vsel %vm435, 0, %v469
      %471 = vst [vmem:[#allocation2 + $0x8c] sm:$0x1] %v470
      %v472 = vld [vmem:[#allocation2 + $0x98] sm:$0x1]
      %v473 = vsel %vm435, 0, %v472
      %474 = vst [vmem:[#allocation2 + $0x98] sm:$0x1] %v473
      %v475 = vld [vmem:[#allocation2 + $0xa4] sm:$0x1]
      %v476 = vsel %vm435, 0, %v475
      %477 = vst [vmem:[#allocation2 + $0xa4] sm:$0x1] %v476
      %v478 = vld [vmem:[#allocation2 + $0xb0] sm:$0x1]
      %v479 = vsel %vm435, 0, %v478
      %480 = vst [vmem:[#allocation2 + $0xb0] sm:$0x1] %v479
      %v481 = vld [vmem:[#allocation2 + $0xbc] sm:$0x1]
      %v482 = vsel %vm435, 0, %v481
      %483 = vst [vmem:[#allocation2 + $0xbc] sm:$0x1] %v482
      %v484 = vld [vmem:[#allocation2 + $0xc8] sm:$0x1]
      %v485 = vsel %vm435, 0, %v484
      %486 = vst [vmem:[#allocation2 + $0xc8] sm:$0x1] %v485
      %v487 = vld [vmem:[#allocation2 + $0xd4] sm:$0x1]
      %v488 = vsel %vm435, 0, %v487
      %489 = vst [vmem:[#allocation2 + $0xd4] sm:$0x1] %v488
      %v490 = vpack.c.bf16 %v337, %v336
      %v491 = vpack.c.bf16 %v339, %v338
      %v492 = vpack.c.bf16 %v341, %v340
      %v493 = vpack.c.bf16 %v343, %v342
      %v494 = vpack.c.bf16 %v345, %v344
      %v495 = vpack.c.bf16 %v347, %v346
      %v496 = vpack.c.bf16 %v349, %v348
      %v497 = vpack.c.bf16 %v351, %v350
      %v498 = vpack.c.bf16 %v353, %v352
      %v499 = vpack.c.bf16 %v355, %v354
      %v500 = vpack.c.bf16 %v357, %v356
      %v501 = vpack.c.bf16 %v359, %v358
      %v502 = vpack.c.bf16 %v361, %v360
      %v503 = vpack.c.bf16 %v363, %v362
      %v504 = vpack.c.bf16 %v365, %v364
      %v505 = vpack.c.bf16 %v367, %v366
      %v522 = vunpack.c.l.b16 %v490
      %v523 = vunpack.c.h.b16 %v490
      %v524 = vunpack.c.l.b16 %v491
      %v525 = vunpack.c.h.b16 %v491
      %v526 = vunpack.c.l.b16 %v492
      %v527 = vunpack.c.h.b16 %v492
      %v528 = vunpack.c.l.b16 %v493
      %v529 = vunpack.c.h.b16 %v493
      %v530 = vunpack.c.l.b16 %v494
      %v531 = vunpack.c.h.b16 %v494
      %v532 = vunpack.c.l.b16 %v495
      %v533 = vunpack.c.h.b16 %v495
      %v534 = vunpack.c.l.b16 %v496
      %v535 = vunpack.c.h.b16 %v496
      %v536 = vunpack.c.l.b16 %v497
      %v537 = vunpack.c.h.b16 %v497
      %v538 = vunpack.c.l.b16 %v498
      %v539 = vunpack.c.h.b16 %v498
      %v540 = vunpack.c.l.b16 %v499
      %v541 = vunpack.c.h.b16 %v499
      %v542 = vunpack.c.l.b16 %v500
      %v543 = vunpack.c.h.b16 %v500
      %v544 = vunpack.c.l.b16 %v501
      %v545 = vunpack.c.h.b16 %v501
      %v546 = vunpack.c.l.b16 %v502
      %v547 = vunpack.c.h.b16 %v502
      %v548 = vunpack.c.l.b16 %v503
      %v549 = vunpack.c.h.b16 %v503
      %v550 = vunpack.c.l.b16 %v504
      %v551 = vunpack.c.h.b16 %v504
      %v552 = vunpack.c.l.b16 %v505
      %v553 = vunpack.c.h.b16 %v505
      %v554 = vpack.c.b16 %v522, %v522
      %v555 = vpack.c.b16 %v523, %v523
      %v556 = vpack.c.b16 %v524, %v524
      %v557 = vpack.c.b16 %v525, %v525
      %v558 = vpack.c.b16 %v526, %v526
      %v559 = vpack.c.b16 %v527, %v527
      %v560 = vpack.c.b16 %v528, %v528
      %v561 = vpack.c.b16 %v529, %v529
      %v562 = vpack.c.b16 %v530, %v530
      %v563 = vpack.c.b16 %v531, %v531
      %v564 = vpack.c.b16 %v532, %v532
      %v565 = vpack.c.b16 %v533, %v533
      %v566 = vpack.c.b16 %v534, %v534
      %v567 = vpack.c.b16 %v535, %v535
      %v568 = vpack.c.b16 %v536, %v536
      %v569 = vpack.c.b16 %v537, %v537
      %v570 = vpack.c.b16 %v538, %v538
      %v571 = vpack.c.b16 %v539, %v539
      %v572 = vpack.c.b16 %v540, %v540
      %v573 = vpack.c.b16 %v541, %v541
      %v574 = vpack.c.b16 %v542, %v542
      %v575 = vpack.c.b16 %v543, %v543
      %v576 = vpack.c.b16 %v544, %v544
      %v577 = vpack.c.b16 %v545, %v545
      %v578 = vpack.c.b16 %v546, %v546
      %v579 = vpack.c.b16 %v547, %v547
      %v580 = vpack.c.b16 %v548, %v548
      %v581 = vpack.c.b16 %v549, %v549
      %v582 = vpack.c.b16 %v550, %v550
      %v583 = vpack.c.b16 %v551, %v551
      %v584 = vpack.c.b16 %v552, %v552
      %v585 = vpack.c.b16 %v553, %v553
      %vm586 = vsmask.f32 4368
      %vm587 = vmor %vm378, %vm586
      %v589 = vshrl.u32 %v554, 16
      %v591 = vrot.slane %v589, 7
      %v592 = vshll.u32 %v554, 16
      %v594 = vor.u32 %v591, %v592
      %v595 = vrot.slane %v591, 4
      %v597 = vshrl.u32 %v555, 16
      %v599 = vrot.slane %v597, 7
      %v600 = vshll.u32 %v555, 16
      %v602 = vor.u32 %v599, %v600
      %v603 = vsel %vm587, %v595, %v602
      %v604 = vrot.slane %v599, 4
      %v606 = vshrl.u32 %v556, 16
      %v608 = vrot.slane %v606, 7
      %v609 = vshll.u32 %v556, 16
      %v611 = vor.u32 %v608, %v609
      %v612 = vrot.slane %v608, 4
      %v614 = vshrl.u32 %v557, 16
      %v616 = vrot.slane %v614, 7
      %v617 = vshll.u32 %v557, 16
      %v619 = vor.u32 %v616, %v617
      %v620 = vsel %vm587, %v612, %v619
      %v621 = vrot.slane %v616, 4
      %v623 = vshrl.u32 %v558, 16
      %v625 = vrot.slane %v623, 7
      %v626 = vshll.u32 %v558, 16
      %v628 = vor.u32 %v625, %v626
      %v629 = vrot.slane %v625, 4
      %v631 = vshrl.u32 %v559, 16
      %v633 = vrot.slane %v631, 7
      %v634 = vshll.u32 %v559, 16
      %v636 = vor.u32 %v633, %v634
      %v637 = vsel %vm587, %v629, %v636
      %v638 = vrot.slane %v633, 4
      %v640 = vshrl.u32 %v560, 16
      %v642 = vrot.slane %v640, 7
      %v643 = vshll.u32 %v560, 16
      %v645 = vor.u32 %v642, %v643
      %v646 = vrot.slane %v642, 4
      %v648 = vshrl.u32 %v561, 16
      %v650 = vrot.slane %v648, 7
      %v651 = vshll.u32 %v561, 16
      %v653 = vor.u32 %v650, %v651
      %v654 = vsel %vm587, %v646, %v653
      %v655 = vrot.slane %v650, 4
      %v657 = vshrl.u32 %v562, 16
      %v659 = vrot.slane %v657, 7
      %v660 = vshll.u32 %v562, 16
      %v662 = vor.u32 %v659, %v660
      %v663 = vrot.slane %v659, 4
      %v665 = vshrl.u32 %v563, 16
      %v667 = vrot.slane %v665, 7
      %v668 = vshll.u32 %v563, 16
      %v670 = vor.u32 %v667, %v668
      %v671 = vsel %vm587, %v663, %v670
      %v672 = vrot.slane %v667, 4
      %v674 = vshrl.u32 %v564, 16
      %v676 = vrot.slane %v674, 7
      %v677 = vshll.u32 %v564, 16
      %v679 = vor.u32 %v676, %v677
      %v680 = vrot.slane %v676, 4
      %v682 = vshrl.u32 %v565, 16
      %v684 = vrot.slane %v682, 7
      %v685 = vshll.u32 %v565, 16
      %v687 = vor.u32 %v684, %v685
      %v688 = vsel %vm587, %v680, %v687
      %v689 = vrot.slane %v684, 4
      %v691 = vshrl.u32 %v566, 16
      %v693 = vrot.slane %v691, 7
      %v694 = vshll.u32 %v566, 16
      %v696 = vor.u32 %v693, %v694
      %v697 = vrot.slane %v693, 4
      %v699 = vshrl.u32 %v567, 16
      %v701 = vrot.slane %v699, 7
      %v702 = vshll.u32 %v567, 16
      %v704 = vor.u32 %v701, %v702
      %v705 = vsel %vm587, %v697, %v704
      %v706 = vrot.slane %v701, 4
      %v708 = vshrl.u32 %v568, 16
      %v710 = vrot.slane %v708, 7
      %v711 = vshll.u32 %v568, 16
      %v713 = vor.u32 %v710, %v711
      %v714 = vrot.slane %v710, 4
      %v716 = vshrl.u32 %v569, 16
      %v718 = vrot.slane %v716, 7
      %v719 = vshll.u32 %v569, 16
      %v721 = vor.u32 %v718, %v719
      %v722 = vsel %vm587, %v714, %v721
      %v723 = vrot.slane %v718, 4
      %v725 = vshrl.u32 %v570, 16
      %v727 = vrot.slane %v725, 7
      %v728 = vshll.u32 %v570, 16
      %v730 = vor.u32 %v727, %v728
      %v731 = vrot.slane %v727, 4
      %v733 = vshrl.u32 %v571, 16
      %v735 = vrot.slane %v733, 7
      %v736 = vshll.u32 %v571, 16
      %v738 = vor.u32 %v735, %v736
      %v739 = vsel %vm587, %v731, %v738
      %v740 = vrot.slane %v735, 4
      %v742 = vshrl.u32 %v572, 16
      %v744 = vrot.slane %v742, 7
      %v745 = vshll.u32 %v572, 16
      %v747 = vor.u32 %v744, %v745
      %v748 = vrot.slane %v744, 4
      %v750 = vshrl.u32 %v573, 16
      %v752 = vrot.slane %v750, 7
      %v753 = vshll.u32 %v573, 16
      %v755 = vor.u32 %v752, %v753
      %v756 = vsel %vm587, %v748, %v755
      %v757 = vrot.slane %v752, 4
      %v759 = vshrl.u32 %v574, 16
      %v761 = vrot.slane %v759, 7
      %v762 = vshll.u32 %v574, 16
      %v764 = vor.u32 %v761, %v762
      %v765 = vrot.slane %v761, 4
      %v767 = vshrl.u32 %v575, 16
      %v769 = vrot.slane %v767, 7
      %v770 = vshll.u32 %v575, 16
      %v772 = vor.u32 %v769, %v770
      %v773 = vsel %vm587, %v765, %v772
      %v774 = vrot.slane %v769, 4
      %v776 = vshrl.u32 %v576, 16
      %v778 = vrot.slane %v776, 7
      %v779 = vshll.u32 %v576, 16
      %v781 = vor.u32 %v778, %v779
      %v782 = vrot.slane %v778, 4
      %v784 = vshrl.u32 %v577, 16
      %v786 = vrot.slane %v784, 7
      %v787 = vshll.u32 %v577, 16
      %v789 = vor.u32 %v786, %v787
      %v790 = vsel %vm587, %v782, %v789
      %v791 = vrot.slane %v786, 4
      %v793 = vshrl.u32 %v578, 16
      %v795 = vrot.slane %v793, 7
      %v796 = vshll.u32 %v578, 16
      %v798 = vor.u32 %v795, %v796
      %v799 = vrot.slane %v795, 4
      %v801 = vshrl.u32 %v579, 16
      %v803 = vrot.slane %v801, 7
      %v804 = vshll.u32 %v579, 16
      %v806 = vor.u32 %v803, %v804
      %v807 = vsel %vm587, %v799, %v806
      %v808 = vrot.slane %v803, 4
      %v810 = vshrl.u32 %v580, 16
      %v812 = vrot.slane %v810, 7
      %v813 = vshll.u32 %v580, 16
      %v815 = vor.u32 %v812, %v813
      %v816 = vrot.slane %v812, 4
      %v818 = vshrl.u32 %v581, 16
      %v820 = vrot.slane %v818, 7
      %v821 = vshll.u32 %v581, 16
      %v823 = vor.u32 %v820, %v821
      %v824 = vsel %vm587, %v816, %v823
      %v825 = vrot.slane %v820, 4
      %v827 = vshrl.u32 %v582, 16
      %v829 = vrot.slane %v827, 7
      %v830 = vshll.u32 %v582, 16
      %v832 = vor.u32 %v829, %v830
      %v833 = vrot.slane %v829, 4
      %v835 = vshrl.u32 %v583, 16
      %v837 = vrot.slane %v835, 7
      %v838 = vshll.u32 %v583, 16
      %v840 = vor.u32 %v837, %v838
      %v841 = vsel %vm587, %v833, %v840
      %v842 = vrot.slane %v837, 4
      %v844 = vshrl.u32 %v584, 16
      %v846 = vrot.slane %v844, 7
      %v847 = vshll.u32 %v584, 16
      %v849 = vor.u32 %v846, %v847
      %v850 = vrot.slane %v846, 4
      %v852 = vshrl.u32 %v585, 16
      %v854 = vrot.slane %v852, 7
      %v855 = vshll.u32 %v585, 16
      %v857 = vor.u32 %v854, %v855
      %v858 = vsel %vm587, %v850, %v857
      %v859 = vrot.slane %v854, 4
      %s908 = scalar_lea.vmem [#allocation2], 12
      %vm909 = vcmask 27648
      %vm910 = vmand %vm909, %vm434
      %v911 = vld [vmem:[%s908] sm:$0xf]
      %v912 = vsel %vm910, %v594, %v911
      %913 = vst [vmem:[%s908] sm:$0xf] %v912
      %914 = vst.msk [vmem:[%s908 + $0x4] sm:$0xf] %vm368, %v603
      %v915 = vld [vmem:[%s908 + $0x8] sm:$0x1]
      %v916 = vsel %vm379, %v604, %v915
      %917 = vst [vmem:[%s908 + $0x8] sm:$0x1] %v916
      %v918 = vld [vmem:[%s908 + $0xc] sm:$0xf]
      %v919 = vsel %vm910, %v611, %v918
      %920 = vst [vmem:[%s908 + $0xc] sm:$0xf] %v919
      %921 = vst.msk [vmem:[%s908 + $0x10] sm:$0xf] %vm368, %v620
      %v922 = vld [vmem:[%s908 + $0x14] sm:$0x1]
      %v923 = vsel %vm379, %v621, %v922
      %924 = vst [vmem:[%s908 + $0x14] sm:$0x1] %v923
      %v925 = vld [vmem:[%s908 + $0x18] sm:$0xf]
      %v926 = vsel %vm910, %v628, %v925
      %927 = vst [vmem:[%s908 + $0x18] sm:$0xf] %v926
      %928 = vst.msk [vmem:[%s908 + $0x1c] sm:$0xf] %vm368, %v637
      %v929 = vld [vmem:[%s908 + $0x20] sm:$0x1]
      %v930 = vsel %vm379, %v638, %v929
      %931 = vst [vmem:[%s908 + $0x20] sm:$0x1] %v930
      %v932 = vld [vmem:[%s908 + $0x24] sm:$0xf]
      %v933 = vsel %vm910, %v645, %v932
      %934 = vst [vmem:[%s908 + $0x24] sm:$0xf] %v933
      %935 = vst.msk [vmem:[%s908 + $0x28] sm:$0xf] %vm368, %v654
      %v936 = vld [vmem:[%s908 + $0x2c] sm:$0x1]
      %v937 = vsel %vm379, %v655, %v936
      %938 = vst [vmem:[%s908 + $0x2c] sm:$0x1] %v937
      %v939 = vld [vmem:[%s908 + $0x30] sm:$0xf]
      %v940 = vsel %vm910, %v662, %v939
      %941 = vst [vmem:[%s908 + $0x30] sm:$0xf] %v940
      %942 = vst.msk [vmem:[%s908 + $0x34] sm:$0xf] %vm368, %v671
      %v943 = vld [vmem:[%s908 + $0x38] sm:$0x1]
      %v944 = vsel %vm379, %v672, %v943
      %945 = vst [vmem:[%s908 + $0x38] sm:$0x1] %v944
      %v946 = vld [vmem:[%s908 + $0x3c] sm:$0xf]
      %v947 = vsel %vm910, %v679, %v946
      %948 = vst [vmem:[%s908 + $0x3c] sm:$0xf] %v947
      %949 = vst.msk [vmem:[%s908 + $0x40] sm:$0xf] %vm368, %v688
      %v950 = vld [vmem:[%s908 + $0x44] sm:$0x1]
      %v951 = vsel %vm379, %v689, %v950
      %952 = vst [vmem:[%s908 + $0x44] sm:$0x1] %v951
      %v953 = vld [vmem:[%s908 + $0x48] sm:$0xf]
      %v954 = vsel %vm910, %v696, %v953
      %955 = vst [vmem:[%s908 + $0x48] sm:$0xf] %v954
      %956 = vst.msk [vmem:[%s908 + $0x4c] sm:$0xf] %vm368, %v705
      %v957 = vld [vmem:[%s908 + $0x50] sm:$0x1]
      %v958 = vsel %vm379, %v706, %v957
      %959 = vst [vmem:[%s908 + $0x50] sm:$0x1] %v958
      %v960 = vld [vmem:[%s908 + $0x54] sm:$0xf]
      %v961 = vsel %vm910, %v713, %v960
      %962 = vst [vmem:[%s908 + $0x54] sm:$0xf] %v961
      %963 = vst.msk [vmem:[%s908 + $0x58] sm:$0xf] %vm368, %v722
      %v964 = vld [vmem:[%s908 + $0x5c] sm:$0x1]
      %v965 = vsel %vm379, %v723, %v964
      %966 = vst [vmem:[%s908 + $0x5c] sm:$0x1] %v965
      %v967 = vld [vmem:[%s908 + $0x60] sm:$0xf]
      %v968 = vsel %vm910, %v730, %v967
      %969 = vst [vmem:[%s908 + $0x60] sm:$0xf] %v968
      %970 = vst.msk [vmem:[%s908 + $0x64] sm:$0xf] %vm368, %v739
      %v971 = vld [vmem:[%s908 + $0x68] sm:$0x1]
      %v972 = vsel %vm379, %v740, %v971
      %973 = vst [vmem:[%s908 + $0x68] sm:$0x1] %v972
      %v974 = vld [vmem:[%s908 + $0x6c] sm:$0xf]
      %v975 = vsel %vm910, %v747, %v974
      %976 = vst [vmem:[%s908 + $0x6c] sm:$0xf] %v975
      %977 = vst.msk [vmem:[%s908 + $0x70] sm:$0xf] %vm368, %v756
      %v978 = vld [vmem:[%s908 + $0x74] sm:$0x1]
      %v979 = vsel %vm379, %v757, %v978
      %980 = vst [vmem:[%s908 + $0x74] sm:$0x1] %v979
      %v981 = vld [vmem:[%s908 + $0x78] sm:$0xf]
      %v982 = vsel %vm910, %v764, %v981
      %983 = vst [vmem:[%s908 + $0x78] sm:$0xf] %v982
      %984 = vst.msk [vmem:[%s908 + $0x7c] sm:$0xf] %vm368, %v773
      %v985 = vld [vmem:[%s908 + $0x80] sm:$0x1]
      %v986 = vsel %vm379, %v774, %v985
      %987 = vst [vmem:[%s908 + $0x80] sm:$0x1] %v986
      %v988 = vld [vmem:[%s908 + $0x84] sm:$0xf]
      %v989 = vsel %vm910, %v781, %v988
      %990 = vst [vmem:[%s908 + $0x84] sm:$0xf] %v989
      %991 = vst.msk [vmem:[%s908 + $0x88] sm:$0xf] %vm368, %v790
      %v992 = vld [vmem:[%s908 + $0x8c] sm:$0x1]
      %v993 = vsel %vm379, %v791, %v992
      %994 = vst [vmem:[%s908 + $0x8c] sm:$0x1] %v993
      %v995 = vld [vmem:[%s908 + $0x90] sm:$0xf]
      %v996 = vsel %vm910, %v798, %v995
      %997 = vst [vmem:[%s908 + $0x90] sm:$0xf] %v996
      %998 = vst.msk [vmem:[%s908 + $0x94] sm:$0xf] %vm368, %v807
      %v999 = vld [vmem:[%s908 + $0x98] sm:$0x1]
      %v1000 = vsel %vm379, %v808, %v999
      %1001 = vst [vmem:[%s908 + $0x98] sm:$0x1] %v1000
      %v1002 = vld [vmem:[%s908 + $0x9c] sm:$0xf]
      %v1003 = vsel %vm910, %v815, %v1002
      %1004 = vst [vmem:[%s908 + $0x9c] sm:$0xf] %v1003
      %1005 = vst.msk [vmem:[%s908 + $0xa0] sm:$0xf] %vm368, %v824
      %v1006 = vld [vmem:[%s908 + $0xa4] sm:$0x1]
      %v1007 = vsel %vm379, %v825, %v1006
      %1008 = vst [vmem:[%s908 + $0xa4] sm:$0x1] %v1007
      %v1009 = vld [vmem:[%s908 + $0xa8] sm:$0xf]
      %v1010 = vsel %vm910, %v832, %v1009
      %1011 = vst [vmem:[%s908 + $0xa8] sm:$0xf] %v1010
      %1012 = vst.msk [vmem:[%s908 + $0xac] sm:$0xf] %vm368, %v841
      %v1013 = vld [vmem:[%s908 + $0xb0] sm:$0x1]
      %v1014 = vsel %vm379, %v842, %v1013
      %1015 = vst [vmem:[%s908 + $0xb0] sm:$0x1] %v1014
      %v1016 = vld [vmem:[%s908 + $0xb4] sm:$0xf]
      %v1017 = vsel %vm910, %v849, %v1016
      %1018 = vst [vmem:[%s908 + $0xb4] sm:$0xf] %v1017
      %1019 = vst.msk [vmem:[%s908 + $0xb8] sm:$0xf] %vm368, %v858
      %v1020 = vld [vmem:[%s908 + $0xbc] sm:$0x1]
      %v1021 = vsel %vm379, %v859, %v1020
      %1022 = vst [vmem:[%s908 + $0xbc] sm:$0x1] %v1021
      %v1023 = vld [vmem:[#allocation2] sm:$0xf]
      %v1024 = vld [vmem:[#allocation2 + $0x4] sm:$0xf]
      %v1025 = vld [vmem:[#allocation2 + $0xc] sm:$0xf]
      %v1026 = vld [vmem:[#allocation2 + $0x10] sm:$0xf]
      %v1027 = vld [vmem:[#allocation2 + $0x18] sm:$0xf]
      %v1028 = vld [vmem:[#allocation2 + $0x1c] sm:$0xf]
      %v1029 = vld [vmem:[#allocation2 + $0x24] sm:$0xf]
      %v1030 = vld [vmem:[#allocation2 + $0x28] sm:$0xf]
      %v1031 = vld [vmem:[#allocation2 + $0x30] sm:$0xf]
      %v1032 = vld [vmem:[#allocation2 + $0x34] sm:$0xf]
      %v1033 = vld [vmem:[#allocation2 + $0x3c] sm:$0xf]
      %v1034 = vld [vmem:[#allocation2 + $0x40] sm:$0xf]
      %v1035 = vld [vmem:[#allocation2 + $0x48] sm:$0xf]
      %v1036 = vld [vmem:[#allocation2 + $0x4c] sm:$0xf]
      %v1037 = vld [vmem:[#allocation2 + $0x54] sm:$0xf]
      %v1038 = vld [vmem:[#allocation2 + $0x58] sm:$0xf]
      %v1039 = vld [vmem:[#allocation2 + $0x60] sm:$0xf]
      %v1040 = vld [vmem:[#allocation2 + $0x64] sm:$0xf]
      %v1041 = vld [vmem:[#allocation2 + $0x6c] sm:$0xf]
      %v1042 = vld [vmem:[#allocation2 + $0x70] sm:$0xf]
      %v1043 = vld [vmem:[#allocation2 + $0x78] sm:$0xf]
      %v1044 = vld [vmem:[#allocation2 + $0x7c] sm:$0xf]
      %v1045 = vld [vmem:[#allocation2 + $0x84] sm:$0xf]
      %v1046 = vld [vmem:[#allocation2 + $0x88] sm:$0xf]
      %v1047 = vld [vmem:[#allocation2 + $0x90] sm:$0xf]
      %v1048 = vld [vmem:[#allocation2 + $0x94] sm:$0xf]
      %v1049 = vld [vmem:[#allocation2 + $0x9c] sm:$0xf]
      %v1050 = vld [vmem:[#allocation2 + $0xa0] sm:$0xf]
      %v1051 = vld [vmem:[#allocation2 + $0xa8] sm:$0xf]
      %v1052 = vld [vmem:[#allocation2 + $0xac] sm:$0xf]
      %v1053 = vld [vmem:[#allocation2 + $0xb4] sm:$0xf]
      %v1054 = vld [vmem:[#allocation2 + $0xb8] sm:$0xf]
      %v1087 = vunpack.c.l.b16 %v1023
      %v1088 = vunpack.c.l.b16 %v1024
      %v1089 = vunpack.c.l.b16 %v1025
      %v1090 = vunpack.c.l.b16 %v1026
      %v1091 = vunpack.c.l.b16 %v1027
      %v1092 = vunpack.c.l.b16 %v1028
      %v1093 = vunpack.c.l.b16 %v1029
      %v1094 = vunpack.c.l.b16 %v1030
      %v1095 = vunpack.c.l.b16 %v1031
      %v1096 = vunpack.c.l.b16 %v1032
      %v1097 = vunpack.c.l.b16 %v1033
      %v1098 = vunpack.c.l.b16 %v1034
      %v1099 = vunpack.c.l.b16 %v1035
      %v1100 = vunpack.c.l.b16 %v1036
      %v1101 = vunpack.c.l.b16 %v1037
      %v1102 = vunpack.c.l.b16 %v1038
      %v1103 = vunpack.c.l.b16 %v1039
      %v1104 = vunpack.c.l.b16 %v1040
      %v1105 = vunpack.c.l.b16 %v1041
      %v1106 = vunpack.c.l.b16 %v1042
      %v1107 = vunpack.c.l.b16 %v1043
      %v1108 = vunpack.c.l.b16 %v1044
      %v1109 = vunpack.c.l.b16 %v1045
      %v1110 = vunpack.c.l.b16 %v1046
      %v1111 = vunpack.c.l.b16 %v1047
      %v1112 = vunpack.c.l.b16 %v1048
      %v1113 = vunpack.c.l.b16 %v1049
      %v1114 = vunpack.c.l.b16 %v1050
      %v1115 = vunpack.c.l.b16 %v1051
      %v1116 = vunpack.c.l.b16 %v1052
      %v1117 = vunpack.c.l.b16 %v1053
      %v1118 = vunpack.c.l.b16 %v1054
      %v1119 = vpack.c.b16 %v1088, %v1087
      %v1120 = vpack.c.b16 %v1090, %v1089
      %v1121 = vpack.c.b16 %v1092, %v1091
      %v1122 = vpack.c.b16 %v1094, %v1093
      %v1123 = vpack.c.b16 %v1096, %v1095
      %v1124 = vpack.c.b16 %v1098, %v1097
      %v1125 = vpack.c.b16 %v1100, %v1099
      %v1126 = vpack.c.b16 %v1102, %v1101
      %v1127 = vpack.c.b16 %v1104, %v1103
      %v1128 = vpack.c.b16 %v1106, %v1105
      %v1129 = vpack.c.b16 %v1108, %v1107
      %v1130 = vpack.c.b16 %v1110, %v1109
      %v1131 = vpack.c.b16 %v1112, %v1111
      %v1132 = vpack.c.b16 %v1114, %v1113
      %v1133 = vpack.c.b16 %v1116, %v1115
      %v1134 = vpack.c.b16 %v1118, %v1117
      %vm1151 = vcmask 31744
      %1152 = vst.msk [vmem:[#allocation3] sm:$0xff] %vm1151, %v1119
      %1153 = vst.msk [vmem:[#allocation3 + $0x8] sm:$0xff] %vm1151, %v1120
      %1154 = vst.msk [vmem:[#allocation3 + $0x10] sm:$0xff] %vm1151, %v1121
      %1155 = vst.msk [vmem:[#allocation3 + $0x18] sm:$0xff] %vm1151, %v1122
      %1156 = vst.msk [vmem:[#allocation3 + $0x20] sm:$0xff] %vm1151, %v1123
      %1157 = vst.msk [vmem:[#allocation3 + $0x28] sm:$0xff] %vm1151, %v1124
      %1158 = vst.msk [vmem:[#allocation3 + $0x30] sm:$0xff] %vm1151, %v1125
      %1159 = vst.msk [vmem:[#allocation3 + $0x38] sm:$0xff] %vm1151, %v1126
      %1160 = vst.msk [vmem:[#allocation3 + $0x40] sm:$0xff] %vm1151, %v1127
      %1161 = vst.msk [vmem:[#allocation3 + $0x48] sm:$0xff] %vm1151, %v1128
      %1162 = vst.msk [vmem:[#allocation3 + $0x50] sm:$0xff] %vm1151, %v1129
      %1163 = vst.msk [vmem:[#allocation3 + $0x58] sm:$0xff] %vm1151, %v1130
      %1164 = vst.msk [vmem:[#allocation3 + $0x60] sm:$0xff] %vm1151, %v1131
      %1165 = vst.msk [vmem:[#allocation3 + $0x68] sm:$0xff] %vm1151, %v1132
      %1166 = vst.msk [vmem:[#allocation3 + $0x70] sm:$0xff] %vm1151, %v1133
      %1167 = vst.msk [vmem:[#allocation3 + $0x78] sm:$0xff] %vm1151, %v1134
      %v1168 = vld [vmem:[#allocation2] sm:$0xf]
      %v1169 = vld [vmem:[#allocation2 + $0x4] sm:$0xf]
      %v1170 = vld [vmem:[#allocation2 + $0x8] sm:$0x1]
      %v1171 = vld [vmem:[#allocation2 + $0xc] sm:$0xf]
      %v1172 = vld [vmem:[#allocation2 + $0x10] sm:$0xf]
      %v1173 = vld [vmem:[#allocation2 + $0x14] sm:$0x1]
      %v1174 = vld [vmem:[#allocation2 + $0x18] sm:$0xf]
      %v1175 = vld [vmem:[#allocation2 + $0x1c] sm:$0xf]
      %v1176 = vld [vmem:[#allocation2 + $0x20] sm:$0x1]
      %v1177 = vld [vmem:[#allocation2 + $0x24] sm:$0xf]
      %v1178 = vld [vmem:[#allocation2 + $0x28] sm:$0xf]
      %v1179 = vld [vmem:[#allocation2 + $0x2c] sm:$0x1]
      %v1180 = vld [vmem:[#allocation2 + $0x30] sm:$0xf]
      %v1181 = vld [vmem:[#allocation2 + $0x34] sm:$0xf]
      %v1182 = vld [vmem:[#allocation2 + $0x38] sm:$0x1]
      %v1183 = vld [vmem:[#allocation2 + $0x3c] sm:$0xf]
      %v1184 = vld [vmem:[#allocation2 + $0x40] sm:$0xf]
      %v1185 = vld [vmem:[#allocation2 + $0x44] sm:$0x1]
      %v1186 = vld [vmem:[#allocation2 + $0x48] sm:$0xf]
      %v1187 = vld [vmem:[#allocation2 + $0x4c] sm:$0xf]
      %v1188 = vld [vmem:[#allocation2 + $0x50] sm:$0x1]
      %v1189 = vld [vmem:[#allocation2 + $0x54] sm:$0xf]
      %v1190 = vld [vmem:[#allocation2 + $0x58] sm:$0xf]
      %v1191 = vld [vmem:[#allocation2 + $0x5c] sm:$0x1]
      %v1192 = vld [vmem:[#allocation2 + $0x60] sm:$0xf]
      %v1193 = vld [vmem:[#allocation2 + $0x64] sm:$0xf]
      %v1194 = vld [vmem:[#allocation2 + $0x68] sm:$0x1]
      %v1195 = vld [vmem:[#allocation2 + $0x6c] sm:$0xf]
      %v1196 = vld [vmem:[#allocation2 + $0x70] sm:$0xf]
      %v1197 = vld [vmem:[#allocation2 + $0x74] sm:$0x1]
      %v1198 = vld [vmem:[#allocation2 + $0x78] sm:$0xf]
      %v1199 = vld [vmem:[#allocation2 + $0x7c] sm:$0xf]
      %v1200 = vld [vmem:[#allocation2 + $0x80] sm:$0x1]
      %v1201 = vld [vmem:[#allocation2 + $0x84] sm:$0xf]
      %v1202 = vld [vmem:[#allocation2 + $0x88] sm:$0xf]
      %v1203 = vld [vmem:[#allocation2 + $0x8c] sm:$0x1]
      %v1204 = vld [vmem:[#allocation2 + $0x90] sm:$0xf]
      %v1205 = vld [vmem:[#allocation2 + $0x94] sm:$0xf]
      %v1206 = vld [vmem:[#allocation2 + $0x98] sm:$0x1]
      %v1207 = vld [vmem:[#allocation2 + $0x9c] sm:$0xf]
      %v1208 = vld [vmem:[#allocation2 + $0xa0] sm:$0xf]
      %v1209 = vld [vmem:[#allocation2 + $0xa4] sm:$0x1]
      %v1210 = vld [vmem:[#allocation2 + $0xa8] sm:$0xf]
      %v1211 = vld [vmem:[#allocation2 + $0xac] sm:$0xf]
      %v1212 = vld [vmem:[#allocation2 + $0xb0] sm:$0x1]
      %v1213 = vld [vmem:[#allocation2 + $0xb4] sm:$0xf]
      %v1214 = vld [vmem:[#allocation2 + $0xb8] sm:$0xf]
      %v1215 = vld [vmem:[#allocation2 + $0xbc] sm:$0x1]
      %v1264 = vunpack.c.l.b16 %v1168
      %v1265 = vunpack.c.l.b16 %v1169
      %v1266 = vunpack.c.l.b16 %v1170
      %v1267 = vunpack.c.l.b16 %v1171
      %v1268 = vunpack.c.l.b16 %v1172
      %v1269 = vunpack.c.l.b16 %v1173
      %v1270 = vunpack.c.l.b16 %v1174
      %v1271 = vunpack.c.l.b16 %v1175
      %v1272 = vunpack.c.l.b16 %v1176
      %v1273 = vunpack.c.l.b16 %v1177
      %v1274 = vunpack.c.l.b16 %v1178
      %v1275 = vunpack.c.l.b16 %v1179
      %v1276 = vunpack.c.l.b16 %v1180
      %v1277 = vunpack.c.l.b16 %v1181
      %v1278 = vunpack.c.l.b16 %v1182
      %v1279 = vunpack.c.l.b16 %v1183
      %v1280 = vunpack.c.l.b16 %v1184
      %v1281 = vunpack.c.l.b16 %v1185
      %v1282 = vunpack.c.l.b16 %v1186
      %v1283 = vunpack.c.l.b16 %v1187
      %v1284 = vunpack.c.l.b16 %v1188
      %v1285 = vunpack.c.l.b16 %v1189
      %v1286 = vunpack.c.l.b16 %v1190
      %v1287 = vunpack.c.l.b16 %v1191
      %v1288 = vunpack.c.l.b16 %v1192
      %v1289 = vunpack.c.l.b16 %v1193
      %v1290 = vunpack.c.l.b16 %v1194
      %v1291 = vunpack.c.l.b16 %v1195
      %v1292 = vunpack.c.l.b16 %v1196
      %v1293 = vunpack.c.l.b16 %v1197
      %v1294 = vunpack.c.l.b16 %v1198
      %v1295 = vunpack.c.l.b16 %v1199
      %v1296 = vunpack.c.l.b16 %v1200
      %v1297 = vunpack.c.l.b16 %v1201
      %v1298 = vunpack.c.l.b16 %v1202
      %v1299 = vunpack.c.l.b16 %v1203
      %v1300 = vunpack.c.l.b16 %v1204
      %v1301 = vunpack.c.l.b16 %v1205
      %v1302 = vunpack.c.l.b16 %v1206
      %v1303 = vunpack.c.l.b16 %v1207
      %v1304 = vunpack.c.l.b16 %v1208
      %v1305 = vunpack.c.l.b16 %v1209
      %v1306 = vunpack.c.l.b16 %v1210
      %v1307 = vunpack.c.l.b16 %v1211
      %v1308 = vunpack.c.l.b16 %v1212
      %v1309 = vunpack.c.l.b16 %v1213
      %v1310 = vunpack.c.l.b16 %v1214
      %v1311 = vunpack.c.l.b16 %v1215
      %v1312 = vpack.c.b16 %v1265, %v1264
      %v1313 = vpack.c.b16 %v1266, %v1266
      %v1314 = vpack.c.b16 %v1268, %v1267
      %v1315 = vpack.c.b16 %v1269, %v1269
      %v1316 = vpack.c.b16 %v1271, %v1270
      %v1317 = vpack.c.b16 %v1272, %v1272
      %v1318 = vpack.c.b16 %v1274, %v1273
      %v1319 = vpack.c.b16 %v1275, %v1275
      %v1320 = vpack.c.b16 %v1277, %v1276
      %v1321 = vpack.c.b16 %v1278, %v1278
      %v1322 = vpack.c.b16 %v1280, %v1279
      %v1323 = vpack.c.b16 %v1281, %v1281
      %v1324 = vpack.c.b16 %v1283, %v1282
      %v1325 = vpack.c.b16 %v1284, %v1284
      %v1326 = vpack.c.b16 %v1286, %v1285
      %v1327 = vpack.c.b16 %v1287, %v1287
      %v1328 = vpack.c.b16 %v1289, %v1288
      %v1329 = vpack.c.b16 %v1290, %v1290
      %v1330 = vpack.c.b16 %v1292, %v1291
      %v1331 = vpack.c.b16 %v1293, %v1293
      %v1332 = vpack.c.b16 %v1295, %v1294
      %v1333 = vpack.c.b16 %v1296, %v1296
      %v1334 = vpack.c.b16 %v1298, %v1297
      %v1335 = vpack.c.b16 %v1299, %v1299
      %v1336 = vpack.c.b16 %v1301, %v1300
      %v1337 = vpack.c.b16 %v1302, %v1302
      %v1338 = vpack.c.b16 %v1304, %v1303
      %v1339 = vpack.c.b16 %v1305, %v1305
      %v1340 = vpack.c.b16 %v1307, %v1306
      %v1341 = vpack.c.b16 %v1308, %v1308
      %v1342 = vpack.c.b16 %v1310, %v1309
      %v1343 = vpack.c.b16 %v1311, %v1311
      %vm1344 = vsmask.f32 7424
      %v1346 = vshrl.u32 %v1312, 16
      %v1348 = vshll.u32 %v1312, 16
      %v1350 = vrot.slane %v1348, 1
      %v1351 = vor.u32 %v1346, %v1350
      %v1353 = vshll.u32 %v1313, 16
      %v1355 = vrot.slane %v1353, 1
      %v1356 = vsel %vm1344, %v1351, %v1355
      %v1358 = vshrl.u32 %v1314, 16
      %v1360 = vshll.u32 %v1314, 16
      %v1362 = vrot.slane %v1360, 1
      %v1363 = vor.u32 %v1358, %v1362
      %v1365 = vshll.u32 %v1315, 16
      %v1367 = vrot.slane %v1365, 1
      %v1368 = vsel %vm1344, %v1363, %v1367
      %v1370 = vshrl.u32 %v1316, 16
      %v1372 = vshll.u32 %v1316, 16
      %v1374 = vrot.slane %v1372, 1
      %v1375 = vor.u32 %v1370, %v1374
      %v1377 = vshll.u32 %v1317, 16
      %v1379 = vrot.slane %v1377, 1
      %v1380 = vsel %vm1344, %v1375, %v1379
      %v1382 = vshrl.u32 %v1318, 16
      %v1384 = vshll.u32 %v1318, 16
      %v1386 = vrot.slane %v1384, 1
      %v1387 = vor.u32 %v1382, %v1386
      %v1389 = vshll.u32 %v1319, 16
      %v1391 = vrot.slane %v1389, 1
      %v1392 = vsel %vm1344, %v1387, %v1391
      %v1394 = vshrl.u32 %v1320, 16
      %v1396 = vshll.u32 %v1320, 16
      %v1398 = vrot.slane %v1396, 1
      %v1399 = vor.u32 %v1394, %v1398
      %v1401 = vshll.u32 %v1321, 16
      %v1403 = vrot.slane %v1401, 1
      %v1404 = vsel %vm1344, %v1399, %v1403
      %v1406 = vshrl.u32 %v1322, 16
      %v1408 = vshll.u32 %v1322, 16
      %v1410 = vrot.slane %v1408, 1
      %v1411 = vor.u32 %v1406, %v1410
      %v1413 = vshll.u32 %v1323, 16
      %v1415 = vrot.slane %v1413, 1
      %v1416 = vsel %vm1344, %v1411, %v1415
      %v1418 = vshrl.u32 %v1324, 16
      %v1420 = vshll.u32 %v1324, 16
      %v1422 = vrot.slane %v1420, 1
      %v1423 = vor.u32 %v1418, %v1422
      %v1425 = vshll.u32 %v1325, 16
      %v1427 = vrot.slane %v1425, 1
      %v1428 = vsel %vm1344, %v1423, %v1427
      %v1430 = vshrl.u32 %v1326, 16
      %v1432 = vshll.u32 %v1326, 16
      %v1434 = vrot.slane %v1432, 1
      %v1435 = vor.u32 %v1430, %v1434
      %v1437 = vshll.u32 %v1327, 16
      %v1439 = vrot.slane %v1437, 1
      %v1440 = vsel %vm1344, %v1435, %v1439
      %v1442 = vshrl.u32 %v1328, 16
      %v1444 = vshll.u32 %v1328, 16
      %v1446 = vrot.slane %v1444, 1
      %v1447 = vor.u32 %v1442, %v1446
      %v1449 = vshll.u32 %v1329, 16
      %v1451 = vrot.slane %v1449, 1
      %v1452 = vsel %vm1344, %v1447, %v1451
      %v1454 = vshrl.u32 %v1330, 16
      %v1456 = vshll.u32 %v1330, 16
      %v1458 = vrot.slane %v1456, 1
      %v1459 = vor.u32 %v1454, %v1458
      %v1461 = vshll.u32 %v1331, 16
      %v1463 = vrot.slane %v1461, 1
      %v1464 = vsel %vm1344, %v1459, %v1463
      %v1466 = vshrl.u32 %v1332, 16
      %v1468 = vshll.u32 %v1332, 16
      %v1470 = vrot.slane %v1468, 1
      %v1471 = vor.u32 %v1466, %v1470
      %v1473 = vshll.u32 %v1333, 16
      %v1475 = vrot.slane %v1473, 1
      %v1476 = vsel %vm1344, %v1471, %v1475
      %v1478 = vshrl.u32 %v1334, 16
      %v1480 = vshll.u32 %v1334, 16
      %v1482 = vrot.slane %v1480, 1
      %v1483 = vor.u32 %v1478, %v1482
      %v1485 = vshll.u32 %v1335, 16
      %v1487 = vrot.slane %v1485, 1
      %v1488 = vsel %vm1344, %v1483, %v1487
      %v1490 = vshrl.u32 %v1336, 16
      %v1492 = vshll.u32 %v1336, 16
      %v1494 = vrot.slane %v1492, 1
      %v1495 = vor.u32 %v1490, %v1494
      %v1497 = vshll.u32 %v1337, 16
      %v1499 = vrot.slane %v1497, 1
      %v1500 = vsel %vm1344, %v1495, %v1499
      %v1502 = vshrl.u32 %v1338, 16
      %v1504 = vshll.u32 %v1338, 16
      %v1506 = vrot.slane %v1504, 1
      %v1507 = vor.u32 %v1502, %v1506
      %v1509 = vshll.u32 %v1339, 16
      %v1511 = vrot.slane %v1509, 1
      %v1512 = vsel %vm1344, %v1507, %v1511
      %v1514 = vshrl.u32 %v1340, 16
      %v1516 = vshll.u32 %v1340, 16
      %v1518 = vrot.slane %v1516, 1
      %v1519 = vor.u32 %v1514, %v1518
      %v1521 = vshll.u32 %v1341, 16
      %v1523 = vrot.slane %v1521, 1
      %v1524 = vsel %vm1344, %v1519, %v1523
      %v1526 = vshrl.u32 %v1342, 16
      %v1528 = vshll.u32 %v1342, 16
      %v1530 = vrot.slane %v1528, 1
      %v1531 = vor.u32 %v1526, %v1530
      %v1533 = vshll.u32 %v1343, 16
      %v1535 = vrot.slane %v1533, 1
      %v1536 = vsel %vm1344, %v1531, %v1535
      %1537 = vrot.lane.b32.xlu0 %v1356, 4
      %v1538 = vpop.permute.xlu0 %1537
      %1539 = vrot.lane.b32.xlu0 %v1368, 4
      %v1540 = vpop.permute.xlu0 %1539
      %1541 = vrot.lane.b32.xlu0 %v1380, 4
      %v1542 = vpop.permute.xlu0 %1541
      %1543 = vrot.lane.b32.xlu0 %v1392, 4
      %v1544 = vpop.permute.xlu0 %1543
      %1545 = vrot.lane.b32.xlu0 %v1404, 4
      %v1546 = vpop.permute.xlu0 %1545
      %1547 = vrot.lane.b32.xlu0 %v1416, 4
      %v1548 = vpop.permute.xlu0 %1547
      %1549 = vrot.lane.b32.xlu0 %v1428, 4
      %v1550 = vpop.permute.xlu0 %1549
      %1551 = vrot.lane.b32.xlu0 %v1440, 4
      %v1552 = vpop.permute.xlu0 %1551
      %1553 = vrot.lane.b32.xlu0 %v1452, 4
      %v1554 = vpop.permute.xlu0 %1553
      %1555 = vrot.lane.b32.xlu0 %v1464, 4
      %v1556 = vpop.permute.xlu0 %1555
      %1557 = vrot.lane.b32.xlu0 %v1476, 4
      %v1558 = vpop.permute.xlu0 %1557
      %1559 = vrot.lane.b32.xlu0 %v1488, 4
      %v1560 = vpop.permute.xlu0 %1559
      %1561 = vrot.lane.b32.xlu0 %v1500, 4
      %v1562 = vpop.permute.xlu0 %1561
      %1563 = vrot.lane.b32.xlu0 %v1512, 4
      %v1564 = vpop.permute.xlu0 %1563
      %1565 = vrot.lane.b32.xlu0 %v1524, 4
      %v1566 = vpop.permute.xlu0 %1565
      %1567 = vrot.lane.b32.xlu0 %v1536, 4
      %v1568 = vpop.permute.xlu0 %1567
      %vm1585 = vcmask 64544
      %1586 = vst.msk [vmem:[#allocation3] sm:$0xff] %vm1585, %v1538
      %1587 = vst.msk [vmem:[#allocation3 + $0x8] sm:$0xff] %vm1585, %v1540
      %1588 = vst.msk [vmem:[#allocation3 + $0x10] sm:$0xff] %vm1585, %v1542
      %1589 = vst.msk [vmem:[#allocation3 + $0x18] sm:$0xff] %vm1585, %v1544
      %1590 = vst.msk [vmem:[#allocation3 + $0x20] sm:$0xff] %vm1585, %v1546
      %1591 = vst.msk [vmem:[#allocation3 + $0x28] sm:$0xff] %vm1585, %v1548
      %1592 = vst.msk [vmem:[#allocation3 + $0x30] sm:$0xff] %vm1585, %v1550
      %1593 = vst.msk [vmem:[#allocation3 + $0x38] sm:$0xff] %vm1585, %v1552
      %1594 = vst.msk [vmem:[#allocation3 + $0x40] sm:$0xff] %vm1585, %v1554
      %1595 = vst.msk [vmem:[#allocation3 + $0x48] sm:$0xff] %vm1585, %v1556
      %1596 = vst.msk [vmem:[#allocation3 + $0x50] sm:$0xff] %vm1585, %v1558
      %1597 = vst.msk [vmem:[#allocation3 + $0x58] sm:$0xff] %vm1585, %v1560
      %1598 = vst.msk [vmem:[#allocation3 + $0x60] sm:$0xff] %vm1585, %v1562
      %1599 = vst.msk [vmem:[#allocation3 + $0x68] sm:$0xff] %vm1585, %v1564
      %1600 = vst.msk [vmem:[#allocation3 + $0x70] sm:$0xff] %vm1585, %v1566
      %1601 = vst.msk [vmem:[#allocation3 + $0x78] sm:$0xff] %vm1585, %v1568
      %v1602 = vld [vmem:[#allocation2] sm:$0xe]
      %v1603 = vld [vmem:[#allocation2 + $0x4] sm:$0xf]
      %v1604 = vld [vmem:[#allocation2 + $0x8] sm:$0x1]
      %v1605 = vld [vmem:[#allocation2 + $0xc] sm:$0xe]
      %v1606 = vld [vmem:[#allocation2 + $0x10] sm:$0xf]
      %v1607 = vld [vmem:[#allocation2 + $0x14] sm:$0x1]
      %v1608 = vld [vmem:[#allocation2 + $0x18] sm:$0xe]
      %v1609 = vld [vmem:[#allocation2 + $0x1c] sm:$0xf]
      %v1610 = vld [vmem:[#allocation2 + $0x20] sm:$0x1]
      %v1611 = vld [vmem:[#allocation2 + $0x24] sm:$0xe]
      %v1612 = vld [vmem:[#allocation2 + $0x28] sm:$0xf]
      %v1613 = vld [vmem:[#allocation2 + $0x2c] sm:$0x1]
      %v1614 = vld [vmem:[#allocation2 + $0x30] sm:$0xe]
      %v1615 = vld [vmem:[#allocation2 + $0x34] sm:$0xf]
      %v1616 = vld [vmem:[#allocation2 + $0x38] sm:$0x1]
      %v1617 = vld [vmem:[#allocation2 + $0x3c] sm:$0xe]
      %v1618 = vld [vmem:[#allocation2 + $0x40] sm:$0xf]
      %v1619 = vld [vmem:[#allocation2 + $0x44] sm:$0x1]
      %v1620 = vld [vmem:[#allocation2 + $0x48] sm:$0xe]
      %v1621 = vld [vmem:[#allocation2 + $0x4c] sm:$0xf]
      %v1622 = vld [vmem:[#allocation2 + $0x50] sm:$0x1]
      %v1623 = vld [vmem:[#allocation2 + $0x54] sm:$0xe]
      %v1624 = vld [vmem:[#allocation2 + $0x58] sm:$0xf]
      %v1625 = vld [vmem:[#allocation2 + $0x5c] sm:$0x1]
      %v1626 = vld [vmem:[#allocation2 + $0x60] sm:$0xe]
      %v1627 = vld [vmem:[#allocation2 + $0x64] sm:$0xf]
      %v1628 = vld [vmem:[#allocation2 + $0x68] sm:$0x1]
      %v1629 = vld [vmem:[#allocation2 + $0x6c] sm:$0xe]
      %v1630 = vld [vmem:[#allocation2 + $0x70] sm:$0xf]
      %v1631 = vld [vmem:[#allocation2 + $0x74] sm:$0x1]
      %v1632 = vld [vmem:[#allocation2 + $0x78] sm:$0xe]
      %v1633 = vld [vmem:[#allocation2 + $0x7c] sm:$0xf]
      %v1634 = vld [vmem:[#allocation2 + $0x80] sm:$0x1]
      %v1635 = vld [vmem:[#allocation2 + $0x84] sm:$0xe]
      %v1636 = vld [vmem:[#allocation2 + $0x88] sm:$0xf]
      %v1637 = vld [vmem:[#allocation2 + $0x8c] sm:$0x1]
      %v1638 = vld [vmem:[#allocation2 + $0x90] sm:$0xe]
      %v1639 = vld [vmem:[#allocation2 + $0x94] sm:$0xf]
      %v1640 = vld [vmem:[#allocation2 + $0x98] sm:$0x1]
      %v1641 = vld [vmem:[#allocation2 + $0x9c] sm:$0xe]
      %v1642 = vld [vmem:[#allocation2 + $0xa0] sm:$0xf]
      %v1643 = vld [vmem:[#allocation2 + $0xa4] sm:$0x1]
      %v1644 = vld [vmem:[#allocation2 + $0xa8] sm:$0xe]
      %v1645 = vld [vmem:[#allocation2 + $0xac] sm:$0xf]
      %v1646 = vld [vmem:[#allocation2 + $0xb0] sm:$0x1]
      %v1647 = vld [vmem:[#allocation2 + $0xb4] sm:$0xe]
      %v1648 = vld [vmem:[#allocation2 + $0xb8] sm:$0xf]
      %v1649 = vld [vmem:[#allocation2 + $0xbc] sm:$0x1]
      %v1698 = vunpack.c.l.b16 %v1602
      %v1699 = vunpack.c.l.b16 %v1603
      %v1700 = vunpack.c.l.b16 %v1604
      %v1701 = vunpack.c.l.b16 %v1605
      %v1702 = vunpack.c.l.b16 %v1606
      %v1703 = vunpack.c.l.b16 %v1607
      %v1704 = vunpack.c.l.b16 %v1608
      %v1705 = vunpack.c.l.b16 %v1609
      %v1706 = vunpack.c.l.b16 %v1610
      %v1707 = vunpack.c.l.b16 %v1611
      %v1708 = vunpack.c.l.b16 %v1612
      %v1709 = vunpack.c.l.b16 %v1613
      %v1710 = vunpack.c.l.b16 %v1614
      %v1711 = vunpack.c.l.b16 %v1615
      %v1712 = vunpack.c.l.b16 %v1616
      %v1713 = vunpack.c.l.b16 %v1617
      %v1714 = vunpack.c.l.b16 %v1618
      %v1715 = vunpack.c.l.b16 %v1619
      %v1716 = vunpack.c.l.b16 %v1620
      %v1717 = vunpack.c.l.b16 %v1621
      %v1718 = vunpack.c.l.b16 %v1622
      %v1719 = vunpack.c.l.b16 %v1623
      %v1720 = vunpack.c.l.b16 %v1624
      %v1721 = vunpack.c.l.b16 %v1625
      %v1722 = vunpack.c.l.b16 %v1626
      %v1723 = vunpack.c.l.b16 %v1627
      %v1724 = vunpack.c.l.b16 %v1628
      %v1725 = vunpack.c.l.b16 %v1629
      %v1726 = vunpack.c.l.b16 %v1630
      %v1727 = vunpack.c.l.b16 %v1631
      %v1728 = vunpack.c.l.b16 %v1632
      %v1729 = vunpack.c.l.b16 %v1633
      %v1730 = vunpack.c.l.b16 %v1634
      %v1731 = vunpack.c.l.b16 %v1635
      %v1732 = vunpack.c.l.b16 %v1636
      %v1733 = vunpack.c.l.b16 %v1637
      %v1734 = vunpack.c.l.b16 %v1638
      %v1735 = vunpack.c.l.b16 %v1639
      %v1736 = vunpack.c.l.b16 %v1640
      %v1737 = vunpack.c.l.b16 %v1641
      %v1738 = vunpack.c.l.b16 %v1642
      %v1739 = vunpack.c.l.b16 %v1643
      %v1740 = vunpack.c.l.b16 %v1644
      %v1741 = vunpack.c.l.b16 %v1645
      %v1742 = vunpack.c.l.b16 %v1646
      %v1743 = vunpack.c.l.b16 %v1647
      %v1744 = vunpack.c.l.b16 %v1648
      %v1745 = vunpack.c.l.b16 %v1649
      %v1746 = vpack.c.b16 %v1699, %v1698
      %v1747 = vpack.c.b16 %v1700, %v1700
      %v1748 = vpack.c.b16 %v1702, %v1701
      %v1749 = vpack.c.b16 %v1703, %v1703
      %v1750 = vpack.c.b16 %v1705, %v1704
      %v1751 = vpack.c.b16 %v1706, %v1706
      %v1752 = vpack.c.b16 %v1708, %v1707
      %v1753 = vpack.c.b16 %v1709, %v1709
      %v1754 = vpack.c.b16 %v1711, %v1710
      %v1755 = vpack.c.b16 %v1712, %v1712
      %v1756 = vpack.c.b16 %v1714, %v1713
      %v1757 = vpack.c.b16 %v1715, %v1715
      %v1758 = vpack.c.b16 %v1717, %v1716
      %v1759 = vpack.c.b16 %v1718, %v1718
      %v1760 = vpack.c.b16 %v1720, %v1719
      %v1761 = vpack.c.b16 %v1721, %v1721
      %v1762 = vpack.c.b16 %v1723, %v1722
      %v1763 = vpack.c.b16 %v1724, %v1724
      %v1764 = vpack.c.b16 %v1726, %v1725
      %v1765 = vpack.c.b16 %v1727, %v1727
      %v1766 = vpack.c.b16 %v1729, %v1728
      %v1767 = vpack.c.b16 %v1730, %v1730
      %v1768 = vpack.c.b16 %v1732, %v1731
      %v1769 = vpack.c.b16 %v1733, %v1733
      %v1770 = vpack.c.b16 %v1735, %v1734
      %v1771 = vpack.c.b16 %v1736, %v1736
      %v1772 = vpack.c.b16 %v1738, %v1737
      %v1773 = vpack.c.b16 %v1739, %v1739
      %v1774 = vpack.c.b16 %v1741, %v1740
      %v1775 = vpack.c.b16 %v1742, %v1742
      %v1776 = vpack.c.b16 %v1744, %v1743
      %v1777 = vpack.c.b16 %v1745, %v1745
      %vm1778 = vcmask 1046528
      %v1779 = vrot.slane %v1746, 1
      %v1780 = vrot.slane %v1747, 1
      %v1781 = vsel %vm1778, %v1779, %v1780
      %v1782 = vrot.slane %v1748, 1
      %v1783 = vrot.slane %v1749, 1
      %v1784 = vsel %vm1778, %v1782, %v1783
      %v1785 = vrot.slane %v1750, 1
      %v1786 = vrot.slane %v1751, 1
      %v1787 = vsel %vm1778, %v1785, %v1786
      %v1788 = vrot.slane %v1752, 1
      %v1789 = vrot.slane %v1753, 1
      %v1790 = vsel %vm1778, %v1788, %v1789
      %v1791 = vrot.slane %v1754, 1
      %v1792 = vrot.slane %v1755, 1
      %v1793 = vsel %vm1778, %v1791, %v1792
      %v1794 = vrot.slane %v1756, 1
      %v1795 = vrot.slane %v1757, 1
      %v1796 = vsel %vm1778, %v1794, %v1795
      %v1797 = vrot.slane %v1758, 1
      %v1798 = vrot.slane %v1759, 1
      %v1799 = vsel %vm1778, %v1797, %v1798
      %v1800 = vrot.slane %v1760, 1
      %v1801 = vrot.slane %v1761, 1
      %v1802 = vsel %vm1778, %v1800, %v1801
      %v1803 = vrot.slane %v1762, 1
      %v1804 = vrot.slane %v1763, 1
      %v1805 = vsel %vm1778, %v1803, %v1804
      %v1806 = vrot.slane %v1764, 1
      %v1807 = vrot.slane %v1765, 1
      %v1808 = vsel %vm1778, %v1806, %v1807
      %v1809 = vrot.slane %v1766, 1
      %v1810 = vrot.slane %v1767, 1
      %v1811 = vsel %vm1778, %v1809, %v1810
      %v1812 = vrot.slane %v1768, 1
      %v1813 = vrot.slane %v1769, 1
      %v1814 = vsel %vm1778, %v1812, %v1813
      %v1815 = vrot.slane %v1770, 1
      %v1816 = vrot.slane %v1771, 1
      %v1817 = vsel %vm1778, %v1815, %v1816
      %v1818 = vrot.slane %v1772, 1
      %v1819 = vrot.slane %v1773, 1
      %v1820 = vsel %vm1778, %v1818, %v1819
      %v1821 = vrot.slane %v1774, 1
      %v1822 = vrot.slane %v1775, 1
      %v1823 = vsel %vm1778, %v1821, %v1822
      %v1824 = vrot.slane %v1776, 1
      %v1825 = vrot.slane %v1777, 1
      %v1826 = vsel %vm1778, %v1824, %v1825
      %1827 = vrot.lane.b32.xlu0 %v1781, 8
      %v1828 = vpop.permute.xlu0 %1827
      %1829 = vrot.lane.b32.xlu0 %v1784, 8
      %v1830 = vpop.permute.xlu0 %1829
      %1831 = vrot.lane.b32.xlu0 %v1787, 8
      %v1832 = vpop.permute.xlu0 %1831
      %1833 = vrot.lane.b32.xlu0 %v1790, 8
      %v1834 = vpop.permute.xlu0 %1833
      %1835 = vrot.lane.b32.xlu0 %v1793, 8
      %v1836 = vpop.permute.xlu0 %1835
      %1837 = vrot.lane.b32.xlu0 %v1796, 8
      %v1838 = vpop.permute.xlu0 %1837
      %1839 = vrot.lane.b32.xlu0 %v1799, 8
      %v1840 = vpop.permute.xlu0 %1839
      %1841 = vrot.lane.b32.xlu0 %v1802, 8
      %v1842 = vpop.permute.xlu0 %1841
      %1843 = vrot.lane.b32.xlu0 %v1805, 8
      %v1844 = vpop.permute.xlu0 %1843
      %1845 = vrot.lane.b32.xlu0 %v1808, 8
      %v1846 = vpop.permute.xlu0 %1845
      %1847 = vrot.lane.b32.xlu0 %v1811, 8
      %v1848 = vpop.permute.xlu0 %1847
      %1849 = vrot.lane.b32.xlu0 %v1814, 8
      %v1850 = vpop.permute.xlu0 %1849
      %1851 = vrot.lane.b32.xlu0 %v1817, 8
      %v1852 = vpop.permute.xlu0 %1851
      %1853 = vrot.lane.b32.xlu0 %v1820, 8
      %v1854 = vpop.permute.xlu0 %1853
      %1855 = vrot.lane.b32.xlu0 %v1823, 8
      %v1856 = vpop.permute.xlu0 %1855
      %1857 = vrot.lane.b32.xlu0 %v1826, 8
      %v1858 = vpop.permute.xlu0 %1857
      %vm1875 = vcmask 97344
      %1876 = vst.msk [vmem:[#allocation3] sm:$0xff] %vm1875, %v1828
      %1877 = vst.msk [vmem:[#allocation3 + $0x8] sm:$0xff] %vm1875, %v1830
      %1878 = vst.msk [vmem:[#allocation3 + $0x10] sm:$0xff] %vm1875, %v1832
      %1879 = vst.msk [vmem:[#allocation3 + $0x18] sm:$0xff] %vm1875, %v1834
      %1880 = vst.msk [vmem:[#allocation3 + $0x20] sm:$0xff] %vm1875, %v1836
      %1881 = vst.msk [vmem:[#allocation3 + $0x28] sm:$0xff] %vm1875, %v1838
      %1882 = vst.msk [vmem:[#allocation3 + $0x30] sm:$0xff] %vm1875, %v1840
      %1883 = vst.msk [vmem:[#allocation3 + $0x38] sm:$0xff] %vm1875, %v1842
      %1884 = vst.msk [vmem:[#allocation3 + $0x40] sm:$0xff] %vm1875, %v1844
      %1885 = vst.msk [vmem:[#allocation3 + $0x48] sm:$0xff] %vm1875, %v1846
      %1886 = vst.msk [vmem:[#allocation3 + $0x50] sm:$0xff] %vm1875, %v1848
      %1887 = vst.msk [vmem:[#allocation3 + $0x58] sm:$0xff] %vm1875, %v1850
      %1888 = vst.msk [vmem:[#allocation3 + $0x60] sm:$0xff] %vm1875, %v1852
      %1889 = vst.msk [vmem:[#allocation3 + $0x68] sm:$0xff] %vm1875, %v1854
      %1890 = vst.msk [vmem:[#allocation3 + $0x70] sm:$0xff] %vm1875, %v1856
      %1891 = vst.msk [vmem:[#allocation3 + $0x78] sm:$0xff] %vm1875, %v1858
      %v1892 = vld [vmem:[%s908] sm:$0xf]
      %v1893 = vld [vmem:[%s908 + $0x4] sm:$0xf]
      %v1894 = vld [vmem:[%s908 + $0xc] sm:$0xf]
      %v1895 = vld [vmem:[%s908 + $0x10] sm:$0xf]
      %v1896 = vld [vmem:[%s908 + $0x18] sm:$0xf]
      %v1897 = vld [vmem:[%s908 + $0x1c] sm:$0xf]
      %v1898 = vld [vmem:[%s908 + $0x24] sm:$0xf]
      %v1899 = vld [vmem:[%s908 + $0x28] sm:$0xf]
      %v1900 = vld [vmem:[%s908 + $0x30] sm:$0xf]
      %v1901 = vld [vmem:[%s908 + $0x34] sm:$0xf]
      %v1902 = vld [vmem:[%s908 + $0x3c] sm:$0xf]
      %v1903 = vld [vmem:[%s908 + $0x40] sm:$0xf]
      %v1904 = vld [vmem:[%s908 + $0x48] sm:$0xf]
      %v1905 = vld [vmem:[%s908 + $0x4c] sm:$0xf]
      %v1906 = vld [vmem:[%s908 + $0x54] sm:$0xf]
      %v1907 = vld [vmem:[%s908 + $0x58] sm:$0xf]
      %v1908 = vld [vmem:[%s908 + $0x60] sm:$0xf]
      %v1909 = vld [vmem:[%s908 + $0x64] sm:$0xf]
      %v1910 = vld [vmem:[%s908 + $0x6c] sm:$0xf]
      %v1911 = vld [vmem:[%s908 + $0x70] sm:$0xf]
      %v1912 = vld [vmem:[%s908 + $0x78] sm:$0xf]
      %v1913 = vld [vmem:[%s908 + $0x7c] sm:$0xf]
      %v1914 = vld [vmem:[%s908 + $0x84] sm:$0xf]
      %v1915 = vld [vmem:[%s908 + $0x88] sm:$0xf]
      %v1916 = vld [vmem:[%s908 + $0x90] sm:$0xf]
      %v1917 = vld [vmem:[%s908 + $0x94] sm:$0xf]
      %v1918 = vld [vmem:[%s908 + $0x9c] sm:$0xf]
      %v1919 = vld [vmem:[%s908 + $0xa0] sm:$0xf]
      %v1920 = vld [vmem:[%s908 + $0xa8] sm:$0xf]
      %v1921 = vld [vmem:[%s908 + $0xac] sm:$0xf]
      %v1922 = vld [vmem:[%s908 + $0xb4] sm:$0xf]
      %v1923 = vld [vmem:[%s908 + $0xb8] sm:$0xf]
      %v1956 = vunpack.c.l.b16 %v1892
      %v1957 = vunpack.c.l.b16 %v1893
      %v1958 = vunpack.c.l.b16 %v1894
      %v1959 = vunpack.c.l.b16 %v1895
      %v1960 = vunpack.c.l.b16 %v1896
      %v1961 = vunpack.c.l.b16 %v1897
      %v1962 = vunpack.c.l.b16 %v1898
      %v1963 = vunpack.c.l.b16 %v1899
      %v1964 = vunpack.c.l.b16 %v1900
      %v1965 = vunpack.c.l.b16 %v1901
      %v1966 = vunpack.c.l.b16 %v1902
      %v1967 = vunpack.c.l.b16 %v1903
      %v1968 = vunpack.c.l.b16 %v1904
      %v1969 = vunpack.c.l.b16 %v1905
      %v1970 = vunpack.c.l.b16 %v1906
      %v1971 = vunpack.c.l.b16 %v1907
      %v1972 = vunpack.c.l.b16 %v1908
      %v1973 = vunpack.c.l.b16 %v1909
      %v1974 = vunpack.c.l.b16 %v1910
      %v1975 = vunpack.c.l.b16 %v1911
      %v1976 = vunpack.c.l.b16 %v1912
      %v1977 = vunpack.c.l.b16 %v1913
      %v1978 = vunpack.c.l.b16 %v1914
      %v1979 = vunpack.c.l.b16 %v1915
      %v1980 = vunpack.c.l.b16 %v1916
      %v1981 = vunpack.c.l.b16 %v1917
      %v1982 = vunpack.c.l.b16 %v1918
      %v1983 = vunpack.c.l.b16 %v1919
      %v1984 = vunpack.c.l.b16 %v1920
      %v1985 = vunpack.c.l.b16 %v1921
      %v1986 = vunpack.c.l.b16 %v1922
      %v1987 = vunpack.c.l.b16 %v1923
      %v1988 = vpack.c.b16 %v1957, %v1956
      %v1989 = vpack.c.b16 %v1959, %v1958
      %v1990 = vpack.c.b16 %v1961, %v1960
      %v1991 = vpack.c.b16 %v1963, %v1962
      %v1992 = vpack.c.b16 %v1965, %v1964
      %v1993 = vpack.c.b16 %v1967, %v1966
      %v1994 = vpack.c.b16 %v1969, %v1968
      %v1995 = vpack.c.b16 %v1971, %v1970
      %v1996 = vpack.c.b16 %v1973, %v1972
      %v1997 = vpack.c.b16 %v1975, %v1974
      %v1998 = vpack.c.b16 %v1977, %v1976
      %v1999 = vpack.c.b16 %v1979, %v1978
      %v2000 = vpack.c.b16 %v1981, %v1980
      %v2001 = vpack.c.b16 %v1983, %v1982
      %v2002 = vpack.c.b16 %v1985, %v1984
      %v2003 = vpack.c.b16 %v1987, %v1986
      %2004 = vrot.lane.b32.xlu0 %v1988, 12
      %v2005 = vpop.permute.xlu0 %2004
      %2006 = vrot.lane.b32.xlu0 %v1989, 12
      %v2007 = vpop.permute.xlu0 %2006
      %2008 = vrot.lane.b32.xlu0 %v1990, 12
      %v2009 = vpop.permute.xlu0 %2008
      %2010 = vrot.lane.b32.xlu0 %v1991, 12
      %v2011 = vpop.permute.xlu0 %2010
      %2012 = vrot.lane.b32.xlu0 %v1992, 12
      %v2013 = vpop.permute.xlu0 %2012
      %2014 = vrot.lane.b32.xlu0 %v1993, 12
      %v2015 = vpop.permute.xlu0 %2014
      %2016 = vrot.lane.b32.xlu0 %v1994, 12
      %v2017 = vpop.permute.xlu0 %2016
      %2018 = vrot.lane.b32.xlu0 %v1995, 12
      %v2019 = vpop.permute.xlu0 %2018
      %2020 = vrot.lane.b32.xlu0 %v1996, 12
      %v2021 = vpop.permute.xlu0 %2020
      %2022 = vrot.lane.b32.xlu0 %v1997, 12
      %v2023 = vpop.permute.xlu0 %2022
      %2024 = vrot.lane.b32.xlu0 %v1998, 12
      %v2025 = vpop.permute.xlu0 %2024
      %2026 = vrot.lane.b32.xlu0 %v1999, 12
      %v2027 = vpop.permute.xlu0 %2026
      %2028 = vrot.lane.b32.xlu0 %v2000, 12
      %v2029 = vpop.permute.xlu0 %2028
      %2030 = vrot.lane.b32.xlu0 %v2001, 12
      %v2031 = vpop.permute.xlu0 %2030
      %2032 = vrot.lane.b32.xlu0 %v2002, 12
      %v2033 = vpop.permute.xlu0 %2032
      %2034 = vrot.lane.b32.xlu0 %v2003, 12
      %v2035 = vpop.permute.xlu0 %2034
      %vm2052 = vcmask 130144
      %2053 = vst.msk [vmem:[#allocation3] sm:$0xff] %vm2052, %v2005
      %2054 = vst.msk [vmem:[#allocation3 + $0x8] sm:$0xff] %vm2052, %v2007
      %2055 = vst.msk [vmem:[#allocation3 + $0x10] sm:$0xff] %vm2052, %v2009
      %2056 = vst.msk [vmem:[#allocation3 + $0x18] sm:$0xff] %vm2052, %v2011
      %2057 = vst.msk [vmem:[#allocation3 + $0x20] sm:$0xff] %vm2052, %v2013
      %2058 = vst.msk [vmem:[#allocation3 + $0x28] sm:$0xff] %vm2052, %v2015
      %2059 = vst.msk [vmem:[#allocation3 + $0x30] sm:$0xff] %vm2052, %v2017
      %2060 = vst.msk [vmem:[#allocation3 + $0x38] sm:$0xff] %vm2052, %v2019
      %2061 = vst.msk [vmem:[#allocation3 + $0x40] sm:$0xff] %vm2052, %v2021
      %2062 = vst.msk [vmem:[#allocation3 + $0x48] sm:$0xff] %vm2052, %v2023
      %2063 = vst.msk [vmem:[#allocation3 + $0x50] sm:$0xff] %vm2052, %v2025
      %2064 = vst.msk [vmem:[#allocation3 + $0x58] sm:$0xff] %vm2052, %v2027
      %2065 = vst.msk [vmem:[#allocation3 + $0x60] sm:$0xff] %vm2052, %v2029
      %2066 = vst.msk [vmem:[#allocation3 + $0x68] sm:$0xff] %vm2052, %v2031
      %2067 = vst.msk [vmem:[#allocation3 + $0x70] sm:$0xff] %vm2052, %v2033
      %2068 = vst.msk [vmem:[#allocation3 + $0x78] sm:$0xff] %vm2052, %v2035
      %v2069 = vld [vmem:[%s908] sm:$0xf]
      %v2070 = vld [vmem:[%s908 + $0x4] sm:$0xf]
      %v2071 = vld [vmem:[%s908 + $0x8] sm:$0x1]
      %v2072 = vld [vmem:[%s908 + $0xc] sm:$0xf]
      %v2073 = vld [vmem:[%s908 + $0x10] sm:$0xf]
      %v2074 = vld [vmem:[%s908 + $0x14] sm:$0x1]
      %v2075 = vld [vmem:[%s908 + $0x18] sm:$0xf]
      %v2076 = vld [vmem:[%s908 + $0x1c] sm:$0xf]
      %v2077 = vld [vmem:[%s908 + $0x20] sm:$0x1]
      %v2078 = vld [vmem:[%s908 + $0x24] sm:$0xf]
      %v2079 = vld [vmem:[%s908 + $0x28] sm:$0xf]
      %v2080 = vld [vmem:[%s908 + $0x2c] sm:$0x1]
      %v2081 = vld [vmem:[%s908 + $0x30] sm:$0xf]
      %v2082 = vld [vmem:[%s908 + $0x34] sm:$0xf]
      %v2083 = vld [vmem:[%s908 + $0x38] sm:$0x1]
      %v2084 = vld [vmem:[%s908 + $0x3c] sm:$0xf]
      %v2085 = vld [vmem:[%s908 + $0x40] sm:$0xf]
      %v2086 = vld [vmem:[%s908 + $0x44] sm:$0x1]
      %v2087 = vld [vmem:[%s908 + $0x48] sm:$0xf]
      %v2088 = vld [vmem:[%s908 + $0x4c] sm:$0xf]
      %v2089 = vld [vmem:[%s908 + $0x50] sm:$0x1]
      %v2090 = vld [vmem:[%s908 + $0x54] sm:$0xf]
      %v2091 = vld [vmem:[%s908 + $0x58] sm:$0xf]
      %v2092 = vld [vmem:[%s908 + $0x5c] sm:$0x1]
      %v2093 = vld [vmem:[%s908 + $0x60] sm:$0xf]
      %v2094 = vld [vmem:[%s908 + $0x64] sm:$0xf]
      %v2095 = vld [vmem:[%s908 + $0x68] sm:$0x1]
      %v2096 = vld [vmem:[%s908 + $0x6c] sm:$0xf]
      %v2097 = vld [vmem:[%s908 + $0x70] sm:$0xf]
      %v2098 = vld [vmem:[%s908 + $0x74] sm:$0x1]
      %v2099 = vld [vmem:[%s908 + $0x78] sm:$0xf]
      %v2100 = vld [vmem:[%s908 + $0x7c] sm:$0xf]
      %v2101 = vld [vmem:[%s908 + $0x80] sm:$0x1]
      %v2102 = vld [vmem:[%s908 + $0x84] sm:$0xf]
      %v2103 = vld [vmem:[%s908 + $0x88] sm:$0xf]
      %v2104 = vld [vmem:[%s908 + $0x8c] sm:$0x1]
      %v2105 = vld [vmem:[%s908 + $0x90] sm:$0xf]
      %v2106 = vld [vmem:[%s908 + $0x94] sm:$0xf]
      %v2107 = vld [vmem:[%s908 + $0x98] sm:$0x1]
      %v2108 = vld [vmem:[%s908 + $0x9c] sm:$0xf]
      %v2109 = vld [vmem:[%s908 + $0xa0] sm:$0xf]
      %v2110 = vld [vmem:[%s908 + $0xa4] sm:$0x1]
      %v2111 = vld [vmem:[%s908 + $0xa8] sm:$0xf]
      %v2112 = vld [vmem:[%s908 + $0xac] sm:$0xf]
      %v2113 = vld [vmem:[%s908 + $0xb0] sm:$0x1]
      %v2114 = vld [vmem:[%s908 + $0xb4] sm:$0xf]
      %v2115 = vld [vmem:[%s908 + $0xb8] sm:$0xf]
      %v2116 = vld [vmem:[%s908 + $0xbc] sm:$0x1]
      %v2165 = vunpack.c.l.b16 %v2069
      %v2166 = vunpack.c.l.b16 %v2070
      %v2167 = vunpack.c.l.b16 %v2071
      %v2168 = vunpack.c.l.b16 %v2072
      %v2169 = vunpack.c.l.b16 %v2073
      %v2170 = vunpack.c.l.b16 %v2074
      %v2171 = vunpack.c.l.b16 %v2075
      %v2172 = vunpack.c.l.b16 %v2076
      %v2173 = vunpack.c.l.b16 %v2077
      %v2174 = vunpack.c.l.b16 %v2078
      %v2175 = vunpack.c.l.b16 %v2079
      %v2176 = vunpack.c.l.b16 %v2080
      %v2177 = vunpack.c.l.b16 %v2081
      %v2178 = vunpack.c.l.b16 %v2082
      %v2179 = vunpack.c.l.b16 %v2083
      %v2180 = vunpack.c.l.b16 %v2084
      %v2181 = vunpack.c.l.b16 %v2085
      %v2182 = vunpack.c.l.b16 %v2086
      %v2183 = vunpack.c.l.b16 %v2087
      %v2184 = vunpack.c.l.b16 %v2088
      %v2185 = vunpack.c.l.b16 %v2089
      %v2186 = vunpack.c.l.b16 %v2090
      %v2187 = vunpack.c.l.b16 %v2091
      %v2188 = vunpack.c.l.b16 %v2092
      %v2189 = vunpack.c.l.b16 %v2093
      %v2190 = vunpack.c.l.b16 %v2094
      %v2191 = vunpack.c.l.b16 %v2095
      %v2192 = vunpack.c.l.b16 %v2096
      %v2193 = vunpack.c.l.b16 %v2097
      %v2194 = vunpack.c.l.b16 %v2098
      %v2195 = vunpack.c.l.b16 %v2099
      %v2196 = vunpack.c.l.b16 %v2100
      %v2197 = vunpack.c.l.b16 %v2101
      %v2198 = vunpack.c.l.b16 %v2102
      %v2199 = vunpack.c.l.b16 %v2103
      %v2200 = vunpack.c.l.b16 %v2104
      %v2201 = vunpack.c.l.b16 %v2105
      %v2202 = vunpack.c.l.b16 %v2106
      %v2203 = vunpack.c.l.b16 %v2107
      %v2204 = vunpack.c.l.b16 %v2108
      %v2205 = vunpack.c.l.b16 %v2109
      %v2206 = vunpack.c.l.b16 %v2110
      %v2207 = vunpack.c.l.b16 %v2111
      %v2208 = vunpack.c.l.b16 %v2112
      %v2209 = vunpack.c.l.b16 %v2113
      %v2210 = vunpack.c.l.b16 %v2114
      %v2211 = vunpack.c.l.b16 %v2115
      %v2212 = vunpack.c.l.b16 %v2116
      %v2213 = vpack.c.b16 %v2166, %v2165
      %v2214 = vpack.c.b16 %v2167, %v2167
      %v2215 = vpack.c.b16 %v2169, %v2168
      %v2216 = vpack.c.b16 %v2170, %v2170
      %v2217 = vpack.c.b16 %v2172, %v2171
      %v2218 = vpack.c.b16 %v2173, %v2173
      %v2219 = vpack.c.b16 %v2175, %v2174
      %v2220 = vpack.c.b16 %v2176, %v2176
      %v2221 = vpack.c.b16 %v2178, %v2177
      %v2222 = vpack.c.b16 %v2179, %v2179
      %v2223 = vpack.c.b16 %v2181, %v2180
      %v2224 = vpack.c.b16 %v2182, %v2182
      %v2225 = vpack.c.b16 %v2184, %v2183
      %v2226 = vpack.c.b16 %v2185, %v2185
      %v2227 = vpack.c.b16 %v2187, %v2186
      %v2228 = vpack.c.b16 %v2188, %v2188
      %v2229 = vpack.c.b16 %v2190, %v2189
      %v2230 = vpack.c.b16 %v2191, %v2191
      %v2231 = vpack.c.b16 %v2193, %v2192
      %v2232 = vpack.c.b16 %v2194, %v2194
      %v2233 = vpack.c.b16 %v2196, %v2195
      %v2234 = vpack.c.b16 %v2197, %v2197
      %v2235 = vpack.c.b16 %v2199, %v2198
      %v2236 = vpack.c.b16 %v2200, %v2200
      %v2237 = vpack.c.b16 %v2202, %v2201
      %v2238 = vpack.c.b16 %v2203, %v2203
      %v2239 = vpack.c.b16 %v2205, %v2204
      %v2240 = vpack.c.b16 %v2206, %v2206
      %v2241 = vpack.c.b16 %v2208, %v2207
      %v2242 = vpack.c.b16 %v2209, %v2209
      %v2243 = vpack.c.b16 %v2211, %v2210
      %v2244 = vpack.c.b16 %v2212, %v2212
      %v2246 = vshrl.u32 %v2213, 16
      %v2248 = vshll.u32 %v2213, 16
      %v2250 = vrot.slane %v2248, 1
      %v2251 = vor.u32 %v2246, %v2250
      %v2253 = vshll.u32 %v2214, 16
      %v2255 = vrot.slane %v2253, 1
      %v2256 = vsel %vm1344, %v2251, %v2255
      %v2258 = vshrl.u32 %v2215, 16
      %v2260 = vshll.u32 %v2215, 16
      %v2262 = vrot.slane %v2260, 1
      %v2263 = vor.u32 %v2258, %v2262
      %v2265 = vshll.u32 %v2216, 16
      %v2267 = vrot.slane %v2265, 1
      %v2268 = vsel %vm1344, %v2263, %v2267
      %v2270 = vshrl.u32 %v2217, 16
      %v2272 = vshll.u32 %v2217, 16
      %v2274 = vrot.slane %v2272, 1
      %v2275 = vor.u32 %v2270, %v2274
      %v2277 = vshll.u32 %v2218, 16
      %v2279 = vrot.slane %v2277, 1
      %v2280 = vsel %vm1344, %v2275, %v2279
      %v2282 = vshrl.u32 %v2219, 16
      %v2284 = vshll.u32 %v2219, 16
      %v2286 = vrot.slane %v2284, 1
      %v2287 = vor.u32 %v2282, %v2286
      %v2289 = vshll.u32 %v2220, 16
      %v2291 = vrot.slane %v2289, 1
      %v2292 = vsel %vm1344, %v2287, %v2291
      %v2294 = vshrl.u32 %v2221, 16
      %v2296 = vshll.u32 %v2221, 16
      %v2298 = vrot.slane %v2296, 1
      %v2299 = vor.u32 %v2294, %v2298
      %v2301 = vshll.u32 %v2222, 16
      %v2303 = vrot.slane %v2301, 1
      %v2304 = vsel %vm1344, %v2299, %v2303
      %v2306 = vshrl.u32 %v2223, 16
      %v2308 = vshll.u32 %v2223, 16
      %v2310 = vrot.slane %v2308, 1
      %v2311 = vor.u32 %v2306, %v2310
      %v2313 = vshll.u32 %v2224, 16
      %v2315 = vrot.slane %v2313, 1
      %v2316 = vsel %vm1344, %v2311, %v2315
      %v2318 = vshrl.u32 %v2225, 16
      %v2320 = vshll.u32 %v2225, 16
      %v2322 = vrot.slane %v2320, 1
      %v2323 = vor.u32 %v2318, %v2322
      %v2325 = vshll.u32 %v2226, 16
      %v2327 = vrot.slane %v2325, 1
      %v2328 = vsel %vm1344, %v2323, %v2327
      %v2330 = vshrl.u32 %v2227, 16
      %v2332 = vshll.u32 %v2227, 16
      %v2334 = vrot.slane %v2332, 1
      %v2335 = vor.u32 %v2330, %v2334
      %v2337 = vshll.u32 %v2228, 16
      %v2339 = vrot.slane %v2337, 1
      %v2340 = vsel %vm1344, %v2335, %v2339
      %v2342 = vshrl.u32 %v2229, 16
      %v2344 = vshll.u32 %v2229, 16
      %v2346 = vrot.slane %v2344, 1
      %v2347 = vor.u32 %v2342, %v2346
      %v2349 = vshll.u32 %v2230, 16
      %v2351 = vrot.slane %v2349, 1
      %v2352 = vsel %vm1344, %v2347, %v2351
      %v2354 = vshrl.u32 %v2231, 16
      %v2356 = vshll.u32 %v2231, 16
      %v2358 = vrot.slane %v2356, 1
      %v2359 = vor.u32 %v2354, %v2358
      %v2361 = vshll.u32 %v2232, 16
      %v2363 = vrot.slane %v2361, 1
      %v2364 = vsel %vm1344, %v2359, %v2363
      %v2366 = vshrl.u32 %v2233, 16
      %v2368 = vshll.u32 %v2233, 16
      %v2370 = vrot.slane %v2368, 1
      %v2371 = vor.u32 %v2366, %v2370
      %v2373 = vshll.u32 %v2234, 16
      %v2375 = vrot.slane %v2373, 1
      %v2376 = vsel %vm1344, %v2371, %v2375
      %v2378 = vshrl.u32 %v2235, 16
      %v2380 = vshll.u32 %v2235, 16
      %v2382 = vrot.slane %v2380, 1
      %v2383 = vor.u32 %v2378, %v2382
      %v2385 = vshll.u32 %v2236, 16
      %v2387 = vrot.slane %v2385, 1
      %v2388 = vsel %vm1344, %v2383, %v2387
      %v2390 = vshrl.u32 %v2237, 16
      %v2392 = vshll.u32 %v2237, 16
      %v2394 = vrot.slane %v2392, 1
      %v2395 = vor.u32 %v2390, %v2394
      %v2397 = vshll.u32 %v2238, 16
      %v2399 = vrot.slane %v2397, 1
      %v2400 = vsel %vm1344, %v2395, %v2399
      %v2402 = vshrl.u32 %v2239, 16
      %v2404 = vshll.u32 %v2239, 16
      %v2406 = vrot.slane %v2404, 1
      %v2407 = vor.u32 %v2402, %v2406
      %v2409 = vshll.u32 %v2240, 16
      %v2411 = vrot.slane %v2409, 1
      %v2412 = vsel %vm1344, %v2407, %v2411
      %v2414 = vshrl.u32 %v2241, 16
      %v2416 = vshll.u32 %v2241, 16
      %v2418 = vrot.slane %v2416, 1
      %v2419 = vor.u32 %v2414, %v2418
      %v2421 = vshll.u32 %v2242, 16
      %v2423 = vrot.slane %v2421, 1
      %v2424 = vsel %vm1344, %v2419, %v2423
      %v2426 = vshrl.u32 %v2243, 16
      %v2428 = vshll.u32 %v2243, 16
      %v2430 = vrot.slane %v2428, 1
      %v2431 = vor.u32 %v2426, %v2430
      %v2433 = vshll.u32 %v2244, 16
      %v2435 = vrot.slane %v2433, 1
      %v2436 = vsel %vm1344, %v2431, %v2435
      %2437 = vrot.lane.b32.xlu0 %v2256, 16
      %v2438 = vpop.permute.xlu0 %2437
      %2439 = vrot.lane.b32.xlu0 %v2268, 16
      %v2440 = vpop.permute.xlu0 %2439
      %2441 = vrot.lane.b32.xlu0 %v2280, 16
      %v2442 = vpop.permute.xlu0 %2441
      %2443 = vrot.lane.b32.xlu0 %v2292, 16
      %v2444 = vpop.permute.xlu0 %2443
      %2445 = vrot.lane.b32.xlu0 %v2304, 16
      %v2446 = vpop.permute.xlu0 %2445
      %2447 = vrot.lane.b32.xlu0 %v2316, 16
      %v2448 = vpop.permute.xlu0 %2447
      %2449 = vrot.lane.b32.xlu0 %v2328, 16
      %v2450 = vpop.permute.xlu0 %2449
      %2451 = vrot.lane.b32.xlu0 %v2340, 16
      %v2452 = vpop.permute.xlu0 %2451
      %2453 = vrot.lane.b32.xlu0 %v2352, 16
      %v2454 = vpop.permute.xlu0 %2453
      %2455 = vrot.lane.b32.xlu0 %v2364, 16
      %v2456 = vpop.permute.xlu0 %2455
      %2457 = vrot.lane.b32.xlu0 %v2376, 16
      %v2458 = vpop.permute.xlu0 %2457
      %2459 = vrot.lane.b32.xlu0 %v2388, 16
      %v2460 = vpop.permute.xlu0 %2459
      %2461 = vrot.lane.b32.xlu0 %v2400, 16
      %v2462 = vpop.permute.xlu0 %2461
      %2463 = vrot.lane.b32.xlu0 %v2412, 16
      %v2464 = vpop.permute.xlu0 %2463
      %2465 = vrot.lane.b32.xlu0 %v2424, 16
      %v2466 = vpop.permute.xlu0 %2465
      %2467 = vrot.lane.b32.xlu0 %v2436, 16
      %v2468 = vpop.permute.xlu0 %2467
      %vm2485 = vcmask 162944
      %2486 = vst.msk [vmem:[#allocation3] sm:$0xff] %vm2485, %v2438
      %2487 = vst.msk [vmem:[#allocation3 + $0x8] sm:$0xff] %vm2485, %v2440
      %2488 = vst.msk [vmem:[#allocation3 + $0x10] sm:$0xff] %vm2485, %v2442
      %2489 = vst.msk [vmem:[#allocation3 + $0x18] sm:$0xff] %vm2485, %v2444
      %2490 = vst.msk [vmem:[#allocation3 + $0x20] sm:$0xff] %vm2485, %v2446
      %2491 = vst.msk [vmem:[#allocation3 + $0x28] sm:$0xff] %vm2485, %v2448
      %2492 = vst.msk [vmem:[#allocation3 + $0x30] sm:$0xff] %vm2485, %v2450
      %2493 = vst.msk [vmem:[#allocation3 + $0x38] sm:$0xff] %vm2485, %v2452
      %2494 = vst.msk [vmem:[#allocation3 + $0x40] sm:$0xff] %vm2485, %v2454
      %2495 = vst.msk [vmem:[#allocation3 + $0x48] sm:$0xff] %vm2485, %v2456
      %2496 = vst.msk [vmem:[#allocation3 + $0x50] sm:$0xff] %vm2485, %v2458
      %2497 = vst.msk [vmem:[#allocation3 + $0x58] sm:$0xff] %vm2485, %v2460
      %2498 = vst.msk [vmem:[#allocation3 + $0x60] sm:$0xff] %vm2485, %v2462
      %2499 = vst.msk [vmem:[#allocation3 + $0x68] sm:$0xff] %vm2485, %v2464
      %2500 = vst.msk [vmem:[#allocation3 + $0x70] sm:$0xff] %vm2485, %v2466
      %2501 = vst.msk [vmem:[#allocation3 + $0x78] sm:$0xff] %vm2485, %v2468
      %v2502 = vld [vmem:[%s908] sm:$0xe]
      %v2503 = vld [vmem:[%s908 + $0x4] sm:$0xf]
      %v2504 = vld [vmem:[%s908 + $0x8] sm:$0x1]
      %v2505 = vld [vmem:[%s908 + $0xc] sm:$0xe]
      %v2506 = vld [vmem:[%s908 + $0x10] sm:$0xf]
      %v2507 = vld [vmem:[%s908 + $0x14] sm:$0x1]
      %v2508 = vld [vmem:[%s908 + $0x18] sm:$0xe]
      %v2509 = vld [vmem:[%s908 + $0x1c] sm:$0xf]
      %v2510 = vld [vmem:[%s908 + $0x20] sm:$0x1]
      %v2511 = vld [vmem:[%s908 + $0x24] sm:$0xe]
      %v2512 = vld [vmem:[%s908 + $0x28] sm:$0xf]
      %v2513 = vld [vmem:[%s908 + $0x2c] sm:$0x1]
      %v2514 = vld [vmem:[%s908 + $0x30] sm:$0xe]
      %v2515 = vld [vmem:[%s908 + $0x34] sm:$0xf]
      %v2516 = vld [vmem:[%s908 + $0x38] sm:$0x1]
      %v2517 = vld [vmem:[%s908 + $0x3c] sm:$0xe]
      %v2518 = vld [vmem:[%s908 + $0x40] sm:$0xf]
      %v2519 = vld [vmem:[%s908 + $0x44] sm:$0x1]
      %v2520 = vld [vmem:[%s908 + $0x48] sm:$0xe]
      %v2521 = vld [vmem:[%s908 + $0x4c] sm:$0xf]
      %v2522 = vld [vmem:[%s908 + $0x50] sm:$0x1]
      %v2523 = vld [vmem:[%s908 + $0x54] sm:$0xe]
      %v2524 = vld [vmem:[%s908 + $0x58] sm:$0xf]
      %v2525 = vld [vmem:[%s908 + $0x5c] sm:$0x1]
      %v2526 = vld [vmem:[%s908 + $0x60] sm:$0xe]
      %v2527 = vld [vmem:[%s908 + $0x64] sm:$0xf]
      %v2528 = vld [vmem:[%s908 + $0x68] sm:$0x1]
      %v2529 = vld [vmem:[%s908 + $0x6c] sm:$0xe]
      %v2530 = vld [vmem:[%s908 + $0x70] sm:$0xf]
      %v2531 = vld [vmem:[%s908 + $0x74] sm:$0x1]
      %v2532 = vld [vmem:[%s908 + $0x78] sm:$0xe]
      %v2533 = vld [vmem:[%s908 + $0x7c] sm:$0xf]
      %v2534 = vld [vmem:[%s908 + $0x80] sm:$0x1]
      %v2535 = vld [vmem:[%s908 + $0x84] sm:$0xe]
      %v2536 = vld [vmem:[%s908 + $0x88] sm:$0xf]
      %v2537 = vld [vmem:[%s908 + $0x8c] sm:$0x1]
      %v2538 = vld [vmem:[%s908 + $0x90] sm:$0xe]
      %v2539 = vld [vmem:[%s908 + $0x94] sm:$0xf]
      %v2540 = vld [vmem:[%s908 + $0x98] sm:$0x1]
      %v2541 = vld [vmem:[%s908 + $0x9c] sm:$0xe]
      %v2542 = vld [vmem:[%s908 + $0xa0] sm:$0xf]
      %v2543 = vld [vmem:[%s908 + $0xa4] sm:$0x1]
      %v2544 = vld [vmem:[%s908 + $0xa8] sm:$0xe]
      %v2545 = vld [vmem:[%s908 + $0xac] sm:$0xf]
      %v2546 = vld [vmem:[%s908 + $0xb0] sm:$0x1]
      %v2547 = vld [vmem:[%s908 + $0xb4] sm:$0xe]
      %v2548 = vld [vmem:[%s908 + $0xb8] sm:$0xf]
      %v2549 = vld [vmem:[%s908 + $0xbc] sm:$0x1]
      %v2598 = vunpack.c.l.b16 %v2502
      %v2599 = vunpack.c.l.b16 %v2503
      %v2600 = vunpack.c.l.b16 %v2504
      %v2601 = vunpack.c.l.b16 %v2505
      %v2602 = vunpack.c.l.b16 %v2506
      %v2603 = vunpack.c.l.b16 %v2507
      %v2604 = vunpack.c.l.b16 %v2508
      %v2605 = vunpack.c.l.b16 %v2509
      %v2606 = vunpack.c.l.b16 %v2510
      %v2607 = vunpack.c.l.b16 %v2511
      %v2608 = vunpack.c.l.b16 %v2512
      %v2609 = vunpack.c.l.b16 %v2513
      %v2610 = vunpack.c.l.b16 %v2514
      %v2611 = vunpack.c.l.b16 %v2515
      %v2612 = vunpack.c.l.b16 %v2516
      %v2613 = vunpack.c.l.b16 %v2517
      %v2614 = vunpack.c.l.b16 %v2518
      %v2615 = vunpack.c.l.b16 %v2519
      %v2616 = vunpack.c.l.b16 %v2520
      %v2617 = vunpack.c.l.b16 %v2521
      %v2618 = vunpack.c.l.b16 %v2522
      %v2619 = vunpack.c.l.b16 %v2523
      %v2620 = vunpack.c.l.b16 %v2524
      %v2621 = vunpack.c.l.b16 %v2525
      %v2622 = vunpack.c.l.b16 %v2526
      %v2623 = vunpack.c.l.b16 %v2527
      %v2624 = vunpack.c.l.b16 %v2528
      %v2625 = vunpack.c.l.b16 %v2529
      %v2626 = vunpack.c.l.b16 %v2530
      %v2627 = vunpack.c.l.b16 %v2531
      %v2628 = vunpack.c.l.b16 %v2532
      %v2629 = vunpack.c.l.b16 %v2533
      %v2630 = vunpack.c.l.b16 %v2534
      %v2631 = vunpack.c.l.b16 %v2535
      %v2632 = vunpack.c.l.b16 %v2536
      %v2633 = vunpack.c.l.b16 %v2537
      %v2634 = vunpack.c.l.b16 %v2538
      %v2635 = vunpack.c.l.b16 %v2539
      %v2636 = vunpack.c.l.b16 %v2540
      %v2637 = vunpack.c.l.b16 %v2541
      %v2638 = vunpack.c.l.b16 %v2542
      %v2639 = vunpack.c.l.b16 %v2543
      %v2640 = vunpack.c.l.b16 %v2544
      %v2641 = vunpack.c.l.b16 %v2545
      %v2642 = vunpack.c.l.b16 %v2546
      %v2643 = vunpack.c.l.b16 %v2547
      %v2644 = vunpack.c.l.b16 %v2548
      %v2645 = vunpack.c.l.b16 %v2549
      %v2646 = vpack.c.b16 %v2599, %v2598
      %v2647 = vpack.c.b16 %v2600, %v2600
      %v2648 = vpack.c.b16 %v2602, %v2601
      %v2649 = vpack.c.b16 %v2603, %v2603
      %v2650 = vpack.c.b16 %v2605, %v2604
      %v2651 = vpack.c.b16 %v2606, %v2606
      %v2652 = vpack.c.b16 %v2608, %v2607
      %v2653 = vpack.c.b16 %v2609, %v2609
      %v2654 = vpack.c.b16 %v2611, %v2610
      %v2655 = vpack.c.b16 %v2612, %v2612
      %v2656 = vpack.c.b16 %v2614, %v2613
      %v2657 = vpack.c.b16 %v2615, %v2615
      %v2658 = vpack.c.b16 %v2617, %v2616
      %v2659 = vpack.c.b16 %v2618, %v2618
      %v2660 = vpack.c.b16 %v2620, %v2619
      %v2661 = vpack.c.b16 %v2621, %v2621
      %v2662 = vpack.c.b16 %v2623, %v2622
      %v2663 = vpack.c.b16 %v2624, %v2624
      %v2664 = vpack.c.b16 %v2626, %v2625
      %v2665 = vpack.c.b16 %v2627, %v2627
      %v2666 = vpack.c.b16 %v2629, %v2628
      %v2667 = vpack.c.b16 %v2630, %v2630
      %v2668 = vpack.c.b16 %v2632, %v2631
      %v2669 = vpack.c.b16 %v2633, %v2633
      %v2670 = vpack.c.b16 %v2635, %v2634
      %v2671 = vpack.c.b16 %v2636, %v2636
      %v2672 = vpack.c.b16 %v2638, %v2637
      %v2673 = vpack.c.b16 %v2639, %v2639
      %v2674 = vpack.c.b16 %v2641, %v2640
      %v2675 = vpack.c.b16 %v2642, %v2642
      %v2676 = vpack.c.b16 %v2644, %v2643
      %v2677 = vpack.c.b16 %v2645, %v2645
      %v2678 = vrot.slane %v2646, 1
      %v2679 = vrot.slane %v2647, 1
      %v2680 = vsel %vm1778, %v2678, %v2679
      %v2681 = vrot.slane %v2648, 1
      %v2682 = vrot.slane %v2649, 1
      %v2683 = vsel %vm1778, %v2681, %v2682
      %v2684 = vrot.slane %v2650, 1
      %v2685 = vrot.slane %v2651, 1
      %v2686 = vsel %vm1778, %v2684, %v2685
      %v2687 = vrot.slane %v2652, 1
      %v2688 = vrot.slane %v2653, 1
      %v2689 = vsel %vm1778, %v2687, %v2688
      %v2690 = vrot.slane %v2654, 1
      %v2691 = vrot.slane %v2655, 1
      %v2692 = vsel %vm1778, %v2690, %v2691
      %v2693 = vrot.slane %v2656, 1
      %v2694 = vrot.slane %v2657, 1
      %v2695 = vsel %vm1778, %v2693, %v2694
      %v2696 = vrot.slane %v2658, 1
      %v2697 = vrot.slane %v2659, 1
      %v2698 = vsel %vm1778, %v2696, %v2697
      %v2699 = vrot.slane %v2660, 1
      %v2700 = vrot.slane %v2661, 1
      %v2701 = vsel %vm1778, %v2699, %v2700
      %v2702 = vrot.slane %v2662, 1
      %v2703 = vrot.slane %v2663, 1
      %v2704 = vsel %vm1778, %v2702, %v2703
      %v2705 = vrot.slane %v2664, 1
      %v2706 = vrot.slane %v2665, 1
      %v2707 = vsel %vm1778, %v2705, %v2706
      %v2708 = vrot.slane %v2666, 1
      %v2709 = vrot.slane %v2667, 1
      %v2710 = vsel %vm1778, %v2708, %v2709
      %v2711 = vrot.slane %v2668, 1
      %v2712 = vrot.slane %v2669, 1
      %v2713 = vsel %vm1778, %v2711, %v2712
      %v2714 = vrot.slane %v2670, 1
      %v2715 = vrot.slane %v2671, 1
      %v2716 = vsel %vm1778, %v2714, %v2715
      %v2717 = vrot.slane %v2672, 1
      %v2718 = vrot.slane %v2673, 1
      %v2719 = vsel %vm1778, %v2717, %v2718
      %v2720 = vrot.slane %v2674, 1
      %v2721 = vrot.slane %v2675, 1
      %v2722 = vsel %vm1778, %v2720, %v2721
      %v2723 = vrot.slane %v2676, 1
      %v2724 = vrot.slane %v2677, 1
      %v2725 = vsel %vm1778, %v2723, %v2724
      %2726 = vrot.lane.b32.xlu0 %v2680, 20
      %v2727 = vpop.permute.xlu0 %2726
      %2728 = vrot.lane.b32.xlu0 %v2683, 20
      %v2729 = vpop.permute.xlu0 %2728
      %2730 = vrot.lane.b32.xlu0 %v2686, 20
      %v2731 = vpop.permute.xlu0 %2730
      %2732 = vrot.lane.b32.xlu0 %v2689, 20
      %v2733 = vpop.permute.xlu0 %2732
      %2734 = vrot.lane.b32.xlu0 %v2692, 20
      %v2735 = vpop.permute.xlu0 %2734
      %2736 = vrot.lane.b32.xlu0 %v2695, 20
      %v2737 = vpop.permute.xlu0 %2736
      %2738 = vrot.lane.b32.xlu0 %v2698, 20
      %v2739 = vpop.permute.xlu0 %2738
      %2740 = vrot.lane.b32.xlu0 %v2701, 20
      %v2741 = vpop.permute.xlu0 %2740
      %2742 = vrot.lane.b32.xlu0 %v2704, 20
      %v2743 = vpop.permute.xlu0 %2742
      %2744 = vrot.lane.b32.xlu0 %v2707, 20
      %v2745 = vpop.permute.xlu0 %2744
      %2746 = vrot.lane.b32.xlu0 %v2710, 20
      %v2747 = vpop.permute.xlu0 %2746
      %2748 = vrot.lane.b32.xlu0 %v2713, 20
      %v2749 = vpop.permute.xlu0 %2748
      %2750 = vrot.lane.b32.xlu0 %v2716, 20
      %v2751 = vpop.permute.xlu0 %2750
      %2752 = vrot.lane.b32.xlu0 %v2719, 20
      %v2753 = vpop.permute.xlu0 %2752
      %2754 = vrot.lane.b32.xlu0 %v2722, 20
      %v2755 = vpop.permute.xlu0 %2754
      %2756 = vrot.lane.b32.xlu0 %v2725, 20
      %v2757 = vpop.permute.xlu0 %2756
      %vm2774 = vcmask 195744
      %2775 = vst.msk [vmem:[#allocation3] sm:$0xff] %vm2774, %v2727
      %2776 = vst.msk [vmem:[#allocation3 + $0x8] sm:$0xff] %vm2774, %v2729
      %2777 = vst.msk [vmem:[#allocation3 + $0x10] sm:$0xff] %vm2774, %v2731
      %2778 = vst.msk [vmem:[#allocation3 + $0x18] sm:$0xff] %vm2774, %v2733
      %2779 = vst.msk [vmem:[#allocation3 + $0x20] sm:$0xff] %vm2774, %v2735
      %2780 = vst.msk [vmem:[#allocation3 + $0x28] sm:$0xff] %vm2774, %v2737
      %2781 = vst.msk [vmem:[#allocation3 + $0x30] sm:$0xff] %vm2774, %v2739
      %2782 = vst.msk [vmem:[#allocation3 + $0x38] sm:$0xff] %vm2774, %v2741
      %2783 = vst.msk [vmem:[#allocation3 + $0x40] sm:$0xff] %vm2774, %v2743
      %2784 = vst.msk [vmem:[#allocation3 + $0x48] sm:$0xff] %vm2774, %v2745
      %2785 = vst.msk [vmem:[#allocation3 + $0x50] sm:$0xff] %vm2774, %v2747
      %2786 = vst.msk [vmem:[#allocation3 + $0x58] sm:$0xff] %vm2774, %v2749
      %2787 = vst.msk [vmem:[#allocation3 + $0x60] sm:$0xff] %vm2774, %v2751
      %2788 = vst.msk [vmem:[#allocation3 + $0x68] sm:$0xff] %vm2774, %v2753
      %2789 = vst.msk [vmem:[#allocation3 + $0x70] sm:$0xff] %vm2774, %v2755
      %2790 = vst.msk [vmem:[#allocation3 + $0x78] sm:$0xff] %vm2774, %v2757
      %s2791 = scalar_lea.vmem [#allocation2], 24
      %v2792 = vld [vmem:[%s2791] sm:$0xf]
      %v2793 = vld [vmem:[%s2791 + $0x4] sm:$0xf]
      %v2794 = vld [vmem:[%s2791 + $0xc] sm:$0xf]
      %v2795 = vld [vmem:[%s2791 + $0x10] sm:$0xf]
      %v2796 = vld [vmem:[%s2791 + $0x18] sm:$0xf]
      %v2797 = vld [vmem:[%s2791 + $0x1c] sm:$0xf]
      %v2798 = vld [vmem:[%s2791 + $0x24] sm:$0xf]
      %v2799 = vld [vmem:[%s2791 + $0x28] sm:$0xf]
      %v2800 = vld [vmem:[%s2791 + $0x30] sm:$0xf]
      %v2801 = vld [vmem:[%s2791 + $0x34] sm:$0xf]
      %v2802 = vld [vmem:[%s2791 + $0x3c] sm:$0xf]
      %v2803 = vld [vmem:[%s2791 + $0x40] sm:$0xf]
      %v2804 = vld [vmem:[%s2791 + $0x48] sm:$0xf]
      %v2805 = vld [vmem:[%s2791 + $0x4c] sm:$0xf]
      %v2806 = vld [vmem:[%s2791 + $0x54] sm:$0xf]
      %v2807 = vld [vmem:[%s2791 + $0x58] sm:$0xf]
      %v2808 = vld [vmem:[%s2791 + $0x60] sm:$0xf]
      %v2809 = vld [vmem:[%s2791 + $0x64] sm:$0xf]
      %v2810 = vld [vmem:[%s2791 + $0x6c] sm:$0xf]
      %v2811 = vld [vmem:[%s2791 + $0x70] sm:$0xf]
      %v2812 = vld [vmem:[%s2791 + $0x78] sm:$0xf]
      %v2813 = vld [vmem:[%s2791 + $0x7c] sm:$0xf]
      %v2814 = vld [vmem:[%s2791 + $0x84] sm:$0xf]
      %v2815 = vld [vmem:[%s2791 + $0x88] sm:$0xf]
      %v2816 = vld [vmem:[%s2791 + $0x90] sm:$0xf]
      %v2817 = vld [vmem:[%s2791 + $0x94] sm:$0xf]
      %v2818 = vld [vmem:[%s2791 + $0x9c] sm:$0xf]
      %v2819 = vld [vmem:[%s2791 + $0xa0] sm:$0xf]
      %v2820 = vld [vmem:[%s2791 + $0xa8] sm:$0xf]
      %v2821 = vld [vmem:[%s2791 + $0xac] sm:$0xf]
      %v2822 = vld [vmem:[%s2791 + $0xb4] sm:$0xf]
      %v2823 = vld [vmem:[%s2791 + $0xb8] sm:$0xf]
      %v2856 = vunpack.c.l.b16 %v2792
      %v2857 = vunpack.c.l.b16 %v2793
      %v2858 = vunpack.c.l.b16 %v2794
      %v2859 = vunpack.c.l.b16 %v2795
      %v2860 = vunpack.c.l.b16 %v2796
      %v2861 = vunpack.c.l.b16 %v2797
      %v2862 = vunpack.c.l.b16 %v2798
      %v2863 = vunpack.c.l.b16 %v2799
      %v2864 = vunpack.c.l.b16 %v2800
      %v2865 = vunpack.c.l.b16 %v2801
      %v2866 = vunpack.c.l.b16 %v2802
      %v2867 = vunpack.c.l.b16 %v2803
      %v2868 = vunpack.c.l.b16 %v2804
      %v2869 = vunpack.c.l.b16 %v2805
      %v2870 = vunpack.c.l.b16 %v2806
      %v2871 = vunpack.c.l.b16 %v2807
      %v2872 = vunpack.c.l.b16 %v2808
      %v2873 = vunpack.c.l.b16 %v2809
      %v2874 = vunpack.c.l.b16 %v2810
      %v2875 = vunpack.c.l.b16 %v2811
      %v2876 = vunpack.c.l.b16 %v2812
      %v2877 = vunpack.c.l.b16 %v2813
      %v2878 = vunpack.c.l.b16 %v2814
      %v2879 = vunpack.c.l.b16 %v2815
      %v2880 = vunpack.c.l.b16 %v2816
      %v2881 = vunpack.c.l.b16 %v2817
      %v2882 = vunpack.c.l.b16 %v2818
      %v2883 = vunpack.c.l.b16 %v2819
      %v2884 = vunpack.c.l.b16 %v2820
      %v2885 = vunpack.c.l.b16 %v2821
      %v2886 = vunpack.c.l.b16 %v2822
      %v2887 = vunpack.c.l.b16 %v2823
      %v2888 = vpack.c.b16 %v2857, %v2856
      %v2889 = vpack.c.b16 %v2859, %v2858
      %v2890 = vpack.c.b16 %v2861, %v2860
      %v2891 = vpack.c.b16 %v2863, %v2862
      %v2892 = vpack.c.b16 %v2865, %v2864
      %v2893 = vpack.c.b16 %v2867, %v2866
      %v2894 = vpack.c.b16 %v2869, %v2868
      %v2895 = vpack.c.b16 %v2871, %v2870
      %v2896 = vpack.c.b16 %v2873, %v2872
      %v2897 = vpack.c.b16 %v2875, %v2874
      %v2898 = vpack.c.b16 %v2877, %v2876
      %v2899 = vpack.c.b16 %v2879, %v2878
      %v2900 = vpack.c.b16 %v2881, %v2880
      %v2901 = vpack.c.b16 %v2883, %v2882
      %v2902 = vpack.c.b16 %v2885, %v2884
      %v2903 = vpack.c.b16 %v2887, %v2886
      %2904 = vrot.lane.b32.xlu0 %v2888, 24
      %v2905 = vpop.permute.xlu0 %2904
      %2906 = vrot.lane.b32.xlu0 %v2889, 24
      %v2907 = vpop.permute.xlu0 %2906
      %2908 = vrot.lane.b32.xlu0 %v2890, 24
      %v2909 = vpop.permute.xlu0 %2908
      %2910 = vrot.lane.b32.xlu0 %v2891, 24
      %v2911 = vpop.permute.xlu0 %2910
      %2912 = vrot.lane.b32.xlu0 %v2892, 24
      %v2913 = vpop.permute.xlu0 %2912
      %2914 = vrot.lane.b32.xlu0 %v2893, 24
      %v2915 = vpop.permute.xlu0 %2914
      %2916 = vrot.lane.b32.xlu0 %v2894, 24
      %v2917 = vpop.permute.xlu0 %2916
      %2918 = vrot.lane.b32.xlu0 %v2895, 24
      %v2919 = vpop.permute.xlu0 %2918
      %2920 = vrot.lane.b32.xlu0 %v2896, 24
      %v2921 = vpop.permute.xlu0 %2920
      %2922 = vrot.lane.b32.xlu0 %v2897, 24
      %v2923 = vpop.permute.xlu0 %2922
      %2924 = vrot.lane.b32.xlu0 %v2898, 24
      %v2925 = vpop.permute.xlu0 %2924
      %2926 = vrot.lane.b32.xlu0 %v2899, 24
      %v2927 = vpop.permute.xlu0 %2926
      %2928 = vrot.lane.b32.xlu0 %v2900, 24
      %v2929 = vpop.permute.xlu0 %2928
      %2930 = vrot.lane.b32.xlu0 %v2901, 24
      %v2931 = vpop.permute.xlu0 %2930
      %2932 = vrot.lane.b32.xlu0 %v2902, 24
      %v2933 = vpop.permute.xlu0 %2932
      %2934 = vrot.lane.b32.xlu0 %v2903, 24
      %v2935 = vpop.permute.xlu0 %2934
      %vm2952 = vcmask 228544
      %2953 = vst.msk [vmem:[#allocation3] sm:$0xff] %vm2952, %v2905
      %2954 = vst.msk [vmem:[#allocation3 + $0x8] sm:$0xff] %vm2952, %v2907
      %2955 = vst.msk [vmem:[#allocation3 + $0x10] sm:$0xff] %vm2952, %v2909
      %2956 = vst.msk [vmem:[#allocation3 + $0x18] sm:$0xff] %vm2952, %v2911
      %2957 = vst.msk [vmem:[#allocation3 + $0x20] sm:$0xff] %vm2952, %v2913
      %2958 = vst.msk [vmem:[#allocation3 + $0x28] sm:$0xff] %vm2952, %v2915
      %2959 = vst.msk [vmem:[#allocation3 + $0x30] sm:$0xff] %vm2952, %v2917
      %2960 = vst.msk [vmem:[#allocation3 + $0x38] sm:$0xff] %vm2952, %v2919
      %2961 = vst.msk [vmem:[#allocation3 + $0x40] sm:$0xff] %vm2952, %v2921
      %2962 = vst.msk [vmem:[#allocation3 + $0x48] sm:$0xff] %vm2952, %v2923
      %2963 = vst.msk [vmem:[#allocation3 + $0x50] sm:$0xff] %vm2952, %v2925
      %2964 = vst.msk [vmem:[#allocation3 + $0x58] sm:$0xff] %vm2952, %v2927
      %2965 = vst.msk [vmem:[#allocation3 + $0x60] sm:$0xff] %vm2952, %v2929
      %2966 = vst.msk [vmem:[#allocation3 + $0x68] sm:$0xff] %vm2952, %v2931
      %2967 = vst.msk [vmem:[#allocation3 + $0x70] sm:$0xff] %vm2952, %v2933
      %2968 = vst.msk [vmem:[#allocation3 + $0x78] sm:$0xff] %vm2952, %v2935
      %v2969 = vld [vmem:[%s2791] sm:$0xf]
      %v2970 = vld [vmem:[%s2791 + $0x4] sm:$0xf]
      %v2971 = vld [vmem:[%s2791 + $0x8] sm:$0x1]
      %v2972 = vld [vmem:[%s2791 + $0xc] sm:$0xf]
      %v2973 = vld [vmem:[%s2791 + $0x10] sm:$0xf]
      %v2974 = vld [vmem:[%s2791 + $0x14] sm:$0x1]
      %v2975 = vld [vmem:[%s2791 + $0x18] sm:$0xf]
      %v2976 = vld [vmem:[%s2791 + $0x1c] sm:$0xf]
      %v2977 = vld [vmem:[%s2791 + $0x20] sm:$0x1]
      %v2978 = vld [vmem:[%s2791 + $0x24] sm:$0xf]
      %v2979 = vld [vmem:[%s2791 + $0x28] sm:$0xf]
      %v2980 = vld [vmem:[%s2791 + $0x2c] sm:$0x1]
      %v2981 = vld [vmem:[%s2791 + $0x30] sm:$0xf]
      %v2982 = vld [vmem:[%s2791 + $0x34] sm:$0xf]
      %v2983 = vld [vmem:[%s2791 + $0x38] sm:$0x1]
      %v2984 = vld [vmem:[%s2791 + $0x3c] sm:$0xf]
      %v2985 = vld [vmem:[%s2791 + $0x40] sm:$0xf]
      %v2986 = vld [vmem:[%s2791 + $0x44] sm:$0x1]
      %v2987 = vld [vmem:[%s2791 + $0x48] sm:$0xf]
      %v2988 = vld [vmem:[%s2791 + $0x4c] sm:$0xf]
      %v2989 = vld [vmem:[%s2791 + $0x50] sm:$0x1]
      %v2990 = vld [vmem:[%s2791 + $0x54] sm:$0xf]
      %v2991 = vld [vmem:[%s2791 + $0x58] sm:$0xf]
      %v2992 = vld [vmem:[%s2791 + $0x5c] sm:$0x1]
      %v2993 = vld [vmem:[%s2791 + $0x60] sm:$0xf]
      %v2994 = vld [vmem:[%s2791 + $0x64] sm:$0xf]
      %v2995 = vld [vmem:[%s2791 + $0x68] sm:$0x1]
      %v2996 = vld [vmem:[%s2791 + $0x6c] sm:$0xf]
      %v2997 = vld [vmem:[%s2791 + $0x70] sm:$0xf]
      %v2998 = vld [vmem:[%s2791 + $0x74] sm:$0x1]
      %v2999 = vld [vmem:[%s2791 + $0x78] sm:$0xf]
      %v3000 = vld [vmem:[%s2791 + $0x7c] sm:$0xf]
      %v3001 = vld [vmem:[%s2791 + $0x80] sm:$0x1]
      %v3002 = vld [vmem:[%s2791 + $0x84] sm:$0xf]
      %v3003 = vld [vmem:[%s2791 + $0x88] sm:$0xf]
      %v3004 = vld [vmem:[%s2791 + $0x8c] sm:$0x1]
      %v3005 = vld [vmem:[%s2791 + $0x90] sm:$0xf]
      %v3006 = vld [vmem:[%s2791 + $0x94] sm:$0xf]
      %v3007 = vld [vmem:[%s2791 + $0x98] sm:$0x1]
      %v3008 = vld [vmem:[%s2791 + $0x9c] sm:$0xf]
      %v3009 = vld [vmem:[%s2791 + $0xa0] sm:$0xf]
      %v3010 = vld [vmem:[%s2791 + $0xa4] sm:$0x1]
      %v3011 = vld [vmem:[%s2791 + $0xa8] sm:$0xf]
      %v3012 = vld [vmem:[%s2791 + $0xac] sm:$0xf]
      %v3013 = vld [vmem:[%s2791 + $0xb0] sm:$0x1]
      %v3014 = vld [vmem:[%s2791 + $0xb4] sm:$0xf]
      %v3015 = vld [vmem:[%s2791 + $0xb8] sm:$0xf]
      %v3016 = vld [vmem:[%s2791 + $0xbc] sm:$0x1]
      %v3065 = vunpack.c.l.b16 %v2969
      %v3066 = vunpack.c.l.b16 %v2970
      %v3067 = vunpack.c.l.b16 %v2971
      %v3068 = vunpack.c.l.b16 %v2972
      %v3069 = vunpack.c.l.b16 %v2973
      %v3070 = vunpack.c.l.b16 %v2974
      %v3071 = vunpack.c.l.b16 %v2975
      %v3072 = vunpack.c.l.b16 %v2976
      %v3073 = vunpack.c.l.b16 %v2977
      %v3074 = vunpack.c.l.b16 %v2978
      %v3075 = vunpack.c.l.b16 %v2979
      %v3076 = vunpack.c.l.b16 %v2980
      %v3077 = vunpack.c.l.b16 %v2981
      %v3078 = vunpack.c.l.b16 %v2982
      %v3079 = vunpack.c.l.b16 %v2983
      %v3080 = vunpack.c.l.b16 %v2984
      %v3081 = vunpack.c.l.b16 %v2985
      %v3082 = vunpack.c.l.b16 %v2986
      %v3083 = vunpack.c.l.b16 %v2987
      %v3084 = vunpack.c.l.b16 %v2988
      %v3085 = vunpack.c.l.b16 %v2989
      %v3086 = vunpack.c.l.b16 %v2990
      %v3087 = vunpack.c.l.b16 %v2991
      %v3088 = vunpack.c.l.b16 %v2992
      %v3089 = vunpack.c.l.b16 %v2993
      %v3090 = vunpack.c.l.b16 %v2994
      %v3091 = vunpack.c.l.b16 %v2995
      %v3092 = vunpack.c.l.b16 %v2996
      %v3093 = vunpack.c.l.b16 %v2997
      %v3094 = vunpack.c.l.b16 %v2998
      %v3095 = vunpack.c.l.b16 %v2999
      %v3096 = vunpack.c.l.b16 %v3000
      %v3097 = vunpack.c.l.b16 %v3001
      %v3098 = vunpack.c.l.b16 %v3002
      %v3099 = vunpack.c.l.b16 %v3003
      %v3100 = vunpack.c.l.b16 %v3004
      %v3101 = vunpack.c.l.b16 %v3005
      %v3102 = vunpack.c.l.b16 %v3006
      %v3103 = vunpack.c.l.b16 %v3007
      %v3104 = vunpack.c.l.b16 %v3008
      %v3105 = vunpack.c.l.b16 %v3009
      %v3106 = vunpack.c.l.b16 %v3010
      %v3107 = vunpack.c.l.b16 %v3011
      %v3108 = vunpack.c.l.b16 %v3012
      %v3109 = vunpack.c.l.b16 %v3013
      %v3110 = vunpack.c.l.b16 %v3014
      %v3111 = vunpack.c.l.b16 %v3015
      %v3112 = vunpack.c.l.b16 %v3016
      %v3113 = vpack.c.b16 %v3066, %v3065
      %v3114 = vpack.c.b16 %v3067, %v3067
      %v3115 = vpack.c.b16 %v3069, %v3068
      %v3116 = vpack.c.b16 %v3070, %v3070
      %v3117 = vpack.c.b16 %v3072, %v3071
      %v3118 = vpack.c.b16 %v3073, %v3073
      %v3119 = vpack.c.b16 %v3075, %v3074
      %v3120 = vpack.c.b16 %v3076, %v3076
      %v3121 = vpack.c.b16 %v3078, %v3077
      %v3122 = vpack.c.b16 %v3079, %v3079
      %v3123 = vpack.c.b16 %v3081, %v3080
      %v3124 = vpack.c.b16 %v3082, %v3082
      %v3125 = vpack.c.b16 %v3084, %v3083
      %v3126 = vpack.c.b16 %v3085, %v3085
      %v3127 = vpack.c.b16 %v3087, %v3086
      %v3128 = vpack.c.b16 %v3088, %v3088
      %v3129 = vpack.c.b16 %v3090, %v3089
      %v3130 = vpack.c.b16 %v3091, %v3091
      %v3131 = vpack.c.b16 %v3093, %v3092
      %v3132 = vpack.c.b16 %v3094, %v3094
      %v3133 = vpack.c.b16 %v3096, %v3095
      %v3134 = vpack.c.b16 %v3097, %v3097
      %v3135 = vpack.c.b16 %v3099, %v3098
      %v3136 = vpack.c.b16 %v3100, %v3100
      %v3137 = vpack.c.b16 %v3102, %v3101
      %v3138 = vpack.c.b16 %v3103, %v3103
      %v3139 = vpack.c.b16 %v3105, %v3104
      %v3140 = vpack.c.b16 %v3106, %v3106
      %v3141 = vpack.c.b16 %v3108, %v3107
      %v3142 = vpack.c.b16 %v3109, %v3109
      %v3143 = vpack.c.b16 %v3111, %v3110
      %v3144 = vpack.c.b16 %v3112, %v3112
      %v3146 = vshrl.u32 %v3113, 16
      %v3148 = vshll.u32 %v3113, 16
      %v3150 = vrot.slane %v3148, 1
      %v3151 = vor.u32 %v3146, %v3150
      %v3153 = vshll.u32 %v3114, 16
      %v3155 = vrot.slane %v3153, 1
      %v3156 = vsel %vm1344, %v3151, %v3155
      %v3158 = vshrl.u32 %v3115, 16
      %v3160 = vshll.u32 %v3115, 16
      %v3162 = vrot.slane %v3160, 1
      %v3163 = vor.u32 %v3158, %v3162
      %v3165 = vshll.u32 %v3116, 16
      %v3167 = vrot.slane %v3165, 1
      %v3168 = vsel %vm1344, %v3163, %v3167
      %v3170 = vshrl.u32 %v3117, 16
      %v3172 = vshll.u32 %v3117, 16
      %v3174 = vrot.slane %v3172, 1
      %v3175 = vor.u32 %v3170, %v3174
      %v3177 = vshll.u32 %v3118, 16
      %v3179 = vrot.slane %v3177, 1
      %v3180 = vsel %vm1344, %v3175, %v3179
      %v3182 = vshrl.u32 %v3119, 16
      %v3184 = vshll.u32 %v3119, 16
      %v3186 = vrot.slane %v3184, 1
      %v3187 = vor.u32 %v3182, %v3186
      %v3189 = vshll.u32 %v3120, 16
      %v3191 = vrot.slane %v3189, 1
      %v3192 = vsel %vm1344, %v3187, %v3191
      %v3194 = vshrl.u32 %v3121, 16
      %v3196 = vshll.u32 %v3121, 16
      %v3198 = vrot.slane %v3196, 1
      %v3199 = vor.u32 %v3194, %v3198
      %v3201 = vshll.u32 %v3122, 16
      %v3203 = vrot.slane %v3201, 1
      %v3204 = vsel %vm1344, %v3199, %v3203
      %v3206 = vshrl.u32 %v3123, 16
      %v3208 = vshll.u32 %v3123, 16
      %v3210 = vrot.slane %v3208, 1
      %v3211 = vor.u32 %v3206, %v3210
      %v3213 = vshll.u32 %v3124, 16
      %v3215 = vrot.slane %v3213, 1
      %v3216 = vsel %vm1344, %v3211, %v3215
      %v3218 = vshrl.u32 %v3125, 16
      %v3220 = vshll.u32 %v3125, 16
      %v3222 = vrot.slane %v3220, 1
      %v3223 = vor.u32 %v3218, %v3222
      %v3225 = vshll.u32 %v3126, 16
      %v3227 = vrot.slane %v3225, 1
      %v3228 = vsel %vm1344, %v3223, %v3227
      %v3230 = vshrl.u32 %v3127, 16
      %v3232 = vshll.u32 %v3127, 16
      %v3234 = vrot.slane %v3232, 1
      %v3235 = vor.u32 %v3230, %v3234
      %v3237 = vshll.u32 %v3128, 16
      %v3239 = vrot.slane %v3237, 1
      %v3240 = vsel %vm1344, %v3235, %v3239
      %v3242 = vshrl.u32 %v3129, 16
      %v3244 = vshll.u32 %v3129, 16
      %v3246 = vrot.slane %v3244, 1
      %v3247 = vor.u32 %v3242, %v3246
      %v3249 = vshll.u32 %v3130, 16
      %v3251 = vrot.slane %v3249, 1
      %v3252 = vsel %vm1344, %v3247, %v3251
      %v3254 = vshrl.u32 %v3131, 16
      %v3256 = vshll.u32 %v3131, 16
      %v3258 = vrot.slane %v3256, 1
      %v3259 = vor.u32 %v3254, %v3258
      %v3261 = vshll.u32 %v3132, 16
      %v3263 = vrot.slane %v3261, 1
      %v3264 = vsel %vm1344, %v3259, %v3263
      %v3266 = vshrl.u32 %v3133, 16
      %v3268 = vshll.u32 %v3133, 16
      %v3270 = vrot.slane %v3268, 1
      %v3271 = vor.u32 %v3266, %v3270
      %v3273 = vshll.u32 %v3134, 16
      %v3275 = vrot.slane %v3273, 1
      %v3276 = vsel %vm1344, %v3271, %v3275
      %v3278 = vshrl.u32 %v3135, 16
      %v3280 = vshll.u32 %v3135, 16
      %v3282 = vrot.slane %v3280, 1
      %v3283 = vor.u32 %v3278, %v3282
      %v3285 = vshll.u32 %v3136, 16
      %v3287 = vrot.slane %v3285, 1
      %v3288 = vsel %vm1344, %v3283, %v3287
      %v3290 = vshrl.u32 %v3137, 16
      %v3292 = vshll.u32 %v3137, 16
      %v3294 = vrot.slane %v3292, 1
      %v3295 = vor.u32 %v3290, %v3294
      %v3297 = vshll.u32 %v3138, 16
      %v3299 = vrot.slane %v3297, 1
      %v3300 = vsel %vm1344, %v3295, %v3299
      %v3302 = vshrl.u32 %v3139, 16
      %v3304 = vshll.u32 %v3139, 16
      %v3306 = vrot.slane %v3304, 1
      %v3307 = vor.u32 %v3302, %v3306
      %v3309 = vshll.u32 %v3140, 16
      %v3311 = vrot.slane %v3309, 1
      %v3312 = vsel %vm1344, %v3307, %v3311
      %v3314 = vshrl.u32 %v3141, 16
      %v3316 = vshll.u32 %v3141, 16
      %v3318 = vrot.slane %v3316, 1
      %v3319 = vor.u32 %v3314, %v3318
      %v3321 = vshll.u32 %v3142, 16
      %v3323 = vrot.slane %v3321, 1
      %v3324 = vsel %vm1344, %v3319, %v3323
      %v3326 = vshrl.u32 %v3143, 16
      %v3328 = vshll.u32 %v3143, 16
      %v3330 = vrot.slane %v3328, 1
      %v3331 = vor.u32 %v3326, %v3330
      %v3333 = vshll.u32 %v3144, 16
      %v3335 = vrot.slane %v3333, 1
      %v3336 = vsel %vm1344, %v3331, %v3335
      %3337 = vrot.lane.b32.xlu0 %v3156, 28
      %v3338 = vpop.permute.xlu0 %3337
      %3339 = vrot.lane.b32.xlu0 %v3168, 28
      %v3340 = vpop.permute.xlu0 %3339
      %3341 = vrot.lane.b32.xlu0 %v3180, 28
      %v3342 = vpop.permute.xlu0 %3341
      %3343 = vrot.lane.b32.xlu0 %v3192, 28
      %v3344 = vpop.permute.xlu0 %3343
      %3345 = vrot.lane.b32.xlu0 %v3204, 28
      %v3346 = vpop.permute.xlu0 %3345
      %3347 = vrot.lane.b32.xlu0 %v3216, 28
      %v3348 = vpop.permute.xlu0 %3347
      %3349 = vrot.lane.b32.xlu0 %v3228, 28
      %v3350 = vpop.permute.xlu0 %3349
      %3351 = vrot.lane.b32.xlu0 %v3240, 28
      %v3352 = vpop.permute.xlu0 %3351
      %3353 = vrot.lane.b32.xlu0 %v3252, 28
      %v3354 = vpop.permute.xlu0 %3353
      %3355 = vrot.lane.b32.xlu0 %v3264, 28
      %v3356 = vpop.permute.xlu0 %3355
      %3357 = vrot.lane.b32.xlu0 %v3276, 28
      %v3358 = vpop.permute.xlu0 %3357
      %3359 = vrot.lane.b32.xlu0 %v3288, 28
      %v3360 = vpop.permute.xlu0 %3359
      %3361 = vrot.lane.b32.xlu0 %v3300, 28
      %v3362 = vpop.permute.xlu0 %3361
      %3363 = vrot.lane.b32.xlu0 %v3312, 28
      %v3364 = vpop.permute.xlu0 %3363
      %3365 = vrot.lane.b32.xlu0 %v3324, 28
      %v3366 = vpop.permute.xlu0 %3365
      %3367 = vrot.lane.b32.xlu0 %v3336, 28
      %v3368 = vpop.permute.xlu0 %3367
      %vm3385 = vcmask 261344
      %3386 = vst.msk [vmem:[#allocation3] sm:$0xff] %vm3385, %v3338
      %3387 = vst.msk [vmem:[#allocation3 + $0x8] sm:$0xff] %vm3385, %v3340
      %3388 = vst.msk [vmem:[#allocation3 + $0x10] sm:$0xff] %vm3385, %v3342
      %3389 = vst.msk [vmem:[#allocation3 + $0x18] sm:$0xff] %vm3385, %v3344
      %3390 = vst.msk [vmem:[#allocation3 + $0x20] sm:$0xff] %vm3385, %v3346
      %3391 = vst.msk [vmem:[#allocation3 + $0x28] sm:$0xff] %vm3385, %v3348
      %3392 = vst.msk [vmem:[#allocation3 + $0x30] sm:$0xff] %vm3385, %v3350
      %3393 = vst.msk [vmem:[#allocation3 + $0x38] sm:$0xff] %vm3385, %v3352
      %3394 = vst.msk [vmem:[#allocation3 + $0x40] sm:$0xff] %vm3385, %v3354
      %3395 = vst.msk [vmem:[#allocation3 + $0x48] sm:$0xff] %vm3385, %v3356
      %3396 = vst.msk [vmem:[#allocation3 + $0x50] sm:$0xff] %vm3385, %v3358
      %3397 = vst.msk [vmem:[#allocation3 + $0x58] sm:$0xff] %vm3385, %v3360
      %3398 = vst.msk [vmem:[#allocation3 + $0x60] sm:$0xff] %vm3385, %v3362
      %3399 = vst.msk [vmem:[#allocation3 + $0x68] sm:$0xff] %vm3385, %v3364
      %3400 = vst.msk [vmem:[#allocation3 + $0x70] sm:$0xff] %vm3385, %v3366
      %3401 = vst.msk [vmem:[#allocation3 + $0x78] sm:$0xff] %vm3385, %v3368
      %v3402 = vld [vmem:[%s2791] sm:$0xe]
      %v3403 = vld [vmem:[%s2791 + $0x4] sm:$0xf]
      %v3404 = vld [vmem:[%s2791 + $0x8] sm:$0x1]
      %v3405 = vld [vmem:[%s2791 + $0xc] sm:$0xe]
      %v3406 = vld [vmem:[%s2791 + $0x10] sm:$0xf]
      %v3407 = vld [vmem:[%s2791 + $0x14] sm:$0x1]
      %v3408 = vld [vmem:[%s2791 + $0x18] sm:$0xe]
      %v3409 = vld [vmem:[%s2791 + $0x1c] sm:$0xf]
      %v3410 = vld [vmem:[%s2791 + $0x20] sm:$0x1]
      %v3411 = vld [vmem:[%s2791 + $0x24] sm:$0xe]
      %v3412 = vld [vmem:[%s2791 + $0x28] sm:$0xf]
      %v3413 = vld [vmem:[%s2791 + $0x2c] sm:$0x1]
      %v3414 = vld [vmem:[%s2791 + $0x30] sm:$0xe]
      %v3415 = vld [vmem:[%s2791 + $0x34] sm:$0xf]
      %v3416 = vld [vmem:[%s2791 + $0x38] sm:$0x1]
      %v3417 = vld [vmem:[%s2791 + $0x3c] sm:$0xe]
      %v3418 = vld [vmem:[%s2791 + $0x40] sm:$0xf]
      %v3419 = vld [vmem:[%s2791 + $0x44] sm:$0x1]
      %v3420 = vld [vmem:[%s2791 + $0x48] sm:$0xe]
      %v3421 = vld [vmem:[%s2791 + $0x4c] sm:$0xf]
      %v3422 = vld [vmem:[%s2791 + $0x50] sm:$0x1]
      %v3423 = vld [vmem:[%s2791 + $0x54] sm:$0xe]
      %v3424 = vld [vmem:[%s2791 + $0x58] sm:$0xf]
      %v3425 = vld [vmem:[%s2791 + $0x5c] sm:$0x1]
      %v3426 = vld [vmem:[%s2791 + $0x60] sm:$0xe]
      %v3427 = vld [vmem:[%s2791 + $0x64] sm:$0xf]
      %v3428 = vld [vmem:[%s2791 + $0x68] sm:$0x1]
      %v3429 = vld [vmem:[%s2791 + $0x6c] sm:$0xe]
      %v3430 = vld [vmem:[%s2791 + $0x70] sm:$0xf]
      %v3431 = vld [vmem:[%s2791 + $0x74] sm:$0x1]
      %v3432 = vld [vmem:[%s2791 + $0x78] sm:$0xe]
      %v3433 = vld [vmem:[%s2791 + $0x7c] sm:$0xf]
      %v3434 = vld [vmem:[%s2791 + $0x80] sm:$0x1]
      %v3435 = vld [vmem:[%s2791 + $0x84] sm:$0xe]
      %v3436 = vld [vmem:[%s2791 + $0x88] sm:$0xf]
      %v3437 = vld [vmem:[%s2791 + $0x8c] sm:$0x1]
      %v3438 = vld [vmem:[%s2791 + $0x90] sm:$0xe]
      %v3439 = vld [vmem:[%s2791 + $0x94] sm:$0xf]
      %v3440 = vld [vmem:[%s2791 + $0x98] sm:$0x1]
      %v3441 = vld [vmem:[%s2791 + $0x9c] sm:$0xe]
      %v3442 = vld [vmem:[%s2791 + $0xa0] sm:$0xf]
      %v3443 = vld [vmem:[%s2791 + $0xa4] sm:$0x1]
      %v3444 = vld [vmem:[%s2791 + $0xa8] sm:$0xe]
      %v3445 = vld [vmem:[%s2791 + $0xac] sm:$0xf]
      %v3446 = vld [vmem:[%s2791 + $0xb0] sm:$0x1]
      %v3447 = vld [vmem:[%s2791 + $0xb4] sm:$0xe]
      %v3448 = vld [vmem:[%s2791 + $0xb8] sm:$0xf]
      %v3449 = vld [vmem:[%s2791 + $0xbc] sm:$0x1]
      %v3498 = vunpack.c.l.b16 %v3402
      %v3499 = vunpack.c.l.b16 %v3403
      %v3500 = vunpack.c.l.b16 %v3404
      %v3501 = vunpack.c.l.b16 %v3405
      %v3502 = vunpack.c.l.b16 %v3406
      %v3503 = vunpack.c.l.b16 %v3407
      %v3504 = vunpack.c.l.b16 %v3408
      %v3505 = vunpack.c.l.b16 %v3409
      %v3506 = vunpack.c.l.b16 %v3410
      %v3507 = vunpack.c.l.b16 %v3411
      %v3508 = vunpack.c.l.b16 %v3412
      %v3509 = vunpack.c.l.b16 %v3413
      %v3510 = vunpack.c.l.b16 %v3414
      %v3511 = vunpack.c.l.b16 %v3415
      %v3512 = vunpack.c.l.b16 %v3416
      %v3513 = vunpack.c.l.b16 %v3417
      %v3514 = vunpack.c.l.b16 %v3418
      %v3515 = vunpack.c.l.b16 %v3419
      %v3516 = vunpack.c.l.b16 %v3420
      %v3517 = vunpack.c.l.b16 %v3421
      %v3518 = vunpack.c.l.b16 %v3422
      %v3519 = vunpack.c.l.b16 %v3423
      %v3520 = vunpack.c.l.b16 %v3424
      %v3521 = vunpack.c.l.b16 %v3425
      %v3522 = vunpack.c.l.b16 %v3426
      %v3523 = vunpack.c.l.b16 %v3427
      %v3524 = vunpack.c.l.b16 %v3428
      %v3525 = vunpack.c.l.b16 %v3429
      %v3526 = vunpack.c.l.b16 %v3430
      %v3527 = vunpack.c.l.b16 %v3431
      %v3528 = vunpack.c.l.b16 %v3432
      %v3529 = vunpack.c.l.b16 %v3433
      %v3530 = vunpack.c.l.b16 %v3434
      %v3531 = vunpack.c.l.b16 %v3435
      %v3532 = vunpack.c.l.b16 %v3436
      %v3533 = vunpack.c.l.b16 %v3437
      %v3534 = vunpack.c.l.b16 %v3438
      %v3535 = vunpack.c.l.b16 %v3439
      %v3536 = vunpack.c.l.b16 %v3440
      %v3537 = vunpack.c.l.b16 %v3441
      %v3538 = vunpack.c.l.b16 %v3442
      %v3539 = vunpack.c.l.b16 %v3443
      %v3540 = vunpack.c.l.b16 %v3444
      %v3541 = vunpack.c.l.b16 %v3445
      %v3542 = vunpack.c.l.b16 %v3446
      %v3543 = vunpack.c.l.b16 %v3447
      %v3544 = vunpack.c.l.b16 %v3448
      %v3545 = vunpack.c.l.b16 %v3449
      %v3546 = vpack.c.b16 %v3499, %v3498
      %v3547 = vpack.c.b16 %v3500, %v3500
      %v3548 = vpack.c.b16 %v3502, %v3501
      %v3549 = vpack.c.b16 %v3503, %v3503
      %v3550 = vpack.c.b16 %v3505, %v3504
      %v3551 = vpack.c.b16 %v3506, %v3506
      %v3552 = vpack.c.b16 %v3508, %v3507
      %v3553 = vpack.c.b16 %v3509, %v3509
      %v3554 = vpack.c.b16 %v3511, %v3510
      %v3555 = vpack.c.b16 %v3512, %v3512
      %v3556 = vpack.c.b16 %v3514, %v3513
      %v3557 = vpack.c.b16 %v3515, %v3515
      %v3558 = vpack.c.b16 %v3517, %v3516
      %v3559 = vpack.c.b16 %v3518, %v3518
      %v3560 = vpack.c.b16 %v3520, %v3519
      %v3561 = vpack.c.b16 %v3521, %v3521
      %v3562 = vpack.c.b16 %v3523, %v3522
      %v3563 = vpack.c.b16 %v3524, %v3524
      %v3564 = vpack.c.b16 %v3526, %v3525
      %v3565 = vpack.c.b16 %v3527, %v3527
      %v3566 = vpack.c.b16 %v3529, %v3528
      %v3567 = vpack.c.b16 %v3530, %v3530
      %v3568 = vpack.c.b16 %v3532, %v3531
      %v3569 = vpack.c.b16 %v3533, %v3533
      %v3570 = vpack.c.b16 %v3535, %v3534
      %v3571 = vpack.c.b16 %v3536, %v3536
      %v3572 = vpack.c.b16 %v3538, %v3537
      %v3573 = vpack.c.b16 %v3539, %v3539
      %v3574 = vpack.c.b16 %v3541, %v3540
      %v3575 = vpack.c.b16 %v3542, %v3542
      %v3576 = vpack.c.b16 %v3544, %v3543
      %v3577 = vpack.c.b16 %v3545, %v3545
      %v3578 = vrot.slane %v3546, 1
      %v3579 = vrot.slane %v3547, 1
      %v3580 = vsel %vm1778, %v3578, %v3579
      %v3581 = vrot.slane %v3548, 1
      %v3582 = vrot.slane %v3549, 1
      %v3583 = vsel %vm1778, %v3581, %v3582
      %v3584 = vrot.slane %v3550, 1
      %v3585 = vrot.slane %v3551, 1
      %v3586 = vsel %vm1778, %v3584, %v3585
      %v3587 = vrot.slane %v3552, 1
      %v3588 = vrot.slane %v3553, 1
      %v3589 = vsel %vm1778, %v3587, %v3588
      %v3590 = vrot.slane %v3554, 1
      %v3591 = vrot.slane %v3555, 1
      %v3592 = vsel %vm1778, %v3590, %v3591
      %v3593 = vrot.slane %v3556, 1
      %v3594 = vrot.slane %v3557, 1
      %v3595 = vsel %vm1778, %v3593, %v3594
      %v3596 = vrot.slane %v3558, 1
      %v3597 = vrot.slane %v3559, 1
      %v3598 = vsel %vm1778, %v3596, %v3597
      %v3599 = vrot.slane %v3560, 1
      %v3600 = vrot.slane %v3561, 1
      %v3601 = vsel %vm1778, %v3599, %v3600
      %v3602 = vrot.slane %v3562, 1
      %v3603 = vrot.slane %v3563, 1
      %v3604 = vsel %vm1778, %v3602, %v3603
      %v3605 = vrot.slane %v3564, 1
      %v3606 = vrot.slane %v3565, 1
      %v3607 = vsel %vm1778, %v3605, %v3606
      %v3608 = vrot.slane %v3566, 1
      %v3609 = vrot.slane %v3567, 1
      %v3610 = vsel %vm1778, %v3608, %v3609
      %v3611 = vrot.slane %v3568, 1
      %v3612 = vrot.slane %v3569, 1
      %v3613 = vsel %vm1778, %v3611, %v3612
      %v3614 = vrot.slane %v3570, 1
      %v3615 = vrot.slane %v3571, 1
      %v3616 = vsel %vm1778, %v3614, %v3615
      %v3617 = vrot.slane %v3572, 1
      %v3618 = vrot.slane %v3573, 1
      %v3619 = vsel %vm1778, %v3617, %v3618
      %v3620 = vrot.slane %v3574, 1
      %v3621 = vrot.slane %v3575, 1
      %v3622 = vsel %vm1778, %v3620, %v3621
      %v3623 = vrot.slane %v3576, 1
      %v3624 = vrot.slane %v3577, 1
      %v3625 = vsel %vm1778, %v3623, %v3624
      %3626 = vrot.lane.b32.xlu0 %v3580, 32
      %v3627 = vpop.permute.xlu0 %3626
      %3628 = vrot.lane.b32.xlu0 %v3583, 32
      %v3629 = vpop.permute.xlu0 %3628
      %3630 = vrot.lane.b32.xlu0 %v3586, 32
      %v3631 = vpop.permute.xlu0 %3630
      %3632 = vrot.lane.b32.xlu0 %v3589, 32
      %v3633 = vpop.permute.xlu0 %3632
      %3634 = vrot.lane.b32.xlu0 %v3592, 32
      %v3635 = vpop.permute.xlu0 %3634
      %3636 = vrot.lane.b32.xlu0 %v3595, 32
      %v3637 = vpop.permute.xlu0 %3636
      %3638 = vrot.lane.b32.xlu0 %v3598, 32
      %v3639 = vpop.permute.xlu0 %3638
      %3640 = vrot.lane.b32.xlu0 %v3601, 32
      %v3641 = vpop.permute.xlu0 %3640
      %3642 = vrot.lane.b32.xlu0 %v3604, 32
      %v3643 = vpop.permute.xlu0 %3642
      %3644 = vrot.lane.b32.xlu0 %v3607, 32
      %v3645 = vpop.permute.xlu0 %3644
      %3646 = vrot.lane.b32.xlu0 %v3610, 32
      %v3647 = vpop.permute.xlu0 %3646
      %3648 = vrot.lane.b32.xlu0 %v3613, 32
      %v3649 = vpop.permute.xlu0 %3648
      %3650 = vrot.lane.b32.xlu0 %v3616, 32
      %v3651 = vpop.permute.xlu0 %3650
      %3652 = vrot.lane.b32.xlu0 %v3619, 32
      %v3653 = vpop.permute.xlu0 %3652
      %3654 = vrot.lane.b32.xlu0 %v3622, 32
      %v3655 = vpop.permute.xlu0 %3654
      %3656 = vrot.lane.b32.xlu0 %v3625, 32
      %v3657 = vpop.permute.xlu0 %3656
      %vm3674 = vcmask 294144
      %3675 = vst.msk [vmem:[#allocation3] sm:$0xff] %vm3674, %v3627
      %3676 = vst.msk [vmem:[#allocation3 + $0x8] sm:$0xff] %vm3674, %v3629
      %3677 = vst.msk [vmem:[#allocation3 + $0x10] sm:$0xff] %vm3674, %v3631
      %3678 = vst.msk [vmem:[#allocation3 + $0x18] sm:$0xff] %vm3674, %v3633
      %3679 = vst.msk [vmem:[#allocation3 + $0x20] sm:$0xff] %vm3674, %v3635
      %3680 = vst.msk [vmem:[#allocation3 + $0x28] sm:$0xff] %vm3674, %v3637
      %3681 = vst.msk [vmem:[#allocation3 + $0x30] sm:$0xff] %vm3674, %v3639
      %3682 = vst.msk [vmem:[#allocation3 + $0x38] sm:$0xff] %vm3674, %v3641
      %3683 = vst.msk [vmem:[#allocation3 + $0x40] sm:$0xff] %vm3674, %v3643
      %3684 = vst.msk [vmem:[#allocation3 + $0x48] sm:$0xff] %vm3674, %v3645
      %3685 = vst.msk [vmem:[#allocation3 + $0x50] sm:$0xff] %vm3674, %v3647
      %3686 = vst.msk [vmem:[#allocation3 + $0x58] sm:$0xff] %vm3674, %v3649
      %3687 = vst.msk [vmem:[#allocation3 + $0x60] sm:$0xff] %vm3674, %v3651
      %3688 = vst.msk [vmem:[#allocation3 + $0x68] sm:$0xff] %vm3674, %v3653
      %3689 = vst.msk [vmem:[#allocation3 + $0x70] sm:$0xff] %vm3674, %v3655
      %3690 = vst.msk [vmem:[#allocation3 + $0x78] sm:$0xff] %vm3674, %v3657
      %v3691 = vld [vmem:[#allocation3] sm:$0xff]
      %v3692 = vld [vmem:[#allocation3 + $0x8] sm:$0xff]
      %v3693 = vld [vmem:[#allocation3 + $0x10] sm:$0xff]
      %v3694 = vld [vmem:[#allocation3 + $0x18] sm:$0xff]
      %v3695 = vld [vmem:[#allocation3 + $0x20] sm:$0xff]
      %v3696 = vld [vmem:[#allocation3 + $0x28] sm:$0xff]
      %v3697 = vld [vmem:[#allocation3 + $0x30] sm:$0xff]
      %v3698 = vld [vmem:[#allocation3 + $0x38] sm:$0xff]
      %v3699 = vld [vmem:[#allocation3 + $0x40] sm:$0xff]
      %v3700 = vld [vmem:[#allocation3 + $0x48] sm:$0xff]
      %v3701 = vld [vmem:[#allocation3 + $0x50] sm:$0xff]
      %v3702 = vld [vmem:[#allocation3 + $0x58] sm:$0xff]
      %v3703 = vld [vmem:[#allocation3 + $0x60] sm:$0xff]
      %v3704 = vld [vmem:[#allocation3 + $0x68] sm:$0xff]
      %v3705 = vld [vmem:[#allocation3 + $0x70] sm:$0xff]
      %v3706 = vld [vmem:[#allocation3 + $0x78] sm:$0xff]
      %v3707 = vld [vmem:[%s3] sm:$0xf]
      %v3708 = vld [vmem:[%s3 + $0x4] sm:$0xf]
      %v3709 = vld [vmem:[%s3 + $0x8] sm:$0xf]
      %v3710 = vld [vmem:[%s3 + $0xc] sm:$0xf]
      %v3711 = vld [vmem:[%s3 + $0x10] sm:$0x3]
      %v3712 = vld [vmem:[%s4] sm:$0x1]
      %v3714 = vlaneseq
      %v3715 = vshrl.u32 %v3714, 7
      %v3716 = vsub.s32 0, %v3715
      %v3717 = vrot.slane %v3712, %v3716
      %v3724 = vunpack.c.l.b16 %v3707
      %v3725 = vunpack.c.l.b16 %v3708
      %v3726 = vunpack.c.l.b16 %v3709
      %v3727 = vunpack.c.l.b16 %v3710
      %v3728 = vunpack.c.l.b16 %v3711
      %v3729 = vpack.c.b16 %v3725, %v3724
      %v3730 = vpack.c.b16 %v3727, %v3726
      %v3731 = vpack.c.b16 %v3728, %v3728
      %vm3734 = vcmask 293888
      %v3736 = vsel %vm3734, %v3691, 0
      %v3739 = vsel %vm3734, %v3692, 0
      %v3742 = vsel %vm3734, %v3693, 0
      %v3745 = vsel %vm3734, %v3694, 0
      %v3748 = vsel %vm3734, %v3695, 0
      %v3751 = vsel %vm3734, %v3696, 0
      %v3754 = vsel %vm3734, %v3697, 0
      %v3757 = vsel %vm3734, %v3698, 0
      %v3760 = vsel %vm3734, %v3699, 0
      %v3763 = vsel %vm3734, %v3700, 0
      %v3766 = vsel %vm3734, %v3701, 0
      %v3769 = vsel %vm3734, %v3702, 0
      %v3772 = vsel %vm3734, %v3703, 0
      %v3775 = vsel %vm3734, %v3704, 0
      %v3778 = vsel %vm3734, %v3705, 0
      %v3781 = vsel %vm3734, %v3706, 0
      %vm3783 = vcmask 1041408
      %v3785 = vsel %vm3783, %v3731, 0
      %3787 = vmatprep.subr.bf16.mxu0 0
      %3788 = vmatpush1.bf16.msra.mxu0 %v3729
      %3789 = vmatprep.subr.bf16.mxu0 0
      %3790 = vmatpush1.bf16.msra.mxu0 %v3730
      %3791 = vmatprep.subr.bf16.mxu0 0
      %3792 = vmatpush1.bf16.msra.mxu0 %v3785
      %3793 = vmatprep.subr.bf16.mxu0 0
      %3794 = vmatpush1.bf16.msra.mxu0 0
      %3795 = vmatprep.subr.bf16.mxu0 0
      %3796 = vmatpush1.bf16.msra.mxu0 0
      %3797 = vmatprep.subr.bf16.mxu0 0
      %3798 = vmatpush1.bf16.msra.mxu0 0
      %3799 = vmatprep.subr.bf16.mxu0 0
      %3800 = vmatpush1.bf16.msra.mxu0 0
      %3801 = vmatprep.subr.bf16.mxu0 0
      %3802 = vmatpush1.bf16.msra.mxu0 0
      %3803 = vmatprep.subr.bf16.mxu0 0
      %3804 = vmatpush1.bf16.msra.mxu0 0
      %3805 = vmatprep.subr.bf16.mxu0 0
      %3806 = vmatpush1.bf16.msra.mxu0 0
      %3807 = vmatprep.subr.bf16.mxu0 0
      %3808 = vmatpush1.bf16.msra.mxu0 0
      %3809 = vmatprep.subr.bf16.mxu0 0
      %3810 = vmatpush1.bf16.msra.mxu0 0
      %3811 = vmatprep.subr.bf16.mxu0 0
      %3812 = vmatpush1.bf16.msra.mxu0 0
      %3813 = vmatprep.subr.bf16.mxu0 0
      %3814 = vmatpush1.bf16.msra.mxu0 0
      %3815 = vmatprep.subr.bf16.mxu0 0
      %3816 = vmatpush1.bf16.msra.mxu0 0
      %3817 = vmatprep.subr.bf16.mxu0 0
      %3818 = vmatpush1.bf16.msra.mxu0 0
      %3819 = vmatprep.mubr.bf16.mxu0 0
      %3820 = vmatmul.mubr.bf16.gmra.mrb[0].mxu0 %v3736
      %v3821 = vpop.f32.mrb[0].mxu0
      %v3822 = vadd.f32 %v3717, %v3821
      %v3823 = vpop.f32.mrb[0].mxu0
      %v3824 = vpop.f32.mrb[0].mxu0
      %v3825 = vadd.f32 %v3717, %v3824
      %v3826 = vpop.f32.mrb[0].mxu0
      %3827 = vmatprep.mubr.bf16.mxu0 0
      %3828 = vmatmul.mubr.bf16.gmra.mrb[0].mxu0 %v3739
      %v3829 = vpop.f32.mrb[0].mxu0
      %v3830 = vadd.f32 %v3717, %v3829
      %v3831 = vpop.f32.mrb[0].mxu0
      %v3832 = vpop.f32.mrb[0].mxu0
      %v3833 = vadd.f32 %v3717, %v3832
      %v3834 = vpop.f32.mrb[0].mxu0
      %3835 = vmatprep.mubr.bf16.mxu0 0
      %3836 = vmatmul.mubr.bf16.gmra.mrb[0].mxu0 %v3742
      %v3837 = vpop.f32.mrb[0].mxu0
      %v3838 = vadd.f32 %v3717, %v3837
      %v3839 = vpop.f32.mrb[0].mxu0
      %v3840 = vpop.f32.mrb[0].mxu0
      %v3841 = vadd.f32 %v3717, %v3840
      %v3842 = vpop.f32.mrb[0].mxu0
      %3843 = vmatprep.mubr.bf16.mxu0 0
      %3844 = vmatmul.mubr.bf16.gmra.mrb[0].mxu0 %v3745
      %v3845 = vpop.f32.mrb[0].mxu0
      %v3846 = vadd.f32 %v3717, %v3845
      %v3847 = vpop.f32.mrb[0].mxu0
      %v3848 = vpop.f32.mrb[0].mxu0
      %v3849 = vadd.f32 %v3717, %v3848
      %v3850 = vpop.f32.mrb[0].mxu0
      %3851 = vmatprep.mubr.bf16.mxu0 0
      %3852 = vmatmul.mubr.bf16.gmra.mrb[0].mxu0 %v3748
      %v3853 = vpop.f32.mrb[0].mxu0
      %v3854 = vadd.f32 %v3717, %v3853
      %v3855 = vpop.f32.mrb[0].mxu0
      %v3856 = vpop.f32.mrb[0].mxu0
      %v3857 = vadd.f32 %v3717, %v3856
      %v3858 = vpop.f32.mrb[0].mxu0
      %3859 = vmatprep.mubr.bf16.mxu0 0
      %3860 = vmatmul.mubr.bf16.gmra.mrb[0].mxu0 %v3751
      %v3861 = vpop.f32.mrb[0].mxu0
      %v3862 = vadd.f32 %v3717, %v3861
      %v3863 = vpop.f32.mrb[0].mxu0
      %v3864 = vpop.f32.mrb[0].mxu0
      %v3865 = vadd.f32 %v3717, %v3864
      %v3866 = vpop.f32.mrb[0].mxu0
      %3867 = vmatprep.mubr.bf16.mxu0 0
      %3868 = vmatmul.mubr.bf16.gmra.mrb[0].mxu0 %v3754
      %v3869 = vpop.f32.mrb[0].mxu0
      %v3870 = vadd.f32 %v3717, %v3869
      %v3871 = vpop.f32.mrb[0].mxu0
      %v3872 = vpop.f32.mrb[0].mxu0
      %v3873 = vadd.f32 %v3717, %v3872
      %v3874 = vpop.f32.mrb[0].mxu0
      %3875 = vmatprep.mubr.bf16.mxu0 0
      %3876 = vmatmul.mubr.bf16.gmra.mrb[0].mxu0 %v3757
      %v3877 = vpop.f32.mrb[0].mxu0
      %v3878 = vadd.f32 %v3717, %v3877
      %v3879 = vpop.f32.mrb[0].mxu0
      %v3880 = vpop.f32.mrb[0].mxu0
      %v3881 = vadd.f32 %v3717, %v3880
      %v3882 = vpop.f32.mrb[0].mxu0
      %3883 = vmatprep.mubr.bf16.mxu0 0
      %3884 = vmatmul.mubr.bf16.gmra.mrb[0].mxu0 %v3760
      %v3885 = vpop.f32.mrb[0].mxu0
      %v3886 = vadd.f32 %v3717, %v3885
      %v3887 = vpop.f32.mrb[0].mxu0
      %v3888 = vpop.f32.mrb[0].mxu0
      %v3889 = vadd.f32 %v3717, %v3888
      %v3890 = vpop.f32.mrb[0].mxu0
      %3891 = vmatprep.mubr.bf16.mxu0 0
      %3892 = vmatmul.mubr.bf16.gmra.mrb[0].mxu0 %v3763
      %v3893 = vpop.f32.mrb[0].mxu0
      %v3894 = vadd.f32 %v3717, %v3893
      %v3895 = vpop.f32.mrb[0].mxu0
      %v3896 = vpop.f32.mrb[0].mxu0
      %v3897 = vadd.f32 %v3717, %v3896
      %v3898 = vpop.f32.mrb[0].mxu0
      %3899 = vmatprep.mubr.bf16.mxu0 0
      %3900 = vmatmul.mubr.bf16.gmra.mrb[0].mxu0 %v3766
      %v3901 = vpop.f32.mrb[0].mxu0
      %v3902 = vadd.f32 %v3717, %v3901
      %v3903 = vpop.f32.mrb[0].mxu0
      %v3904 = vpop.f32.mrb[0].mxu0
      %v3905 = vadd.f32 %v3717, %v3904
      %v3906 = vpop.f32.mrb[0].mxu0
      %3907 = vmatprep.mubr.bf16.mxu0 0
      %3908 = vmatmul.mubr.bf16.gmra.mrb[0].mxu0 %v3769
      %v3909 = vpop.f32.mrb[0].mxu0
      %v3910 = vadd.f32 %v3717, %v3909
      %v3911 = vpop.f32.mrb[0].mxu0
      %v3912 = vpop.f32.mrb[0].mxu0
      %v3913 = vadd.f32 %v3717, %v3912
      %v3914 = vpop.f32.mrb[0].mxu0
      %3915 = vmatprep.mubr.bf16.mxu0 0
      %3916 = vmatmul.mubr.bf16.gmra.mrb[0].mxu0 %v3772
      %v3917 = vpop.f32.mrb[0].mxu0
      %v3918 = vadd.f32 %v3717, %v3917
      %v3919 = vpop.f32.mrb[0].mxu0
      %v3920 = vpop.f32.mrb[0].mxu0
      %v3921 = vadd.f32 %v3717, %v3920
      %v3922 = vpop.f32.mrb[0].mxu0
      %3923 = vmatprep.mubr.bf16.mxu0 0
      %3924 = vmatmul.mubr.bf16.gmra.mrb[0].mxu0 %v3775
      %v3925 = vpop.f32.mrb[0].mxu0
      %v3926 = vadd.f32 %v3717, %v3925
      %v3927 = vpop.f32.mrb[0].mxu0
      %v3928 = vpop.f32.mrb[0].mxu0
      %v3929 = vadd.f32 %v3717, %v3928
      %v3930 = vpop.f32.mrb[0].mxu0
      %3931 = vmatprep.mubr.bf16.mxu0 0
      %3932 = vmatmul.mubr.bf16.gmra.mrb[0].mxu0 %v3778
      %v3933 = vpop.f32.mrb[0].mxu0
      %v3934 = vadd.f32 %v3717, %v3933
      %v3935 = vpop.f32.mrb[0].mxu0
      %v3936 = vpop.f32.mrb[0].mxu0
      %v3937 = vadd.f32 %v3717, %v3936
      %v3938 = vpop.f32.mrb[0].mxu0
      %3939 = vmatprep.mubr.bf16.mxu0 0
      %3940 = vmatmul.mubr.bf16.gmra.mrb[0].mxu0 %v3781
      %v3941 = vpop.f32.mrb[0].mxu0
      %v3942 = vadd.f32 %v3717, %v3941
      %v3943 = vpop.f32.mrb[0].mxu0
      %v3944 = vpop.f32.mrb[0].mxu0
      %v3945 = vadd.f32 %v3717, %v3944
      %v3946 = vpop.f32.mrb[0].mxu0
      %3947 = vdwg.mxu0
      %3948 = vst.msk [vmem:[%s224] sm:$0xff] %vm1151, %v3822
      %3949 = vst.msk [vmem:[%s224 + $0x8] sm:$0xff] %vm1151, %v3825
      %3950 = vst.msk [vmem:[%s224 + $0x10] sm:$0xff] %vm1151, %v3830
      %3951 = vst.msk [vmem:[%s224 + $0x18] sm:$0xff] %vm1151, %v3833
      %3952 = vst.msk [vmem:[%s224 + $0x20] sm:$0xff] %vm1151, %v3838
      %3953 = vst.msk [vmem:[%s224 + $0x28] sm:$0xff] %vm1151, %v3841
      %3954 = vst.msk [vmem:[%s224 + $0x30] sm:$0xff] %vm1151, %v3846
      %3955 = vst.msk [vmem:[%s224 + $0x38] sm:$0xff] %vm1151, %v3849
      %3956 = vst.msk [vmem:[%s224 + $0x40] sm:$0xff] %vm1151, %v3854
      %3957 = vst.msk [vmem:[%s224 + $0x48] sm:$0xff] %vm1151, %v3857
      %3958 = vst.msk [vmem:[%s224 + $0x50] sm:$0xff] %vm1151, %v3862
      %3959 = vst.msk [vmem:[%s224 + $0x58] sm:$0xff] %vm1151, %v3865
      %3960 = vst.msk [vmem:[%s224 + $0x60] sm:$0xff] %vm1151, %v3870
      %3961 = vst.msk [vmem:[%s224 + $0x68] sm:$0xff] %vm1151, %v3873
      %3962 = vst.msk [vmem:[%s224 + $0x70] sm:$0xff] %vm1151, %v3878
      %3963 = vst.msk [vmem:[%s224 + $0x78] sm:$0xff] %vm1151, %v3881
      %3964 = vst.msk [vmem:[%s224 + $0x80] sm:$0xff] %vm1151, %v3886
      %3965 = vst.msk [vmem:[%s224 + $0x88] sm:$0xff] %vm1151, %v3889
      %3966 = vst.msk [vmem:[%s224 + $0x90] sm:$0xff] %vm1151, %v3894
      %3967 = vst.msk [vmem:[%s224 + $0x98] sm:$0xff] %vm1151, %v3897
      %3968 = vst.msk [vmem:[%s224 + $0xa0] sm:$0xff] %vm1151, %v3902
      %3969 = vst.msk [vmem:[%s224 + $0xa8] sm:$0xff] %vm1151, %v3905
      %3970 = vst.msk [vmem:[%s224 + $0xb0] sm:$0xff] %vm1151, %v3910
      %3971 = vst.msk [vmem:[%s224 + $0xb8] sm:$0xff] %vm1151, %v3913
      %3972 = vst.msk [vmem:[%s224 + $0xc0] sm:$0xff] %vm1151, %v3918
      %3973 = vst.msk [vmem:[%s224 + $0xc8] sm:$0xff] %vm1151, %v3921
      %3974 = vst.msk [vmem:[%s224 + $0xd0] sm:$0xff] %vm1151, %v3926
      %3975 = vst.msk [vmem:[%s224 + $0xd8] sm:$0xff] %vm1151, %v3929
      %3976 = vst.msk [vmem:[%s224 + $0xe0] sm:$0xff] %vm1151, %v3934
      %3977 = vst.msk [vmem:[%s224 + $0xe8] sm:$0xff] %vm1151, %v3937
      %3978 = vst.msk [vmem:[%s224 + $0xf0] sm:$0xff] %vm1151, %v3942
      %3979 = vst.msk [vmem:[%s224 + $0xf8] sm:$0xff] %vm1151, %v3945
      %p3980 = scmp.lt.s32.totalorder %s16, 1
      %s3981 = scalar_select %p3980, %s16, 1
      %s3982 = smul.addr %s3981, 32
      %s3983 = smul.addr %s3982, 8
      %s3984 = scalar_lea.vmem %s5, %s3983
      // Predicated region
      $region41: #{preact_block_mr_forward.3} parent=39 // pred_check
        %p3985 = pneg %p144
      $region42: #{preact_block_mr_forward.3} parent=39 // pred_check_branch
        %3987 = sbr.rel (%p3985) target = $region44
      $region43: #{preact_block_mr_forward.3} parent=39 // pred_region
        _
      $region44: #{preact_block_mr_forward.3} parent=39 // pred_fallthru
        _
    $region40: #{preact_block_mr_forward.3} parent=5 // pred_fallthru
      _
    %p3988 = scmp.le.s32.totalorder 2, %s11
    // Predicated region
    $region45: #{preact_block_mr_forward.3} parent=5 // pred_check
      %p3989 = pneg %p3988
    $region46: #{preact_block_mr_forward.3} parent=5 // pred_check_branch
      %3991 = sbr.rel (%p3989) target = $region48
    $region47: #{preact_block_mr_forward.3} parent=5 // pred_region
      %s3992 = ssub.s32 %s11, 2
      // Predicated region
      $region49: #{preact_block_mr_forward.3} parent=47 // pred_check
        %p3993 = pneg %p150
      $region50: #{preact_block_mr_forward.3} parent=47 // pred_check_branch
        %3995 = sbr.rel (%p3993) target = $region52
      $region51: #{preact_block_mr_forward.3} parent=47 // pred_region
        %p3996 = scmp.lt.s32.totalorder %s17, 1
        %s3997 = scalar_select %p3996, %s17, 1
        %s3998 = smul.addr %s3997, 32
        %s3999 = smul.addr %s3998, 8
        %s4000 = scalar_lea.vmem %s5, %s3999
      $region52: #{preact_block_mr_forward.3} parent=47 // pred_fallthru
        _
    $region48: #{preact_block_mr_forward.3} parent=5 // pred_fallthru
      _
  $region6: #{preact_block_mr_forward.3} parent=0 // loop_footer
    %s15 = sadd.s32 1, %s11
  $region7: #{preact_block_mr_forward.3} parent=0 // loop_footer_branch
    %10 = sbr.rel target = $region3
  $region8: #{preact_block_mr_forward.3} parent=0 // loop_exit
    _

// kernel: preact_block_mr_forward.2
$region0: #{preact_block_mr_forward.2}
  #allocation0 [shape = 'u32[]', space=smem, size = 0x4, offset = 0x4, fixed_abs, tag = 'smem constant byte address 0x4 - core index']
  #allocation1 [shape = 'u32[144,128]{1,0:T(1,128)}', space=vmem, size = 0x12000, scoped, tag = 'internal scratch']
  #allocation2 [shape = 'bf16[18,18,4]{2,1,0:T(8,128)(2,1)}', space=vmem, size = 0x1b000, scoped, tag = 'scratch operand']
  #allocation3 [shape = 'bf16[16,16,36]{2,1,0:T(16,128)(2,1)}', space=vmem, size = 0x10000, scoped, tag = 'scratch operand']
  %s0 = inlined_call_operand.vmem [shape: f32[2,16,16,4], index: 0, kind: input, shape index: {}]
  %s1 = inlined_call_operand.vmem [shape: f32[1,4], index: 1, kind: input, shape index: {}]
  %s2 = inlined_call_operand.vmem [shape: f32[1,4], index: 2, kind: input, shape index: {}]
  %s3 = inlined_call_operand.vmem [shape: bf16[36,4], index: 3, kind: input, shape index: {}]
  %s4 = inlined_call_operand.vmem [shape: f32[2,256,4], index: 4, kind: output, shape index: {0}]
  %s5 = inlined_call_operand.vmem [shape: f32[2,1,4], index: 5, kind: output, shape index: {1}]
  %s6 = inlined_call_operand.vmem [shape: f32[2,1,4], index: 6, kind: output, shape index: {2}]
  %7 = xla_tuple %s4, %s5, %s6
  %s8 = sld [smem:[#allocation0]]
  $region65: #{preact_block_mr_forward.2} parent=0
    _
  %s10 = ssub.s32 1, %s8
  %s11 = scalar_select 0, %s10, %s8
  loop: start=0, step=1, limit=4
  $region2: #{preact_block_mr_forward.2} parent=0 // loop_pre_header
    _
  $region3: #{preact_block_mr_forward.2} parent=0 // loop_header
    %s13 = sphi 0, %s17
    %p14 = scmp.ge.s32.totalorder %s13, 4
    %s23 = sphi 0, %s25
    %s26 = sphi 0, %s23
    %s27 = sphi 0, %s26
    %s43 = sphi 0, %s27
    %s47 = sphi 0, %s47
    %s49 = sphi 0, %s47
    %s50 = sphi 0, %s49
    %s64 = sphi 0, %s50
    %s68 = sphi 0, %s68
    %s70 = sphi 0, %s68
    %s71 = sphi 0, %s70
    %s85 = sphi 0, %s71
    %s89 = sphi 0, %s89
    %s91 = sphi 0, %s89
    %s92 = sphi 0, %s91
    %s106 = sphi 0, %s92
    %s112 = sphi 0, %s114
    %s115 = sphi 0, %s112
    %s116 = sphi 0, %s115
    %s132 = sphi 0, %s116
    %s138 = sphi 0, %s140
    %s141 = sphi 0, %s138
    %s142 = sphi 0, %s141
    %s158 = sphi 0, %s142
    %s164 = sphi 0, %s166
    %s167 = sphi 0, %s164
    %s168 = sphi 0, %s167
    %s184 = sphi 0, %s168
  $region4: #{preact_block_mr_forward.2} parent=0 // loop_header_branch
    %16 = sbr.rel (%p14) target = $region8
  $region5: #{preact_block_mr_forward.2} parent=0 // loop_body
    %s18 = ssub.s32 %s13, 1
    %s19 = ssub.s32 %s13, 2
    %s20 = sadd.s32 %s13, 1
    %s21 = ssub.s32 %s13, %s20
    %p22 = scmp.eq.s32.totalorder %s21, 0
    %s24 = sadd.s32 %s23, 1
    %s25 = scalar_select %p22, %s23, %s24
    %p28 = pneg %p22
    %p29 = scmp.eq.s32.totalorder %s13, 1
    %p30 = por %p28, %p29
    %p31 = scmp.ne.s32.totalorder %s23, %s26
    %p32 = scmp.eq.s32.totalorder %s13, 0
    %p33 = por %p31, %p32
    %p34 = scmp.ne.s32.totalorder %s23, %s26
    %p35 = scmp.eq.s32.totalorder %s18, 1
    %p36 = por %p34, %p35
    %p37 = scmp.ne.s32.totalorder %s26, %s27
    %p38 = scmp.eq.s32.totalorder %s18, 0
    %p39 = por %p37, %p38
    %p40 = scmp.ne.s32.totalorder %s26, %s27
    %p41 = scmp.eq.s32.totalorder %s19, 1
    %p42 = por %p40, %p41
    %p44 = scmp.ne.s32.totalorder %s27, %s43
    %p45 = scmp.eq.s32.totalorder %s19, 0
    %p46 = por %p44, %p45
    %s48 = sadd.s32 %s47, 1
    %p51 = scmp.eq.s32.totalorder %s13, 1
    %p52 = scmp.ne.s32.totalorder %s47, %s49
    %p53 = scmp.eq.s32.totalorder %s13, 0
    %p54 = por %p52, %p53
    %p55 = scmp.ne.s32.totalorder %s47, %s49
    %p56 = scmp.eq.s32.totalorder %s18, 1
    %p57 = por %p55, %p56
    %p58 = scmp.ne.s32.totalorder %s49, %s50
    %p59 = scmp.eq.s32.totalorder %s18, 0
    %p60 = por %p58, %p59
    %p61 = scmp.ne.s32.totalorder %s49, %s50
    %p62 = scmp.eq.s32.totalorder %s19, 1
    %p63 = por %p61, %p62
    %p65 = scmp.ne.s32.totalorder %s50, %s64
    %p66 = scmp.eq.s32.totalorder %s19, 0
    %p67 = por %p65, %p66
    %s69 = sadd.s32 %s68, 1
    %p72 = scmp.eq.s32.totalorder %s13, 1
    %p73 = scmp.ne.s32.totalorder %s68, %s70
    %p74 = scmp.eq.s32.totalorder %s13, 0
    %p75 = por %p73, %p74
    %p76 = scmp.ne.s32.totalorder %s68, %s70
    %p77 = scmp.eq.s32.totalorder %s18, 1
    %p78 = por %p76, %p77
    %p79 = scmp.ne.s32.totalorder %s70, %s71
    %p80 = scmp.eq.s32.totalorder %s18, 0
    %p81 = por %p79, %p80
    %p82 = scmp.ne.s32.totalorder %s70, %s71
    %p83 = scmp.eq.s32.totalorder %s19, 1
    %p84 = por %p82, %p83
    %p86 = scmp.ne.s32.totalorder %s71, %s85
    %p87 = scmp.eq.s32.totalorder %s19, 0
    %p88 = por %p86, %p87
    %s90 = sadd.s32 %s89, 1
    %p93 = scmp.eq.s32.totalorder %s13, 1
    %p94 = scmp.ne.s32.totalorder %s89, %s91
    %p95 = scmp.eq.s32.totalorder %s13, 0
    %p96 = por %p94, %p95
    %p97 = scmp.ne.s32.totalorder %s89, %s91
    %p98 = scmp.eq.s32.totalorder %s18, 1
    %p99 = por %p97, %p98
    %p100 = scmp.ne.s32.totalorder %s91, %s92
    %p101 = scmp.eq.s32.totalorder %s18, 0
    %p102 = por %p100, %p101
    %p103 = scmp.ne.s32.totalorder %s91, %s92
    %p104 = scmp.eq.s32.totalorder %s19, 1
    %p105 = por %p103, %p104
    %p107 = scmp.ne.s32.totalorder %s92, %s106
    %p108 = scmp.eq.s32.totalorder %s19, 0
    %p109 = por %p107, %p108
    %s110 = ssub.s32 %s13, %s20
    %p111 = scmp.eq.s32.totalorder %s110, 0
    %s113 = sadd.s32 %s112, 1
    %s114 = scalar_select %p111, %s112, %s113
    %p117 = pneg %p111
    %p118 = scmp.eq.s32.totalorder %s13, 1
    %p119 = por %p117, %p118
    %p120 = scmp.ne.s32.totalorder %s112, %s115
    %p121 = scmp.eq.s32.totalorder %s13, 0
    %p122 = por %p120, %p121
    %p123 = scmp.ne.s32.totalorder %s112, %s115
    %p124 = scmp.eq.s32.totalorder %s18, 1
    %p125 = por %p123, %p124
    %p126 = scmp.ne.s32.totalorder %s115, %s116
    %p127 = scmp.eq.s32.totalorder %s18, 0
    %p128 = por %p126, %p127
    %p129 = scmp.ne.s32.totalorder %s115, %s116
    %p130 = scmp.eq.s32.totalorder %s19, 1
    %p131 = por %p129, %p130
    %p133 = scmp.ne.s32.totalorder %s116, %s132
    %p134 = scmp.eq.s32.totalorder %s19, 0
    %p135 = por %p133, %p134
    %s136 = ssub.s32 %s13, %s20
    %p137 = scmp.eq.s32.totalorder %s136, 0
    %s139 = sadd.s32 %s138, 1
    %s140 = scalar_select %p137, %s138, %s139
    %p143 = pneg %p137
    %p144 = scmp.eq.s32.totalorder %s13, 1
    %p145 = por %p143, %p144
    %p146 = scmp.ne.s32.totalorder %s138, %s141
    %p147 = scmp.eq.s32.totalorder %s13, 0
    %p148 = por %p146, %p147
    %p149 = scmp.ne.s32.totalorder %s138, %s141
    %p150 = scmp.eq.s32.totalorder %s18, 1
    %p151 = por %p149, %p150
    %p152 = scmp.ne.s32.totalorder %s141, %s142
    %p153 = scmp.eq.s32.totalorder %s18, 0
    %p154 = por %p152, %p153
    %p155 = scmp.ne.s32.totalorder %s141, %s142
    %p156 = scmp.eq.s32.totalorder %s19, 1
    %p157 = por %p155, %p156
    %p159 = scmp.ne.s32.totalorder %s142, %s158
    %p160 = scmp.eq.s32.totalorder %s19, 0
    %p161 = por %p159, %p160
    %s162 = ssub.s32 %s13, %s20
    %p163 = scmp.eq.s32.totalorder %s162, 0
    %s165 = sadd.s32 %s164, 1
    %s166 = scalar_select %p163, %s164, %s165
    %p169 = pneg %p163
    %p170 = scmp.eq.s32.totalorder %s13, 1
    %p171 = por %p169, %p170
    %p172 = scmp.ne.s32.totalorder %s164, %s167
    %p173 = scmp.eq.s32.totalorder %s13, 0
    %p174 = por %p172, %p173
    %p175 = scmp.ne.s32.totalorder %s164, %s167
    %p176 = scmp.eq.s32.totalorder %s18, 1
    %p177 = por %p175, %p176
    %p178 = scmp.ne.s32.totalorder %s167, %s168
    %p179 = scmp.eq.s32.totalorder %s18, 0
    %p180 = por %p178, %p179
    %p181 = scmp.ne.s32.totalorder %s167, %s168
    %p182 = scmp.eq.s32.totalorder %s19, 1
    %p183 = por %p181, %p182
    %p185 = scmp.ne.s32.totalorder %s168, %s184
    %p186 = scmp.eq.s32.totalorder %s19, 0
    %p187 = por %p185, %p186
    %p188 = scmp.le.s32.totalorder 1, %s13
    %p189 = scmp.lt.s32.totalorder %s13, 3
    %p190 = pnand %p188, %p189
    %p191 = pneg %p190
    // Predicated region
    $region9: #{preact_block_mr_forward.2} parent=5 // pred_check
      _
    $region10: #{preact_block_mr_forward.2} parent=5 // pred_check_branch
      %193 = sbr.rel (%p190) target = $region12
    $region11: #{preact_block_mr_forward.2} parent=5 // pred_region
      %s194 = ssub.s32 %s13, 1
      // Predicated region
      $region13: #{preact_block_mr_forward.2} parent=11 // pred_check
        %p195 = pneg %p60
      $region14: #{preact_block_mr_forward.2} parent=11 // pred_check_branch
        %197 = sbr.rel (%p195) target = $region16
      $region15: #{preact_block_mr_forward.2} parent=11 // pred_region
        _
      $region16: #{preact_block_mr_forward.2} parent=11 // pred_fallthru
        _
      // Predicated region
      $region17: #{preact_block_mr_forward.2} parent=11 // pred_check
        %p198 = pneg %p81
      $region18: #{preact_block_mr_forward.2} parent=11 // pred_check_branch
        %200 = sbr.rel (%p198) target = $region20
      $region19: #{preact_block_mr_forward.2} parent=11 // pred_region
        _
      $region20: #{preact_block_mr_forward.2} parent=11 // pred_fallthru
        _
      // Predicated region
      $region21: #{preact_block_mr_forward.2} parent=11 // pred_check
        %p201 = pneg %p102
      $region22: #{preact_block_mr_forward.2} parent=11 // pred_check_branch
        %203 = sbr.rel (%p201) target = $region24
      $region23: #{preact_block_mr_forward.2} parent=11 // pred_region
        _
      $region24: #{preact_block_mr_forward.2} parent=11 // pred_fallthru
        _
    $region12: #{preact_block_mr_forward.2} parent=5 // pred_fallthru
      _
    %p204 = scmp.lt.s32.totalorder %s13, 2
    // Predicated region
    $region25: #{preact_block_mr_forward.2} parent=5 // pred_check
      %p205 = pneg %p204
    $region26: #{preact_block_mr_forward.2} parent=5 // pred_check_branch
      %207 = sbr.rel (%p205) target = $region28
    $region27: #{preact_block_mr_forward.2} parent=5 // pred_region
      // Predicated region
      $region29: #{preact_block_mr_forward.2} parent=27 // pred_check
        %p208 = pneg %p33
      $region30: #{preact_block_mr_forward.2} parent=27 // pred_check_branch
        %210 = sbr.rel (%p208) target = $region32
      $region31: #{preact_block_mr_forward.2} parent=27 // pred_region
        %p211 = scmp.lt.s32.totalorder %s13, 1
        %s212 = scalar_select %p211, %s13, 1
        %s213 = smul.addr %s212, 32
        %s214 = smul.addr %s213, 8
        %s215 = scalar_lea.vmem %s0, %s214
      $region32: #{preact_block_mr_forward.2} parent=27 // pred_fallthru
        _
    $region28: #{preact_block_mr_forward.2} parent=5 // pred_fallthru
      _
    %p216 = scmp.le.s32.totalorder 1, %s13
    %p217 = scmp.lt.s32.totalorder %s13, 3
    %p218 = pnand %p216, %p217
    %p219 = pneg %p218
    // Predicated region
    $region33: #{preact_block_mr_forward.2} parent=5 // pred_check
      _
    $region34: #{preact_block_mr_forward.2} parent=5 // pred_check_branch
      %221 = sbr.rel (%p218) target = $region36
    $region35: #{preact_block_mr_forward.2} parent=5 // pred_region
      %s222 = ssub.s32 %s13, 1
      %p223 = scmp.lt.s32.totalorder %s18, 1
      %s224 = scalar_select %p223, %s18, 1
      %s225 = smul.addr %s224, 32
      %s226 = smul.addr %s225, 8
      %s227 = scalar_lea.vmem %s0, %s226
      %p228 = pneg %p39
      %p229 = pneg %p36
      %p230 = pneg %p60
      %p231 = pneg %p57
      %p232 = pneg %p81
      %p233 = pneg %p78
      %p234 = pneg %p102
      %p235 = pneg %p99
      %p236 = pneg %p128
      %p237 = pneg %p125
      %p238 = scmp.lt.s32.totalorder %s18, 1
      %s239 = scalar_select %p238, %s18, 1
      %s240 = smul.addr %s239, 32
      %s241 = smul.addr %s240, 8
      %s242 = scalar_lea.vmem %s4, %s241
      %p243 = pneg %p154
      %p244 = pneg %p151
      %p245 = scmp.lt.s32.totalorder %s18, 1
      %s246 = scalar_select %p245, %s18, 1
      %s247 = scalar_lea.vmem %s5, %s246
      %p248 = pneg %p180
      %p249 = pneg %p177
      %p250 = scmp.lt.s32.totalorder %s18, 1
      %s251 = scalar_select %p250, %s18, 1
      %s252 = scalar_lea.vmem %s6, %s251
      %p253 = scmp.lt.s32.totalorder %s18, 1
      %s254 = scalar_select %p253, %s18, 1
      %s255 = smul.addr %s254, 32
      %s256 = smul.addr %s255, 8
      %s257 = scalar_lea.vmem %s0, %s256
      %p258 = scmp.lt.s32.totalorder %s18, 1
      %s259 = scalar_select %p258, %s18, 1
      %s260 = smul.addr %s259, 32
      %s261 = smul.addr %s260, 8
      %s262 = scalar_lea.vmem %s4, %s261
      %p263 = scmp.lt.s32.totalorder %s18, 1
      %s264 = scalar_select %p263, %s18, 1
      %s265 = scalar_lea.vmem %s5, %s264
      %p266 = scmp.lt.s32.totalorder %s18, 1
      %s267 = scalar_select %p266, %s18, 1
      %s268 = scalar_lea.vmem %s6, %s267
      %v270 = vld [vmem:[%s257] sm:$0xff]
      %v271 = vld [vmem:[%s257 + $0x8] sm:$0xff]
      %v272 = vld [vmem:[%s257 + $0x10] sm:$0xff]
      %v273 = vld [vmem:[%s257 + $0x18] sm:$0xff]
      %v274 = vld [vmem:[%s257 + $0x20] sm:$0xff]
      %v275 = vld [vmem:[%s257 + $0x28] sm:$0xff]
      %v276 = vld [vmem:[%s257 + $0x30] sm:$0xff]
      %v277 = vld [vmem:[%s257 + $0x38] sm:$0xff]
      %v278 = vld [vmem:[%s257 + $0x40] sm:$0xff]
      %v279 = vld [vmem:[%s257 + $0x48] sm:$0xff]
      %v280 = vld [vmem:[%s257 + $0x50] sm:$0xff]
      %v281 = vld [vmem:[%s257 + $0x58] sm:$0xff]
      %v282 = vld [vmem:[%s257 + $0x60] sm:$0xff]
      %v283 = vld [vmem:[%s257 + $0x68] sm:$0xff]
      %v284 = vld [vmem:[%s257 + $0x70] sm:$0xff]
      %v285 = vld [vmem:[%s257 + $0x78] sm:$0xff]
      %v286 = vld [vmem:[%s257 + $0x80] sm:$0xff]
      %v287 = vld [vmem:[%s257 + $0x88] sm:$0xff]
      %v288 = vld [vmem:[%s257 + $0x90] sm:$0xff]
      %v289 = vld [vmem:[%s257 + $0x98] sm:$0xff]
      %v290 = vld [vmem:[%s257 + $0xa0] sm:$0xff]
      %v291 = vld [vmem:[%s257 + $0xa8] sm:$0xff]
      %v292 = vld [vmem:[%s257 + $0xb0] sm:$0xff]
      %v293 = vld [vmem:[%s257 + $0xb8] sm:$0xff]
      %v294 = vld [vmem:[%s257 + $0xc0] sm:$0xff]
      %v295 = vld [vmem:[%s257 + $0xc8] sm:$0xff]
      %v296 = vld [vmem:[%s257 + $0xd0] sm:$0xff]
      %v297 = vld [vmem:[%s257 + $0xd8] sm:$0xff]
      %v298 = vld [vmem:[%s257 + $0xe0] sm:$0xff]
      %v299 = vld [vmem:[%s257 + $0xe8] sm:$0xff]
      %v300 = vld [vmem:[%s257 + $0xf0] sm:$0xff]
      %v301 = vld [vmem:[%s257 + $0xf8] sm:$0xff]
      %v302 = vld [vmem:[%s1] sm:$0x1]
      %v303 = vld [vmem:[%s2] sm:$0x1]
      %v305 = vlaneseq
      %v306 = vshrl.u32 %v305, 7
      %v307 = vsub.s32 0, %v306
      %v308 = vrot.slane %v302, %v307
      %v310 = vmul.f32 %v270, %v308
      %v311 = vmul.f32 %v271, %v308
      %v312 = vmul.f32 %v272, %v308
      %v313 = vmul.f32 %v273, %v308
      %v314 = vmul.f32 %v274, %v308
      %v315 = vmul.f32 %v275, %v308
      %v316 = vmul.f32 %v276, %v308
      %v317 = vmul.f32 %v277, %v308
      %v318 = vmul.f32 %v278, %v308
      %v319 = vmul.f32 %v279, %v308
      %v320 = vmul.f32 %v280, %v308
      %v321 = vmul.f32 %v281, %v308
      %v322 = vmul.f32 %v282, %v308
      %v323 = vmul.f32 %v283, %v308
      %v324 = vmul.f32 %v284, %v308
      %v325 = vmul.f32 %v285, %v308
      %v326 = vmul.f32 %v286, %v308
      %v327 = vmul.f32 %v287, %v308
      %v328 = vmul.f32 %v288, %v308
      %v329 = vmul.f32 %v289, %v308
      %v330 = vmul.f32 %v290, %v308
      %v331 = vmul.f32 %v291, %v308
      %v332 = vmul.f32 %v292, %v308
      %v333 = vmul.f32 %v293, %v308
      %v334 = vmul.f32 %v294, %v308
      %v335 = vmul.f32 %v295, %v308
      %v336 = vmul.f32 %v296, %v308
      %v337 = vmul.f32 %v297, %v308
      %v338 = vmul.f32 %v298, %v308
      %v339 = vmul.f32 %v299, %v308
      %v340 = vmul.f32 %v300, %v308
      %v341 = vmul.f32 %v301, %v308
      %v343 = vlaneseq
      %v344 = vshrl.u32 %v343, 7
      %v345 = vsub.s32 0, %v344
      %v346 = vrot.slane %v303, %v345
      %v348 = vadd.f32 %v310, %v346
      %v349 = vadd.f32 %v311, %v346
      %v350 = vadd.f32 %v312, %v346
      %v351 = vadd.f32 %v313, %v346
      %v352 = vadd.f32 %v314, %v346
      %v353 = vadd.f32 %v315, %v346
      %v354 = vadd.f32 %v316, %v346
      %v355 = vadd.f32 %v317, %v346
      %v356 = vadd.f32 %v318, %v346
      %v357 = vadd.f32 %v319, %v346
      %v358 = vadd.f32 %v320, %v346
      %v359 = vadd.f32 %v321, %v346
      %v360 = vadd.f32 %v322, %v346
      %v361 = vadd.f32 %v323, %v346
      %v362 = vadd.f32 %v324, %v346
      %v363 = vadd.f32 %v325, %v346
      %v364 = vadd.f32 %v326, %v346
      %v365 = vadd.f32 %v327, %v346
      %v366 = vadd.f32 %v328, %v346
      %v367 = vadd.f32 %v329, %v346
      %v368 = vadd.f32 %v330, %v346
      %v369 = vadd.f32 %v331, %v346
      %v370 = vadd.f32 %v332, %v346
      %v371 = vadd.f32 %v333, %v346
      %v372 = vadd.f32 %v334, %v346
      %v373 = vadd.f32 %v335, %v346
      %v374 = vadd.f32 %v336, %v346
      %v375 = vadd.f32 %v337, %v346
      %v376 = vadd.f32 %v338, %v346
      %v377 = vadd.f32 %v339, %v346
      %v378 = vadd.f32 %v340, %v346
      %v379 = vadd.f32 %v341, %v346
      %v380 = vmax.f32 %v348, 0.0
      %v381 = vmax.f32 %v349, 0.0
      %v382 = vmax.f32 %v350, 0.0
      %v383 = vmax.f32 %v351, 0.0
      %v384 = vmax.f32 %v352, 0.0
      %v385 = vmax.f32 %v353, 0.0
      %v386 = vmax.f32 %v354, 0.0
      %v387 = vmax.f32 %v355, 0.0
      %v388 = vmax.f32 %v356, 0.0
      %v389 = vmax.f32 %v357, 0.0
      %v390 = vmax.f32 %v358, 0.0
      %v391 = vmax.f32 %v359, 0.0
      %v392 = vmax.f32 %v360, 0.0
      %v393 = vmax.f32 %v361, 0.0
      %v394 = vmax.f32 %v362, 0.0
      %v395 = vmax.f32 %v363, 0.0
      %v396 = vmax.f32 %v364, 0.0
      %v397 = vmax.f32 %v365, 0.0
      %v398 = vmax.f32 %v366, 0.0
      %v399 = vmax.f32 %v367, 0.0
      %v400 = vmax.f32 %v368, 0.0
      %v401 = vmax.f32 %v369, 0.0
      %v402 = vmax.f32 %v370, 0.0
      %v403 = vmax.f32 %v371, 0.0
      %v404 = vmax.f32 %v372, 0.0
      %v405 = vmax.f32 %v373, 0.0
      %v406 = vmax.f32 %v374, 0.0
      %v407 = vmax.f32 %v375, 0.0
      %v408 = vmax.f32 %v376, 0.0
      %v409 = vmax.f32 %v377, 0.0
      %v410 = vmax.f32 %v378, 0.0
      %v411 = vmax.f32 %v379, 0.0
      %vm412 = vcmask 27648
      %413 = vst.msk [vmem:[#allocation2] sm:$0xf] %vm412, 0
      %414 = vst.msk [vmem:[#allocation2 + $0x4] sm:$0xf] %vm412, 0
      %vm415 = vcmask 24576
      %416 = vst.msk [vmem:[#allocation2 + $0x8] sm:$0x1] %vm415, 0
      %s417 = scalar_lea.vmem [#allocation2], 204
      %418 = vst.msk [vmem:[%s417] sm:$0xf] %vm412, 0
      %419 = vst.msk [vmem:[%s417 + $0x4] sm:$0xf] %vm412, 0
      %420 = vst.msk [vmem:[%s417 + $0x8] sm:$0x1] %vm415, 0
      %vm421 = vcmask 24576
      %vm422 = vsmask.f32 256
      %vm423 = vmand %vm421, %vm422
      %v424 = vld [vmem:[#allocation2] sm:$0x1]
      %v425 = vsel %vm423, 0, %v424
      %426 = vst [vmem:[#allocation2] sm:$0x1] %v425
      %v427 = vld [vmem:[#allocation2 + $0xc] sm:$0x1]
      %v428 = vsel %vm423, 0, %v427
      %429 = vst [vmem:[#allocation2 + $0xc] sm:$0x1] %v428
      %v430 = vld [vmem:[#allocation2 + $0x18] sm:$0x1]
      %v431 = vsel %vm423, 0, %v430
      %432 = vst [vmem:[#allocation2 + $0x18] sm:$0x1] %v431
      %v433 = vld [vmem:[#allocation2 + $0x24] sm:$0x1]
      %v434 = vsel %vm423, 0, %v433
      %435 = vst [vmem:[#allocation2 + $0x24] sm:$0x1] %v434
      %v436 = vld [vmem:[#allocation2 + $0x30] sm:$0x1]
      %v437 = vsel %vm423, 0, %v436
      %438 = vst [vmem:[#allocation2 + $0x30] sm:$0x1] %v437
      %v439 = vld [vmem:[#allocation2 + $0x3c] sm:$0x1]
      %v440 = vsel %vm423, 0, %v439
      %441 = vst [vmem:[#allocation2 + $0x3c] sm:$0x1] %v440
      %v442 = vld [vmem:[#allocation2 + $0x48] sm:$0x1]
      %v443 = vsel %vm423, 0, %v442
      %444 = vst [vmem:[#allocation2 + $0x48] sm:$0x1] %v443
      %v445 = vld [vmem:[#allocation2 + $0x54] sm:$0x1]
      %v446 = vsel %vm423, 0, %v445
      %447 = vst [vmem:[#allocation2 + $0x54] sm:$0x1] %v446
      %v448 = vld [vmem:[#allocation2 + $0x60] sm:$0x1]
      %v449 = vsel %vm423, 0, %v448
      %450 = vst [vmem:[#allocation2 + $0x60] sm:$0x1] %v449
      %v451 = vld [vmem:[#allocation2 + $0x6c] sm:$0x1]
      %v452 = vsel %vm423, 0, %v451
      %453 = vst [vmem:[#allocation2 + $0x6c] sm:$0x1] %v452
      %v454 = vld [vmem:[#allocation2 + $0x78] sm:$0x1]
      %v455 = vsel %vm423, 0, %v454
      %456 = vst [vmem:[#allocation2 + $0x78] sm:$0x1] %v455
      %v457 = vld [vmem:[#allocation2 + $0x84] sm:$0x1]
      %v458 = vsel %vm423, 0, %v457
      %459 = vst [vmem:[#allocation2 + $0x84] sm:$0x1] %v458
      %v460 = vld [vmem:[#allocation2 + $0x90] sm:$0x1]
      %v461 = vsel %vm423, 0, %v460
      %462 = vst [vmem:[#allocation2 + $0x90] sm:$0x1] %v461
      %v463 = vld [vmem:[#allocation2 + $0x9c] sm:$0x1]
      %v464 = vsel %vm423, 0, %v463
      %465 = vst [vmem:[#allocation2 + $0x9c] sm:$0x1] %v464
      %v466 = vld [vmem:[#allocation2 + $0xa8] sm:$0x1]
      %v467 = vsel %vm423, 0, %v466
      %468 = vst [vmem:[#allocation2 + $0xa8] sm:$0x1] %v467
      %v469 = vld [vmem:[#allocation2 + $0xb4] sm:$0x1]
      %v470 = vsel %vm423, 0, %v469
      %471 = vst [vmem:[#allocation2 + $0xb4] sm:$0x1] %v470
      %v472 = vld [vmem:[#allocation2 + $0xc0] sm:$0x1]
      %v473 = vsel %vm423, 0, %v472
      %474 = vst [vmem:[#allocation2 + $0xc0] sm:$0x1] %v473
      %v475 = vld [vmem:[#allocation2 + $0xcc] sm:$0x1]
      %v476 = vsel %vm423, 0, %v475
      %477 = vst [vmem:[#allocation2 + $0xcc] sm:$0x1] %v476
      %vm478 = vsmask.f32 7938
      %vm479 = vmand %vm421, %vm478
      %v480 = vld [vmem:[#allocation2 + $0x8] sm:$0x1]
      %v481 = vsel %vm479, 0, %v480
      %482 = vst [vmem:[#allocation2 + $0x8] sm:$0x1] %v481
      %v483 = vld [vmem:[#allocation2 + $0x14] sm:$0x1]
      %v484 = vsel %vm479, 0, %v483
      %485 = vst [vmem:[#allocation2 + $0x14] sm:$0x1] %v484
      %v486 = vld [vmem:[#allocation2 + $0x20] sm:$0x1]
      %v487 = vsel %vm479, 0, %v486
      %488 = vst [vmem:[#allocation2 + $0x20] sm:$0x1] %v487
      %v489 = vld [vmem:[#allocation2 + $0x2c] sm:$0x1]
      %v490 = vsel %vm479, 0, %v489
      %491 = vst [vmem:[#allocation2 + $0x2c] sm:$0x1] %v490
      %v492 = vld [vmem:[#allocation2 + $0x38] sm:$0x1]
      %v493 = vsel %vm479, 0, %v492
      %494 = vst [vmem:[#allocation2 + $0x38] sm:$0x1] %v493
      %v495 = vld [vmem:[#allocation2 + $0x44] sm:$0x1]
      %v496 = vsel %vm479, 0, %v495
      %497 = vst [vmem:[#allocation2 + $0x44] sm:$0x1] %v496
      %v498 = vld [vmem:[#allocation2 + $0x50] sm:$0x1]
      %v499 = vsel %vm479, 0, %v498
      %500 = vst [vmem:[#allocation2 + $0x50] sm:$0x1] %v499
      %v501 = vld [vmem:[#allocation2 + $0x5c] sm:$0x1]
      %v502 = vsel %vm479, 0, %v501
      %503 = vst [vmem:[#allocation2 + $0x5c] sm:$0x1] %v502
      %v504 = vld [vmem:[#allocation2 + $0x68] sm:$0x1]
      %v505 = vsel %vm479, 0, %v504
      %506 = vst [vmem:[#allocation2 + $0x68] sm:$0x1] %v505
      %v507 = vld [vmem:[#allocation2 + $0x74] sm:$0x1]
      %v508 = vsel %vm479, 0, %v507
      %509 = vst [vmem:[#allocation2 + $0x74] sm:$0x1] %v508
      %v510 = vld [vmem:[#allocation2 + $0x80] sm:$0x1]
      %v511 = vsel %vm479, 0, %v510
      %512 = vst [vmem:[#allocation2 + $0x80] sm:$0x1] %v511
      %v513 = vld [vmem:[#allocation2 + $0x8c] sm:$0x1]
      %v514 = vsel %vm479, 0, %v513
      %515 = vst [vmem:[#allocation2 + $0x8c] sm:$0x1] %v514
      %v516 = vld [vmem:[#allocation2 + $0x98] sm:$0x1]
      %v517 = vsel %vm479, 0, %v516
      %518 = vst [vmem:[#allocation2 + $0x98] sm:$0x1] %v517
      %v519 = vld [vmem:[#allocation2 + $0xa4] sm:$0x1]
      %v520 = vsel %vm479, 0, %v519
      %521 = vst [vmem:[#allocation2 + $0xa4] sm:$0x1] %v520
      %v522 = vld [vmem:[#allocation2 + $0xb0] sm:$0x1]
      %v523 = vsel %vm479, 0, %v522
      %524 = vst [vmem:[#allocation2 + $0xb0] sm:$0x1] %v523
      %v525 = vld [vmem:[#allocation2 + $0xbc] sm:$0x1]
      %v526 = vsel %vm479, 0, %v525
      %527 = vst [vmem:[#allocation2 + $0xbc] sm:$0x1] %v526
      %v528 = vld [vmem:[#allocation2 + $0xc8] sm:$0x1]
      %v529 = vsel %vm479, 0, %v528
      %530 = vst [vmem:[#allocation2 + $0xc8] sm:$0x1] %v529
      %v531 = vld [vmem:[#allocation2 + $0xd4] sm:$0x1]
      %v532 = vsel %vm479, 0, %v531
      %533 = vst [vmem:[#allocation2 + $0xd4] sm:$0x1] %v532
      %v534 = vpack.c.bf16 %v381, %v380
      %v535 = vpack.c.bf16 %v383, %v382
      %v536 = vpack.c.bf16 %v385, %v384
      %v537 = vpack.c.bf16 %v387, %v386
      %v538 = vpack.c.bf16 %v389, %v388
      %v539 = vpack.c.bf16 %v391, %v390
      %v540 = vpack.c.bf16 %v393, %v392
      %v541 = vpack.c.bf16 %v395, %v394
      %v542 = vpack.c.bf16 %v397, %v396
      %v543 = vpack.c.bf16 %v399, %v398
      %v544 = vpack.c.bf16 %v401, %v400
      %v545 = vpack.c.bf16 %v403, %v402
      %v546 = vpack.c.bf16 %v405, %v404
      %v547 = vpack.c.bf16 %v407, %v406
      %v548 = vpack.c.bf16 %v409, %v408
      %v549 = vpack.c.bf16 %v411, %v410
      %v566 = vunpack.c.l.b16 %v534
      %v567 = vunpack.c.h.b16 %v534
      %v568 = vunpack.c.l.b16 %v535
      %v569 = vunpack.c.h.b16 %v535
      %v570 = vunpack.c.l.b16 %v536
      %v571 = vunpack.c.h.b16 %v536
      %v572 = vunpack.c.l.b16 %v537
      %v573 = vunpack.c.h.b16 %v537
      %v574 = vunpack.c.l.b16 %v538
      %v575 = vunpack.c.h.b16 %v538
      %v576 = vunpack.c.l.b16 %v539
      %v577 = vunpack.c.h.b16 %v539
      %v578 = vunpack.c.l.b16 %v540
      %v579 = vunpack.c.h.b16 %v540
      %v580 = vunpack.c.l.b16 %v541
      %v581 = vunpack.c.h.b16 %v541
      %v582 = vunpack.c.l.b16 %v542
      %v583 = vunpack.c.h.b16 %v542
      %v584 = vunpack.c.l.b16 %v543
      %v585 = vunpack.c.h.b16 %v543
      %v586 = vunpack.c.l.b16 %v544
      %v587 = vunpack.c.h.b16 %v544
      %v588 = vunpack.c.l.b16 %v545
      %v589 = vunpack.c.h.b16 %v545
      %v590 = vunpack.c.l.b16 %v546
      %v591 = vunpack.c.h.b16 %v546
      %v592 = vunpack.c.l.b16 %v547
      %v593 = vunpack.c.h.b16 %v547
      %v594 = vunpack.c.l.b16 %v548
      %v595 = vunpack.c.h.b16 %v548
      %v596 = vunpack.c.l.b16 %v549
      %v597 = vunpack.c.h.b16 %v549
      %v598 = vpack.c.b16 %v566, %v566
      %v599 = vpack.c.b16 %v567, %v567
      %v600 = vpack.c.b16 %v568, %v568
      %v601 = vpack.c.b16 %v569, %v569
      %v602 = vpack.c.b16 %v570, %v570
      %v603 = vpack.c.b16 %v571, %v571
      %v604 = vpack.c.b16 %v572, %v572
      %v605 = vpack.c.b16 %v573, %v573
      %v606 = vpack.c.b16 %v574, %v574
      %v607 = vpack.c.b16 %v575, %v575
      %v608 = vpack.c.b16 %v576, %v576
      %v609 = vpack.c.b16 %v577, %v577
      %v610 = vpack.c.b16 %v578, %v578
      %v611 = vpack.c.b16 %v579, %v579
      %v612 = vpack.c.b16 %v580, %v580
      %v613 = vpack.c.b16 %v581, %v581
      %v614 = vpack.c.b16 %v582, %v582
      %v615 = vpack.c.b16 %v583, %v583
      %v616 = vpack.c.b16 %v584, %v584
      %v617 = vpack.c.b16 %v585, %v585
      %v618 = vpack.c.b16 %v586, %v586
      %v619 = vpack.c.b16 %v587, %v587
      %v620 = vpack.c.b16 %v588, %v588
      %v621 = vpack.c.b16 %v589, %v589
      %v622 = vpack.c.b16 %v590, %v590
      %v623 = vpack.c.b16 %v591, %v591
      %v624 = vpack.c.b16 %v592, %v592
      %v625 = vpack.c.b16 %v593, %v593
      %v626 = vpack.c.b16 %v594, %v594
      %v627 = vpack.c.b16 %v595, %v595
      %v628 = vpack.c.b16 %v596, %v596
      %v629 = vpack.c.b16 %v597, %v597
      %vm630 = vsmask.f32 4368
      %vm631 = vmor %vm422, %vm630
      %v633 = vshrl.u32 %v598, 16
      %v635 = vrot.slane %v633, 7
      %v636 = vshll.u32 %v598, 16
      %v638 = vor.u32 %v635, %v636
      %v639 = vrot.slane %v635, 4
      %v641 = vshrl.u32 %v599, 16
      %v643 = vrot.slane %v641, 7
      %v644 = vshll.u32 %v599, 16
      %v646 = vor.u32 %v643, %v644
      %v647 = vsel %vm631, %v639, %v646
      %v648 = vrot.slane %v643, 4
      %v650 = vshrl.u32 %v600, 16
      %v652 = vrot.slane %v650, 7
      %v653 = vshll.u32 %v600, 16
      %v655 = vor.u32 %v652, %v653
      %v656 = vrot.slane %v652, 4
      %v658 = vshrl.u32 %v601, 16
      %v660 = vrot.slane %v658, 7
      %v661 = vshll.u32 %v601, 16
      %v663 = vor.u32 %v660, %v661
      %v664 = vsel %vm631, %v656, %v663
      %v665 = vrot.slane %v660, 4
      %v667 = vshrl.u32 %v602, 16
      %v669 = vrot.slane %v667, 7
      %v670 = vshll.u32 %v602, 16
      %v672 = vor.u32 %v669, %v670
      %v673 = vrot.slane %v669, 4
      %v675 = vshrl.u32 %v603, 16
      %v677 = vrot.slane %v675, 7
      %v678 = vshll.u32 %v603, 16
      %v680 = vor.u32 %v677, %v678
      %v681 = vsel %vm631, %v673, %v680
      %v682 = vrot.slane %v677, 4
      %v684 = vshrl.u32 %v604, 16
      %v686 = vrot.slane %v684, 7
      %v687 = vshll.u32 %v604, 16
      %v689 = vor.u32 %v686, %v687
      %v690 = vrot.slane %v686, 4
      %v692 = vshrl.u32 %v605, 16
      %v694 = vrot.slane %v692, 7
      %v695 = vshll.u32 %v605, 16
      %v697 = vor.u32 %v694, %v695
      %v698 = vsel %vm631, %v690, %v697
      %v699 = vrot.slane %v694, 4
      %v701 = vshrl.u32 %v606, 16
      %v703 = vrot.slane %v701, 7
      %v704 = vshll.u32 %v606, 16
      %v706 = vor.u32 %v703, %v704
      %v707 = vrot.slane %v703, 4
      %v709 = vshrl.u32 %v607, 16
      %v711 = vrot.slane %v709, 7
      %v712 = vshll.u32 %v607, 16
      %v714 = vor.u32 %v711, %v712
      %v715 = vsel %vm631, %v707, %v714
      %v716 = vrot.slane %v711, 4
      %v718 = vshrl.u32 %v608, 16
      %v720 = vrot.slane %v718, 7
      %v721 = vshll.u32 %v608, 16
      %v723 = vor.u32 %v720, %v721
      %v724 = vrot.slane %v720, 4
      %v726 = vshrl.u32 %v609, 16
      %v728 = vrot.slane %v726, 7
      %v729 = vshll.u32 %v609, 16
      %v731 = vor.u32 %v728, %v729
      %v732 = vsel %vm631, %v724, %v731
      %v733 = vrot.slane %v728, 4
      %v735 = vshrl.u32 %v610, 16
      %v737 = vrot.slane %v735, 7
      %v738 = vshll.u32 %v610, 16
      %v740 = vor.u32 %v737, %v738
      %v741 = vrot.slane %v737, 4
      %v743 = vshrl.u32 %v611, 16
      %v745 = vrot.slane %v743, 7
      %v746 = vshll.u32 %v611, 16
      %v748 = vor.u32 %v745, %v746
      %v749 = vsel %vm631, %v741, %v748
      %v750 = vrot.slane %v745, 4
      %v752 = vshrl.u32 %v612, 16
      %v754 = vrot.slane %v752, 7
      %v755 = vshll.u32 %v612, 16
      %v757 = vor.u32 %v754, %v755
      %v758 = vrot.slane %v754, 4
      %v760 = vshrl.u32 %v613, 16
      %v762 = vrot.slane %v760, 7
      %v763 = vshll.u32 %v613, 16
      %v765 = vor.u32 %v762, %v763
      %v766 = vsel %vm631, %v758, %v765
      %v767 = vrot.slane %v762, 4
      %v769 = vshrl.u32 %v614, 16
      %v771 = vrot.slane %v769, 7
      %v772 = vshll.u32 %v614, 16
      %v774 = vor.u32 %v771, %v772
      %v775 = vrot.slane %v771, 4
      %v777 = vshrl.u32 %v615, 16
      %v779 = vrot.slane %v777, 7
      %v780 = vshll.u32 %v615, 16
      %v782 = vor.u32 %v779, %v780
      %v783 = vsel %vm631, %v775, %v782
      %v784 = vrot.slane %v779, 4
      %v786 = vshrl.u32 %v616, 16
      %v788 = vrot.slane %v786, 7
      %v789 = vshll.u32 %v616, 16
      %v791 = vor.u32 %v788, %v789
      %v792 = vrot.slane %v788, 4
      %v794 = vshrl.u32 %v617, 16
      %v796 = vrot.slane %v794, 7
      %v797 = vshll.u32 %v617, 16
      %v799 = vor.u32 %v796, %v797
      %v800 = vsel %vm631, %v792, %v799
      %v801 = vrot.slane %v796, 4
      %v803 = vshrl.u32 %v618, 16
      %v805 = vrot.slane %v803, 7
      %v806 = vshll.u32 %v618, 16
      %v808 = vor.u32 %v805, %v806
      %v809 = vrot.slane %v805, 4
      %v811 = vshrl.u32 %v619, 16
      %v813 = vrot.slane %v811, 7
      %v814 = vshll.u32 %v619, 16
      %v816 = vor.u32 %v813, %v814
      %v817 = vsel %vm631, %v809, %v816
      %v818 = vrot.slane %v813, 4
      %v820 = vshrl.u32 %v620, 16
      %v822 = vrot.slane %v820, 7
      %v823 = vshll.u32 %v620, 16
      %v825 = vor.u32 %v822, %v823
      %v826 = vrot.slane %v822, 4
      %v828 = vshrl.u32 %v621, 16
      %v830 = vrot.slane %v828, 7
      %v831 = vshll.u32 %v621, 16
      %v833 = vor.u32 %v830, %v831
      %v834 = vsel %vm631, %v826, %v833
      %v835 = vrot.slane %v830, 4
      %v837 = vshrl.u32 %v622, 16
      %v839 = vrot.slane %v837, 7
      %v840 = vshll.u32 %v622, 16
      %v842 = vor.u32 %v839, %v840
      %v843 = vrot.slane %v839, 4
      %v845 = vshrl.u32 %v623, 16
      %v847 = vrot.slane %v845, 7
      %v848 = vshll.u32 %v623, 16
      %v850 = vor.u32 %v847, %v848
      %v851 = vsel %vm631, %v843, %v850
      %v852 = vrot.slane %v847, 4
      %v854 = vshrl.u32 %v624, 16
      %v856 = vrot.slane %v854, 7
      %v857 = vshll.u32 %v624, 16
      %v859 = vor.u32 %v856, %v857
      %v860 = vrot.slane %v856, 4
      %v862 = vshrl.u32 %v625, 16
      %v864 = vrot.slane %v862, 7
      %v865 = vshll.u32 %v625, 16
      %v867 = vor.u32 %v864, %v865
      %v868 = vsel %vm631, %v860, %v867
      %v869 = vrot.slane %v864, 4
      %v871 = vshrl.u32 %v626, 16
      %v873 = vrot.slane %v871, 7
      %v874 = vshll.u32 %v626, 16
      %v876 = vor.u32 %v873, %v874
      %v877 = vrot.slane %v873, 4
      %v879 = vshrl.u32 %v627, 16
      %v881 = vrot.slane %v879, 7
      %v882 = vshll.u32 %v627, 16
      %v884 = vor.u32 %v881, %v882
      %v885 = vsel %vm631, %v877, %v884
      %v886 = vrot.slane %v881, 4
      %v888 = vshrl.u32 %v628, 16
      %v890 = vrot.slane %v888, 7
      %v891 = vshll.u32 %v628, 16
      %v893 = vor.u32 %v890, %v891
      %v894 = vrot.slane %v890, 4
      %v896 = vshrl.u32 %v629, 16
      %v898 = vrot.slane %v896, 7
      %v899 = vshll.u32 %v629, 16
      %v901 = vor.u32 %v898, %v899
      %v902 = vsel %vm631, %v894, %v901
      %v903 = vrot.slane %v898, 4
      %s952 = scalar_lea.vmem [#allocation2], 12
      %vm953 = vcmask 27648
      %vm954 = vmand %vm953, %vm478
      %v955 = vld [vmem:[%s952] sm:$0xf]
      %v956 = vsel %vm954, %v638, %v955
      %957 = vst [vmem:[%s952] sm:$0xf] %v956
      %958 = vst.msk [vmem:[%s952 + $0x4] sm:$0xf] %vm412, %v647
      %v959 = vld [vmem:[%s952 + $0x8] sm:$0x1]
      %v960 = vsel %vm423, %v648, %v959
      %961 = vst [vmem:[%s952 + $0x8] sm:$0x1] %v960
      %v962 = vld [vmem:[%s952 + $0xc] sm:$0xf]
      %v963 = vsel %vm954, %v655, %v962
      %964 = vst [vmem:[%s952 + $0xc] sm:$0xf] %v963
      %965 = vst.msk [vmem:[%s952 + $0x10] sm:$0xf] %vm412, %v664
      %v966 = vld [vmem:[%s952 + $0x14] sm:$0x1]
      %v967 = vsel %vm423, %v665, %v966
      %968 = vst [vmem:[%s952 + $0x14] sm:$0x1] %v967
      %v969 = vld [vmem:[%s952 + $0x18] sm:$0xf]
      %v970 = vsel %vm954, %v672, %v969
      %971 = vst [vmem:[%s952 + $0x18] sm:$0xf] %v970
      %972 = vst.msk [vmem:[%s952 + $0x1c] sm:$0xf] %vm412, %v681
      %v973 = vld [vmem:[%s952 + $0x20] sm:$0x1]
      %v974 = vsel %vm423, %v682, %v973
      %975 = vst [vmem:[%s952 + $0x20] sm:$0x1] %v974
      %v976 = vld [vmem:[%s952 + $0x24] sm:$0xf]
      %v977 = vsel %vm954, %v689, %v976
      %978 = vst [vmem:[%s952 + $0x24] sm:$0xf] %v977
      %979 = vst.msk [vmem:[%s952 + $0x28] sm:$0xf] %vm412, %v698
      %v980 = vld [vmem:[%s952 + $0x2c] sm:$0x1]
      %v981 = vsel %vm423, %v699, %v980
      %982 = vst [vmem:[%s952 + $0x2c] sm:$0x1] %v981
      %v983 = vld [vmem:[%s952 + $0x30] sm:$0xf]
      %v984 = vsel %vm954, %v706, %v983
      %985 = vst [vmem:[%s952 + $0x30] sm:$0xf] %v984
      %986 = vst.msk [vmem:[%s952 + $0x34] sm:$0xf] %vm412, %v715
      %v987 = vld [vmem:[%s952 + $0x38] sm:$0x1]
      %v988 = vsel %vm423, %v716, %v987
      %989 = vst [vmem:[%s952 + $0x38] sm:$0x1] %v988
      %v990 = vld [vmem:[%s952 + $0x3c] sm:$0xf]
      %v991 = vsel %vm954, %v723, %v990
      %992 = vst [vmem:[%s952 + $0x3c] sm:$0xf] %v991
      %993 = vst.msk [vmem:[%s952 + $0x40] sm:$0xf] %vm412, %v732
      %v994 = vld [vmem:[%s952 + $0x44] sm:$0x1]
      %v995 = vsel %vm423, %v733, %v994
      %996 = vst [vmem:[%s952 + $0x44] sm:$0x1] %v995
      %v997 = vld [vmem:[%s952 + $0x48] sm:$0xf]
      %v998 = vsel %vm954, %v740, %v997
      %999 = vst [vmem:[%s952 + $0x48] sm:$0xf] %v998
      %1000 = vst.msk [vmem:[%s952 + $0x4c] sm:$0xf] %vm412, %v749
      %v1001 = vld [vmem:[%s952 + $0x50] sm:$0x1]
      %v1002 = vsel %vm423, %v750, %v1001
      %1003 = vst [vmem:[%s952 + $0x50] sm:$0x1] %v1002
      %v1004 = vld [vmem:[%s952 + $0x54] sm:$0xf]
      %v1005 = vsel %vm954, %v757, %v1004
      %1006 = vst [vmem:[%s952 + $0x54] sm:$0xf] %v1005
      %1007 = vst.msk [vmem:[%s952 + $0x58] sm:$0xf] %vm412, %v766
      %v1008 = vld [vmem:[%s952 + $0x5c] sm:$0x1]
      %v1009 = vsel %vm423, %v767, %v1008
      %1010 = vst [vmem:[%s952 + $0x5c] sm:$0x1] %v1009
      %v1011 = vld [vmem:[%s952 + $0x60] sm:$0xf]
      %v1012 = vsel %vm954, %v774, %v1011
      %1013 = vst [vmem:[%s952 + $0x60] sm:$0xf] %v1012
      %1014 = vst.msk [vmem:[%s952 + $0x64] sm:$0xf] %vm412, %v783
      %v1015 = vld [vmem:[%s952 + $0x68] sm:$0x1]
      %v1016 = vsel %vm423, %v784, %v1015
      %1017 = vst [vmem:[%s952 + $0x68] sm:$0x1] %v1016
      %v1018 = vld [vmem:[%s952 + $0x6c] sm:$0xf]
      %v1019 = vsel %vm954, %v791, %v1018
      %1020 = vst [vmem:[%s952 + $0x6c] sm:$0xf] %v1019
      %1021 = vst.msk [vmem:[%s952 + $0x70] sm:$0xf] %vm412, %v800
      %v1022 = vld [vmem:[%s952 + $0x74] sm:$0x1]
      %v1023 = vsel %vm423, %v801, %v1022
      %1024 = vst [vmem:[%s952 + $0x74] sm:$0x1] %v1023
      %v1025 = vld [vmem:[%s952 + $0x78] sm:$0xf]
      %v1026 = vsel %vm954, %v808, %v1025
      %1027 = vst [vmem:[%s952 + $0x78] sm:$0xf] %v1026
      %1028 = vst.msk [vmem:[%s952 + $0x7c] sm:$0xf] %vm412, %v817
      %v1029 = vld [vmem:[%s952 + $0x80] sm:$0x1]
      %v1030 = vsel %vm423, %v818, %v1029
      %1031 = vst [vmem:[%s952 + $0x80] sm:$0x1] %v1030
      %v1032 = vld [vmem:[%s952 + $0x84] sm:$0xf]
      %v1033 = vsel %vm954, %v825, %v1032
      %1034 = vst [vmem:[%s952 + $0x84] sm:$0xf] %v1033
      %1035 = vst.msk [vmem:[%s952 + $0x88] sm:$0xf] %vm412, %v834
      %v1036 = vld [vmem:[%s952 + $0x8c] sm:$0x1]
      %v1037 = vsel %vm423, %v835, %v1036
      %1038 = vst [vmem:[%s952 + $0x8c] sm:$0x1] %v1037
      %v1039 = vld [vmem:[%s952 + $0x90] sm:$0xf]
      %v1040 = vsel %vm954, %v842, %v1039
      %1041 = vst [vmem:[%s952 + $0x90] sm:$0xf] %v1040
      %1042 = vst.msk [vmem:[%s952 + $0x94] sm:$0xf] %vm412, %v851
      %v1043 = vld [vmem:[%s952 + $0x98] sm:$0x1]
      %v1044 = vsel %vm423, %v852, %v1043
      %1045 = vst [vmem:[%s952 + $0x98] sm:$0x1] %v1044
      %v1046 = vld [vmem:[%s952 + $0x9c] sm:$0xf]
      %v1047 = vsel %vm954, %v859, %v1046
      %1048 = vst [vmem:[%s952 + $0x9c] sm:$0xf] %v1047
      %1049 = vst.msk [vmem:[%s952 + $0xa0] sm:$0xf] %vm412, %v868
      %v1050 = vld [vmem:[%s952 + $0xa4] sm:$0x1]
      %v1051 = vsel %vm423, %v869, %v1050
      %1052 = vst [vmem:[%s952 + $0xa4] sm:$0x1] %v1051
      %v1053 = vld [vmem:[%s952 + $0xa8] sm:$0xf]
      %v1054 = vsel %vm954, %v876, %v1053
      %1055 = vst [vmem:[%s952 + $0xa8] sm:$0xf] %v1054
      %1056 = vst.msk [vmem:[%s952 + $0xac] sm:$0xf] %vm412, %v885
      %v1057 = vld [vmem:[%s952 + $0xb0] sm:$0x1]
      %v1058 = vsel %vm423, %v886, %v1057
      %1059 = vst [vmem:[%s952 + $0xb0] sm:$0x1] %v1058
      %v1060 = vld [vmem:[%s952 + $0xb4] sm:$0xf]
      %v1061 = vsel %vm954, %v893, %v1060
      %1062 = vst [vmem:[%s952 + $0xb4] sm:$0xf] %v1061
      %1063 = vst.msk [vmem:[%s952 + $0xb8] sm:$0xf] %vm412, %v902
      %v1064 = vld [vmem:[%s952 + $0xbc] sm:$0x1]
      %v1065 = vsel %vm423, %v903, %v1064
      %1066 = vst [vmem:[%s952 + $0xbc] sm:$0x1] %v1065
      %v1067 = vld [vmem:[#allocation2] sm:$0xf]
      %v1068 = vld [vmem:[#allocation2 + $0x4] sm:$0xf]
      %v1069 = vld [vmem:[#allocation2 + $0xc] sm:$0xf]
      %v1070 = vld [vmem:[#allocation2 + $0x10] sm:$0xf]
      %v1071 = vld [vmem:[#allocation2 + $0x18] sm:$0xf]
      %v1072 = vld [vmem:[#allocation2 + $0x1c] sm:$0xf]
      %v1073 = vld [vmem:[#allocation2 + $0x24] sm:$0xf]
      %v1074 = vld [vmem:[#allocation2 + $0x28] sm:$0xf]
      %v1075 = vld [vmem:[#allocation2 + $0x30] sm:$0xf]
      %v1076 = vld [vmem:[#allocation2 + $0x34] sm:$0xf]
      %v1077 = vld [vmem:[#allocation2 + $0x3c] sm:$0xf]
      %v1078 = vld [vmem:[#allocation2 + $0x40] sm:$0xf]
      %v1079 = vld [vmem:[#allocation2 + $0x48] sm:$0xf]
      %v1080 = vld [vmem:[#allocation2 + $0x4c] sm:$0xf]
      %v1081 = vld [vmem:[#allocation2 + $0x54] sm:$0xf]
      %v1082 = vld [vmem:[#allocation2 + $0x58] sm:$0xf]
      %v1083 = vld [vmem:[#allocation2 + $0x60] sm:$0xf]
      %v1084 = vld [vmem:[#allocation2 + $0x64] sm:$0xf]
      %v1085 = vld [vmem:[#allocation2 + $0x6c] sm:$0xf]
      %v1086 = vld [vmem:[#allocation2 + $0x70] sm:$0xf]
      %v1087 = vld [vmem:[#allocation2 + $0x78] sm:$0xf]
      %v1088 = vld [vmem:[#allocation2 + $0x7c] sm:$0xf]
      %v1089 = vld [vmem:[#allocation2 + $0x84] sm:$0xf]
      %v1090 = vld [vmem:[#allocation2 + $0x88] sm:$0xf]
      %v1091 = vld [vmem:[#allocation2 + $0x90] sm:$0xf]
      %v1092 = vld [vmem:[#allocation2 + $0x94] sm:$0xf]
      %v1093 = vld [vmem:[#allocation2 + $0x9c] sm:$0xf]
      %v1094 = vld [vmem:[#allocation2 + $0xa0] sm:$0xf]
      %v1095 = vld [vmem:[#allocation2 + $0xa8] sm:$0xf]
      %v1096 = vld [vmem:[#allocation2 + $0xac] sm:$0xf]
      %v1097 = vld [vmem:[#allocation2 + $0xb4] sm:$0xf]
      %v1098 = vld [vmem:[#allocation2 + $0xb8] sm:$0xf]
      %v1131 = vunpack.c.l.b16 %v1067
      %v1132 = vunpack.c.l.b16 %v1068
      %v1133 = vunpack.c.l.b16 %v1069
      %v1134 = vunpack.c.l.b16 %v1070
      %v1135 = vunpack.c.l.b16 %v1071
      %v1136 = vunpack.c.l.b16 %v1072
      %v1137 = vunpack.c.l.b16 %v1073
      %v1138 = vunpack.c.l.b16 %v1074
      %v1139 = vunpack.c.l.b16 %v1075
      %v1140 = vunpack.c.l.b16 %v1076
      %v1141 = vunpack.c.l.b16 %v1077
      %v1142 = vunpack.c.l.b16 %v1078
      %v1143 = vunpack.c.l.b16 %v1079
      %v1144 = vunpack.c.l.b16 %v1080
      %v1145 = vunpack.c.l.b16 %v1081
      %v1146 = vunpack.c.l.b16 %v1082
      %v1147 = vunpack.c.l.b16 %v1083
      %v1148 = vunpack.c.l.b16 %v1084
      %v1149 = vunpack.c.l.b16 %v1085
      %v1150 = vunpack.c.l.b16 %v1086
      %v1151 = vunpack.c.l.b16 %v1087
      %v1152 = vunpack.c.l.b16 %v1088
      %v1153 = vunpack.c.l.b16 %v1089
      %v1154 = vunpack.c.l.b16 %v1090
      %v1155 = vunpack.c.l.b16 %v1091
      %v1156 = vunpack.c.l.b16 %v1092
      %v1157 = vunpack.c.l.b16 %v1093
      %v1158 = vunpack.c.l.b16 %v1094
      %v1159 = vunpack.c.l.b16 %v1095
      %v1160 = vunpack.c.l.b16 %v1096
      %v1161 = vunpack.c.l.b16 %v1097
      %v1162 = vunpack.c.l.b16 %v1098
      %v1163 = vpack.c.b16 %v1132, %v1131
      %v1164 = vpack.c.b16 %v1134, %v1133
      %v1165 = vpack.c.b16 %v1136, %v1135
      %v1166 = vpack.c.b16 %v1138, %v1137
      %v1167 = vpack.c.b16 %v1140, %v1139
      %v1168 = vpack.c.b16 %v1142, %v1141
      %v1169 = vpack.c.b16 %v1144, %v1143
      %v1170 = vpack.c.b16 %v1146, %v1145
      %v1171 = vpack.c.b16 %v1148, %v1147
      %v1172 = vpack.c.b16 %v1150, %v1149
      %v1173 = vpack.c.b16 %v1152, %v1151
      %v1174 = vpack.c.b16 %v1154, %v1153
      %v1175 = vpack.c.b16 %v1156, %v1155
      %v1176 = vpack.c.b16 %v1158, %v1157
      %v1177 = vpack.c.b16 %v1160, %v1159
      %v1178 = vpack.c.b16 %v1162, %v1161
      %vm1195 = vcmask 31744
      %1196 = vst.msk [vmem:[#allocation3] sm:$0xff] %vm1195, %v1163
      %1197 = vst.msk [vmem:[#allocation3 + $0x8] sm:$0xff] %vm1195, %v1164
      %1198 = vst.msk [vmem:[#allocation3 + $0x10] sm:$0xff] %vm1195, %v1165
      %1199 = vst.msk [vmem:[#allocation3 + $0x18] sm:$0xff] %vm1195, %v1166
      %1200 = vst.msk [vmem:[#allocation3 + $0x20] sm:$0xff] %vm1195, %v1167
      %1201 = vst.msk [vmem:[#allocation3 + $0x28] sm:$0xff] %vm1195, %v1168
      %1202 = vst.msk [vmem:[#allocation3 + $0x30] sm:$0xff] %vm1195, %v1169
      %1203 = vst.msk [vmem:[#allocation3 + $0x38] sm:$0xff] %vm1195, %v1170
      %1204 = vst.msk [vmem:[#allocation3 + $0x40] sm:$0xff] %vm1195, %v1171
      %1205 = vst.msk [vmem:[#allocation3 + $0x48] sm:$0xff] %vm1195, %v1172
      %1206 = vst.msk [vmem:[#allocation3 + $0x50] sm:$0xff] %vm1195, %v1173
      %1207 = vst.msk [vmem:[#allocation3 + $0x58] sm:$0xff] %vm1195, %v1174
      %1208 = vst.msk [vmem:[#allocation3 + $0x60] sm:$0xff] %vm1195, %v1175
      %1209 = vst.msk [vmem:[#allocation3 + $0x68] sm:$0xff] %vm1195, %v1176
      %1210 = vst.msk [vmem:[#allocation3 + $0x70] sm:$0xff] %vm1195, %v1177
      %1211 = vst.msk [vmem:[#allocation3 + $0x78] sm:$0xff] %vm1195, %v1178
      %v1212 = vld [vmem:[#allocation2] sm:$0xf]
      %v1213 = vld [vmem:[#allocation2 + $0x4] sm:$0xf]
      %v1214 = vld [vmem:[#allocation2 + $0x8] sm:$0x1]
      %v1215 = vld [vmem:[#allocation2 + $0xc] sm:$0xf]
      %v1216 = vld [vmem:[#allocation2 + $0x10] sm:$0xf]
      %v1217 = vld [vmem:[#allocation2 + $0x14] sm:$0x1]
      %v1218 = vld [vmem:[#allocation2 + $0x18] sm:$0xf]
      %v1219 = vld [vmem:[#allocation2 + $0x1c] sm:$0xf]
      %v1220 = vld [vmem:[#allocation2 + $0x20] sm:$0x1]
      %v1221 = vld [vmem:[#allocation2 + $0x24] sm:$0xf]
      %v1222 = vld [vmem:[#allocation2 + $0x28] sm:$0xf]
      %v1223 = vld [vmem:[#allocation2 + $0x2c] sm:$0x1]
      %v1224 = vld [vmem:[#allocation2 + $0x30] sm:$0xf]
      %v1225 = vld [vmem:[#allocation2 + $0x34] sm:$0xf]
      %v1226 = vld [vmem:[#allocation2 + $0x38] sm:$0x1]
      %v1227 = vld [vmem:[#allocation2 + $0x3c] sm:$0xf]
      %v1228 = vld [vmem:[#allocation2 + $0x40] sm:$0xf]
      %v1229 = vld [vmem:[#allocation2 + $0x44] sm:$0x1]
      %v1230 = vld [vmem:[#allocation2 + $0x48] sm:$0xf]
      %v1231 = vld [vmem:[#allocation2 + $0x4c] sm:$0xf]
      %v1232 = vld [vmem:[#allocation2 + $0x50] sm:$0x1]
      %v1233 = vld [vmem:[#allocation2 + $0x54] sm:$0xf]
      %v1234 = vld [vmem:[#allocation2 + $0x58] sm:$0xf]
      %v1235 = vld [vmem:[#allocation2 + $0x5c] sm:$0x1]
      %v1236 = vld [vmem:[#allocation2 + $0x60] sm:$0xf]
      %v1237 = vld [vmem:[#allocation2 + $0x64] sm:$0xf]
      %v1238 = vld [vmem:[#allocation2 + $0x68] sm:$0x1]
      %v1239 = vld [vmem:[#allocation2 + $0x6c] sm:$0xf]
      %v1240 = vld [vmem:[#allocation2 + $0x70] sm:$0xf]
      %v1241 = vld [vmem:[#allocation2 + $0x74] sm:$0x1]
      %v1242 = vld [vmem:[#allocation2 + $0x78] sm:$0xf]
      %v1243 = vld [vmem:[#allocation2 + $0x7c] sm:$0xf]
      %v1244 = vld [vmem:[#allocation2 + $0x80] sm:$0x1]
      %v1245 = vld [vmem:[#allocation2 + $0x84] sm:$0xf]
      %v1246 = vld [vmem:[#allocation2 + $0x88] sm:$0xf]
      %v1247 = vld [vmem:[#allocation2 + $0x8c] sm:$0x1]
      %v1248 = vld [vmem:[#allocation2 + $0x90] sm:$0xf]
      %v1249 = vld [vmem:[#allocation2 + $0x94] sm:$0xf]
      %v1250 = vld [vmem:[#allocation2 + $0x98] sm:$0x1]
      %v1251 = vld [vmem:[#allocation2 + $0x9c] sm:$0xf]
      %v1252 = vld [vmem:[#allocation2 + $0xa0] sm:$0xf]
      %v1253 = vld [vmem:[#allocation2 + $0xa4] sm:$0x1]
      %v1254 = vld [vmem:[#allocation2 + $0xa8] sm:$0xf]
      %v1255 = vld [vmem:[#allocation2 + $0xac] sm:$0xf]
      %v1256 = vld [vmem:[#allocation2 + $0xb0] sm:$0x1]
      %v1257 = vld [vmem:[#allocation2 + $0xb4] sm:$0xf]
      %v1258 = vld [vmem:[#allocation2 + $0xb8] sm:$0xf]
      %v1259 = vld [vmem:[#allocation2 + $0xbc] sm:$0x1]
      %v1308 = vunpack.c.l.b16 %v1212
      %v1309 = vunpack.c.l.b16 %v1213
      %v1310 = vunpack.c.l.b16 %v1214
      %v1311 = vunpack.c.l.b16 %v1215
      %v1312 = vunpack.c.l.b16 %v1216
      %v1313 = vunpack.c.l.b16 %v1217
      %v1314 = vunpack.c.l.b16 %v1218
      %v1315 = vunpack.c.l.b16 %v1219
      %v1316 = vunpack.c.l.b16 %v1220
      %v1317 = vunpack.c.l.b16 %v1221
      %v1318 = vunpack.c.l.b16 %v1222
      %v1319 = vunpack.c.l.b16 %v1223
      %v1320 = vunpack.c.l.b16 %v1224
      %v1321 = vunpack.c.l.b16 %v1225
      %v1322 = vunpack.c.l.b16 %v1226
      %v1323 = vunpack.c.l.b16 %v1227
      %v1324 = vunpack.c.l.b16 %v1228
      %v1325 = vunpack.c.l.b16 %v1229
      %v1326 = vunpack.c.l.b16 %v1230
      %v1327 = vunpack.c.l.b16 %v1231
      %v1328 = vunpack.c.l.b16 %v1232
      %v1329 = vunpack.c.l.b16 %v1233
      %v1330 = vunpack.c.l.b16 %v1234
      %v1331 = vunpack.c.l.b16 %v1235
      %v1332 = vunpack.c.l.b16 %v1236
      %v1333 = vunpack.c.l.b16 %v1237
      %v1334 = vunpack.c.l.b16 %v1238
      %v1335 = vunpack.c.l.b16 %v1239
      %v1336 = vunpack.c.l.b16 %v1240
      %v1337 = vunpack.c.l.b16 %v1241
      %v1338 = vunpack.c.l.b16 %v1242
      %v1339 = vunpack.c.l.b16 %v1243
      %v1340 = vunpack.c.l.b16 %v1244
      %v1341 = vunpack.c.l.b16 %v1245
      %v1342 = vunpack.c.l.b16 %v1246
      %v1343 = vunpack.c.l.b16 %v1247
      %v1344 = vunpack.c.l.b16 %v1248
      %v1345 = vunpack.c.l.b16 %v1249
      %v1346 = vunpack.c.l.b16 %v1250
      %v1347 = vunpack.c.l.b16 %v1251
      %v1348 = vunpack.c.l.b16 %v1252
      %v1349 = vunpack.c.l.b16 %v1253
      %v1350 = vunpack.c.l.b16 %v1254
      %v1351 = vunpack.c.l.b16 %v1255
      %v1352 = vunpack.c.l.b16 %v1256
      %v1353 = vunpack.c.l.b16 %v1257
      %v1354 = vunpack.c.l.b16 %v1258
      %v1355 = vunpack.c.l.b16 %v1259
      %v1356 = vpack.c.b16 %v1309, %v1308
      %v1357 = vpack.c.b16 %v1310, %v1310
      %v1358 = vpack.c.b16 %v1312, %v1311
      %v1359 = vpack.c.b16 %v1313, %v1313
      %v1360 = vpack.c.b16 %v1315, %v1314
      %v1361 = vpack.c.b16 %v1316, %v1316
      %v1362 = vpack.c.b16 %v1318, %v1317
      %v1363 = vpack.c.b16 %v1319, %v1319
      %v1364 = vpack.c.b16 %v1321, %v1320
      %v1365 = vpack.c.b16 %v1322, %v1322
      %v1366 = vpack.c.b16 %v1324, %v1323
      %v1367 = vpack.c.b16 %v1325, %v1325
      %v1368 = vpack.c.b16 %v1327, %v1326
      %v1369 = vpack.c.b16 %v1328, %v1328
      %v1370 = vpack.c.b16 %v1330, %v1329
      %v1371 = vpack.c.b16 %v1331, %v1331
      %v1372 = vpack.c.b16 %v1333, %v1332
      %v1373 = vpack.c.b16 %v1334, %v1334
      %v1374 = vpack.c.b16 %v1336, %v1335
      %v1375 = vpack.c.b16 %v1337, %v1337
      %v1376 = vpack.c.b16 %v1339, %v1338
      %v1377 = vpack.c.b16 %v1340, %v1340
      %v1378 = vpack.c.b16 %v1342, %v1341
      %v1379 = vpack.c.b16 %v1343, %v1343
      %v1380 = vpack.c.b16 %v1345, %v1344
      %v1381 = vpack.c.b16 %v1346, %v1346
      %v1382 = vpack.c.b16 %v1348, %v1347
      %v1383 = vpack.c.b16 %v1349, %v1349
      %v1384 = vpack.c.b16 %v1351, %v1350
      %v1385 = vpack.c.b16 %v1352, %v1352
      %v1386 = vpack.c.b16 %v1354, %v1353
      %v1387 = vpack.c.b16 %v1355, %v1355
      %vm1388 = vsmask.f32 7424
      %v1390 = vshrl.u32 %v1356, 16
      %v1392 = vshll.u32 %v1356, 16
      %v1394 = vrot.slane %v1392, 1
      %v1395 = vor.u32 %v1390, %v1394
      %v1397 = vshll.u32 %v1357, 16
      %v1399 = vrot.slane %v1397, 1
      %v1400 = vsel %vm1388, %v1395, %v1399
      %v1402 = vshrl.u32 %v1358, 16
      %v1404 = vshll.u32 %v1358, 16
      %v1406 = vrot.slane %v1404, 1
      %v1407 = vor.u32 %v1402, %v1406
      %v1409 = vshll.u32 %v1359, 16
      %v1411 = vrot.slane %v1409, 1
      %v1412 = vsel %vm1388, %v1407, %v1411
      %v1414 = vshrl.u32 %v1360, 16
      %v1416 = vshll.u32 %v1360, 16
      %v1418 = vrot.slane %v1416, 1
      %v1419 = vor.u32 %v1414, %v1418
      %v1421 = vshll.u32 %v1361, 16
      %v1423 = vrot.slane %v1421, 1
      %v1424 = vsel %vm1388, %v1419, %v1423
      %v1426 = vshrl.u32 %v1362, 16
      %v1428 = vshll.u32 %v1362, 16
      %v1430 = vrot.slane %v1428, 1
      %v1431 = vor.u32 %v1426, %v1430
      %v1433 = vshll.u32 %v1363, 16
      %v1435 = vrot.slane %v1433, 1
      %v1436 = vsel %vm1388, %v1431, %v1435
      %v1438 = vshrl.u32 %v1364, 16
      %v1440 = vshll.u32 %v1364, 16
      %v1442 = vrot.slane %v1440, 1
      %v1443 = vor.u32 %v1438, %v1442
      %v1445 = vshll.u32 %v1365, 16
      %v1447 = vrot.slane %v1445, 1
      %v1448 = vsel %vm1388, %v1443, %v1447
      %v1450 = vshrl.u32 %v1366, 16
      %v1452 = vshll.u32 %v1366, 16
      %v1454 = vrot.slane %v1452, 1
      %v1455 = vor.u32 %v1450, %v1454
      %v1457 = vshll.u32 %v1367, 16
      %v1459 = vrot.slane %v1457, 1
      %v1460 = vsel %vm1388, %v1455, %v1459
      %v1462 = vshrl.u32 %v1368, 16
      %v1464 = vshll.u32 %v1368, 16
      %v1466 = vrot.slane %v1464, 1
      %v1467 = vor.u32 %v1462, %v1466
      %v1469 = vshll.u32 %v1369, 16
      %v1471 = vrot.slane %v1469, 1
      %v1472 = vsel %vm1388, %v1467, %v1471
      %v1474 = vshrl.u32 %v1370, 16
      %v1476 = vshll.u32 %v1370, 16
      %v1478 = vrot.slane %v1476, 1
      %v1479 = vor.u32 %v1474, %v1478
      %v1481 = vshll.u32 %v1371, 16
      %v1483 = vrot.slane %v1481, 1
      %v1484 = vsel %vm1388, %v1479, %v1483
      %v1486 = vshrl.u32 %v1372, 16
      %v1488 = vshll.u32 %v1372, 16
      %v1490 = vrot.slane %v1488, 1
      %v1491 = vor.u32 %v1486, %v1490
      %v1493 = vshll.u32 %v1373, 16
      %v1495 = vrot.slane %v1493, 1
      %v1496 = vsel %vm1388, %v1491, %v1495
      %v1498 = vshrl.u32 %v1374, 16
      %v1500 = vshll.u32 %v1374, 16
      %v1502 = vrot.slane %v1500, 1
      %v1503 = vor.u32 %v1498, %v1502
      %v1505 = vshll.u32 %v1375, 16
      %v1507 = vrot.slane %v1505, 1
      %v1508 = vsel %vm1388, %v1503, %v1507
      %v1510 = vshrl.u32 %v1376, 16
      %v1512 = vshll.u32 %v1376, 16
      %v1514 = vrot.slane %v1512, 1
      %v1515 = vor.u32 %v1510, %v1514
      %v1517 = vshll.u32 %v1377, 16
      %v1519 = vrot.slane %v1517, 1
      %v1520 = vsel %vm1388, %v1515, %v1519
      %v1522 = vshrl.u32 %v1378, 16
      %v1524 = vshll.u32 %v1378, 16
      %v1526 = vrot.slane %v1524, 1
      %v1527 = vor.u32 %v1522, %v1526
      %v1529 = vshll.u32 %v1379, 16
      %v1531 = vrot.slane %v1529, 1
      %v1532 = vsel %vm1388, %v1527, %v1531
      %v1534 = vshrl.u32 %v1380, 16
      %v1536 = vshll.u32 %v1380, 16
      %v1538 = vrot.slane %v1536, 1
      %v1539 = vor.u32 %v1534, %v1538
      %v1541 = vshll.u32 %v1381, 16
      %v1543 = vrot.slane %v1541, 1
      %v1544 = vsel %vm1388, %v1539, %v1543
      %v1546 = vshrl.u32 %v1382, 16
      %v1548 = vshll.u32 %v1382, 16
      %v1550 = vrot.slane %v1548, 1
      %v1551 = vor.u32 %v1546, %v1550
      %v1553 = vshll.u32 %v1383, 16
      %v1555 = vrot.slane %v1553, 1
      %v1556 = vsel %vm1388, %v1551, %v1555
      %v1558 = vshrl.u32 %v1384, 16
      %v1560 = vshll.u32 %v1384, 16
      %v1562 = vrot.slane %v1560, 1
      %v1563 = vor.u32 %v1558, %v1562
      %v1565 = vshll.u32 %v1385, 16
      %v1567 = vrot.slane %v1565, 1
      %v1568 = vsel %vm1388, %v1563, %v1567
      %v1570 = vshrl.u32 %v1386, 16
      %v1572 = vshll.u32 %v1386, 16
      %v1574 = vrot.slane %v1572, 1
      %v1575 = vor.u32 %v1570, %v1574
      %v1577 = vshll.u32 %v1387, 16
      %v1579 = vrot.slane %v1577, 1
      %v1580 = vsel %vm1388, %v1575, %v1579
      %1581 = vrot.lane.b32.xlu0 %v1400, 4
      %v1582 = vpop.permute.xlu0 %1581
      %1583 = vrot.lane.b32.xlu0 %v1412, 4
      %v1584 = vpop.permute.xlu0 %1583
      %1585 = vrot.lane.b32.xlu0 %v1424, 4
      %v1586 = vpop.permute.xlu0 %1585
      %1587 = vrot.lane.b32.xlu0 %v1436, 4
      %v1588 = vpop.permute.xlu0 %1587
      %1589 = vrot.lane.b32.xlu0 %v1448, 4
      %v1590 = vpop.permute.xlu0 %1589
      %1591 = vrot.lane.b32.xlu0 %v1460, 4
      %v1592 = vpop.permute.xlu0 %1591
      %1593 = vrot.lane.b32.xlu0 %v1472, 4
      %v1594 = vpop.permute.xlu0 %1593
      %1595 = vrot.lane.b32.xlu0 %v1484, 4
      %v1596 = vpop.permute.xlu0 %1595
      %1597 = vrot.lane.b32.xlu0 %v1496, 4
      %v1598 = vpop.permute.xlu0 %1597
      %1599 = vrot.lane.b32.xlu0 %v1508, 4
      %v1600 = vpop.permute.xlu0 %1599
      %1601 = vrot.lane.b32.xlu0 %v1520, 4
      %v1602 = vpop.permute.xlu0 %1601
      %1603 = vrot.lane.b32.xlu0 %v1532, 4
      %v1604 = vpop.permute.xlu0 %1603
      %1605 = vrot.lane.b32.xlu0 %v1544, 4
      %v1606 = vpop.permute.xlu0 %1605
      %1607 = vrot.lane.b32.xlu0 %v1556, 4
      %v1608 = vpop.permute.xlu0 %1607
      %1609 = vrot.lane.b32.xlu0 %v1568, 4
      %v1610 = vpop.permute.xlu0 %1609
      %1611 = vrot.lane.b32.xlu0 %v1580, 4
      %v1612 = vpop.permute.xlu0 %1611
      %vm1629 = vcmask 64544
      %1630 = vst.msk [vmem:[#allocation3] sm:$0xff] %vm1629, %v1582
      %1631 = vst.msk [vmem:[#allocation3 + $0x8] sm:$0xff] %vm1629, %v1584
      %1632 = vst.msk [vmem:[#allocation3 + $0x10] sm:$0xff] %vm1629, %v1586
      %1633 = vst.msk [vmem:[#allocation3 + $0x18] sm:$0xff] %vm1629, %v1588
      %1634 = vst.msk [vmem:[#allocation3 + $0x20] sm:$0xff] %vm1629, %v1590
      %1635 = vst.msk [vmem:[#allocation3 + $0x28] sm:$0xff] %vm1629, %v1592
      %1636 = vst.msk [vmem:[#allocation3 + $0x30] sm:$0xff] %vm1629, %v1594
      %1637 = vst.msk [vmem:[#allocation3 + $0x38] sm:$0xff] %vm1629, %v1596
      %1638 = vst.msk [vmem:[#allocation3 + $0x40] sm:$0xff] %vm1629, %v1598
      %1639 = vst.msk [vmem:[#allocation3 + $0x48] sm:$0xff] %vm1629, %v1600
      %1640 = vst.msk [vmem:[#allocation3 + $0x50] sm:$0xff] %vm1629, %v1602
      %1641 = vst.msk [vmem:[#allocation3 + $0x58] sm:$0xff] %vm1629, %v1604
      %1642 = vst.msk [vmem:[#allocation3 + $0x60] sm:$0xff] %vm1629, %v1606
      %1643 = vst.msk [vmem:[#allocation3 + $0x68] sm:$0xff] %vm1629, %v1608
      %1644 = vst.msk [vmem:[#allocation3 + $0x70] sm:$0xff] %vm1629, %v1610
      %1645 = vst.msk [vmem:[#allocation3 + $0x78] sm:$0xff] %vm1629, %v1612
      %v1646 = vld [vmem:[#allocation2] sm:$0xe]
      %v1647 = vld [vmem:[#allocation2 + $0x4] sm:$0xf]
      %v1648 = vld [vmem:[#allocation2 + $0x8] sm:$0x1]
      %v1649 = vld [vmem:[#allocation2 + $0xc] sm:$0xe]
      %v1650 = vld [vmem:[#allocation2 + $0x10] sm:$0xf]
      %v1651 = vld [vmem:[#allocation2 + $0x14] sm:$0x1]
      %v1652 = vld [vmem:[#allocation2 + $0x18] sm:$0xe]
      %v1653 = vld [vmem:[#allocation2 + $0x1c] sm:$0xf]
      %v1654 = vld [vmem:[#allocation2 + $0x20] sm:$0x1]
      %v1655 = vld [vmem:[#allocation2 + $0x24] sm:$0xe]
      %v1656 = vld [vmem:[#allocation2 + $0x28] sm:$0xf]
      %v1657 = vld [vmem:[#allocation2 + $0x2c] sm:$0x1]
      %v1658 = vld [vmem:[#allocation2 + $0x30] sm:$0xe]
      %v1659 = vld [vmem:[#allocation2 + $0x34] sm:$0xf]
      %v1660 = vld [vmem:[#allocation2 + $0x38] sm:$0x1]
      %v1661 = vld [vmem:[#allocation2 + $0x3c] sm:$0xe]
      %v1662 = vld [vmem:[#allocation2 + $0x40] sm:$0xf]
      %v1663 = vld [vmem:[#allocation2 + $0x44] sm:$0x1]
      %v1664 = vld [vmem:[#allocation2 + $0x48] sm:$0xe]
      %v1665 = vld [vmem:[#allocation2 + $0x4c] sm:$0xf]
      %v1666 = vld [vmem:[#allocation2 + $0x50] sm:$0x1]
      %v1667 = vld [vmem:[#allocation2 + $0x54] sm:$0xe]
      %v1668 = vld [vmem:[#allocation2 + $0x58] sm:$0xf]
      %v1669 = vld [vmem:[#allocation2 + $0x5c] sm:$0x1]
      %v1670 = vld [vmem:[#allocation2 + $0x60] sm:$0xe]
      %v1671 = vld [vmem:[#allocation2 + $0x64] sm:$0xf]
      %v1672 = vld [vmem:[#allocation2 + $0x68] sm:$0x1]
      %v1673 = vld [vmem:[#allocation2 + $0x6c] sm:$0xe]
      %v1674 = vld [vmem:[#allocation2 + $0x70] sm:$0xf]
      %v1675 = vld [vmem:[#allocation2 + $0x74] sm:$0x1]
      %v1676 = vld [vmem:[#allocation2 + $0x78] sm:$0xe]
      %v1677 = vld [vmem:[#allocation2 + $0x7c] sm:$0xf]
      %v1678 = vld [vmem:[#allocation2 + $0x80] sm:$0x1]
      %v1679 = vld [vmem:[#allocation2 + $0x84] sm:$0xe]
      %v1680 = vld [vmem:[#allocation2 + $0x88] sm:$0xf]
      %v1681 = vld [vmem:[#allocation2 + $0x8c] sm:$0x1]
      %v1682 = vld [vmem:[#allocation2 + $0x90] sm:$0xe]
      %v1683 = vld [vmem:[#allocation2 + $0x94] sm:$0xf]
      %v1684 = vld [vmem:[#allocation2 + $0x98] sm:$0x1]
      %v1685 = vld [vmem:[#allocation2 + $0x9c] sm:$0xe]
      %v1686 = vld [vmem:[#allocation2 + $0xa0] sm:$0xf]
      %v1687 = vld [vmem:[#allocation2 + $0xa4] sm:$0x1]
      %v1688 = vld [vmem:[#allocation2 + $0xa8] sm:$0xe]
      %v1689 = vld [vmem:[#allocation2 + $0xac] sm:$0xf]
      %v1690 = vld [vmem:[#allocation2 + $0xb0] sm:$0x1]
      %v1691 = vld [vmem:[#allocation2 + $0xb4] sm:$0xe]
      %v1692 = vld [vmem:[#allocation2 + $0xb8] sm:$0xf]
      %v1693 = vld [vmem:[#allocation2 + $0xbc] sm:$0x1]
      %v1742 = vunpack.c.l.b16 %v1646
      %v1743 = vunpack.c.l.b16 %v1647
      %v1744 = vunpack.c.l.b16 %v1648
      %v1745 = vunpack.c.l.b16 %v1649
      %v1746 = vunpack.c.l.b16 %v1650
      %v1747 = vunpack.c.l.b16 %v1651
      %v1748 = vunpack.c.l.b16 %v1652
      %v1749 = vunpack.c.l.b16 %v1653
      %v1750 = vunpack.c.l.b16 %v1654
      %v1751 = vunpack.c.l.b16 %v1655
      %v1752 = vunpack.c.l.b16 %v1656
      %v1753 = vunpack.c.l.b16 %v1657
      %v1754 = vunpack.c.l.b16 %v1658
      %v1755 = vunpack.c.l.b16 %v1659
      %v1756 = vunpack.c.l.b16 %v1660
      %v1757 = vunpack.c.l.b16 %v1661
      %v1758 = vunpack.c.l.b16 %v1662
      %v1759 = vunpack.c.l.b16 %v1663
      %v1760 = vunpack.c.l.b16 %v1664
      %v1761 = vunpack.c.l.b16 %v1665
      %v1762 = vunpack.c.l.b16 %v1666
      %v1763 = vunpack.c.l.b16 %v1667
      %v1764 = vunpack.c.l.b16 %v1668
      %v1765 = vunpack.c.l.b16 %v1669
      %v1766 = vunpack.c.l.b16 %v1670
      %v1767 = vunpack.c.l.b16 %v1671
      %v1768 = vunpack.c.l.b16 %v1672
      %v1769 = vunpack.c.l.b16 %v1673
      %v1770 = vunpack.c.l.b16 %v1674
      %v1771 = vunpack.c.l.b16 %v1675
      %v1772 = vunpack.c.l.b16 %v1676
      %v1773 = vunpack.c.l.b16 %v1677
      %v1774 = vunpack.c.l.b16 %v1678
      %v1775 = vunpack.c.l.b16 %v1679
      %v1776 = vunpack.c.l.b16 %v1680
      %v1777 = vunpack.c.l.b16 %v1681
      %v1778 = vunpack.c.l.b16 %v1682
      %v1779 = vunpack.c.l.b16 %v1683
      %v1780 = vunpack.c.l.b16 %v1684
      %v1781 = vunpack.c.l.b16 %v1685
      %v1782 = vunpack.c.l.b16 %v1686
      %v1783 = vunpack.c.l.b16 %v1687
      %v1784 = vunpack.c.l.b16 %v1688
      %v1785 = vunpack.c.l.b16 %v1689
      %v1786 = vunpack.c.l.b16 %v1690
      %v1787 = vunpack.c.l.b16 %v1691
      %v1788 = vunpack.c.l.b16 %v1692
      %v1789 = vunpack.c.l.b16 %v1693
      %v1790 = vpack.c.b16 %v1743, %v1742
      %v1791 = vpack.c.b16 %v1744, %v1744
      %v1792 = vpack.c.b16 %v1746, %v1745
      %v1793 = vpack.c.b16 %v1747, %v1747
      %v1794 = vpack.c.b16 %v1749, %v1748
      %v1795 = vpack.c.b16 %v1750, %v1750
      %v1796 = vpack.c.b16 %v1752, %v1751
      %v1797 = vpack.c.b16 %v1753, %v1753
      %v1798 = vpack.c.b16 %v1755, %v1754
      %v1799 = vpack.c.b16 %v1756, %v1756
      %v1800 = vpack.c.b16 %v1758, %v1757
      %v1801 = vpack.c.b16 %v1759, %v1759
      %v1802 = vpack.c.b16 %v1761, %v1760
      %v1803 = vpack.c.b16 %v1762, %v1762
      %v1804 = vpack.c.b16 %v1764, %v1763
      %v1805 = vpack.c.b16 %v1765, %v1765
      %v1806 = vpack.c.b16 %v1767, %v1766
      %v1807 = vpack.c.b16 %v1768, %v1768
      %v1808 = vpack.c.b16 %v1770, %v1769
      %v1809 = vpack.c.b16 %v1771, %v1771
      %v1810 = vpack.c.b16 %v1773, %v1772
      %v1811 = vpack.c.b16 %v1774, %v1774
      %v1812 = vpack.c.b16 %v1776, %v1775
      %v1813 = vpack.c.b16 %v1777, %v1777
      %v1814 = vpack.c.b16 %v1779, %v1778
      %v1815 = vpack.c.b16 %v1780, %v1780
      %v1816 = vpack.c.b16 %v1782, %v1781
      %v1817 = vpack.c.b16 %v1783, %v1783
      %v1818 = vpack.c.b16 %v1785, %v1784
      %v1819 = vpack.c.b16 %v1786, %v1786
      %v1820 = vpack.c.b16 %v1788, %v1787
      %v1821 = vpack.c.b16 %v1789, %v1789
      %vm1822 = vcmask 1046528
      %v1823 = vrot.slane %v1790, 1
      %v1824 = vrot.slane %v1791, 1
      %v1825 = vsel %vm1822, %v1823, %v1824
      %v1826 = vrot.slane %v1792, 1
      %v1827 = vrot.slane %v1793, 1
      %v1828 = vsel %vm1822, %v1826, %v1827
      %v1829 = vrot.slane %v1794, 1
      %v1830 = vrot.slane %v1795, 1
      %v1831 = vsel %vm1822, %v1829, %v1830
      %v1832 = vrot.slane %v1796, 1
      %v1833 = vrot.slane %v1797, 1
      %v1834 = vsel %vm1822, %v1832, %v1833
      %v1835 = vrot.slane %v1798, 1
      %v1836 = vrot.slane %v1799, 1
      %v1837 = vsel %vm1822, %v1835, %v1836
      %v1838 = vrot.slane %v1800, 1
      %v1839 = vrot.slane %v1801, 1
      %v1840 = vsel %vm1822, %v1838, %v1839
      %v1841 = vrot.slane %v1802, 1
      %v1842 = vrot.slane %v1803, 1
      %v1843 = vsel %vm1822, %v1841, %v1842
      %v1844 = vrot.slane %v1804, 1
      %v1845 = vrot.slane %v1805, 1
      %v1846 = vsel %vm1822, %v1844, %v1845
      %v1847 = vrot.slane %v1806, 1
      %v1848 = vrot.slane %v1807, 1
      %v1849 = vsel %vm1822, %v1847, %v1848
      %v1850 = vrot.slane %v1808, 1
      %v1851 = vrot.slane %v1809, 1
      %v1852 = vsel %vm1822, %v1850, %v1851
      %v1853 = vrot.slane %v1810, 1
      %v1854 = vrot.slane %v1811, 1
      %v1855 = vsel %vm1822, %v1853, %v1854
      %v1856 = vrot.slane %v1812, 1
      %v1857 = vrot.slane %v1813, 1
      %v1858 = vsel %vm1822, %v1856, %v1857
      %v1859 = vrot.slane %v1814, 1
      %v1860 = vrot.slane %v1815, 1
      %v1861 = vsel %vm1822, %v1859, %v1860
      %v1862 = vrot.slane %v1816, 1
      %v1863 = vrot.slane %v1817, 1
      %v1864 = vsel %vm1822, %v1862, %v1863
      %v1865 = vrot.slane %v1818, 1
      %v1866 = vrot.slane %v1819, 1
      %v1867 = vsel %vm1822, %v1865, %v1866
      %v1868 = vrot.slane %v1820, 1
      %v1869 = vrot.slane %v1821, 1
      %v1870 = vsel %vm1822, %v1868, %v1869
      %1871 = vrot.lane.b32.xlu0 %v1825, 8
      %v1872 = vpop.permute.xlu0 %1871
      %1873 = vrot.lane.b32.xlu0 %v1828, 8
      %v1874 = vpop.permute.xlu0 %1873
      %1875 = vrot.lane.b32.xlu0 %v1831, 8
      %v1876 = vpop.permute.xlu0 %1875
      %1877 = vrot.lane.b32.xlu0 %v1834, 8
      %v1878 = vpop.permute.xlu0 %1877
      %1879 = vrot.lane.b32.xlu0 %v1837, 8
      %v1880 = vpop.permute.xlu0 %1879
      %1881 = vrot.lane.b32.xlu0 %v1840, 8
      %v1882 = vpop.permute.xlu0 %1881
      %1883 = vrot.lane.b32.xlu0 %v1843, 8
      %v1884 = vpop.permute.xlu0 %1883
      %1885 = vrot.lane.b32.xlu0 %v1846, 8
      %v1886 = vpop.permute.xlu0 %1885
      %1887 = vrot.lane.b32.xlu0 %v1849, 8
      %v1888 = vpop.permute.xlu0 %1887
      %1889 = vrot.lane.b32.xlu0 %v1852, 8
      %v1890 = vpop.permute.xlu0 %1889
      %1891 = vrot.lane.b32.xlu0 %v1855, 8
      %v1892 = vpop.permute.xlu0 %1891
      %1893 = vrot.lane.b32.xlu0 %v1858, 8
      %v1894 = vpop.permute.xlu0 %1893
      %1895 = vrot.lane.b32.xlu0 %v1861, 8
      %v1896 = vpop.permute.xlu0 %1895
      %1897 = vrot.lane.b32.xlu0 %v1864, 8
      %v1898 = vpop.permute.xlu0 %1897
      %1899 = vrot.lane.b32.xlu0 %v1867, 8
      %v1900 = vpop.permute.xlu0 %1899
      %1901 = vrot.lane.b32.xlu0 %v1870, 8
      %v1902 = vpop.permute.xlu0 %1901
      %vm1919 = vcmask 97344
      %1920 = vst.msk [vmem:[#allocation3] sm:$0xff] %vm1919, %v1872
      %1921 = vst.msk [vmem:[#allocation3 + $0x8] sm:$0xff] %vm1919, %v1874
      %1922 = vst.msk [vmem:[#allocation3 + $0x10] sm:$0xff] %vm1919, %v1876
      %1923 = vst.msk [vmem:[#allocation3 + $0x18] sm:$0xff] %vm1919, %v1878
      %1924 = vst.msk [vmem:[#allocation3 + $0x20] sm:$0xff] %vm1919, %v1880
      %1925 = vst.msk [vmem:[#allocation3 + $0x28] sm:$0xff] %vm1919, %v1882
      %1926 = vst.msk [vmem:[#allocation3 + $0x30] sm:$0xff] %vm1919, %v1884
      %1927 = vst.msk [vmem:[#allocation3 + $0x38] sm:$0xff] %vm1919, %v1886
      %1928 = vst.msk [vmem:[#allocation3 + $0x40] sm:$0xff] %vm1919, %v1888
      %1929 = vst.msk [vmem:[#allocation3 + $0x48] sm:$0xff] %vm1919, %v1890
      %1930 = vst.msk [vmem:[#allocation3 + $0x50] sm:$0xff] %vm1919, %v1892
      %1931 = vst.msk [vmem:[#allocation3 + $0x58] sm:$0xff] %vm1919, %v1894
      %1932 = vst.msk [vmem:[#allocation3 + $0x60] sm:$0xff] %vm1919, %v1896
      %1933 = vst.msk [vmem:[#allocation3 + $0x68] sm:$0xff] %vm1919, %v1898
      %1934 = vst.msk [vmem:[#allocation3 + $0x70] sm:$0xff] %vm1919, %v1900
      %1935 = vst.msk [vmem:[#allocation3 + $0x78] sm:$0xff] %vm1919, %v1902
      %v1936 = vld [vmem:[%s952] sm:$0xf]
      %v1937 = vld [vmem:[%s952 + $0x4] sm:$0xf]
      %v1938 = vld [vmem:[%s952 + $0xc] sm:$0xf]
      %v1939 = vld [vmem:[%s952 + $0x10] sm:$0xf]
      %v1940 = vld [vmem:[%s952 + $0x18] sm:$0xf]
      %v1941 = vld [vmem:[%s952 + $0x1c] sm:$0xf]
      %v1942 = vld [vmem:[%s952 + $0x24] sm:$0xf]
      %v1943 = vld [vmem:[%s952 + $0x28] sm:$0xf]
      %v1944 = vld [vmem:[%s952 + $0x30] sm:$0xf]
      %v1945 = vld [vmem:[%s952 + $0x34] sm:$0xf]
      %v1946 = vld [vmem:[%s952 + $0x3c] sm:$0xf]
      %v1947 = vld [vmem:[%s952 + $0x40] sm:$0xf]
      %v1948 = vld [vmem:[%s952 + $0x48] sm:$0xf]
      %v1949 = vld [vmem:[%s952 + $0x4c] sm:$0xf]
      %v1950 = vld [vmem:[%s952 + $0x54] sm:$0xf]
      %v1951 = vld [vmem:[%s952 + $0x58] sm:$0xf]
      %v1952 = vld [vmem:[%s952 + $0x60] sm:$0xf]
      %v1953 = vld [vmem:[%s952 + $0x64] sm:$0xf]
      %v1954 = vld [vmem:[%s952 + $0x6c] sm:$0xf]
      %v1955 = vld [vmem:[%s952 + $0x70] sm:$0xf]
      %v1956 = vld [vmem:[%s952 + $0x78] sm:$0xf]
      %v1957 = vld [vmem:[%s952 + $0x7c] sm:$0xf]
      %v1958 = vld [vmem:[%s952 + $0x84] sm:$0xf]
      %v1959 = vld [vmem:[%s952 + $0x88] sm:$0xf]
      %v1960 = vld [vmem:[%s952 + $0x90] sm:$0xf]
      %v1961 = vld [vmem:[%s952 + $0x94] sm:$0xf]
      %v1962 = vld [vmem:[%s952 + $0x9c] sm:$0xf]
      %v1963 = vld [vmem:[%s952 + $0xa0] sm:$0xf]
      %v1964 = vld [vmem:[%s952 + $0xa8] sm:$0xf]
      %v1965 = vld [vmem:[%s952 + $0xac] sm:$0xf]
      %v1966 = vld [vmem:[%s952 + $0xb4] sm:$0xf]
      %v1967 = vld [vmem:[%s952 + $0xb8] sm:$0xf]
      %v2000 = vunpack.c.l.b16 %v1936
      %v2001 = vunpack.c.l.b16 %v1937
      %v2002 = vunpack.c.l.b16 %v1938
      %v2003 = vunpack.c.l.b16 %v1939
      %v2004 = vunpack.c.l.b16 %v1940
      %v2005 = vunpack.c.l.b16 %v1941
      %v2006 = vunpack.c.l.b16 %v1942
      %v2007 = vunpack.c.l.b16 %v1943
      %v2008 = vunpack.c.l.b16 %v1944
      %v2009 = vunpack.c.l.b16 %v1945
      %v2010 = vunpack.c.l.b16 %v1946
      %v2011 = vunpack.c.l.b16 %v1947
      %v2012 = vunpack.c.l.b16 %v1948
      %v2013 = vunpack.c.l.b16 %v1949
      %v2014 = vunpack.c.l.b16 %v1950
      %v2015 = vunpack.c.l.b16 %v1951
      %v2016 = vunpack.c.l.b16 %v1952
      %v2017 = vunpack.c.l.b16 %v1953
      %v2018 = vunpack.c.l.b16 %v1954
      %v2019 = vunpack.c.l.b16 %v1955
      %v2020 = vunpack.c.l.b16 %v1956
      %v2021 = vunpack.c.l.b16 %v1957
      %v2022 = vunpack.c.l.b16 %v1958
      %v2023 = vunpack.c.l.b16 %v1959
      %v2024 = vunpack.c.l.b16 %v1960
      %v2025 = vunpack.c.l.b16 %v1961
      %v2026 = vunpack.c.l.b16 %v1962
      %v2027 = vunpack.c.l.b16 %v1963
      %v2028 = vunpack.c.l.b16 %v1964
      %v2029 = vunpack.c.l.b16 %v1965
      %v2030 = vunpack.c.l.b16 %v1966
      %v2031 = vunpack.c.l.b16 %v1967
      %v2032 = vpack.c.b16 %v2001, %v2000
      %v2033 = vpack.c.b16 %v2003, %v2002
      %v2034 = vpack.c.b16 %v2005, %v2004
      %v2035 = vpack.c.b16 %v2007, %v2006
      %v2036 = vpack.c.b16 %v2009, %v2008
      %v2037 = vpack.c.b16 %v2011, %v2010
      %v2038 = vpack.c.b16 %v2013, %v2012
      %v2039 = vpack.c.b16 %v2015, %v2014
      %v2040 = vpack.c.b16 %v2017, %v2016
      %v2041 = vpack.c.b16 %v2019, %v2018
      %v2042 = vpack.c.b16 %v2021, %v2020
      %v2043 = vpack.c.b16 %v2023, %v2022
      %v2044 = vpack.c.b16 %v2025, %v2024
      %v2045 = vpack.c.b16 %v2027, %v2026
      %v2046 = vpack.c.b16 %v2029, %v2028
      %v2047 = vpack.c.b16 %v2031, %v2030
      %2048 = vrot.lane.b32.xlu0 %v2032, 12
      %v2049 = vpop.permute.xlu0 %2048
      %2050 = vrot.lane.b32.xlu0 %v2033, 12
      %v2051 = vpop.permute.xlu0 %2050
      %2052 = vrot.lane.b32.xlu0 %v2034, 12
      %v2053 = vpop.permute.xlu0 %2052
      %2054 = vrot.lane.b32.xlu0 %v2035, 12
      %v2055 = vpop.permute.xlu0 %2054
      %2056 = vrot.lane.b32.xlu0 %v2036, 12
      %v2057 = vpop.permute.xlu0 %2056
      %2058 = vrot.lane.b32.xlu0 %v2037, 12
      %v2059 = vpop.permute.xlu0 %2058
      %2060 = vrot.lane.b32.xlu0 %v2038, 12
      %v2061 = vpop.permute.xlu0 %2060
      %2062 = vrot.lane.b32.xlu0 %v2039, 12
      %v2063 = vpop.permute.xlu0 %2062
      %2064 = vrot.lane.b32.xlu0 %v2040, 12
      %v2065 = vpop.permute.xlu0 %2064
      %2066 = vrot.lane.b32.xlu0 %v2041, 12
      %v2067 = vpop.permute.xlu0 %2066
      %2068 = vrot.lane.b32.xlu0 %v2042, 12
      %v2069 = vpop.permute.xlu0 %2068
      %2070 = vrot.lane.b32.xlu0 %v2043, 12
      %v2071 = vpop.permute.xlu0 %2070
      %2072 = vrot.lane.b32.xlu0 %v2044, 12
      %v2073 = vpop.permute.xlu0 %2072
      %2074 = vrot.lane.b32.xlu0 %v2045, 12
      %v2075 = vpop.permute.xlu0 %2074
      %2076 = vrot.lane.b32.xlu0 %v2046, 12
      %v2077 = vpop.permute.xlu0 %2076
      %2078 = vrot.lane.b32.xlu0 %v2047, 12
      %v2079 = vpop.permute.xlu0 %2078
      %vm2096 = vcmask 130144
      %2097 = vst.msk [vmem:[#allocation3] sm:$0xff] %vm2096, %v2049
      %2098 = vst.msk [vmem:[#allocation3 + $0x8] sm:$0xff] %vm2096, %v2051
      %2099 = vst.msk [vmem:[#allocation3 + $0x10] sm:$0xff] %vm2096, %v2053
      %2100 = vst.msk [vmem:[#allocation3 + $0x18] sm:$0xff] %vm2096, %v2055
      %2101 = vst.msk [vmem:[#allocation3 + $0x20] sm:$0xff] %vm2096, %v2057
      %2102 = vst.msk [vmem:[#allocation3 + $0x28] sm:$0xff] %vm2096, %v2059
      %2103 = vst.msk [vmem:[#allocation3 + $0x30] sm:$0xff] %vm2096, %v2061
      %2104 = vst.msk [vmem:[#allocation3 + $0x38] sm:$0xff] %vm2096, %v2063
      %2105 = vst.msk [vmem:[#allocation3 + $0x40] sm:$0xff] %vm2096, %v2065
      %2106 = vst.msk [vmem:[#allocation3 + $0x48] sm:$0xff] %vm2096, %v2067
      %2107 = vst.msk [vmem:[#allocation3 + $0x50] sm:$0xff] %vm2096, %v2069
      %2108 = vst.msk [vmem:[#allocation3 + $0x58] sm:$0xff] %vm2096, %v2071
      %2109 = vst.msk [vmem:[#allocation3 + $0x60] sm:$0xff] %vm2096, %v2073
      %2110 = vst.msk [vmem:[#allocation3 + $0x68] sm:$0xff] %vm2096, %v2075
      %2111 = vst.msk [vmem:[#allocation3 + $0x70] sm:$0xff] %vm2096, %v2077
      %2112 = vst.msk [vmem:[#allocation3 + $0x78] sm:$0xff] %vm2096, %v2079
      %v2113 = vld [vmem:[%s952] sm:$0xf]
      %v2114 = vld [vmem:[%s952 + $0x4] sm:$0xf]
      %v2115 = vld [vmem:[%s952 + $0x8] sm:$0x1]
      %v2116 = vld [vmem:[%s952 + $0xc] sm:$0xf]
      %v2117 = vld [vmem:[%s952 + $0x10] sm:$0xf]
      %v2118 = vld [vmem:[%s952 + $0x14] sm:$0x1]
      %v2119 = vld [vmem:[%s952 + $0x18] sm:$0xf]
      %v2120 = vld [vmem:[%s952 + $0x1c] sm:$0xf]
      %v2121 = vld [vmem:[%s952 + $0x20] sm:$0x1]
      %v2122 = vld [vmem:[%s952 + $0x24] sm:$0xf]
      %v2123 = vld [vmem:[%s952 + $0x28] sm:$0xf]
      %v2124 = vld [vmem:[%s952 + $0x2c] sm:$0x1]
      %v2125 = vld [vmem:[%s952 + $0x30] sm:$0xf]
      %v2126 = vld [vmem:[%s952 + $0x34] sm:$0xf]
      %v2127 = vld [vmem:[%s952 + $0x38] sm:$0x1]
      %v2128 = vld [vmem:[%s952 + $0x3c] sm:$0xf]
      %v2129 = vld [vmem:[%s952 + $0x40] sm:$0xf]
      %v2130 = vld [vmem:[%s952 + $0x44] sm:$0x1]
      %v2131 = vld [vmem:[%s952 + $0x48] sm:$0xf]
      %v2132 = vld [vmem:[%s952 + $0x4c] sm:$0xf]
      %v2133 = vld [vmem:[%s952 + $0x50] sm:$0x1]
      %v2134 = vld [vmem:[%s952 + $0x54] sm:$0xf]
      %v2135 = vld [vmem:[%s952 + $0x58] sm:$0xf]
      %v2136 = vld [vmem:[%s952 + $0x5c] sm:$0x1]
      %v2137 = vld [vmem:[%s952 + $0x60] sm:$0xf]
      %v2138 = vld [vmem:[%s952 + $0x64] sm:$0xf]
      %v2139 = vld [vmem:[%s952 + $0x68] sm:$0x1]
      %v2140 = vld [vmem:[%s952 + $0x6c] sm:$0xf]
      %v2141 = vld [vmem:[%s952 + $0x70] sm:$0xf]
      %v2142 = vld [vmem:[%s952 + $0x74] sm:$0x1]
      %v2143 = vld [vmem:[%s952 + $0x78] sm:$0xf]
      %v2144 = vld [vmem:[%s952 + $0x7c] sm:$0xf]
      %v2145 = vld [vmem:[%s952 + $0x80] sm:$0x1]
      %v2146 = vld [vmem:[%s952 + $0x84] sm:$0xf]
      %v2147 = vld [vmem:[%s952 + $0x88] sm:$0xf]
      %v2148 = vld [vmem:[%s952 + $0x8c] sm:$0x1]
      %v2149 = vld [vmem:[%s952 + $0x90] sm:$0xf]
      %v2150 = vld [vmem:[%s952 + $0x94] sm:$0xf]
      %v2151 = vld [vmem:[%s952 + $0x98] sm:$0x1]
      %v2152 = vld [vmem:[%s952 + $0x9c] sm:$0xf]
      %v2153 = vld [vmem:[%s952 + $0xa0] sm:$0xf]
      %v2154 = vld [vmem:[%s952 + $0xa4] sm:$0x1]
      %v2155 = vld [vmem:[%s952 + $0xa8] sm:$0xf]
      %v2156 = vld [vmem:[%s952 + $0xac] sm:$0xf]
      %v2157 = vld [vmem:[%s952 + $0xb0] sm:$0x1]
      %v2158 = vld [vmem:[%s952 + $0xb4] sm:$0xf]
      %v2159 = vld [vmem:[%s952 + $0xb8] sm:$0xf]
      %v2160 = vld [vmem:[%s952 + $0xbc] sm:$0x1]
      %v2209 = vunpack.c.l.b16 %v2113
      %v2210 = vunpack.c.l.b16 %v2114
      %v2211 = vunpack.c.l.b16 %v2115
      %v2212 = vunpack.c.l.b16 %v2116
      %v2213 = vunpack.c.l.b16 %v2117
      %v2214 = vunpack.c.l.b16 %v2118
      %v2215 = vunpack.c.l.b16 %v2119
      %v2216 = vunpack.c.l.b16 %v2120
      %v2217 = vunpack.c.l.b16 %v2121
      %v2218 = vunpack.c.l.b16 %v2122
      %v2219 = vunpack.c.l.b16 %v2123
      %v2220 = vunpack.c.l.b16 %v2124
      %v2221 = vunpack.c.l.b16 %v2125
      %v2222 = vunpack.c.l.b16 %v2126
      %v2223 = vunpack.c.l.b16 %v2127
      %v2224 = vunpack.c.l.b16 %v2128
      %v2225 = vunpack.c.l.b16 %v2129
      %v2226 = vunpack.c.l.b16 %v2130
      %v2227 = vunpack.c.l.b16 %v2131
      %v2228 = vunpack.c.l.b16 %v2132
      %v2229 = vunpack.c.l.b16 %v2133
      %v2230 = vunpack.c.l.b16 %v2134
      %v2231 = vunpack.c.l.b16 %v2135
      %v2232 = vunpack.c.l.b16 %v2136
      %v2233 = vunpack.c.l.b16 %v2137
      %v2234 = vunpack.c.l.b16 %v2138
      %v2235 = vunpack.c.l.b16 %v2139
      %v2236 = vunpack.c.l.b16 %v2140
      %v2237 = vunpack.c.l.b16 %v2141
      %v2238 = vunpack.c.l.b16 %v2142
      %v2239 = vunpack.c.l.b16 %v2143
      %v2240 = vunpack.c.l.b16 %v2144
      %v2241 = vunpack.c.l.b16 %v2145
      %v2242 = vunpack.c.l.b16 %v2146
      %v2243 = vunpack.c.l.b16 %v2147
      %v2244 = vunpack.c.l.b16 %v2148
      %v2245 = vunpack.c.l.b16 %v2149
      %v2246 = vunpack.c.l.b16 %v2150
      %v2247 = vunpack.c.l.b16 %v2151
      %v2248 = vunpack.c.l.b16 %v2152
      %v2249 = vunpack.c.l.b16 %v2153
      %v2250 = vunpack.c.l.b16 %v2154
      %v2251 = vunpack.c.l.b16 %v2155
      %v2252 = vunpack.c.l.b16 %v2156
      %v2253 = vunpack.c.l.b16 %v2157
      %v2254 = vunpack.c.l.b16 %v2158
      %v2255 = vunpack.c.l.b16 %v2159
      %v2256 = vunpack.c.l.b16 %v2160
      %v2257 = vpack.c.b16 %v2210, %v2209
      %v2258 = vpack.c.b16 %v2211, %v2211
      %v2259 = vpack.c.b16 %v2213, %v2212
      %v2260 = vpack.c.b16 %v2214, %v2214
      %v2261 = vpack.c.b16 %v2216, %v2215
      %v2262 = vpack.c.b16 %v2217, %v2217
      %v2263 = vpack.c.b16 %v2219, %v2218
      %v2264 = vpack.c.b16 %v2220, %v2220
      %v2265 = vpack.c.b16 %v2222, %v2221
      %v2266 = vpack.c.b16 %v2223, %v2223
      %v2267 = vpack.c.b16 %v2225, %v2224
      %v2268 = vpack.c.b16 %v2226, %v2226
      %v2269 = vpack.c.b16 %v2228, %v2227
      %v2270 = vpack.c.b16 %v2229, %v2229
      %v2271 = vpack.c.b16 %v2231, %v2230
      %v2272 = vpack.c.b16 %v2232, %v2232
      %v2273 = vpack.c.b16 %v2234, %v2233
      %v2274 = vpack.c.b16 %v2235, %v2235
      %v2275 = vpack.c.b16 %v2237, %v2236
      %v2276 = vpack.c.b16 %v2238, %v2238
      %v2277 = vpack.c.b16 %v2240, %v2239
      %v2278 = vpack.c.b16 %v2241, %v2241
      %v2279 = vpack.c.b16 %v2243, %v2242
      %v2280 = vpack.c.b16 %v2244, %v2244
      %v2281 = vpack.c.b16 %v2246, %v2245
      %v2282 = vpack.c.b16 %v2247, %v2247
      %v2283 = vpack.c.b16 %v2249, %v2248
      %v2284 = vpack.c.b16 %v2250, %v2250
      %v2285 = vpack.c.b16 %v2252, %v2251
      %v2286 = vpack.c.b16 %v2253, %v2253
      %v2287 = vpack.c.b16 %v2255, %v2254
      %v2288 = vpack.c.b16 %v2256, %v2256
      %v2290 = vshrl.u32 %v2257, 16
      %v2292 = vshll.u32 %v2257, 16
      %v2294 = vrot.slane %v2292, 1
      %v2295 = vor.u32 %v2290, %v2294
      %v2297 = vshll.u32 %v2258, 16
      %v2299 = vrot.slane %v2297, 1
      %v2300 = vsel %vm1388, %v2295, %v2299
      %v2302 = vshrl.u32 %v2259, 16
      %v2304 = vshll.u32 %v2259, 16
      %v2306 = vrot.slane %v2304, 1
      %v2307 = vor.u32 %v2302, %v2306
      %v2309 = vshll.u32 %v2260, 16
      %v2311 = vrot.slane %v2309, 1
      %v2312 = vsel %vm1388, %v2307, %v2311
      %v2314 = vshrl.u32 %v2261, 16
      %v2316 = vshll.u32 %v2261, 16
      %v2318 = vrot.slane %v2316, 1
      %v2319 = vor.u32 %v2314, %v2318
      %v2321 = vshll.u32 %v2262, 16
      %v2323 = vrot.slane %v2321, 1
      %v2324 = vsel %vm1388, %v2319, %v2323
      %v2326 = vshrl.u32 %v2263, 16
      %v2328 = vshll.u32 %v2263, 16
      %v2330 = vrot.slane %v2328, 1
      %v2331 = vor.u32 %v2326, %v2330
      %v2333 = vshll.u32 %v2264, 16
      %v2335 = vrot.slane %v2333, 1
      %v2336 = vsel %vm1388, %v2331, %v2335
      %v2338 = vshrl.u32 %v2265, 16
      %v2340 = vshll.u32 %v2265, 16
      %v2342 = vrot.slane %v2340, 1
      %v2343 = vor.u32 %v2338, %v2342
      %v2345 = vshll.u32 %v2266, 16
      %v2347 = vrot.slane %v2345, 1
      %v2348 = vsel %vm1388, %v2343, %v2347
      %v2350 = vshrl.u32 %v2267, 16
      %v2352 = vshll.u32 %v2267, 16
      %v2354 = vrot.slane %v2352, 1
      %v2355 = vor.u32 %v2350, %v2354
      %v2357 = vshll.u32 %v2268, 16
      %v2359 = vrot.slane %v2357, 1
      %v2360 = vsel %vm1388, %v2355, %v2359
      %v2362 = vshrl.u32 %v2269, 16
      %v2364 = vshll.u32 %v2269, 16
      %v2366 = vrot.slane %v2364, 1
      %v2367 = vor.u32 %v2362, %v2366
      %v2369 = vshll.u32 %v2270, 16
      %v2371 = vrot.slane %v2369, 1
      %v2372 = vsel %vm1388, %v2367, %v2371
      %v2374 = vshrl.u32 %v2271, 16
      %v2376 = vshll.u32 %v2271, 16
      %v2378 = vrot.slane %v2376, 1
      %v2379 = vor.u32 %v2374, %v2378
      %v2381 = vshll.u32 %v2272, 16
      %v2383 = vrot.slane %v2381, 1
      %v2384 = vsel %vm1388, %v2379, %v2383
      %v2386 = vshrl.u32 %v2273, 16
      %v2388 = vshll.u32 %v2273, 16
      %v2390 = vrot.slane %v2388, 1
      %v2391 = vor.u32 %v2386, %v2390
      %v2393 = vshll.u32 %v2274, 16
      %v2395 = vrot.slane %v2393, 1
      %v2396 = vsel %vm1388, %v2391, %v2395
      %v2398 = vshrl.u32 %v2275, 16
      %v2400 = vshll.u32 %v2275, 16
      %v2402 = vrot.slane %v2400, 1
      %v2403 = vor.u32 %v2398, %v2402
      %v2405 = vshll.u32 %v2276, 16
      %v2407 = vrot.slane %v2405, 1
      %v2408 = vsel %vm1388, %v2403, %v2407
      %v2410 = vshrl.u32 %v2277, 16
      %v2412 = vshll.u32 %v2277, 16
      %v2414 = vrot.slane %v2412, 1
      %v2415 = vor.u32 %v2410, %v2414
      %v2417 = vshll.u32 %v2278, 16
      %v2419 = vrot.slane %v2417, 1
      %v2420 = vsel %vm1388, %v2415, %v2419
      %v2422 = vshrl.u32 %v2279, 16
      %v2424 = vshll.u32 %v2279, 16
      %v2426 = vrot.slane %v2424, 1
      %v2427 = vor.u32 %v2422, %v2426
      %v2429 = vshll.u32 %v2280, 16
      %v2431 = vrot.slane %v2429, 1
      %v2432 = vsel %vm1388, %v2427, %v2431
      %v2434 = vshrl.u32 %v2281, 16
      %v2436 = vshll.u32 %v2281, 16
      %v2438 = vrot.slane %v2436, 1
      %v2439 = vor.u32 %v2434, %v2438
      %v2441 = vshll.u32 %v2282, 16
      %v2443 = vrot.slane %v2441, 1
      %v2444 = vsel %vm1388, %v2439, %v2443
      %v2446 = vshrl.u32 %v2283, 16
      %v2448 = vshll.u32 %v2283, 16
      %v2450 = vrot.slane %v2448, 1
      %v2451 = vor.u32 %v2446, %v2450
      %v2453 = vshll.u32 %v2284, 16
      %v2455 = vrot.slane %v2453, 1
      %v2456 = vsel %vm1388, %v2451, %v2455
      %v2458 = vshrl.u32 %v2285, 16
      %v2460 = vshll.u32 %v2285, 16
      %v2462 = vrot.slane %v2460, 1
      %v2463 = vor.u32 %v2458, %v2462
      %v2465 = vshll.u32 %v2286, 16
      %v2467 = vrot.slane %v2465, 1
      %v2468 = vsel %vm1388, %v2463, %v2467
      %v2470 = vshrl.u32 %v2287, 16
      %v2472 = vshll.u32 %v2287, 16
      %v2474 = vrot.slane %v2472, 1
      %v2475 = vor.u32 %v2470, %v2474
      %v2477 = vshll.u32 %v2288, 16
      %v2479 = vrot.slane %v2477, 1
      %v2480 = vsel %vm1388, %v2475, %v2479
      %2481 = vrot.lane.b32.xlu0 %v2300, 16
      %v2482 = vpop.permute.xlu0 %2481
      %2483 = vrot.lane.b32.xlu0 %v2312, 16
      %v2484 = vpop.permute.xlu0 %2483
      %2485 = vrot.lane.b32.xlu0 %v2324, 16
      %v2486 = vpop.permute.xlu0 %2485
      %2487 = vrot.lane.b32.xlu0 %v2336, 16
      %v2488 = vpop.permute.xlu0 %2487
      %2489 = vrot.lane.b32.xlu0 %v2348, 16
      %v2490 = vpop.permute.xlu0 %2489
      %2491 = vrot.lane.b32.xlu0 %v2360, 16
      %v2492 = vpop.permute.xlu0 %2491
      %2493 = vrot.lane.b32.xlu0 %v2372, 16
      %v2494 = vpop.permute.xlu0 %2493
      %2495 = vrot.lane.b32.xlu0 %v2384, 16
      %v2496 = vpop.permute.xlu0 %2495
      %2497 = vrot.lane.b32.xlu0 %v2396, 16
      %v2498 = vpop.permute.xlu0 %2497
      %2499 = vrot.lane.b32.xlu0 %v2408, 16
      %v2500 = vpop.permute.xlu0 %2499
      %2501 = vrot.lane.b32.xlu0 %v2420, 16
      %v2502 = vpop.permute.xlu0 %2501
      %2503 = vrot.lane.b32.xlu0 %v2432, 16
      %v2504 = vpop.permute.xlu0 %2503
      %2505 = vrot.lane.b32.xlu0 %v2444, 16
      %v2506 = vpop.permute.xlu0 %2505
      %2507 = vrot.lane.b32.xlu0 %v2456, 16
      %v2508 = vpop.permute.xlu0 %2507
      %2509 = vrot.lane.b32.xlu0 %v2468, 16
      %v2510 = vpop.permute.xlu0 %2509
      %2511 = vrot.lane.b32.xlu0 %v2480, 16
      %v2512 = vpop.permute.xlu0 %2511
      %vm2529 = vcmask 162944
      %2530 = vst.msk [vmem:[#allocation3] sm:$0xff] %vm2529, %v2482
      %2531 = vst.msk [vmem:[#allocation3 + $0x8] sm:$0xff] %vm2529, %v2484
      %2532 = vst.msk [vmem:[#allocation3 + $0x10] sm:$0xff] %vm2529, %v2486
      %2533 = vst.msk [vmem:[#allocation3 + $0x18] sm:$0xff] %vm2529, %v2488
      %2534 = vst.msk [vmem:[#allocation3 + $0x20] sm:$0xff] %vm2529, %v2490
      %2535 = vst.msk [vmem:[#allocation3 + $0x28] sm:$0xff] %vm2529, %v2492
      %2536 = vst.msk [vmem:[#allocation3 + $0x30] sm:$0xff] %vm2529, %v2494
      %2537 = vst.msk [vmem:[#allocation3 + $0x38] sm:$0xff] %vm2529, %v2496
      %2538 = vst.msk [vmem:[#allocation3 + $0x40] sm:$0xff] %vm2529, %v2498
      %2539 = vst.msk [vmem:[#allocation3 + $0x48] sm:$0xff] %vm2529, %v2500
      %2540 = vst.msk [vmem:[#allocation3 + $0x50] sm:$0xff] %vm2529, %v2502
      %2541 = vst.msk [vmem:[#allocation3 + $0x58] sm:$0xff] %vm2529, %v2504
      %2542 = vst.msk [vmem:[#allocation3 + $0x60] sm:$0xff] %vm2529, %v2506
      %2543 = vst.msk [vmem:[#allocation3 + $0x68] sm:$0xff] %vm2529, %v2508
      %2544 = vst.msk [vmem:[#allocation3 + $0x70] sm:$0xff] %vm2529, %v2510
      %2545 = vst.msk [vmem:[#allocation3 + $0x78] sm:$0xff] %vm2529, %v2512
      %v2546 = vld [vmem:[%s952] sm:$0xe]
      %v2547 = vld [vmem:[%s952 + $0x4] sm:$0xf]
      %v2548 = vld [vmem:[%s952 + $0x8] sm:$0x1]
      %v2549 = vld [vmem:[%s952 + $0xc] sm:$0xe]
      %v2550 = vld [vmem:[%s952 + $0x10] sm:$0xf]
      %v2551 = vld [vmem:[%s952 + $0x14] sm:$0x1]
      %v2552 = vld [vmem:[%s952 + $0x18] sm:$0xe]
      %v2553 = vld [vmem:[%s952 + $0x1c] sm:$0xf]
      %v2554 = vld [vmem:[%s952 + $0x20] sm:$0x1]
      %v2555 = vld [vmem:[%s952 + $0x24] sm:$0xe]
      %v2556 = vld [vmem:[%s952 + $0x28] sm:$0xf]
      %v2557 = vld [vmem:[%s952 + $0x2c] sm:$0x1]
      %v2558 = vld [vmem:[%s952 + $0x30] sm:$0xe]
      %v2559 = vld [vmem:[%s952 + $0x34] sm:$0xf]
      %v2560 = vld [vmem:[%s952 + $0x38] sm:$0x1]
      %v2561 = vld [vmem:[%s952 + $0x3c] sm:$0xe]
      %v2562 = vld [vmem:[%s952 + $0x40] sm:$0xf]
      %v2563 = vld [vmem:[%s952 + $0x44] sm:$0x1]
      %v2564 = vld [vmem:[%s952 + $0x48] sm:$0xe]
      %v2565 = vld [vmem:[%s952 + $0x4c] sm:$0xf]
      %v2566 = vld [vmem:[%s952 + $0x50] sm:$0x1]
      %v2567 = vld [vmem:[%s952 + $0x54] sm:$0xe]
      %v2568 = vld [vmem:[%s952 + $0x58] sm:$0xf]
      %v2569 = vld [vmem:[%s952 + $0x5c] sm:$0x1]
      %v2570 = vld [vmem:[%s952 + $0x60] sm:$0xe]
      %v2571 = vld [vmem:[%s952 + $0x64] sm:$0xf]
      %v2572 = vld [vmem:[%s952 + $0x68] sm:$0x1]
      %v2573 = vld [vmem:[%s952 + $0x6c] sm:$0xe]
      %v2574 = vld [vmem:[%s952 + $0x70] sm:$0xf]
      %v2575 = vld [vmem:[%s952 + $0x74] sm:$0x1]
      %v2576 = vld [vmem:[%s952 + $0x78] sm:$0xe]
      %v2577 = vld [vmem:[%s952 + $0x7c] sm:$0xf]
      %v2578 = vld [vmem:[%s952 + $0x80] sm:$0x1]
      %v2579 = vld [vmem:[%s952 + $0x84] sm:$0xe]
      %v2580 = vld [vmem:[%s952 + $0x88] sm:$0xf]
      %v2581 = vld [vmem:[%s952 + $0x8c] sm:$0x1]
      %v2582 = vld [vmem:[%s952 + $0x90] sm:$0xe]
      %v2583 = vld [vmem:[%s952 + $0x94] sm:$0xf]
      %v2584 = vld [vmem:[%s952 + $0x98] sm:$0x1]
      %v2585 = vld [vmem:[%s952 + $0x9c] sm:$0xe]
      %v2586 = vld [vmem:[%s952 + $0xa0] sm:$0xf]
      %v2587 = vld [vmem:[%s952 + $0xa4] sm:$0x1]
      %v2588 = vld [vmem:[%s952 + $0xa8] sm:$0xe]
      %v2589 = vld [vmem:[%s952 + $0xac] sm:$0xf]
      %v2590 = vld [vmem:[%s952 + $0xb0] sm:$0x1]
      %v2591 = vld [vmem:[%s952 + $0xb4] sm:$0xe]
      %v2592 = vld [vmem:[%s952 + $0xb8] sm:$0xf]
      %v2593 = vld [vmem:[%s952 + $0xbc] sm:$0x1]
      %v2642 = vunpack.c.l.b16 %v2546
      %v2643 = vunpack.c.l.b16 %v2547
      %v2644 = vunpack.c.l.b16 %v2548
      %v2645 = vunpack.c.l.b16 %v2549
      %v2646 = vunpack.c.l.b16 %v2550
      %v2647 = vunpack.c.l.b16 %v2551
      %v2648 = vunpack.c.l.b16 %v2552
      %v2649 = vunpack.c.l.b16 %v2553
      %v2650 = vunpack.c.l.b16 %v2554
      %v2651 = vunpack.c.l.b16 %v2555
      %v2652 = vunpack.c.l.b16 %v2556
      %v2653 = vunpack.c.l.b16 %v2557
      %v2654 = vunpack.c.l.b16 %v2558
      %v2655 = vunpack.c.l.b16 %v2559
      %v2656 = vunpack.c.l.b16 %v2560
      %v2657 = vunpack.c.l.b16 %v2561
      %v2658 = vunpack.c.l.b16 %v2562
      %v2659 = vunpack.c.l.b16 %v2563
      %v2660 = vunpack.c.l.b16 %v2564
      %v2661 = vunpack.c.l.b16 %v2565
      %v2662 = vunpack.c.l.b16 %v2566
      %v2663 = vunpack.c.l.b16 %v2567
      %v2664 = vunpack.c.l.b16 %v2568
      %v2665 = vunpack.c.l.b16 %v2569
      %v2666 = vunpack.c.l.b16 %v2570
      %v2667 = vunpack.c.l.b16 %v2571
      %v2668 = vunpack.c.l.b16 %v2572
      %v2669 = vunpack.c.l.b16 %v2573
      %v2670 = vunpack.c.l.b16 %v2574
      %v2671 = vunpack.c.l.b16 %v2575
      %v2672 = vunpack.c.l.b16 %v2576
      %v2673 = vunpack.c.l.b16 %v2577
      %v2674 = vunpack.c.l.b16 %v2578
      %v2675 = vunpack.c.l.b16 %v2579
      %v2676 = vunpack.c.l.b16 %v2580
      %v2677 = vunpack.c.l.b16 %v2581
      %v2678 = vunpack.c.l.b16 %v2582
      %v2679 = vunpack.c.l.b16 %v2583
      %v2680 = vunpack.c.l.b16 %v2584
      %v2681 = vunpack.c.l.b16 %v2585
      %v2682 = vunpack.c.l.b16 %v2586
      %v2683 = vunpack.c.l.b16 %v2587
      %v2684 = vunpack.c.l.b16 %v2588
      %v2685 = vunpack.c.l.b16 %v2589
      %v2686 = vunpack.c.l.b16 %v2590
      %v2687 = vunpack.c.l.b16 %v2591
      %v2688 = vunpack.c.l.b16 %v2592
      %v2689 = vunpack.c.l.b16 %v2593
      %v2690 = vpack.c.b16 %v2643, %v2642
      %v2691 = vpack.c.b16 %v2644, %v2644
      %v2692 = vpack.c.b16 %v2646, %v2645
      %v2693 = vpack.c.b16 %v2647, %v2647
      %v2694 = vpack.c.b16 %v2649, %v2648
      %v2695 = vpack.c.b16 %v2650, %v2650
      %v2696 = vpack.c.b16 %v2652, %v2651
      %v2697 = vpack.c.b16 %v2653, %v2653
      %v2698 = vpack.c.b16 %v2655, %v2654
      %v2699 = vpack.c.b16 %v2656, %v2656
      %v2700 = vpack.c.b16 %v2658, %v2657
      %v2701 = vpack.c.b16 %v2659, %v2659
      %v2702 = vpack.c.b16 %v2661, %v2660
      %v2703 = vpack.c.b16 %v2662, %v2662
      %v2704 = vpack.c.b16 %v2664, %v2663
      %v2705 = vpack.c.b16 %v2665, %v2665
      %v2706 = vpack.c.b16 %v2667, %v2666
      %v2707 = vpack.c.b16 %v2668, %v2668
      %v2708 = vpack.c.b16 %v2670, %v2669
      %v2709 = vpack.c.b16 %v2671, %v2671
      %v2710 = vpack.c.b16 %v2673, %v2672
      %v2711 = vpack.c.b16 %v2674, %v2674
      %v2712 = vpack.c.b16 %v2676, %v2675
      %v2713 = vpack.c.b16 %v2677, %v2677
      %v2714 = vpack.c.b16 %v2679, %v2678
      %v2715 = vpack.c.b16 %v2680, %v2680
      %v2716 = vpack.c.b16 %v2682, %v2681
      %v2717 = vpack.c.b16 %v2683, %v2683
      %v2718 = vpack.c.b16 %v2685, %v2684
      %v2719 = vpack.c.b16 %v2686, %v2686
      %v2720 = vpack.c.b16 %v2688, %v2687
      %v2721 = vpack.c.b16 %v2689, %v2689
      %v2722 = vrot.slane %v2690, 1
      %v2723 = vrot.slane %v2691, 1
      %v2724 = vsel %vm1822, %v2722, %v2723
      %v2725 = vrot.slane %v2692, 1
      %v2726 = vrot.slane %v2693, 1
      %v2727 = vsel %vm1822, %v2725, %v2726
      %v2728 = vrot.slane %v2694, 1
      %v2729 = vrot.slane %v2695, 1
      %v2730 = vsel %vm1822, %v2728, %v2729
      %v2731 = vrot.slane %v2696, 1
      %v2732 = vrot.slane %v2697, 1
      %v2733 = vsel %vm1822, %v2731, %v2732
      %v2734 = vrot.slane %v2698, 1
      %v2735 = vrot.slane %v2699, 1
      %v2736 = vsel %vm1822, %v2734, %v2735
      %v2737 = vrot.slane %v2700, 1
      %v2738 = vrot.slane %v2701, 1
      %v2739 = vsel %vm1822, %v2737, %v2738
      %v2740 = vrot.slane %v2702, 1
      %v2741 = vrot.slane %v2703, 1
      %v2742 = vsel %vm1822, %v2740, %v2741
      %v2743 = vrot.slane %v2704, 1
      %v2744 = vrot.slane %v2705, 1
      %v2745 = vsel %vm1822, %v2743, %v2744
      %v2746 = vrot.slane %v2706, 1
      %v2747 = vrot.slane %v2707, 1
      %v2748 = vsel %vm1822, %v2746, %v2747
      %v2749 = vrot.slane %v2708, 1
      %v2750 = vrot.slane %v2709, 1
      %v2751 = vsel %vm1822, %v2749, %v2750
      %v2752 = vrot.slane %v2710, 1
      %v2753 = vrot.slane %v2711, 1
      %v2754 = vsel %vm1822, %v2752, %v2753
      %v2755 = vrot.slane %v2712, 1
      %v2756 = vrot.slane %v2713, 1
      %v2757 = vsel %vm1822, %v2755, %v2756
      %v2758 = vrot.slane %v2714, 1
      %v2759 = vrot.slane %v2715, 1
      %v2760 = vsel %vm1822, %v2758, %v2759
      %v2761 = vrot.slane %v2716, 1
      %v2762 = vrot.slane %v2717, 1
      %v2763 = vsel %vm1822, %v2761, %v2762
      %v2764 = vrot.slane %v2718, 1
      %v2765 = vrot.slane %v2719, 1
      %v2766 = vsel %vm1822, %v2764, %v2765
      %v2767 = vrot.slane %v2720, 1
      %v2768 = vrot.slane %v2721, 1
      %v2769 = vsel %vm1822, %v2767, %v2768
      %2770 = vrot.lane.b32.xlu0 %v2724, 20
      %v2771 = vpop.permute.xlu0 %2770
      %2772 = vrot.lane.b32.xlu0 %v2727, 20
      %v2773 = vpop.permute.xlu0 %2772
      %2774 = vrot.lane.b32.xlu0 %v2730, 20
      %v2775 = vpop.permute.xlu0 %2774
      %2776 = vrot.lane.b32.xlu0 %v2733, 20
      %v2777 = vpop.permute.xlu0 %2776
      %2778 = vrot.lane.b32.xlu0 %v2736, 20
      %v2779 = vpop.permute.xlu0 %2778
      %2780 = vrot.lane.b32.xlu0 %v2739, 20
      %v2781 = vpop.permute.xlu0 %2780
      %2782 = vrot.lane.b32.xlu0 %v2742, 20
      %v2783 = vpop.permute.xlu0 %2782
      %2784 = vrot.lane.b32.xlu0 %v2745, 20
      %v2785 = vpop.permute.xlu0 %2784
      %2786 = vrot.lane.b32.xlu0 %v2748, 20
      %v2787 = vpop.permute.xlu0 %2786
      %2788 = vrot.lane.b32.xlu0 %v2751, 20
      %v2789 = vpop.permute.xlu0 %2788
      %2790 = vrot.lane.b32.xlu0 %v2754, 20
      %v2791 = vpop.permute.xlu0 %2790
      %2792 = vrot.lane.b32.xlu0 %v2757, 20
      %v2793 = vpop.permute.xlu0 %2792
      %2794 = vrot.lane.b32.xlu0 %v2760, 20
      %v2795 = vpop.permute.xlu0 %2794
      %2796 = vrot.lane.b32.xlu0 %v2763, 20
      %v2797 = vpop.permute.xlu0 %2796
      %2798 = vrot.lane.b32.xlu0 %v2766, 20
      %v2799 = vpop.permute.xlu0 %2798
      %2800 = vrot.lane.b32.xlu0 %v2769, 20
      %v2801 = vpop.permute.xlu0 %2800
      %vm2818 = vcmask 195744
      %2819 = vst.msk [vmem:[#allocation3] sm:$0xff] %vm2818, %v2771
      %2820 = vst.msk [vmem:[#allocation3 + $0x8] sm:$0xff] %vm2818, %v2773
      %2821 = vst.msk [vmem:[#allocation3 + $0x10] sm:$0xff] %vm2818, %v2775
      %2822 = vst.msk [vmem:[#allocation3 + $0x18] sm:$0xff] %vm2818, %v2777
      %2823 = vst.msk [vmem:[#allocation3 + $0x20] sm:$0xff] %vm2818, %v2779
      %2824 = vst.msk [vmem:[#allocation3 + $0x28] sm:$0xff] %vm2818, %v2781
      %2825 = vst.msk [vmem:[#allocation3 + $0x30] sm:$0xff] %vm2818, %v2783
      %2826 = vst.msk [vmem:[#allocation3 + $0x38] sm:$0xff] %vm2818, %v2785
      %2827 = vst.msk [vmem:[#allocation3 + $0x40] sm:$0xff] %vm2818, %v2787
      %2828 = vst.msk [vmem:[#allocation3 + $0x48] sm:$0xff] %vm2818, %v2789
      %2829 = vst.msk [vmem:[#allocation3 + $0x50] sm:$0xff] %vm2818, %v2791
      %2830 = vst.msk [vmem:[#allocation3 + $0x58] sm:$0xff] %vm2818, %v2793
      %2831 = vst.msk [vmem:[#allocation3 + $0x60] sm:$0xff] %vm2818, %v2795
      %2832 = vst.msk [vmem:[#allocation3 + $0x68] sm:$0xff] %vm2818, %v2797
      %2833 = vst.msk [vmem:[#allocation3 + $0x70] sm:$0xff] %vm2818, %v2799
      %2834 = vst.msk [vmem:[#allocation3 + $0x78] sm:$0xff] %vm2818, %v2801
      %s2835 = scalar_lea.vmem [#allocation2], 24
      %v2836 = vld [vmem:[%s2835] sm:$0xf]
      %v2837 = vld [vmem:[%s2835 + $0x4] sm:$0xf]
      %v2838 = vld [vmem:[%s2835 + $0xc] sm:$0xf]
      %v2839 = vld [vmem:[%s2835 + $0x10] sm:$0xf]
      %v2840 = vld [vmem:[%s2835 + $0x18] sm:$0xf]
      %v2841 = vld [vmem:[%s2835 + $0x1c] sm:$0xf]
      %v2842 = vld [vmem:[%s2835 + $0x24] sm:$0xf]
      %v2843 = vld [vmem:[%s2835 + $0x28] sm:$0xf]
      %v2844 = vld [vmem:[%s2835 + $0x30] sm:$0xf]
      %v2845 = vld [vmem:[%s2835 + $0x34] sm:$0xf]
      %v2846 = vld [vmem:[%s2835 + $0x3c] sm:$0xf]
      %v2847 = vld [vmem:[%s2835 + $0x40] sm:$0xf]
      %v2848 = vld [vmem:[%s2835 + $0x48] sm:$0xf]
      %v2849 = vld [vmem:[%s2835 + $0x4c] sm:$0xf]
      %v2850 = vld [vmem:[%s2835 + $0x54] sm:$0xf]
      %v2851 = vld [vmem:[%s2835 + $0x58] sm:$0xf]
      %v2852 = vld [vmem:[%s2835 + $0x60] sm:$0xf]
      %v2853 = vld [vmem:[%s2835 + $0x64] sm:$0xf]
      %v2854 = vld [vmem:[%s2835 + $0x6c] sm:$0xf]
      %v2855 = vld [vmem:[%s2835 + $0x70] sm:$0xf]
      %v2856 = vld [vmem:[%s2835 + $0x78] sm:$0xf]
      %v2857 = vld [vmem:[%s2835 + $0x7c] sm:$0xf]
      %v2858 = vld [vmem:[%s2835 + $0x84] sm:$0xf]
      %v2859 = vld [vmem:[%s2835 + $0x88] sm:$0xf]
      %v2860 = vld [vmem:[%s2835 + $0x90] sm:$0xf]
      %v2861 = vld [vmem:[%s2835 + $0x94] sm:$0xf]
      %v2862 = vld [vmem:[%s2835 + $0x9c] sm:$0xf]
      %v2863 = vld [vmem:[%s2835 + $0xa0] sm:$0xf]
      %v2864 = vld [vmem:[%s2835 + $0xa8] sm:$0xf]
      %v2865 = vld [vmem:[%s2835 + $0xac] sm:$0xf]
      %v2866 = vld [vmem:[%s2835 + $0xb4] sm:$0xf]
      %v2867 = vld [vmem:[%s2835 + $0xb8] sm:$0xf]
      %v2900 = vunpack.c.l.b16 %v2836
      %v2901 = vunpack.c.l.b16 %v2837
      %v2902 = vunpack.c.l.b16 %v2838
      %v2903 = vunpack.c.l.b16 %v2839
      %v2904 = vunpack.c.l.b16 %v2840
      %v2905 = vunpack.c.l.b16 %v2841
      %v2906 = vunpack.c.l.b16 %v2842
      %v2907 = vunpack.c.l.b16 %v2843
      %v2908 = vunpack.c.l.b16 %v2844
      %v2909 = vunpack.c.l.b16 %v2845
      %v2910 = vunpack.c.l.b16 %v2846
      %v2911 = vunpack.c.l.b16 %v2847
      %v2912 = vunpack.c.l.b16 %v2848
      %v2913 = vunpack.c.l.b16 %v2849
      %v2914 = vunpack.c.l.b16 %v2850
      %v2915 = vunpack.c.l.b16 %v2851
      %v2916 = vunpack.c.l.b16 %v2852
      %v2917 = vunpack.c.l.b16 %v2853
      %v2918 = vunpack.c.l.b16 %v2854
      %v2919 = vunpack.c.l.b16 %v2855
      %v2920 = vunpack.c.l.b16 %v2856
      %v2921 = vunpack.c.l.b16 %v2857
      %v2922 = vunpack.c.l.b16 %v2858
      %v2923 = vunpack.c.l.b16 %v2859
      %v2924 = vunpack.c.l.b16 %v2860
      %v2925 = vunpack.c.l.b16 %v2861
      %v2926 = vunpack.c.l.b16 %v2862
      %v2927 = vunpack.c.l.b16 %v2863
      %v2928 = vunpack.c.l.b16 %v2864
      %v2929 = vunpack.c.l.b16 %v2865
      %v2930 = vunpack.c.l.b16 %v2866
      %v2931 = vunpack.c.l.b16 %v2867
      %v2932 = vpack.c.b16 %v2901, %v2900
      %v2933 = vpack.c.b16 %v2903, %v2902
      %v2934 = vpack.c.b16 %v2905, %v2904
      %v2935 = vpack.c.b16 %v2907, %v2906
      %v2936 = vpack.c.b16 %v2909, %v2908
      %v2937 = vpack.c.b16 %v2911, %v2910
      %v2938 = vpack.c.b16 %v2913, %v2912
      %v2939 = vpack.c.b16 %v2915, %v2914
      %v2940 = vpack.c.b16 %v2917, %v2916
      %v2941 = vpack.c.b16 %v2919, %v2918
      %v2942 = vpack.c.b16 %v2921, %v2920
      %v2943 = vpack.c.b16 %v2923, %v2922
      %v2944 = vpack.c.b16 %v2925, %v2924
      %v2945 = vpack.c.b16 %v2927, %v2926
      %v2946 = vpack.c.b16 %v2929, %v2928
      %v2947 = vpack.c.b16 %v2931, %v2930
      %2948 = vrot.lane.b32.xlu0 %v2932, 24
      %v2949 = vpop.permute.xlu0 %2948
      %2950 = vrot.lane.b32.xlu0 %v2933, 24
      %v2951 = vpop.permute.xlu0 %2950
      %2952 = vrot.lane.b32.xlu0 %v2934, 24
      %v2953 = vpop.permute.xlu0 %2952
      %2954 = vrot.lane.b32.xlu0 %v2935, 24
      %v2955 = vpop.permute.xlu0 %2954
      %2956 = vrot.lane.b32.xlu0 %v2936, 24
      %v2957 = vpop.permute.xlu0 %2956
      %2958 = vrot.lane.b32.xlu0 %v2937, 24
      %v2959 = vpop.permute.xlu0 %2958
      %2960 = vrot.lane.b32.xlu0 %v2938, 24
      %v2961 = vpop.permute.xlu0 %2960
      %2962 = vrot.lane.b32.xlu0 %v2939, 24
      %v2963 = vpop.permute.xlu0 %2962
      %2964 = vrot.lane.b32.xlu0 %v2940, 24
      %v2965 = vpop.permute.xlu0 %2964
      %2966 = vrot.lane.b32.xlu0 %v2941, 24
      %v2967 = vpop.permute.xlu0 %2966
      %2968 = vrot.lane.b32.xlu0 %v2942, 24
      %v2969 = vpop.permute.xlu0 %2968
      %2970 = vrot.lane.b32.xlu0 %v2943, 24
      %v2971 = vpop.permute.xlu0 %2970
      %2972 = vrot.lane.b32.xlu0 %v2944, 24
      %v2973 = vpop.permute.xlu0 %2972
      %2974 = vrot.lane.b32.xlu0 %v2945, 24
      %v2975 = vpop.permute.xlu0 %2974
      %2976 = vrot.lane.b32.xlu0 %v2946, 24
      %v2977 = vpop.permute.xlu0 %2976
      %2978 = vrot.lane.b32.xlu0 %v2947, 24
      %v2979 = vpop.permute.xlu0 %2978
      %vm2996 = vcmask 228544
      %2997 = vst.msk [vmem:[#allocation3] sm:$0xff] %vm2996, %v2949
      %2998 = vst.msk [vmem:[#allocation3 + $0x8] sm:$0xff] %vm2996, %v2951
      %2999 = vst.msk [vmem:[#allocation3 + $0x10] sm:$0xff] %vm2996, %v2953
      %3000 = vst.msk [vmem:[#allocation3 + $0x18] sm:$0xff] %vm2996, %v2955
      %3001 = vst.msk [vmem:[#allocation3 + $0x20] sm:$0xff] %vm2996, %v2957
      %3002 = vst.msk [vmem:[#allocation3 + $0x28] sm:$0xff] %vm2996, %v2959
      %3003 = vst.msk [vmem:[#allocation3 + $0x30] sm:$0xff] %vm2996, %v2961
      %3004 = vst.msk [vmem:[#allocation3 + $0x38] sm:$0xff] %vm2996, %v2963
      %3005 = vst.msk [vmem:[#allocation3 + $0x40] sm:$0xff] %vm2996, %v2965
      %3006 = vst.msk [vmem:[#allocation3 + $0x48] sm:$0xff] %vm2996, %v2967
      %3007 = vst.msk [vmem:[#allocation3 + $0x50] sm:$0xff] %vm2996, %v2969
      %3008 = vst.msk [vmem:[#allocation3 + $0x58] sm:$0xff] %vm2996, %v2971
      %3009 = vst.msk [vmem:[#allocation3 + $0x60] sm:$0xff] %vm2996, %v2973
      %3010 = vst.msk [vmem:[#allocation3 + $0x68] sm:$0xff] %vm2996, %v2975
      %3011 = vst.msk [vmem:[#allocation3 + $0x70] sm:$0xff] %vm2996, %v2977
      %3012 = vst.msk [vmem:[#allocation3 + $0x78] sm:$0xff] %vm2996, %v2979
      %v3013 = vld [vmem:[%s2835] sm:$0xf]
      %v3014 = vld [vmem:[%s2835 + $0x4] sm:$0xf]
      %v3015 = vld [vmem:[%s2835 + $0x8] sm:$0x1]
      %v3016 = vld [vmem:[%s2835 + $0xc] sm:$0xf]
      %v3017 = vld [vmem:[%s2835 + $0x10] sm:$0xf]
      %v3018 = vld [vmem:[%s2835 + $0x14] sm:$0x1]
      %v3019 = vld [vmem:[%s2835 + $0x18] sm:$0xf]
      %v3020 = vld [vmem:[%s2835 + $0x1c] sm:$0xf]
      %v3021 = vld [vmem:[%s2835 + $0x20] sm:$0x1]
      %v3022 = vld [vmem:[%s2835 + $0x24] sm:$0xf]
      %v3023 = vld [vmem:[%s2835 + $0x28] sm:$0xf]
      %v3024 = vld [vmem:[%s2835 + $0x2c] sm:$0x1]
      %v3025 = vld [vmem:[%s2835 + $0x30] sm:$0xf]
      %v3026 = vld [vmem:[%s2835 + $0x34] sm:$0xf]
      %v3027 = vld [vmem:[%s2835 + $0x38] sm:$0x1]
      %v3028 = vld [vmem:[%s2835 + $0x3c] sm:$0xf]
      %v3029 = vld [vmem:[%s2835 + $0x40] sm:$0xf]
      %v3030 = vld [vmem:[%s2835 + $0x44] sm:$0x1]
      %v3031 = vld [vmem:[%s2835 + $0x48] sm:$0xf]
      %v3032 = vld [vmem:[%s2835 + $0x4c] sm:$0xf]
      %v3033 = vld [vmem:[%s2835 + $0x50] sm:$0x1]
      %v3034 = vld [vmem:[%s2835 + $0x54] sm:$0xf]
      %v3035 = vld [vmem:[%s2835 + $0x58] sm:$0xf]
      %v3036 = vld [vmem:[%s2835 + $0x5c] sm:$0x1]
      %v3037 = vld [vmem:[%s2835 + $0x60] sm:$0xf]
      %v3038 = vld [vmem:[%s2835 + $0x64] sm:$0xf]
      %v3039 = vld [vmem:[%s2835 + $0x68] sm:$0x1]
      %v3040 = vld [vmem:[%s2835 + $0x6c] sm:$0xf]
      %v3041 = vld [vmem:[%s2835 + $0x70] sm:$0xf]
      %v3042 = vld [vmem:[%s2835 + $0x74] sm:$0x1]
      %v3043 = vld [vmem:[%s2835 + $0x78] sm:$0xf]
      %v3044 = vld [vmem:[%s2835 + $0x7c] sm:$0xf]
      %v3045 = vld [vmem:[%s2835 + $0x80] sm:$0x1]
      %v3046 = vld [vmem:[%s2835 + $0x84] sm:$0xf]
      %v3047 = vld [vmem:[%s2835 + $0x88] sm:$0xf]
      %v3048 = vld [vmem:[%s2835 + $0x8c] sm:$0x1]
      %v3049 = vld [vmem:[%s2835 + $0x90] sm:$0xf]
      %v3050 = vld [vmem:[%s2835 + $0x94] sm:$0xf]
      %v3051 = vld [vmem:[%s2835 + $0x98] sm:$0x1]
      %v3052 = vld [vmem:[%s2835 + $0x9c] sm:$0xf]
      %v3053 = vld [vmem:[%s2835 + $0xa0] sm:$0xf]
      %v3054 = vld [vmem:[%s2835 + $0xa4] sm:$0x1]
      %v3055 = vld [vmem:[%s2835 + $0xa8] sm:$0xf]
      %v3056 = vld [vmem:[%s2835 + $0xac] sm:$0xf]
      %v3057 = vld [vmem:[%s2835 + $0xb0] sm:$0x1]
      %v3058 = vld [vmem:[%s2835 + $0xb4] sm:$0xf]
      %v3059 = vld [vmem:[%s2835 + $0xb8] sm:$0xf]
      %v3060 = vld [vmem:[%s2835 + $0xbc] sm:$0x1]
      %v3109 = vunpack.c.l.b16 %v3013
      %v3110 = vunpack.c.l.b16 %v3014
      %v3111 = vunpack.c.l.b16 %v3015
      %v3112 = vunpack.c.l.b16 %v3016
      %v3113 = vunpack.c.l.b16 %v3017
      %v3114 = vunpack.c.l.b16 %v3018
      %v3115 = vunpack.c.l.b16 %v3019
      %v3116 = vunpack.c.l.b16 %v3020
      %v3117 = vunpack.c.l.b16 %v3021
      %v3118 = vunpack.c.l.b16 %v3022
      %v3119 = vunpack.c.l.b16 %v3023
      %v3120 = vunpack.c.l.b16 %v3024
      %v3121 = vunpack.c.l.b16 %v3025
      %v3122 = vunpack.c.l.b16 %v3026
      %v3123 = vunpack.c.l.b16 %v3027
      %v3124 = vunpack.c.l.b16 %v3028
      %v3125 = vunpack.c.l.b16 %v3029
      %v3126 = vunpack.c.l.b16 %v3030
      %v3127 = vunpack.c.l.b16 %v3031
      %v3128 = vunpack.c.l.b16 %v3032
      %v3129 = vunpack.c.l.b16 %v3033
      %v3130 = vunpack.c.l.b16 %v3034
      %v3131 = vunpack.c.l.b16 %v3035
      %v3132 = vunpack.c.l.b16 %v3036
      %v3133 = vunpack.c.l.b16 %v3037
      %v3134 = vunpack.c.l.b16 %v3038
      %v3135 = vunpack.c.l.b16 %v3039
      %v3136 = vunpack.c.l.b16 %v3040
      %v3137 = vunpack.c.l.b16 %v3041
      %v3138 = vunpack.c.l.b16 %v3042
      %v3139 = vunpack.c.l.b16 %v3043
      %v3140 = vunpack.c.l.b16 %v3044
      %v3141 = vunpack.c.l.b16 %v3045
      %v3142 = vunpack.c.l.b16 %v3046
      %v3143 = vunpack.c.l.b16 %v3047
      %v3144 = vunpack.c.l.b16 %v3048
      %v3145 = vunpack.c.l.b16 %v3049
      %v3146 = vunpack.c.l.b16 %v3050
      %v3147 = vunpack.c.l.b16 %v3051
      %v3148 = vunpack.c.l.b16 %v3052
      %v3149 = vunpack.c.l.b16 %v3053
      %v3150 = vunpack.c.l.b16 %v3054
      %v3151 = vunpack.c.l.b16 %v3055
      %v3152 = vunpack.c.l.b16 %v3056
      %v3153 = vunpack.c.l.b16 %v3057
      %v3154 = vunpack.c.l.b16 %v3058
      %v3155 = vunpack.c.l.b16 %v3059
      %v3156 = vunpack.c.l.b16 %v3060
      %v3157 = vpack.c.b16 %v3110, %v3109
      %v3158 = vpack.c.b16 %v3111, %v3111
      %v3159 = vpack.c.b16 %v3113, %v3112
      %v3160 = vpack.c.b16 %v3114, %v3114
      %v3161 = vpack.c.b16 %v3116, %v3115
      %v3162 = vpack.c.b16 %v3117, %v3117
      %v3163 = vpack.c.b16 %v3119, %v3118
      %v3164 = vpack.c.b16 %v3120, %v3120
      %v3165 = vpack.c.b16 %v3122, %v3121
      %v3166 = vpack.c.b16 %v3123, %v3123
      %v3167 = vpack.c.b16 %v3125, %v3124
      %v3168 = vpack.c.b16 %v3126, %v3126
      %v3169 = vpack.c.b16 %v3128, %v3127
      %v3170 = vpack.c.b16 %v3129, %v3129
      %v3171 = vpack.c.b16 %v3131, %v3130
      %v3172 = vpack.c.b16 %v3132, %v3132
      %v3173 = vpack.c.b16 %v3134, %v3133
      %v3174 = vpack.c.b16 %v3135, %v3135
      %v3175 = vpack.c.b16 %v3137, %v3136
      %v3176 = vpack.c.b16 %v3138, %v3138
      %v3177 = vpack.c.b16 %v3140, %v3139
      %v3178 = vpack.c.b16 %v3141, %v3141
      %v3179 = vpack.c.b16 %v3143, %v3142
      %v3180 = vpack.c.b16 %v3144, %v3144
      %v3181 = vpack.c.b16 %v3146, %v3145
      %v3182 = vpack.c.b16 %v3147, %v3147
      %v3183 = vpack.c.b16 %v3149, %v3148
      %v3184 = vpack.c.b16 %v3150, %v3150
      %v3185 = vpack.c.b16 %v3152, %v3151
      %v3186 = vpack.c.b16 %v3153, %v3153
      %v3187 = vpack.c.b16 %v3155, %v3154
      %v3188 = vpack.c.b16 %v3156, %v3156
      %v3190 = vshrl.u32 %v3157, 16
      %v3192 = vshll.u32 %v3157, 16
      %v3194 = vrot.slane %v3192, 1
      %v3195 = vor.u32 %v3190, %v3194
      %v3197 = vshll.u32 %v3158, 16
      %v3199 = vrot.slane %v3197, 1
      %v3200 = vsel %vm1388, %v3195, %v3199
      %v3202 = vshrl.u32 %v3159, 16
      %v3204 = vshll.u32 %v3159, 16
      %v3206 = vrot.slane %v3204, 1
      %v3207 = vor.u32 %v3202, %v3206
      %v3209 = vshll.u32 %v3160, 16
      %v3211 = vrot.slane %v3209, 1
      %v3212 = vsel %vm1388, %v3207, %v3211
      %v3214 = vshrl.u32 %v3161, 16
      %v3216 = vshll.u32 %v3161, 16
      %v3218 = vrot.slane %v3216, 1
      %v3219 = vor.u32 %v3214, %v3218
      %v3221 = vshll.u32 %v3162, 16
      %v3223 = vrot.slane %v3221, 1
      %v3224 = vsel %vm1388, %v3219, %v3223
      %v3226 = vshrl.u32 %v3163, 16
      %v3228 = vshll.u32 %v3163, 16
      %v3230 = vrot.slane %v3228, 1
      %v3231 = vor.u32 %v3226, %v3230
      %v3233 = vshll.u32 %v3164, 16
      %v3235 = vrot.slane %v3233, 1
      %v3236 = vsel %vm1388, %v3231, %v3235
      %v3238 = vshrl.u32 %v3165, 16
      %v3240 = vshll.u32 %v3165, 16
      %v3242 = vrot.slane %v3240, 1
      %v3243 = vor.u32 %v3238, %v3242
      %v3245 = vshll.u32 %v3166, 16
      %v3247 = vrot.slane %v3245, 1
      %v3248 = vsel %vm1388, %v3243, %v3247
      %v3250 = vshrl.u32 %v3167, 16
      %v3252 = vshll.u32 %v3167, 16
      %v3254 = vrot.slane %v3252, 1
      %v3255 = vor.u32 %v3250, %v3254
      %v3257 = vshll.u32 %v3168, 16
      %v3259 = vrot.slane %v3257, 1
      %v3260 = vsel %vm1388, %v3255, %v3259
      %v3262 = vshrl.u32 %v3169, 16
      %v3264 = vshll.u32 %v3169, 16
      %v3266 = vrot.slane %v3264, 1
      %v3267 = vor.u32 %v3262, %v3266
      %v3269 = vshll.u32 %v3170, 16
      %v3271 = vrot.slane %v3269, 1
      %v3272 = vsel %vm1388, %v3267, %v3271
      %v3274 = vshrl.u32 %v3171, 16
      %v3276 = vshll.u32 %v3171, 16
      %v3278 = vrot.slane %v3276, 1
      %v3279 = vor.u32 %v3274, %v3278
      %v3281 = vshll.u32 %v3172, 16
      %v3283 = vrot.slane %v3281, 1
      %v3284 = vsel %vm1388, %v3279, %v3283
      %v3286 = vshrl.u32 %v3173, 16
      %v3288 = vshll.u32 %v3173, 16
      %v3290 = vrot.slane %v3288, 1
      %v3291 = vor.u32 %v3286, %v3290
      %v3293 = vshll.u32 %v3174, 16
      %v3295 = vrot.slane %v3293, 1
      %v3296 = vsel %vm1388, %v3291, %v3295
      %v3298 = vshrl.u32 %v3175, 16
      %v3300 = vshll.u32 %v3175, 16
      %v3302 = vrot.slane %v3300, 1
      %v3303 = vor.u32 %v3298, %v3302
      %v3305 = vshll.u32 %v3176, 16
      %v3307 = vrot.slane %v3305, 1
      %v3308 = vsel %vm1388, %v3303, %v3307
      %v3310 = vshrl.u32 %v3177, 16
      %v3312 = vshll.u32 %v3177, 16
      %v3314 = vrot.slane %v3312, 1
      %v3315 = vor.u32 %v3310, %v3314
      %v3317 = vshll.u32 %v3178, 16
      %v3319 = vrot.slane %v3317, 1
      %v3320 = vsel %vm1388, %v3315, %v3319
      %v3322 = vshrl.u32 %v3179, 16
      %v3324 = vshll.u32 %v3179, 16
      %v3326 = vrot.slane %v3324, 1
      %v3327 = vor.u32 %v3322, %v3326
      %v3329 = vshll.u32 %v3180, 16
      %v3331 = vrot.slane %v3329, 1
      %v3332 = vsel %vm1388, %v3327, %v3331
      %v3334 = vshrl.u32 %v3181, 16
      %v3336 = vshll.u32 %v3181, 16
      %v3338 = vrot.slane %v3336, 1
      %v3339 = vor.u32 %v3334, %v3338
      %v3341 = vshll.u32 %v3182, 16
      %v3343 = vrot.slane %v3341, 1
      %v3344 = vsel %vm1388, %v3339, %v3343
      %v3346 = vshrl.u32 %v3183, 16
      %v3348 = vshll.u32 %v3183, 16
      %v3350 = vrot.slane %v3348, 1
      %v3351 = vor.u32 %v3346, %v3350
      %v3353 = vshll.u32 %v3184, 16
      %v3355 = vrot.slane %v3353, 1
      %v3356 = vsel %vm1388, %v3351, %v3355
      %v3358 = vshrl.u32 %v3185, 16
      %v3360 = vshll.u32 %v3185, 16
      %v3362 = vrot.slane %v3360, 1
      %v3363 = vor.u32 %v3358, %v3362
      %v3365 = vshll.u32 %v3186, 16
      %v3367 = vrot.slane %v3365, 1
      %v3368 = vsel %vm1388, %v3363, %v3367
      %v3370 = vshrl.u32 %v3187, 16
      %v3372 = vshll.u32 %v3187, 16
      %v3374 = vrot.slane %v3372, 1
      %v3375 = vor.u32 %v3370, %v3374
      %v3377 = vshll.u32 %v3188, 16
      %v3379 = vrot.slane %v3377, 1
      %v3380 = vsel %vm1388, %v3375, %v3379
      %3381 = vrot.lane.b32.xlu0 %v3200, 28
      %v3382 = vpop.permute.xlu0 %3381
      %3383 = vrot.lane.b32.xlu0 %v3212, 28
      %v3384 = vpop.permute.xlu0 %3383
      %3385 = vrot.lane.b32.xlu0 %v3224, 28
      %v3386 = vpop.permute.xlu0 %3385
      %3387 = vrot.lane.b32.xlu0 %v3236, 28
      %v3388 = vpop.permute.xlu0 %3387
      %3389 = vrot.lane.b32.xlu0 %v3248, 28
      %v3390 = vpop.permute.xlu0 %3389
      %3391 = vrot.lane.b32.xlu0 %v3260, 28
      %v3392 = vpop.permute.xlu0 %3391
      %3393 = vrot.lane.b32.xlu0 %v3272, 28
      %v3394 = vpop.permute.xlu0 %3393
      %3395 = vrot.lane.b32.xlu0 %v3284, 28
      %v3396 = vpop.permute.xlu0 %3395
      %3397 = vrot.lane.b32.xlu0 %v3296, 28
      %v3398 = vpop.permute.xlu0 %3397
      %3399 = vrot.lane.b32.xlu0 %v3308, 28
      %v3400 = vpop.permute.xlu0 %3399
      %3401 = vrot.lane.b32.xlu0 %v3320, 28
      %v3402 = vpop.permute.xlu0 %3401
      %3403 = vrot.lane.b32.xlu0 %v3332, 28
      %v3404 = vpop.permute.xlu0 %3403
      %3405 = vrot.lane.b32.xlu0 %v3344, 28
      %v3406 = vpop.permute.xlu0 %3405
      %3407 = vrot.lane.b32.xlu0 %v3356, 28
      %v3408 = vpop.permute.xlu0 %3407
      %3409 = vrot.lane.b32.xlu0 %v3368, 28
      %v3410 = vpop.permute.xlu0 %3409
      %3411 = vrot.lane.b32.xlu0 %v3380, 28
      %v3412 = vpop.permute.xlu0 %3411
      %vm3429 = vcmask 261344
      %3430 = vst.msk [vmem:[#allocation3] sm:$0xff] %vm3429, %v3382
      %3431 = vst.msk [vmem:[#allocation3 + $0x8] sm:$0xff] %vm3429, %v3384
      %3432 = vst.msk [vmem:[#allocation3 + $0x10] sm:$0xff] %vm3429, %v3386
      %3433 = vst.msk [vmem:[#allocation3 + $0x18] sm:$0xff] %vm3429, %v3388
      %3434 = vst.msk [vmem:[#allocation3 + $0x20] sm:$0xff] %vm3429, %v3390
      %3435 = vst.msk [vmem:[#allocation3 + $0x28] sm:$0xff] %vm3429, %v3392
      %3436 = vst.msk [vmem:[#allocation3 + $0x30] sm:$0xff] %vm3429, %v3394
      %3437 = vst.msk [vmem:[#allocation3 + $0x38] sm:$0xff] %vm3429, %v3396
      %3438 = vst.msk [vmem:[#allocation3 + $0x40] sm:$0xff] %vm3429, %v3398
      %3439 = vst.msk [vmem:[#allocation3 + $0x48] sm:$0xff] %vm3429, %v3400
      %3440 = vst.msk [vmem:[#allocation3 + $0x50] sm:$0xff] %vm3429, %v3402
      %3441 = vst.msk [vmem:[#allocation3 + $0x58] sm:$0xff] %vm3429, %v3404
      %3442 = vst.msk [vmem:[#allocation3 + $0x60] sm:$0xff] %vm3429, %v3406
      %3443 = vst.msk [vmem:[#allocation3 + $0x68] sm:$0xff] %vm3429, %v3408
      %3444 = vst.msk [vmem:[#allocation3 + $0x70] sm:$0xff] %vm3429, %v3410
      %3445 = vst.msk [vmem:[#allocation3 + $0x78] sm:$0xff] %vm3429, %v3412
      %v3446 = vld [vmem:[%s2835] sm:$0xe]
      %v3447 = vld [vmem:[%s2835 + $0x4] sm:$0xf]
      %v3448 = vld [vmem:[%s2835 + $0x8] sm:$0x1]
      %v3449 = vld [vmem:[%s2835 + $0xc] sm:$0xe]
      %v3450 = vld [vmem:[%s2835 + $0x10] sm:$0xf]
      %v3451 = vld [vmem:[%s2835 + $0x14] sm:$0x1]
      %v3452 = vld [vmem:[%s2835 + $0x18] sm:$0xe]
      %v3453 = vld [vmem:[%s2835 + $0x1c] sm:$0xf]
      %v3454 = vld [vmem:[%s2835 + $0x20] sm:$0x1]
      %v3455 = vld [vmem:[%s2835 + $0x24] sm:$0xe]
      %v3456 = vld [vmem:[%s2835 + $0x28] sm:$0xf]
      %v3457 = vld [vmem:[%s2835 + $0x2c] sm:$0x1]
      %v3458 = vld [vmem:[%s2835 + $0x30] sm:$0xe]
      %v3459 = vld [vmem:[%s2835 + $0x34] sm:$0xf]
      %v3460 = vld [vmem:[%s2835 + $0x38] sm:$0x1]
      %v3461 = vld [vmem:[%s2835 + $0x3c] sm:$0xe]
      %v3462 = vld [vmem:[%s2835 + $0x40] sm:$0xf]
      %v3463 = vld [vmem:[%s2835 + $0x44] sm:$0x1]
      %v3464 = vld [vmem:[%s2835 + $0x48] sm:$0xe]
      %v3465 = vld [vmem:[%s2835 + $0x4c] sm:$0xf]
      %v3466 = vld [vmem:[%s2835 + $0x50] sm:$0x1]
      %v3467 = vld [vmem:[%s2835 + $0x54] sm:$0xe]
      %v3468 = vld [vmem:[%s2835 + $0x58] sm:$0xf]
      %v3469 = vld [vmem:[%s2835 + $0x5c] sm:$0x1]
      %v3470 = vld [vmem:[%s2835 + $0x60] sm:$0xe]
      %v3471 = vld [vmem:[%s2835 + $0x64] sm:$0xf]
      %v3472 = vld [vmem:[%s2835 + $0x68] sm:$0x1]
      %v3473 = vld [vmem:[%s2835 + $0x6c] sm:$0xe]
      %v3474 = vld [vmem:[%s2835 + $0x70] sm:$0xf]
      %v3475 = vld [vmem:[%s2835 + $0x74] sm:$0x1]
      %v3476 = vld [vmem:[%s2835 + $0x78] sm:$0xe]
      %v3477 = vld [vmem:[%s2835 + $0x7c] sm:$0xf]
      %v3478 = vld [vmem:[%s2835 + $0x80] sm:$0x1]
      %v3479 = vld [vmem:[%s2835 + $0x84] sm:$0xe]
      %v3480 = vld [vmem:[%s2835 + $0x88] sm:$0xf]
      %v3481 = vld [vmem:[%s2835 + $0x8c] sm:$0x1]
      %v3482 = vld [vmem:[%s2835 + $0x90] sm:$0xe]
      %v3483 = vld [vmem:[%s2835 + $0x94] sm:$0xf]
      %v3484 = vld [vmem:[%s2835 + $0x98] sm:$0x1]
      %v3485 = vld [vmem:[%s2835 + $0x9c] sm:$0xe]
      %v3486 = vld [vmem:[%s2835 + $0xa0] sm:$0xf]
      %v3487 = vld [vmem:[%s2835 + $0xa4] sm:$0x1]
      %v3488 = vld [vmem:[%s2835 + $0xa8] sm:$0xe]
      %v3489 = vld [vmem:[%s2835 + $0xac] sm:$0xf]
      %v3490 = vld [vmem:[%s2835 + $0xb0] sm:$0x1]
      %v3491 = vld [vmem:[%s2835 + $0xb4] sm:$0xe]
      %v3492 = vld [vmem:[%s2835 + $0xb8] sm:$0xf]
      %v3493 = vld [vmem:[%s2835 + $0xbc] sm:$0x1]
      %v3542 = vunpack.c.l.b16 %v3446
      %v3543 = vunpack.c.l.b16 %v3447
      %v3544 = vunpack.c.l.b16 %v3448
      %v3545 = vunpack.c.l.b16 %v3449
      %v3546 = vunpack.c.l.b16 %v3450
      %v3547 = vunpack.c.l.b16 %v3451
      %v3548 = vunpack.c.l.b16 %v3452
      %v3549 = vunpack.c.l.b16 %v3453
      %v3550 = vunpack.c.l.b16 %v3454
      %v3551 = vunpack.c.l.b16 %v3455
      %v3552 = vunpack.c.l.b16 %v3456
      %v3553 = vunpack.c.l.b16 %v3457
      %v3554 = vunpack.c.l.b16 %v3458
      %v3555 = vunpack.c.l.b16 %v3459
      %v3556 = vunpack.c.l.b16 %v3460
      %v3557 = vunpack.c.l.b16 %v3461
      %v3558 = vunpack.c.l.b16 %v3462
      %v3559 = vunpack.c.l.b16 %v3463
      %v3560 = vunpack.c.l.b16 %v3464
      %v3561 = vunpack.c.l.b16 %v3465
      %v3562 = vunpack.c.l.b16 %v3466
      %v3563 = vunpack.c.l.b16 %v3467
      %v3564 = vunpack.c.l.b16 %v3468
      %v3565 = vunpack.c.l.b16 %v3469
      %v3566 = vunpack.c.l.b16 %v3470
      %v3567 = vunpack.c.l.b16 %v3471
      %v3568 = vunpack.c.l.b16 %v3472
      %v3569 = vunpack.c.l.b16 %v3473
      %v3570 = vunpack.c.l.b16 %v3474
      %v3571 = vunpack.c.l.b16 %v3475
      %v3572 = vunpack.c.l.b16 %v3476
      %v3573 = vunpack.c.l.b16 %v3477
      %v3574 = vunpack.c.l.b16 %v3478
      %v3575 = vunpack.c.l.b16 %v3479
      %v3576 = vunpack.c.l.b16 %v3480
      %v3577 = vunpack.c.l.b16 %v3481
      %v3578 = vunpack.c.l.b16 %v3482
      %v3579 = vunpack.c.l.b16 %v3483
      %v3580 = vunpack.c.l.b16 %v3484
      %v3581 = vunpack.c.l.b16 %v3485
      %v3582 = vunpack.c.l.b16 %v3486
      %v3583 = vunpack.c.l.b16 %v3487
      %v3584 = vunpack.c.l.b16 %v3488
      %v3585 = vunpack.c.l.b16 %v3489
      %v3586 = vunpack.c.l.b16 %v3490
      %v3587 = vunpack.c.l.b16 %v3491
      %v3588 = vunpack.c.l.b16 %v3492
      %v3589 = vunpack.c.l.b16 %v3493
      %v3590 = vpack.c.b16 %v3543, %v3542
      %v3591 = vpack.c.b16 %v3544, %v3544
      %v3592 = vpack.c.b16 %v3546, %v3545
      %v3593 = vpack.c.b16 %v3547, %v3547
      %v3594 = vpack.c.b16 %v3549, %v3548
      %v3595 = vpack.c.b16 %v3550, %v3550
      %v3596 = vpack.c.b16 %v3552, %v3551
      %v3597 = vpack.c.b16 %v3553, %v3553
      %v3598 = vpack.c.b16 %v3555, %v3554
      %v3599 = vpack.c.b16 %v3556, %v3556
      %v3600 = vpack.c.b16 %v3558, %v3557
      %v3601 = vpack.c.b16 %v3559, %v3559
      %v3602 = vpack.c.b16 %v3561, %v3560
      %v3603 = vpack.c.b16 %v3562, %v3562
      %v3604 = vpack.c.b16 %v3564, %v3563
      %v3605 = vpack.c.b16 %v3565, %v3565
      %v3606 = vpack.c.b16 %v3567, %v3566
      %v3607 = vpack.c.b16 %v3568, %v3568
      %v3608 = vpack.c.b16 %v3570, %v3569
      %v3609 = vpack.c.b16 %v3571, %v3571
      %v3610 = vpack.c.b16 %v3573, %v3572
      %v3611 = vpack.c.b16 %v3574, %v3574
      %v3612 = vpack.c.b16 %v3576, %v3575
      %v3613 = vpack.c.b16 %v3577, %v3577
      %v3614 = vpack.c.b16 %v3579, %v3578
      %v3615 = vpack.c.b16 %v3580, %v3580
      %v3616 = vpack.c.b16 %v3582, %v3581
      %v3617 = vpack.c.b16 %v3583, %v3583
      %v3618 = vpack.c.b16 %v3585, %v3584
      %v3619 = vpack.c.b16 %v3586, %v3586
      %v3620 = vpack.c.b16 %v3588, %v3587
      %v3621 = vpack.c.b16 %v3589, %v3589
      %v3622 = vrot.slane %v3590, 1
      %v3623 = vrot.slane %v3591, 1
      %v3624 = vsel %vm1822, %v3622, %v3623
      %v3625 = vrot.slane %v3592, 1
      %v3626 = vrot.slane %v3593, 1
      %v3627 = vsel %vm1822, %v3625, %v3626
      %v3628 = vrot.slane %v3594, 1
      %v3629 = vrot.slane %v3595, 1
      %v3630 = vsel %vm1822, %v3628, %v3629
      %v3631 = vrot.slane %v3596, 1
      %v3632 = vrot.slane %v3597, 1
      %v3633 = vsel %vm1822, %v3631, %v3632
      %v3634 = vrot.slane %v3598, 1
      %v3635 = vrot.slane %v3599, 1
      %v3636 = vsel %vm1822, %v3634, %v3635
      %v3637 = vrot.slane %v3600, 1
      %v3638 = vrot.slane %v3601, 1
      %v3639 = vsel %vm1822, %v3637, %v3638
      %v3640 = vrot.slane %v3602, 1
      %v3641 = vrot.slane %v3603, 1
      %v3642 = vsel %vm1822, %v3640, %v3641
      %v3643 = vrot.slane %v3604, 1
      %v3644 = vrot.slane %v3605, 1
      %v3645 = vsel %vm1822, %v3643, %v3644
      %v3646 = vrot.slane %v3606, 1
      %v3647 = vrot.slane %v3607, 1
      %v3648 = vsel %vm1822, %v3646, %v3647
      %v3649 = vrot.slane %v3608, 1
      %v3650 = vrot.slane %v3609, 1
      %v3651 = vsel %vm1822, %v3649, %v3650
      %v3652 = vrot.slane %v3610, 1
      %v3653 = vrot.slane %v3611, 1
      %v3654 = vsel %vm1822, %v3652, %v3653
      %v3655 = vrot.slane %v3612, 1
      %v3656 = vrot.slane %v3613, 1
      %v3657 = vsel %vm1822, %v3655, %v3656
      %v3658 = vrot.slane %v3614, 1
      %v3659 = vrot.slane %v3615, 1
      %v3660 = vsel %vm1822, %v3658, %v3659
      %v3661 = vrot.slane %v3616, 1
      %v3662 = vrot.slane %v3617, 1
      %v3663 = vsel %vm1822, %v3661, %v3662
      %v3664 = vrot.slane %v3618, 1
      %v3665 = vrot.slane %v3619, 1
      %v3666 = vsel %vm1822, %v3664, %v3665
      %v3667 = vrot.slane %v3620, 1
      %v3668 = vrot.slane %v3621, 1
      %v3669 = vsel %vm1822, %v3667, %v3668
      %3670 = vrot.lane.b32.xlu0 %v3624, 32
      %v3671 = vpop.permute.xlu0 %3670
      %3672 = vrot.lane.b32.xlu0 %v3627, 32
      %v3673 = vpop.permute.xlu0 %3672
      %3674 = vrot.lane.b32.xlu0 %v3630, 32
      %v3675 = vpop.permute.xlu0 %3674
      %3676 = vrot.lane.b32.xlu0 %v3633, 32
      %v3677 = vpop.permute.xlu0 %3676
      %3678 = vrot.lane.b32.xlu0 %v3636, 32
      %v3679 = vpop.permute.xlu0 %3678
      %3680 = vrot.lane.b32.xlu0 %v3639, 32
      %v3681 = vpop.permute.xlu0 %3680
      %3682 = vrot.lane.b32.xlu0 %v3642, 32
      %v3683 = vpop.permute.xlu0 %3682
      %3684 = vrot.lane.b32.xlu0 %v3645, 32
      %v3685 = vpop.permute.xlu0 %3684
      %3686 = vrot.lane.b32.xlu0 %v3648, 32
      %v3687 = vpop.permute.xlu0 %3686
      %3688 = vrot.lane.b32.xlu0 %v3651, 32
      %v3689 = vpop.permute.xlu0 %3688
      %3690 = vrot.lane.b32.xlu0 %v3654, 32
      %v3691 = vpop.permute.xlu0 %3690
      %3692 = vrot.lane.b32.xlu0 %v3657, 32
      %v3693 = vpop.permute.xlu0 %3692
      %3694 = vrot.lane.b32.xlu0 %v3660, 32
      %v3695 = vpop.permute.xlu0 %3694
      %3696 = vrot.lane.b32.xlu0 %v3663, 32
      %v3697 = vpop.permute.xlu0 %3696
      %3698 = vrot.lane.b32.xlu0 %v3666, 32
      %v3699 = vpop.permute.xlu0 %3698
      %3700 = vrot.lane.b32.xlu0 %v3669, 32
      %v3701 = vpop.permute.xlu0 %3700
      %vm3718 = vcmask 294144
      %3719 = vst.msk [vmem:[#allocation3] sm:$0xff] %vm3718, %v3671
      %3720 = vst.msk [vmem:[#allocation3 + $0x8] sm:$0xff] %vm3718, %v3673
      %3721 = vst.msk [vmem:[#allocation3 + $0x10] sm:$0xff] %vm3718, %v3675
      %3722 = vst.msk [vmem:[#allocation3 + $0x18] sm:$0xff] %vm3718, %v3677
      %3723 = vst.msk [vmem:[#allocation3 + $0x20] sm:$0xff] %vm3718, %v3679
      %3724 = vst.msk [vmem:[#allocation3 + $0x28] sm:$0xff] %vm3718, %v3681
      %3725 = vst.msk [vmem:[#allocation3 + $0x30] sm:$0xff] %vm3718, %v3683
      %3726 = vst.msk [vmem:[#allocation3 + $0x38] sm:$0xff] %vm3718, %v3685
      %3727 = vst.msk [vmem:[#allocation3 + $0x40] sm:$0xff] %vm3718, %v3687
      %3728 = vst.msk [vmem:[#allocation3 + $0x48] sm:$0xff] %vm3718, %v3689
      %3729 = vst.msk [vmem:[#allocation3 + $0x50] sm:$0xff] %vm3718, %v3691
      %3730 = vst.msk [vmem:[#allocation3 + $0x58] sm:$0xff] %vm3718, %v3693
      %3731 = vst.msk [vmem:[#allocation3 + $0x60] sm:$0xff] %vm3718, %v3695
      %3732 = vst.msk [vmem:[#allocation3 + $0x68] sm:$0xff] %vm3718, %v3697
      %3733 = vst.msk [vmem:[#allocation3 + $0x70] sm:$0xff] %vm3718, %v3699
      %3734 = vst.msk [vmem:[#allocation3 + $0x78] sm:$0xff] %vm3718, %v3701
      %v3735 = vld [vmem:[#allocation3] sm:$0xff]
      %v3736 = vld [vmem:[#allocation3 + $0x8] sm:$0xff]
      %v3737 = vld [vmem:[#allocation3 + $0x10] sm:$0xff]
      %v3738 = vld [vmem:[#allocation3 + $0x18] sm:$0xff]
      %v3739 = vld [vmem:[#allocation3 + $0x20] sm:$0xff]
      %v3740 = vld [vmem:[#allocation3 + $0x28] sm:$0xff]
      %v3741 = vld [vmem:[#allocation3 + $0x30] sm:$0xff]
      %v3742 = vld [vmem:[#allocation3 + $0x38] sm:$0xff]
      %v3743 = vld [vmem:[#allocation3 + $0x40] sm:$0xff]
      %v3744 = vld [vmem:[#allocation3 + $0x48] sm:$0xff]
      %v3745 = vld [vmem:[#allocation3 + $0x50] sm:$0xff]
      %v3746 = vld [vmem:[#allocation3 + $0x58] sm:$0xff]
      %v3747 = vld [vmem:[#allocation3 + $0x60] sm:$0xff]
      %v3748 = vld [vmem:[#allocation3 + $0x68] sm:$0xff]
      %v3749 = vld [vmem:[#allocation3 + $0x70] sm:$0xff]
      %v3750 = vld [vmem:[#allocation3 + $0x78] sm:$0xff]
      %v3751 = vld [vmem:[%s3] sm:$0xf]
      %v3752 = vld [vmem:[%s3 + $0x4] sm:$0xf]
      %v3753 = vld [vmem:[%s3 + $0x8] sm:$0xf]
      %v3754 = vld [vmem:[%s3 + $0xc] sm:$0xf]
      %v3755 = vld [vmem:[%s3 + $0x10] sm:$0x3]
      %v3761 = vunpack.c.l.b16 %v3751
      %v3762 = vunpack.c.l.b16 %v3752
      %v3763 = vunpack.c.l.b16 %v3753
      %v3764 = vunpack.c.l.b16 %v3754
      %v3765 = vunpack.c.l.b16 %v3755
      %v3766 = vpack.c.b16 %v3762, %v3761
      %v3767 = vpack.c.b16 %v3764, %v3763
      %v3768 = vpack.c.b16 %v3765, %v3765
      %vm3771 = vcmask 293888
      %v3773 = vsel %vm3771, %v3735, 0
      %v3776 = vsel %vm3771, %v3736, 0
      %v3779 = vsel %vm3771, %v3737, 0
      %v3782 = vsel %vm3771, %v3738, 0
      %v3785 = vsel %vm3771, %v3739, 0
      %v3788 = vsel %vm3771, %v3740, 0
      %v3791 = vsel %vm3771, %v3741, 0
      %v3794 = vsel %vm3771, %v3742, 0
      %v3797 = vsel %vm3771, %v3743, 0
      %v3800 = vsel %vm3771, %v3744, 0
      %v3803 = vsel %vm3771, %v3745, 0
      %v3806 = vsel %vm3771, %v3746, 0
      %v3809 = vsel %vm3771, %v3747, 0
      %v3812 = vsel %vm3771, %v3748, 0
      %v3815 = vsel %vm3771, %v3749, 0
      %v3818 = vsel %vm3771, %v3750, 0
      %vm3820 = vcmask 1041408
      %v3822 = vsel %vm3820, %v3768, 0
      %3824 = vmatprep.subr.bf16.mxu0 0
      %3825 = vmatpush1.bf16.msra.mxu0 %v3766
      %3826 = vmatprep.subr.bf16.mxu0 0
      %3827 = vmatpush1.bf16.msra.mxu0 %v3767
      %3828 = vmatprep.subr.bf16.mxu0 0
      %3829 = vmatpush1.bf16.msra.mxu0 %v3822
      %3830 = vmatprep.subr.bf16.mxu0 0
      %3831 = vmatpush1.bf16.msra.mxu0 0
      %3832 = vmatprep.subr.bf16.mxu0 0
      %3833 = vmatpush1.bf16.msra.mxu0 0
      %3834 = vmatprep.subr.bf16.mxu0 0
      %3835 = vmatpush1.bf16.msra.mxu0 0
      %3836 = vmatprep.subr.bf16.mxu0 0
      %3837 = vmatpush1.bf16.msra.mxu0 0
      %3838 = vmatprep.subr.bf16.mxu0 0
      %3839 = vmatpush1.bf16.msra.mxu0 0
      %3840 = vmatprep.subr.bf16.mxu0 0
      %3841 = vmatpush1.bf16.msra.mxu0 0
      %3842 = vmatprep.subr.bf16.mxu0 0
      %3843 = vmatpush1.bf16.msra.mxu0 0
      %3844 = vmatprep.subr.bf16.mxu0 0
      %3845 = vmatpush1.bf16.msra.mxu0 0
      %3846 = vmatprep.subr.bf16.mxu0 0
      %3847 = vmatpush1.bf16.msra.mxu0 0
      %3848 = vmatprep.subr.bf16.mxu0 0
      %3849 = vmatpush1.bf16.msra.mxu0 0
      %3850 = vmatprep.subr.bf16.mxu0 0
      %3851 = vmatpush1.bf16.msra.mxu0 0
      %3852 = vmatprep.subr.bf16.mxu0 0
      %3853 = vmatpush1.bf16.msra.mxu0 0
      %3854 = vmatprep.subr.bf16.mxu0 0
      %3855 = vmatpush1.bf16.msra.mxu0 0
      %3856 = vmatprep.mubr.bf16.mxu0 0
      %3857 = vmatmul.mubr.bf16.gmra.mrb[0].mxu0 %v3773
      %v3858 = vpop.f32.mrb[0].mxu0
      %v3859 = vadd.f32 0.0, %v3858
      %v3860 = vpop.f32.mrb[0].mxu0
      %v3861 = vpop.f32.mrb[0].mxu0
      %v3862 = vadd.f32 0.0, %v3861
      %v3863 = vpop.f32.mrb[0].mxu0
      %3864 = vmatprep.mubr.bf16.mxu0 0
      %3865 = vmatmul.mubr.bf16.gmra.mrb[0].mxu0 %v3776
      %v3866 = vpop.f32.mrb[0].mxu0
      %v3867 = vadd.f32 0.0, %v3866
      %v3868 = vpop.f32.mrb[0].mxu0
      %v3869 = vpop.f32.mrb[0].mxu0
      %v3870 = vadd.f32 0.0, %v3869
      %v3871 = vpop.f32.mrb[0].mxu0
      %3872 = vmatprep.mubr.bf16.mxu0 0
      %3873 = vmatmul.mubr.bf16.gmra.mrb[0].mxu0 %v3779
      %v3874 = vpop.f32.mrb[0].mxu0
      %v3875 = vadd.f32 0.0, %v3874
      %v3876 = vpop.f32.mrb[0].mxu0
      %v3877 = vpop.f32.mrb[0].mxu0
      %v3878 = vadd.f32 0.0, %v3877
      %v3879 = vpop.f32.mrb[0].mxu0
      %3880 = vmatprep.mubr.bf16.mxu0 0
      %3881 = vmatmul.mubr.bf16.gmra.mrb[0].mxu0 %v3782
      %v3882 = vpop.f32.mrb[0].mxu0
      %v3883 = vadd.f32 0.0, %v3882
      %v3884 = vpop.f32.mrb[0].mxu0
      %v3885 = vpop.f32.mrb[0].mxu0
      %v3886 = vadd.f32 0.0, %v3885
      %v3887 = vpop.f32.mrb[0].mxu0
      %3888 = vmatprep.mubr.bf16.mxu0 0
      %3889 = vmatmul.mubr.bf16.gmra.mrb[0].mxu0 %v3785
      %v3890 = vpop.f32.mrb[0].mxu0
      %v3891 = vadd.f32 0.0, %v3890
      %v3892 = vpop.f32.mrb[0].mxu0
      %v3893 = vpop.f32.mrb[0].mxu0
      %v3894 = vadd.f32 0.0, %v3893
      %v3895 = vpop.f32.mrb[0].mxu0
      %3896 = vmatprep.mubr.bf16.mxu0 0
      %3897 = vmatmul.mubr.bf16.gmra.mrb[0].mxu0 %v3788
      %v3898 = vpop.f32.mrb[0].mxu0
      %v3899 = vadd.f32 0.0, %v3898
      %v3900 = vpop.f32.mrb[0].mxu0
      %v3901 = vpop.f32.mrb[0].mxu0
      %v3902 = vadd.f32 0.0, %v3901
      %v3903 = vpop.f32.mrb[0].mxu0
      %3904 = vmatprep.mubr.bf16.mxu0 0
      %3905 = vmatmul.mubr.bf16.gmra.mrb[0].mxu0 %v3791
      %v3906 = vpop.f32.mrb[0].mxu0
      %v3907 = vadd.f32 0.0, %v3906
      %v3908 = vpop.f32.mrb[0].mxu0
      %v3909 = vpop.f32.mrb[0].mxu0
      %v3910 = vadd.f32 0.0, %v3909
      %v3911 = vpop.f32.mrb[0].mxu0
      %3912 = vmatprep.mubr.bf16.mxu0 0
      %3913 = vmatmul.mubr.bf16.gmra.mrb[0].mxu0 %v3794
      %v3914 = vpop.f32.mrb[0].mxu0
      %v3915 = vadd.f32 0.0, %v3914
      %v3916 = vpop.f32.mrb[0].mxu0
      %v3917 = vpop.f32.mrb[0].mxu0
      %v3918 = vadd.f32 0.0, %v3917
      %v3919 = vpop.f32.mrb[0].mxu0
      %3920 = vmatprep.mubr.bf16.mxu0 0
      %3921 = vmatmul.mubr.bf16.gmra.mrb[0].mxu0 %v3797
      %v3922 = vpop.f32.mrb[0].mxu0
      %v3923 = vadd.f32 0.0, %v3922
      %v3924 = vpop.f32.mrb[0].mxu0
      %v3925 = vpop.f32.mrb[0].mxu0
      %v3926 = vadd.f32 0.0, %v3925
      %v3927 = vpop.f32.mrb[0].mxu0
      %3928 = vmatprep.mubr.bf16.mxu0 0
      %3929 = vmatmul.mubr.bf16.gmra.mrb[0].mxu0 %v3800
      %v3930 = vpop.f32.mrb[0].mxu0
      %v3931 = vadd.f32 0.0, %v3930
      %v3932 = vpop.f32.mrb[0].mxu0
      %v3933 = vpop.f32.mrb[0].mxu0
      %v3934 = vadd.f32 0.0, %v3933
      %v3935 = vpop.f32.mrb[0].mxu0
      %3936 = vmatprep.mubr.bf16.mxu0 0
      %3937 = vmatmul.mubr.bf16.gmra.mrb[0].mxu0 %v3803
      %v3938 = vpop.f32.mrb[0].mxu0
      %v3939 = vadd.f32 0.0, %v3938
      %v3940 = vpop.f32.mrb[0].mxu0
      %v3941 = vpop.f32.mrb[0].mxu0
      %v3942 = vadd.f32 0.0, %v3941
      %v3943 = vpop.f32.mrb[0].mxu0
      %3944 = vmatprep.mubr.bf16.mxu0 0
      %3945 = vmatmul.mubr.bf16.gmra.mrb[0].mxu0 %v3806
      %v3946 = vpop.f32.mrb[0].mxu0
      %v3947 = vadd.f32 0.0, %v3946
      %v3948 = vpop.f32.mrb[0].mxu0
      %v3949 = vpop.f32.mrb[0].mxu0
      %v3950 = vadd.f32 0.0, %v3949
      %v3951 = vpop.f32.mrb[0].mxu0
      %3952 = vmatprep.mubr.bf16.mxu0 0
      %3953 = vmatmul.mubr.bf16.gmra.mrb[0].mxu0 %v3809
      %v3954 = vpop.f32.mrb[0].mxu0
      %v3955 = vadd.f32 0.0, %v3954
      %v3956 = vpop.f32.mrb[0].mxu0
      %v3957 = vpop.f32.mrb[0].mxu0
      %v3958 = vadd.f32 0.0, %v3957
      %v3959 = vpop.f32.mrb[0].mxu0
      %3960 = vmatprep.mubr.bf16.mxu0 0
      %3961 = vmatmul.mubr.bf16.gmra.mrb[0].mxu0 %v3812
      %v3962 = vpop.f32.mrb[0].mxu0
      %v3963 = vadd.f32 0.0, %v3962
      %v3964 = vpop.f32.mrb[0].mxu0
      %v3965 = vpop.f32.mrb[0].mxu0
      %v3966 = vadd.f32 0.0, %v3965
      %v3967 = vpop.f32.mrb[0].mxu0
      %3968 = vmatprep.mubr.bf16.mxu0 0
      %3969 = vmatmul.mubr.bf16.gmra.mrb[0].mxu0 %v3815
      %v3970 = vpop.f32.mrb[0].mxu0
      %v3971 = vadd.f32 0.0, %v3970
      %v3972 = vpop.f32.mrb[0].mxu0
      %v3973 = vpop.f32.mrb[0].mxu0
      %v3974 = vadd.f32 0.0, %v3973
      %v3975 = vpop.f32.mrb[0].mxu0
      %3976 = vmatprep.mubr.bf16.mxu0 0
      %3977 = vmatmul.mubr.bf16.gmra.mrb[0].mxu0 %v3818
      %v3978 = vpop.f32.mrb[0].mxu0
      %v3979 = vadd.f32 0.0, %v3978
      %v3980 = vpop.f32.mrb[0].mxu0
      %v3981 = vpop.f32.mrb[0].mxu0
      %v3982 = vadd.f32 0.0, %v3981
      %v3983 = vpop.f32.mrb[0].mxu0
      %3984 = vdwg.mxu0
      %3985 = vst.msk [vmem:[%s262] sm:$0xff] %vm1195, %v3859
      %3986 = vst.msk [vmem:[%s262 + $0x8] sm:$0xff] %vm1195, %v3862
      %3987 = vst.msk [vmem:[%s262 + $0x10] sm:$0xff] %vm1195, %v3867
      %3988 = vst.msk [vmem:[%s262 + $0x18] sm:$0xff] %vm1195, %v3870
      %3989 = vst.msk [vmem:[%s262 + $0x20] sm:$0xff] %vm1195, %v3875
      %3990 = vst.msk [vmem:[%s262 + $0x28] sm:$0xff] %vm1195, %v3878
      %3991 = vst.msk [vmem:[%s262 + $0x30] sm:$0xff] %vm1195, %v3883
      %3992 = vst.msk [vmem:[%s262 + $0x38] sm:$0xff] %vm1195, %v3886
      %3993 = vst.msk [vmem:[%s262 + $0x40] sm:$0xff] %vm1195, %v3891
      %3994 = vst.msk [vmem:[%s262 + $0x48] sm:$0xff] %vm1195, %v3894
      %3995 = vst.msk [vmem:[%s262 + $0x50] sm:$0xff] %vm1195, %v3899
      %3996 = vst.msk [vmem:[%s262 + $0x58] sm:$0xff] %vm1195, %v3902
      %3997 = vst.msk [vmem:[%s262 + $0x60] sm:$0xff] %vm1195, %v3907
      %3998 = vst.msk [vmem:[%s262 + $0x68] sm:$0xff] %vm1195, %v3910
      %3999 = vst.msk [vmem:[%s262 + $0x70] sm:$0xff] %vm1195, %v3915
      %4000 = vst.msk [vmem:[%s262 + $0x78] sm:$0xff] %vm1195, %v3918
      %4001 = vst.msk [vmem:[%s262 + $0x80] sm:$0xff] %vm1195, %v3923
      %4002 = vst.msk [vmem:[%s262 + $0x88] sm:$0xff] %vm1195, %v3926
      %4003 = vst.msk [vmem:[%s262 + $0x90] sm:$0xff] %vm1195, %v3931
      %4004 = vst.msk [vmem:[%s262 + $0x98] sm:$0xff] %vm1195, %v3934
      %4005 = vst.msk [vmem:[%s262 + $0xa0] sm:$0xff] %vm1195, %v3939
      %4006 = vst.msk [vmem:[%s262 + $0xa8] sm:$0xff] %vm1195, %v3942
      %4007 = vst.msk [vmem:[%s262 + $0xb0] sm:$0xff] %vm1195, %v3947
      %4008 = vst.msk [vmem:[%s262 + $0xb8] sm:$0xff] %vm1195, %v3950
      %4009 = vst.msk [vmem:[%s262 + $0xc0] sm:$0xff] %vm1195, %v3955
      %4010 = vst.msk [vmem:[%s262 + $0xc8] sm:$0xff] %vm1195, %v3958
      %4011 = vst.msk [vmem:[%s262 + $0xd0] sm:$0xff] %vm1195, %v3963
      %4012 = vst.msk [vmem:[%s262 + $0xd8] sm:$0xff] %vm1195, %v3966
      %4013 = vst.msk [vmem:[%s262 + $0xe0] sm:$0xff] %vm1195, %v3971
      %4014 = vst.msk [vmem:[%s262 + $0xe8] sm:$0xff] %vm1195, %v3974
      %4015 = vst.msk [vmem:[%s262 + $0xf0] sm:$0xff] %vm1195, %v3979
      %4016 = vst.msk [vmem:[%s262 + $0xf8] sm:$0xff] %vm1195, %v3982
      %v4017 = vsel %vm1195, %v3859, 0.0
      %v4018 = vsel %vm1195, %v3862, 0.0
      %v4019 = vadd.f32 %v4017, %v4018
      %v4020 = vsel %vm1195, %v3867, 0.0
      %v4021 = vadd.f32 %v4019, %v4020
      %v4022 = vsel %vm1195, %v3870, 0.0
      %v4023 = vadd.f32 %v4021, %v4022
      %v4024 = vsel %vm1195, %v3875, 0.0
      %v4025 = vadd.f32 %v4023, %v4024
      %v4026 = vsel %vm1195, %v3878, 0.0
      %v4027 = vadd.f32 %v4025, %v4026
      %v4028 = vsel %vm1195, %v3883, 0.0
      %v4029 = vadd.f32 %v4027, %v4028
      %v4030 = vsel %vm1195, %v3886, 0.0
      %v4031 = vadd.f32 %v4029, %v4030
      %v4032 = vsel %vm1195, %v3891, 0.0
      %v4033 = vadd.f32 %v4031, %v4032
      %v4034 = vsel %vm1195, %v3894, 0.0
      %v4035 = vadd.f32 %v4033, %v4034
      %v4036 = vsel %vm1195, %v3899, 0.0
      %v4037 = vadd.f32 %v4035, %v4036
      %v4038 = vsel %vm1195, %v3902, 0.0
      %v4039 = vadd.f32 %v4037, %v4038
      %v4040 = vsel %vm1195, %v3907, 0.0
      %v4041 = vadd.f32 %v4039, %v4040
      %v4042 = vsel %vm1195, %v3910, 0.0
      %v4043 = vadd.f32 %v4041, %v4042
      %v4044 = vsel %vm1195, %v3915, 0.0
      %v4045 = vadd.f32 %v4043, %v4044
      %v4046 = vsel %vm1195, %v3918, 0.0
      %v4047 = vadd.f32 %v4045, %v4046
      %v4048 = vsel %vm1195, %v3923, 0.0
      %v4049 = vadd.f32 %v4047, %v4048
      %v4050 = vsel %vm1195, %v3926, 0.0
      %v4051 = vadd.f32 %v4049, %v4050
      %v4052 = vsel %vm1195, %v3931, 0.0
      %v4053 = vadd.f32 %v4051, %v4052
      %v4054 = vsel %vm1195, %v3934, 0.0
      %v4055 = vadd.f32 %v4053, %v4054
      %v4056 = vsel %vm1195, %v3939, 0.0
      %v4057 = vadd.f32 %v4055, %v4056
      %v4058 = vsel %vm1195, %v3942, 0.0
      %v4059 = vadd.f32 %v4057, %v4058
      %v4060 = vsel %vm1195, %v3947, 0.0
      %v4061 = vadd.f32 %v4059, %v4060
      %v4062 = vsel %vm1195, %v3950, 0.0
      %v4063 = vadd.f32 %v4061, %v4062
      %v4064 = vsel %vm1195, %v3955, 0.0
      %v4065 = vadd.f32 %v4063, %v4064
      %v4066 = vsel %vm1195, %v3958, 0.0
      %v4067 = vadd.f32 %v4065, %v4066
      %v4068 = vsel %vm1195, %v3963, 0.0
      %v4069 = vadd.f32 %v4067, %v4068
      %v4070 = vsel %vm1195, %v3966, 0.0
      %v4071 = vadd.f32 %v4069, %v4070
      %v4072 = vsel %vm1195, %v3971, 0.0
      %v4073 = vadd.f32 %v4071, %v4072
      %v4074 = vsel %vm1195, %v3974, 0.0
      %v4075 = vadd.f32 %v4073, %v4074
      %v4076 = vsel %vm1195, %v3979, 0.0
      %v4077 = vadd.f32 %v4075, %v4076
      %v4078 = vsel %vm1195, %v3982, 0.0
      %v4079 = vadd.f32 %v4077, %v4078
      %v4080 = vrot.slane %v4079, 4
      %v4081 = vadd.f32 %v4079, %v4080
      %v4082 = vrot.slane %v4081, 2
      %v4083 = vadd.f32 %v4081, %v4082
      %v4084 = vrot.slane %v4083, 1
      %v4085 = vadd.f32 %v4083, %v4084
      %4086 = vst.msk [vmem:[%s265] sm:$0x1] %vm415, %v4085
      %v4087 = vmul.f32 %v3859, %v3859
      %v4088 = vmul.f32 %v3862, %v3862
      %v4089 = vmul.f32 %v3867, %v3867
      %v4090 = vmul.f32 %v3870, %v3870
      %v4091 = vmul.f32 %v3875, %v3875
      %v4092 = vmul.f32 %v3878, %v3878
      %v4093 = vmul.f32 %v3883, %v3883
      %v4094 = vmul.f32 %v3886, %v3886
      %v4095 = vmul.f32 %v3891, %v3891
      %v4096 = vmul.f32 %v3894, %v3894
      %v4097 = vmul.f32 %v3899, %v3899
      %v4098 = vmul.f32 %v3902, %v3902
      %v4099 = vmul.f32 %v3907, %v3907
      %v4100 = vmul.f32 %v3910, %v3910
      %v4101 = vmul.f32 %v3915, %v3915
      %v4102 = vmul.f32 %v3918, %v3918
      %v4103 = vmul.f32 %v3923, %v3923
      %v4104 = vmul.f32 %v3926, %v3926
      %v4105 = vmul.f32 %v3931, %v3931
      %v4106 = vmul.f32 %v3934, %v3934
      %v4107 = vmul.f32 %v3939, %v3939
      %v4108 = vmul.f32 %v3942, %v3942
      %v4109 = vmul.f32 %v3947, %v3947
      %v4110 = vmul.f32 %v3950, %v3950
      %v4111 = vmul.f32 %v3955, %v3955
      %v4112 = vmul.f32 %v3958, %v3958
      %v4113 = vmul.f32 %v3963, %v3963
      %v4114 = vmul.f32 %v3966, %v3966
      %v4115 = vmul.f32 %v3971, %v3971
      %v4116 = vmul.f32 %v3974, %v3974
      %v4117 = vmul.f32 %v3979, %v3979
      %v4118 = vmul.f32 %v3982, %v3982
      %v4119 = vsel %vm1195, %v4087, 0.0
      %v4120 = vsel %vm1195, %v4088, 0.0
      %v4121 = vadd.f32 %v4119, %v4120
      %v4122 = vsel %vm1195, %v4089, 0.0
      %v4123 = vadd.f32 %v4121, %v4122
      %v4124 = vsel %vm1195, %v4090, 0.0
      %v4125 = vadd.f32 %v4123, %v4124
      %v4126 = vsel %vm1195, %v4091, 0.0
      %v4127 = vadd.f32 %v4125, %v4126
      %v4128 = vsel %vm1195, %v4092, 0.0
      %v4129 = vadd.f32 %v4127, %v4128
      %v4130 = vsel %vm1195, %v4093, 0.0
      %v4131 = vadd.f32 %v4129, %v4130
      %v4132 = vsel %vm1195, %v4094, 0.0
      %v4133 = vadd.f32 %v4131, %v4132
      %v4134 = vsel %vm1195, %v4095, 0.0
      %v4135 = vadd.f32 %v4133, %v4134
      %v4136 = vsel %vm1195, %v4096, 0.0
      %v4137 = vadd.f32 %v4135, %v4136
      %v4138 = vsel %vm1195, %v4097, 0.0
      %v4139 = vadd.f32 %v4137, %v4138
      %v4140 = vsel %vm1195, %v4098, 0.0
      %v4141 = vadd.f32 %v4139, %v4140
      %v4142 = vsel %vm1195, %v4099, 0.0
      %v4143 = vadd.f32 %v4141, %v4142
      %v4144 = vsel %vm1195, %v4100, 0.0
      %v4145 = vadd.f32 %v4143, %v4144
      %v4146 = vsel %vm1195, %v4101, 0.0
      %v4147 = vadd.f32 %v4145, %v4146
      %v4148 = vsel %vm1195, %v4102, 0.0
      %v4149 = vadd.f32 %v4147, %v4148
      %v4150 = vsel %vm1195, %v4103, 0.0
      %v4151 = vadd.f32 %v4149, %v4150
      %v4152 = vsel %vm1195, %v4104, 0.0
      %v4153 = vadd.f32 %v4151, %v4152
      %v4154 = vsel %vm1195, %v4105, 0.0
      %v4155 = vadd.f32 %v4153, %v4154
      %v4156 = vsel %vm1195, %v4106, 0.0
      %v4157 = vadd.f32 %v4155, %v4156
      %v4158 = vsel %vm1195, %v4107, 0.0
      %v4159 = vadd.f32 %v4157, %v4158
      %v4160 = vsel %vm1195, %v4108, 0.0
      %v4161 = vadd.f32 %v4159, %v4160
      %v4162 = vsel %vm1195, %v4109, 0.0
      %v4163 = vadd.f32 %v4161, %v4162
      %v4164 = vsel %vm1195, %v4110, 0.0
      %v4165 = vadd.f32 %v4163, %v4164
      %v4166 = vsel %vm1195, %v4111, 0.0
      %v4167 = vadd.f32 %v4165, %v4166
      %v4168 = vsel %vm1195, %v4112, 0.0
      %v4169 = vadd.f32 %v4167, %v4168
      %v4170 = vsel %vm1195, %v4113, 0.0
      %v4171 = vadd.f32 %v4169, %v4170
      %v4172 = vsel %vm1195, %v4114, 0.0
      %v4173 = vadd.f32 %v4171, %v4172
      %v4174 = vsel %vm1195, %v4115, 0.0
      %v4175 = vadd.f32 %v4173, %v4174
      %v4176 = vsel %vm1195, %v4116, 0.0
      %v4177 = vadd.f32 %v4175, %v4176
      %v4178 = vsel %vm1195, %v4117, 0.0
      %v4179 = vadd.f32 %v4177, %v4178
      %v4180 = vsel %vm1195, %v4118, 0.0
      %v4181 = vadd.f32 %v4179, %v4180
      %v4182 = vrot.slane %v4181, 4
      %v4183 = vadd.f32 %v4181, %v4182
      %v4184 = vrot.slane %v4183, 2
      %v4185 = vadd.f32 %v4183, %v4184
      %v4186 = vrot.slane %v4185, 1
      %v4187 = vadd.f32 %v4185, %v4186
      %4188 = vst.msk [vmem:[%s268] sm:$0x1] %vm415, %v4187
      %p4189 = scmp.lt.s32.totalorder %s18, 1
      %s4190 = scalar_select %p4189, %s18, 1
      %s4191 = smul.addr %s4190, 32
      %s4192 = smul.addr %s4191, 8
      %s4193 = scalar_lea.vmem %s4, %s4192
      %p4194 = scmp.lt.s32.totalorder %s18, 1
      %s4195 = scalar_select %p4194, %s18, 1
      %s4196 = scalar_lea.vmem %s5, %s4195
      %p4197 = scmp.lt.s32.totalorder %s18, 1
      %s4198 = scalar_select %p4197, %s18, 1
      %s4199 = scalar_lea.vmem %s6, %s4198
      // Predicated region
      $region37: #{preact_block_mr_forward.2} parent=35 // pred_check
        %p4200 = pneg %p125
      $region38: #{preact_block_mr_forward.2} parent=35 // pred_check_branch
        %4202 = sbr.rel (%p4200) target = $region40
      $region39: #{preact_block_mr_forward.2} parent=35 // pred_region
        _
      $region40: #{preact_block_mr_forward.2} parent=35 // pred_fallthru
        _
      // Predicated region
      $region41: #{preact_block_mr_forward.2} parent=35 // pred_check
        %p4203 = pneg %p151
      $region42: #{preact_block_mr_forward.2} parent=35 // pred_check_branch
        %4205 = sbr.rel (%p4203) target = $region44
      $region43: #{preact_block_mr_forward.2} parent=35 // pred_region
        _
      $region44: #{preact_block_mr_forward.2} parent=35 // pred_fallthru
        _
      // Predicated region
      $region45: #{preact_block_mr_forward.2} parent=35 // pred_check
        %p4206 = pneg %p177
      $region46: #{preact_block_mr_forward.2} parent=35 // pred_check_branch
        %4208 = sbr.rel (%p4206) target = $region48
      $region47: #{preact_block_mr_forward.2} parent=35 // pred_region
        _
      $region48: #{preact_block_mr_forward.2} parent=35 // pred_fallthru
        _
    $region36: #{preact_block_mr_forward.2} parent=5 // pred_fallthru
      _
    %p4209 = scmp.le.s32.totalorder 2, %s13
    // Predicated region
    $region49: #{preact_block_mr_forward.2} parent=5 // pred_check
      %p4210 = pneg %p4209
    $region50: #{preact_block_mr_forward.2} parent=5 // pred_check_branch
      %4212 = sbr.rel (%p4210) target = $region52
    $region51: #{preact_block_mr_forward.2} parent=5 // pred_region
      %s4213 = ssub.s32 %s13, 2
      // Predicated region
      $region53: #{preact_block_mr_forward.2} parent=51 // pred_check
        %p4214 = pneg %p131
      $region54: #{preact_block_mr_forward.2} parent=51 // pred_check_branch
        %4216 = sbr.rel (%p4214) target = $region56
      $region55: #{preact_block_mr_forward.2} parent=51 // pred_region
        %p4217 = scmp.lt.s32.totalorder %s19, 1
        %s4218 = scalar_select %p4217, %s19, 1
        %s4219 = smul.addr %s4218, 32
        %s4220 = smul.addr %s4219, 8
        %s4221 = scalar_lea.vmem %s4, %s4220
      $region56: #{preact_block_mr_forward.2} parent=51 // pred_fallthru
        _
      // Predicated region
      $region57: #{preact_block_mr_forward.2} parent=51 // pred_check
        %p4222 = pneg %p157
      $region58: #{preact_block_mr_forward.2} parent=51 // pred_check_branch
        %4224 = sbr.rel (%p4222) target = $region60
      $region59: #{preact_block_mr_forward.2} parent=51 // pred_region
        %p4225 = scmp.lt.s32.totalorder %s19, 1
        %s4226 = scalar_select %p4225, %s19, 1
        %s4227 = scalar_lea.vmem %s5, %s4226
      $region60: #{preact_block_mr_forward.2} parent=51 // pred_fallthru
        _
      // Predicated region
      $region61: #{preact_block_mr_forward.2} parent=51 // pred_check
        %p4228 = pneg %p183
      $region62: #{preact_block_mr_forward.2} parent=51 // pred_check_branch
        %4230 = sbr.rel (%p4228) target = $region64
      $region63: #{preact_block_mr_forward.2} parent=51 // pred_region
        %p4231 = scmp.lt.s32.totalorder %s19, 1
        %s4232 = scalar_select %p4231, %s19, 1
        %s4233 = scalar_lea.vmem %s6, %s4232
      $region64: #{preact_block_mr_forward.2} parent=51 // pred_fallthru
        _
    $region52: #{preact_block_mr_forward.2} parent=5 // pred_fallthru
      _
  $region6: #{preact_block_mr_forward.2} parent=0 // loop_footer
    %s17 = sadd.s32 1, %s13
  $region7: #{preact_block_mr_forward.2} parent=0 // loop_footer_branch
    %12 = sbr.rel target = $region3
  $region8: #{preact_block_mr_forward.2} parent=0 // loop_exit
    _

</llo_original>
